<compile_context>
chip_gen: v7x
topology: tpu7x:2x2x1
jax: 0.10.0
libtpu: 0.0.40
codegen_flags: <defaults>
</compile_context>

<pallas_src>
import functools
import math

import jax
import jax.numpy as jnp
from jax.experimental import pallas as pl
from jax.experimental.pallas import tpu as pltpu

# ----------------------------- model sizes (small) --------------------------
IMG_SIZE = 32          # image_encoder.img_size
PATCH = 8
VIT_DIM = 32
VIT_HEADS = 2
VIT_MLP = 64
C_EMB = 16             # image embedding channels (transformer dim in decoder)
EMB_HW = IMG_SIZE // PATCH          # 4
MAX_PTS = 6            # decoder_max_num_input_points
NUM_MASK_TOKENS = 4    # 3 multimask outputs + 1
DEC_HEADS = 2
DEC_MLP = 32
C4 = C_EMB // 4        # 4
C8 = C_EMB // 8        # 2

_VMEM = pl.BlockSpec(memory_space=pltpu.MemorySpace.VMEM)


# --------------------------- spec / call helpers -----------------------------
def _full_spec(shape):
    nd = len(shape)
    return pl.BlockSpec(tuple(shape), lambda *_: (0,) * nd)


def _batch_spec(shape):
    nd = len(shape)
    return pl.BlockSpec((1,) + tuple(shape[1:]), lambda b: (b,) + (0,) * (nd - 1))


def _batched_pallas(kernel, batched_in, shared_in, out_shapes, grid_size):
    """One pallas_call gridded over the leading (batch) dim; the grid axis is
    marked 'parallel' so megacore / dual-TC parts can split it."""
    in_specs = ([_batch_spec(a.shape) for a in batched_in]
                + [_full_spec(a.shape) for a in shared_in])
    multi = isinstance(out_shapes, (tuple, list))
    outs = tuple(out_shapes) if multi else (out_shapes,)
    out_specs = tuple(_batch_spec(s.shape) for s in outs)
    fn = pl.pallas_call(
        kernel,
        out_shape=outs if multi else outs[0],
        grid=(grid_size,),
        in_specs=in_specs,
        out_specs=out_specs if multi else out_specs[0],
        compiler_params=pltpu.CompilerParams(dimension_semantics=("parallel",)),
    )
    return fn(*batched_in, *shared_in)


# --------------------------- in-kernel math helpers ---------------------------
def _mxdot(a, b):
    """MXU matmul: bf16 operands, f32 accumulation."""
    return jnp.dot(a.astype(jnp.bfloat16), b.astype(jnp.bfloat16),
                   preferred_element_type=jnp.float32)


def _mxdot_t(a, b):
    """a (M,K) @ b(N,K)^T -> (M,N); contraction on last dims (no explicit .T)."""
    return jax.lax.dot_general(
        a.astype(jnp.bfloat16), b.astype(jnp.bfloat16),
        (((1,), (1,)), ((), ())), preferred_element_type=jnp.float32)


def _softmax(s):
    s = s - jnp.max(s, axis=-1, keepdims=True)
    p = jnp.exp(s)
    return p * pl.reciprocal(jnp.sum(p, axis=-1, keepdims=True), approx=True)


def _ln(x, g, b, eps=1e-5):
    mu = jnp.mean(x, axis=-1, keepdims=True)
    xc = x - mu
    var = jnp.mean(xc * xc, axis=-1, keepdims=True)
    return xc * jax.lax.rsqrt(var + eps) * g + b


# ------------------------------- Pallas kernels ------------------------------
def _encoder_kernel(patch_ref, mean_ref, istd_ref, pw_ref, pb_ref, pos_ref,
                    ln1g_ref, ln1b_ref, qkvw_ref, qkvb_ref, projw_ref, projb_ref,
                    ln2g_ref, ln2b_ref, mw1_ref, mb1_ref, mw2_ref, mb2_ref,
                    nw_ref, nb_ref, nlg_ref, nlb_ref, o_ref):
    """Per-image: pixel-norm + patch embed + 1 ViT block + neck, fully fused."""
    hd = VIT_DIM // VIT_HEADS
    scale = 1.0 / math.sqrt(hd)
    # pixel normalization folded into the patch features ((x-mean)*inv_std);
    # patchification is a permutation so this is mathematically identical.
    p = (patch_ref[0] - mean_ref[...]) * istd_ref[...]
    x = _mxdot(p, pw_ref[...]) + pb_ref[...] + pos_ref[...]
    # --- pre-norm multi-head self attention ---
    h = _ln(x, ln1g_ref[...], ln1b_ref[...])
    qkv = _mxdot(h, qkvw_ref[...]) + qkvb_ref[...]
    heads = []
    for i in range(VIT_HEADS):
        q = qkv[:, i * hd:(i + 1) * hd]
        k = qkv[:, VIT_DIM + i * hd:VIT_DIM + (i + 1) * hd]
        v = qkv[:, 2 * VIT_DIM + i * hd:2 * VIT_DIM + (i + 1) * hd]
        heads.append(_mxdot(_softmax(_mxdot_t(q, k) * scale), v))
    a = _mxdot(jnp.concatenate(heads, axis=-1), projw_ref[...]) + projb_ref[...]
    x = x + a
    # --- pre-norm MLP ---
    # TODO(synk): PyTorch nn.GELU defaults to exact erf; tanh approx used here.
    h = _ln(x, ln2g_ref[...], ln2b_ref[...])
    h = jax.nn.gelu(_mxdot(h, mw1_ref[...]) + mb1_ref[...], approximate=True)
    x = x + _mxdot(h, mw2_ref[...]) + mb2_ref[...]
    # --- neck: 1x1 conv (matmul) + LayerNorm2d ---
    y = _mxdot(x, nw_ref[...]) + nb_ref[...]
    o_ref[...] = _ln(y, nlg_ref[...], nlb_ref[...], eps=1e-6)[None]


def _prompt_kernel(coord_ref, lbl_ref, gauss_ref, na_ref, neg_ref, pp_ref, o_ref):
    """Random-Fourier point PE + label-dependent embeddings, fused."""
    proj = jnp.dot(coord_ref[...] * 2.0 - 1.0, gauss_ref[...],
                   preferred_element_type=jnp.float32) * (2.0 * math.pi)
    pe = jnp.concatenate([jnp.sin(proj), jnp.cos(proj)], axis=-1)
    lbl = lbl_ref[...]
    pe = jnp.where(lbl == -1.0, 0.0, pe)
    pe = pe + jnp.where(lbl == -1.0, na_ref[...], 0.0)
    pe = pe + jnp.where(lbl == 0.0, neg_ref[...], 0.0)
    pe = pe + jnp.where(lbl == 1.0, pp_ref[...], 0.0)
    o_ref[...] = pe


def _decoder_kernel(tok_ref, src_ref, pos_ref, aw_ref, ab_ref, ng_ref, nb_ref,
                    mw1_ref, mb1_ref, mw2_ref, mb2_ref, qy_ref, src_out_ref):
    """Whole (reduced) two-way transformer for one query batch element.
    TODO(synk): two-way transformer reduced to depth-1 (self, t->i, MLP, i->t)
    plus the final token->image attention, as in the previous scaffold."""
    hd = C_EMB // DEC_HEADS
    scale = 1.0 / math.sqrt(hd)

    def mha(layer, q_in, k_in, v_in):
        base = 4 * layer                      # [wq, wk, wv, wo] packed per layer
        q = _mxdot(q_in, aw_ref[base + 0]) + ab_ref[base + 0]
        k = _mxdot(k_in, aw_ref[base + 1]) + ab_ref[base + 1]
        v = _mxdot(v_in, aw_ref[base + 2]) + ab_ref[base + 2]
        outs = []
        for i in range(DEC_HEADS):
            qs = q[:, i * hd:(i + 1) * hd]
            ks = k[:, i * hd:(i + 1) * hd]
            vs = v[:, i * hd:(i + 1) * hd]
            outs.append(_mxdot(_softmax(_mxdot_t(qs, ks) * scale), vs))
        return _mxdot(jnp.concatenate(outs, axis=-1), aw_ref[base + 3]) + ab_ref[base + 3]

    qy = tok_ref[0]                           # (T, C)
    src = src_ref[0]                          # (HW, C)
    pos = pos_ref[...]                        # (HW, C)

    qy = _ln(qy + mha(0, qy, qy, qy), ng_ref[0], nb_ref[0])
    qy = _ln(qy + mha(1, qy, src + pos, src), ng_ref[1], nb_ref[1])
    m = jax.nn.gelu(_mxdot(qy, mw1_ref[...]) + mb1_ref[...], approximate=True)
    m = _mxdot(m, mw2_ref[...]) + mb2_ref[...]
    qy = _ln(qy + m, ng_ref[2], nb_ref[2])
    src = _ln(src + mha(2, src + pos, qy, qy), ng_ref[3], nb_ref[3])
    qy = _ln(qy + mha(3, qy, src + pos, src), ng_ref[4], nb_ref[4])

    qy_ref[...] = qy[None]
    src_out_ref[...] = src[None]


def _up1_kernel(x_ref, w_ref, b_ref, g_ref, bt_ref, o_ref):
    """Deconv(k=2,s=2) as matmul + per-group LayerNorm2d + GELU (pre-shuffle)."""
    y = _mxdot(x_ref[...], w_ref[...]) + b_ref[...]
    for g4 in range(4):
        c = y[:, g4 * C4:(g4 + 1) * C4]
        o_ref[:, g4 * C4:(g4 + 1) * C4] = jax.nn.gelu(
            _ln(c, g_ref[...], bt_ref[...], eps=1e-6), approximate=True)


def _up2_kernel(x_ref, w_ref, b_ref, o_ref):
    o_ref[...] = jax.nn.gelu(_mxdot(x_ref[...], w_ref[...]) + b_ref[...],
                             approximate=True)


def _heads_kernel(mt_ref, it_ref, up_ref,
                  hw1_ref, hb1_ref, hw2_ref, hb2_ref, hw3_ref, hb3_ref,
                  iw1_ref, ib1_ref, iw2_ref, ib2_ref, iw3_ref, ib3_ref,
                  masks_ref, iou_ref):
    """Block-diagonal hypernetworks + batched mask matmul + IoU head, fused."""
    mt = mt_ref[0]                                            # (1, NM*C)
    h = jnp.maximum(_mxdot(mt, hw1_ref[...]) + hb1_ref[...], 0.0)
    h = jnp.maximum(_mxdot(h, hw2_ref[...]) + hb2_ref[...], 0.0)
    h = _mxdot(h, hw3_ref[...]) + hb3_ref[...]                # (1, NM*C8)
    up = up_ref[0]                                            # (C8, HWup)
    rows = [_mxdot(h[:, i * C8:(i + 1) * C8], up) for i in range(NUM_MASK_TOKENS)]
    masks_ref[...] = jnp.concatenate(rows, axis=0)[None]      # (1, NM, HWup)

    it = it_ref[0]                                            # (1, C)
    g = jnp.maximum(_mxdot(it, iw1_ref[...]) + ib1_ref[...], 0.0)
    g = jnp.maximum(_mxdot(g, iw2_ref[...]) + ib2_ref[...], 0.0)
    iou_ref[...] = (_mxdot(g, iw3_ref[...]) + ib3_ref[...])[None]


def _bicubic_kernel(m_ref, ah_ref, awt_ref, o_ref):
    """Row + column bicubic interpolation fused (one mask per grid step)."""
    tmp = jnp.dot(ah_ref[...], m_ref[0], preferred_element_type=jnp.float32)
    o_ref[...] = jnp.dot(tmp, awt_ref[...], preferred_element_type=jnp.float32)[None]


# ------------------------------ parameter init -------------------------------
def init_params(key):
    keys = iter(jax.random.split(key, 64))

    def rnd(shape, scale=0.05):
        return (scale * jax.random.normal(next(keys), shape)).astype(jnp.float32)

    def bf(x):
        return x.astype(jnp.bfloat16)

    def zeros(shape):
        return jnp.zeros(shape, jnp.float32)

    def ones(shape):
        return jnp.ones(shape, jnp.float32)

    P = {}
    mean3 = jnp.array([0.485, 0.456, 0.406], jnp.float32)
    std3 = jnp.array([0.229, 0.224, 0.225], jnp.float32)
    # per-flattened-patch-feature constants (channel is the fastest axis);
    # 1/std precomputed so the kernel multiplies instead of divides.
    P["px_mean"] = jnp.tile(mean3, PATCH * PATCH).reshape(1, -1)
    P["px_invstd"] = jnp.tile(1.0 / std3, PATCH * PATCH).reshape(1, -1)

    # --- ViT image encoder (1 block) ---
    P["patch_w"] = bf(rnd((PATCH * PATCH * 3, VIT_DIM)))
    P["patch_b"] = zeros((1, VIT_DIM))
    P["pos_embed"] = rnd((EMB_HW * EMB_HW, VIT_DIM))
    P["ln1_g"], P["ln1_b"] = ones((1, VIT_DIM)), zeros((1, VIT_DIM))
    P["qkv_w"], P["qkv_b"] = bf(rnd((VIT_DIM, 3 * VIT_DIM))), zeros((1, 3 * VIT_DIM))
    P["proj_w"], P["proj_b"] = bf(rnd((VIT_DIM, VIT_DIM))), zeros((1, VIT_DIM))
    P["ln2_g"], P["ln2_b"] = ones((1, VIT_DIM)), zeros((1, VIT_DIM))
    P["mlp_w1"], P["mlp_b1"] = bf(rnd((VIT_DIM, VIT_MLP))), zeros((1, VIT_MLP))
    P["mlp_w2"], P["mlp_b2"] = bf(rnd((VIT_MLP, VIT_DIM))), zeros((1, VIT_DIM))
    P["neck_w"], P["neck_b"] = bf(rnd((VIT_DIM, C_EMB))), zeros((1, C_EMB))
    P["neck_ln_g"], P["neck_ln_b"] = ones((1, C_EMB)), zeros((1, C_EMB))

    # --- prompt encoder ---
    gauss = jax.random.normal(next(keys), (2, C_EMB // 2)).astype(jnp.float32)
    P["pe_gauss"] = gauss
    P["not_a_point"] = rnd((1, C_EMB))
    P["neg_point"] = rnd((1, C_EMB))
    P["pos_point"] = rnd((1, C_EMB))
    # dense positional encoding is input-independent -> hoisted to a constant.
    coords = (jnp.arange(EMB_HW, dtype=jnp.float32) + 0.5) / EMB_HW
    gx, gy = jnp.meshgrid(coords, coords, indexing="xy")
    grid = jnp.stack([gx, gy], axis=-1).reshape(-1, 2)
    proj = (grid * 2.0 - 1.0) @ gauss * (2.0 * jnp.pi)
    P["dense_pe"] = jnp.concatenate([jnp.sin(proj), jnp.cos(proj)], axis=-1)  # (HW, C)

    # --- mask decoder ---
    P["iou_token"] = rnd((1, C_EMB))
    P["mask_tokens"] = rnd((NUM_MASK_TOKENS, C_EMB))
    # 4 attention layers x (wq, wk, wv, wo) packed on one leading axis.
    P["attn_w"] = bf(rnd((16, C_EMB, C_EMB)))
    P["attn_b"] = zeros((16, 1, C_EMB))
    P["norm_g"], P["norm_b"] = ones((5, 1, C_EMB)), zeros((5, 1, C_EMB))
    P["dec_mlp_w1"], P["dec_mlp_b1"] = bf(rnd((C_EMB, DEC_MLP))), zeros((1, DEC_MLP))
    P["dec_mlp_w2"], P["dec_mlp_b2"] = bf(rnd((DEC_MLP, C_EMB))), zeros((1, C_EMB))

    # transposed convs (k=2, s=2) as matmul + pixel shuffle
    P["up1_w"], P["up1_b"] = bf(rnd((C_EMB, 4 * C4))), zeros((1, 4 * C4))
    P["up_ln_g"], P["up_ln_b"] = ones((1, C4)), zeros((1, C4))
    P["up2_w"], P["up2_b"] = bf(rnd((C4, 4 * C8))), zeros((1, 4 * C8))

    # per-mask-token hypernetwork MLPs packed block-diagonally (one wide matmul)
    def bd(blocks):
        n = len(blocks)
        r, c = blocks[0].shape
        out = jnp.zeros((n * r, n * c), jnp.float32)
        for i, blk in enumerate(blocks):
            out = out.at[i * r:(i + 1) * r, i * c:(i + 1) * c].set(blk)
        return out

    P["hyp_w1"] = bf(bd([rnd((C_EMB, C_EMB)) for _ in range(NUM_MASK_TOKENS)]))
    P["hyp_b1"] = zeros((1, NUM_MASK_TOKENS * C_EMB))
    P["hyp_w2"] = bf(bd([rnd((C_EMB, C_EMB)) for _ in range(NUM_MASK_TOKENS)]))
    P["hyp_b2"] = zeros((1, NUM_MASK_TOKENS * C_EMB))
    P["hyp_w3"] = bf(bd([rnd((C_EMB, C8)) for _ in range(NUM_MASK_TOKENS)]))
    P["hyp_b3"] = zeros((1, NUM_MASK_TOKENS * C8))

    # IoU prediction head
    P["iou_w1"], P["iou_b1"] = bf(rnd((C_EMB, C_EMB))), zeros((1, C_EMB))
    P["iou_w2"], P["iou_b2"] = bf(rnd((C_EMB, C_EMB))), zeros((1, C_EMB))
    P["iou_w3"], P["iou_b3"] = bf(rnd((C_EMB, NUM_MASK_TOKENS))), zeros((1, NUM_MASK_TOKENS))
    return P


# ------------------------------- image encoder --------------------------------
def image_encoder(P, images):
    """images: [B,3,S,S] raw pixels -> image embedding [B, C_EMB, EMB_HW, EMB_HW].
    Pixel normalization is fused into the patch-embedding kernel."""
    B = images.shape[0]
    N = EMB_HW * EMB_HW
    xh = jnp.transpose(images.astype(jnp.float32), (0, 2, 3, 1))
    xh = xh.reshape(B, EMB_HW, PATCH, EMB_HW, PATCH, 3)
    xh = xh.transpose(0, 1, 3, 2, 4, 5).reshape(B, N, PATCH * PATCH * 3)

    shared = [P["px_mean"], P["px_invstd"], P["patch_w"], P["patch_b"], P["pos_embed"],
              P["ln1_g"], P["ln1_b"], P["qkv_w"], P["qkv_b"], P["proj_w"], P["proj_b"],
              P["ln2_g"], P["ln2_b"], P["mlp_w1"], P["mlp_b1"], P["mlp_w2"], P["mlp_b2"],
              P["neck_w"], P["neck_b"], P["neck_ln_g"], P["neck_ln_b"]]
    out = _batched_pallas(_encoder_kernel, [xh], shared,
                          jax.ShapeDtypeStruct((B, N, C_EMB), jnp.float32), B)
    return out.reshape(B, EMB_HW, EMB_HW, C_EMB).transpose(0, 3, 1, 2)   # NCHW


# ------------------------------- prompt encoder --------------------------------
def prompt_encoder(P, pts, labels):
    """pts [Bq,P,2] (image-space), labels [Bq,P] -> sparse emb [Bq,P,C]."""
    Bq, Pn = pts.shape[0], pts.shape[1]
    coords = ((pts + 0.5) / IMG_SIZE).reshape(Bq * Pn, 2).astype(jnp.float32)
    lbl = labels.reshape(Bq * Pn, 1).astype(jnp.float32)
    out = pl.pallas_call(
        _prompt_kernel,
        out_shape=jax.ShapeDtypeStruct((Bq * Pn, C_EMB), jnp.float32),
        in_specs=[_VMEM] * 6,
        out_specs=_VMEM,
    )(coords, lbl, P["pe_gauss"], P["not_a_point"], P["neg_point"], P["pos_point"])
    return out.reshape(Bq, Pn, C_EMB)


# ------------------------------- mask decoder ----------------------------------
def _upscale(P, src_out, Bq, H, W):
    """src (Bq,HW,C) -> (Bq, C8, (4H)*(4W)) via two fused deconv kernels."""
    HW = H * W
    x = src_out.reshape(Bq * HW, C_EMB)
    y1 = pl.pallas_call(
        _up1_kernel,
        out_shape=jax.ShapeDtypeStruct((Bq * HW, 4 * C4), jnp.float32),
        in_specs=[_VMEM] * 5, out_specs=_VMEM,
    )(x, P["up1_w"], P["up1_b"], P["up_ln_g"], P["up_ln_b"])
    y1 = y1.reshape(Bq, H, W, 2, 2, C4).transpose(0, 1, 3, 2, 4, 5)
    y1 = y1.reshape(Bq * 4 * HW, C4)
    y2 = pl.pallas_call(
        _up2_kernel,
        out_shape=jax.ShapeDtypeStruct((Bq * 4 * HW, 4 * C8), jnp.float32),
        in_specs=[_VMEM] * 3, out_specs=_VMEM,
    )(y1, P["up2_w"], P["up2_b"])
    up = y2.reshape(Bq, 2 * H, 2 * W, 2, 2, C8).transpose(0, 1, 3, 2, 4, 5)
    return up.reshape(Bq, 16 * HW, C8).transpose(0, 2, 1)


def mask_decoder(P, image_emb, sparse, multimask_output=True):
    """image_emb [B,C,H,W]; sparse [B,Q,P,C] -> (masks, iou)."""
    B, C, H, W = image_emb.shape
    Q = sparse.shape[1]
    Bq = B * Q
    HW = H * W
    T = 1 + NUM_MASK_TOKENS + MAX_PTS

    out_tok = jnp.concatenate([P["iou_token"], P["mask_tokens"]], axis=0)     # [5,C]
    tokens = jnp.concatenate(
        [jnp.broadcast_to(out_tok[None], (Bq, 1 + NUM_MASK_TOKENS, C)),
         sparse.reshape(Bq, MAX_PTS, C)], axis=1)                             # [Bq,T,C]
    src = jnp.broadcast_to(
        image_emb.reshape(B, 1, C, HW).transpose(0, 1, 3, 2), (B, Q, HW, C)
    ).reshape(Bq, HW, C)

    qy, src_out = _batched_pallas(
        _decoder_kernel, [tokens, src],
        [P["dense_pe"], P["attn_w"], P["attn_b"], P["norm_g"], P["norm_b"],
         P["dec_mlp_w1"], P["dec_mlp_b1"], P["dec_mlp_w2"], P["dec_mlp_b2"]],
        (jax.ShapeDtypeStruct((Bq, T, C), jnp.float32),
         jax.ShapeDtypeStruct((Bq, HW, C), jnp.float32)),
        Bq)

    up_flat = _upscale(P, src_out, Bq, H, W)                                  # [Bq,C8,HWup]

    iou_tok = qy[:, 0:1, :]                                                   # [Bq,1,C]
    mask_toks = qy[:, 1:1 + NUM_MASK_TOKENS, :].reshape(Bq, 1, NUM_MASK_TOKENS * C)

    masks, iou = _batched_pallas(
        _heads_kernel, [mask_toks, iou_tok, up_flat],
        [P["hyp_w1"], P["hyp_b1"], P["hyp_w2"], P["hyp_b2"], P["hyp_w3"], P["hyp_b3"],
         P["iou_w1"], P["iou_b1"], P["iou_w2"], P["iou_b2"], P["iou_w3"], P["iou_b3"]],
        (jax.ShapeDtypeStruct((Bq, NUM_MASK_TOKENS, 16 * HW), jnp.float32),
         jax.ShapeDtypeStruct((Bq, 1, NUM_MASK_TOKENS), jnp.float32)),
        Bq)
    masks = masks.reshape(Bq, NUM_MASK_TOKENS, 4 * H, 4 * W)
    iou = iou.reshape(Bq, NUM_MASK_TOKENS)

    if multimask_output:
        return masks[:, 1:], iou[:, 1:]
    return masks[:, :1], iou[:, :1]


# ----------------------------- bicubic resize as matmul -------------------------
@functools.lru_cache(maxsize=None)
def bicubic_matrix(in_size, out_size):
    """Row-interp matrix for torch F.interpolate(mode='bicubic', align_corners=False)."""
    A = -0.75

    def conv1(x):
        return ((A + 2.0) * x - (A + 3.0)) * x * x + 1.0

    def conv2(x):
        return ((A * x - 5.0 * A) * x + 8.0 * A) * x - 4.0 * A

    scale = in_size / out_size
    Wm = [[0.0] * in_size for _ in range(out_size)]
    for i in range(out_size):
        real = (i + 0.5) * scale - 0.5
        i0 = math.floor(real)
        t = real - i0
        ws = [conv2(t + 1.0), conv1(t), conv1(1.0 - t), conv2(2.0 - t)]
        for tap, w in zip(range(-1, 3), ws):
            idx = min(max(i0 + tap, 0), in_size - 1)
            Wm[i][idx] += w
    return jnp.array(Wm, dtype=jnp.float32)


def bicubic_resize(masks, out_h, out_w):
    """masks [M, h, w] -> [M, out_h, out_w]; both interpolations in one kernel."""
    M, h, w = masks.shape
    Ah = bicubic_matrix(h, out_h)
    Awt = bicubic_matrix(w, out_w).T
    return _batched_pallas(_bicubic_kernel, [masks], [Ah, Awt],
                           jax.ShapeDtypeStruct((M, out_h, out_w), jnp.float32), M)


# ------------------------------- EfficientSam forward ---------------------------
def predict_masks(P, image_embeddings, batched_points, batched_point_labels,
                  multimask_output, input_h, input_w, output_h=-1, output_w=-1):
    B, Q, num_pts, _ = batched_points.shape
    # get_rescaled_pts
    px = jnp.where(batched_points[..., 0] >= 0,
                   batched_points[..., 0] * IMG_SIZE / input_w, -1.0)
    py = jnp.where(batched_points[..., 1] >= 0,
                   batched_points[..., 1] * IMG_SIZE / input_h, -1.0)
    pts = jnp.stack([px, py], axis=-1)
    labels = batched_point_labels
    if num_pts > MAX_PTS:
        pts = pts[:, :, :MAX_PTS, :]
        labels = labels[:, :, :MAX_PTS]
    elif num_pts < MAX_PTS:
        pad = MAX_PTS - num_pts
        pts = jnp.pad(pts, ((0, 0), (0, 0), (0, pad), (0, 0)), constant_values=-1.0)
        labels = jnp.pad(labels, ((0, 0), (0, 0), (0, pad)), constant_values=-1.0)

    sparse = prompt_encoder(P, pts.reshape(B * Q, MAX_PTS, 2),
                            labels.reshape(B * Q, MAX_PTS))
    sparse = sparse.reshape(B, Q, MAX_PTS, C_EMB)

    low_res, iou = mask_decoder(P, image_embeddings, sparse, multimask_output)
    num_pred, lr_h, lr_w = low_res.shape[1], low_res.shape[2], low_res.shape[3]

    if output_h > 0 and output_w > 0:
        out = bicubic_resize(low_res.reshape(-1, lr_h, lr_w), output_h, output_w)
        output_masks = out.reshape(B, Q, num_pred, output_h, output_w)
    else:
        output_masks = low_res.reshape(B, Q, num_pred, lr_h, lr_w)
    iou = iou.reshape(B, Q, num_pred)
    return output_masks, iou


@functools.partial(jax.jit, static_argnames=("scale_to_original_image_size",))
def efficient_sam_forward(P, batched_images, batched_points, batched_point_labels,
                          scale_to_original_image_size=True):
    _, _, input_h, input_w = batched_images.shape
    # TODO(synk): bilinear resize to img_size skipped; example inputs already at img_size.
    # Pixel normalization ((x - mean) / std) is folded into the patch-embed kernel.
    image_embeddings = image_encoder(P, batched_images)
    return predict_masks(
        P, image_embeddings, batched_points, batched_point_labels,
        multimask_output=True, input_h=input_h, input_w=input_w,
        output_h=input_h if scale_to_original_image_size else -1,
        output_w=input_w if scale_to_original_image_size else -1)


# ------------------------------------ main --------------------------------------
if __name__ == "__main__":
    key = jax.random.PRNGKey(0)
    pkey, ikey, ptkey = jax.random.split(key, 3)
    params = init_params(pkey)

    B, Q, NP = 1, 2, 2
    images = jax.random.uniform(ikey, (B, 3, IMG_SIZE, IMG_SIZE), jnp.float32)
    points = jax.random.uniform(ptkey, (B, Q, NP, 2), jnp.float32, 0.0, float(IMG_SIZE))
    labels = jnp.array([[[1.0, 0.0], [1.0, -1.0]]], jnp.float32)

    masks, iou = efficient_sam_forward(params, images, points, labels,
                                       scale_to_original_image_size=True)
    jax.block_until_ready((masks, iou))

    assert masks.shape == (B, Q, 3, IMG_SIZE, IMG_SIZE), masks.shape
    assert iou.shape == (B, Q, 3), iou.shape
    assert bool(jnp.all(jnp.isfinite(masks))) and bool(jnp.all(jnp.isfinite(iou)))
    print("KERNEL_OK")
</pallas_src>

<mosaic_0001>
module attributes {stable_mosaic.version = 11 : i64} {
  func.func @_prompt_kernel(%arg0: memref<12x2xf32, #tpu.memory_space<vmem>>, %arg1: memref<12x1xf32, #tpu.memory_space<vmem>>, %arg2: memref<2x8xf32, #tpu.memory_space<vmem>>, %arg3: memref<1x16xf32, #tpu.memory_space<vmem>>, %arg4: memref<1x16xf32, #tpu.memory_space<vmem>>, %arg5: memref<1x16xf32, #tpu.memory_space<vmem>>, %arg6: memref<12x16xf32, #tpu.memory_space<vmem>>) attributes {dimension_semantics = [], scalar_prefetch = 0 : i64, scratch_operands = 0 : i64, tpu.core_type = #tpu.core_type<tc>} {
    %c0 = arith.constant 0 : index
    %c0_0 = arith.constant 0 : index
    %0 = vector.load %arg0[%c0, %c0_0] : memref<12x2xf32, #tpu.memory_space<vmem>>, vector<12x2xf32>
    %cst = arith.constant 2.000000e+00 : f32
    %1 = vector.broadcast %cst : f32 to vector<12x2xf32>
    %2 = arith.mulf %0, %1 : vector<12x2xf32>
    %cst_1 = arith.constant 1.000000e+00 : f32
    %3 = vector.broadcast %cst_1 : f32 to vector<12x2xf32>
    %4 = arith.subf %2, %3 : vector<12x2xf32>
    %c0_2 = arith.constant 0 : index
    %c0_3 = arith.constant 0 : index
    %5 = vector.load %arg2[%c0_2, %c0_3] : memref<2x8xf32, #tpu.memory_space<vmem>>, vector<2x8xf32>
    %cst_4 = arith.constant dense<0.000000e+00> : vector<12x8xf32>
    %6 = tpu.matmul %4, %5, %cst_4 {dimension_numbers = #tpu.dot_dimension_numbers<[1], [0], [0], [1], [0, 0, 1, 1], [], []>} : vector<12x2xf32>, vector<2x8xf32>, vector<12x8xf32> -> vector<12x8xf32>
    %cst_5 = arith.constant 6.28318548 : f32
    %7 = vector.broadcast %cst_5 : f32 to vector<12x8xf32>
    %8 = arith.mulf %6, %7 : vector<12x8xf32>
    %9 = math.sin %8 : vector<12x8xf32>
    %10 = math.cos %8 : vector<12x8xf32>
    %11 = tpu.concatenate %9, %10 in 1 : vector<12x8xf32>, vector<12x8xf32> -> vector<12x16xf32>
    %c0_6 = arith.constant 0 : index
    %c0_7 = arith.constant 0 : index
    %12 = vector.load %arg1[%c0_6, %c0_7] : memref<12x1xf32, #tpu.memory_space<vmem>>, vector<12x1xf32>
    %cst_8 = arith.constant -1.000000e+00 : f32
    %13 = vector.broadcast %cst_8 : f32 to vector<12x1xf32>
    %14 = arith.cmpf oeq, %12, %13 : vector<12x1xf32>
    %cst_9 = arith.constant 0.000000e+00 : f32
    %15 = vector.shape_cast %14 : vector<12x1xi1> to vector<12x1xi1>
    %16 = vector.broadcast %15 : vector<12x1xi1> to vector<12x16xi1>
    %17 = vector.broadcast %cst_9 : f32 to vector<12x16xf32>
    %18 = arith.select %16, %17, %11 : vector<12x16xi1>, vector<12x16xf32>
    %cst_10 = arith.constant -1.000000e+00 : f32
    %19 = vector.broadcast %cst_10 : f32 to vector<12x1xf32>
    %20 = arith.cmpf oeq, %12, %19 : vector<12x1xf32>
    %c0_11 = arith.constant 0 : index
    %c0_12 = arith.constant 0 : index
    %21 = vector.load %arg3[%c0_11, %c0_12] : memref<1x16xf32, #tpu.memory_space<vmem>>, vector<1x16xf32>
    %cst_13 = arith.constant 0.000000e+00 : f32
    %22 = vector.shape_cast %20 : vector<12x1xi1> to vector<12x1xi1>
    %23 = vector.broadcast %22 : vector<12x1xi1> to vector<12x16xi1>
    %24 = vector.shape_cast %21 : vector<1x16xf32> to vector<1x16xf32>
    %25 = vector.broadcast %24 : vector<1x16xf32> to vector<12x16xf32>
    %26 = vector.broadcast %cst_13 : f32 to vector<12x16xf32>
    %27 = arith.select %23, %25, %26 : vector<12x16xi1>, vector<12x16xf32>
    %28 = arith.addf %18, %27 : vector<12x16xf32>
    %cst_14 = arith.constant 0.000000e+00 : f32
    %29 = vector.broadcast %cst_14 : f32 to vector<12x1xf32>
    %30 = arith.cmpf oeq, %12, %29 : vector<12x1xf32>
    %c0_15 = arith.constant 0 : index
    %c0_16 = arith.constant 0 : index
    %31 = vector.load %arg4[%c0_15, %c0_16] : memref<1x16xf32, #tpu.memory_space<vmem>>, vector<1x16xf32>
    %cst_17 = arith.constant 0.000000e+00 : f32
    %32 = vector.shape_cast %30 : vector<12x1xi1> to vector<12x1xi1>
    %33 = vector.broadcast %32 : vector<12x1xi1> to vector<12x16xi1>
    %34 = vector.shape_cast %31 : vector<1x16xf32> to vector<1x16xf32>
    %35 = vector.broadcast %34 : vector<1x16xf32> to vector<12x16xf32>
    %36 = vector.broadcast %cst_17 : f32 to vector<12x16xf32>
    %37 = arith.select %33, %35, %36 : vector<12x16xi1>, vector<12x16xf32>
    %38 = arith.addf %28, %37 : vector<12x16xf32>
    %cst_18 = arith.constant 1.000000e+00 : f32
    %39 = vector.broadcast %cst_18 : f32 to vector<12x1xf32>
    %40 = arith.cmpf oeq, %12, %39 : vector<12x1xf32>
    %c0_19 = arith.constant 0 : index
    %c0_20 = arith.constant 0 : index
    %41 = vector.load %arg5[%c0_19, %c0_20] : memref<1x16xf32, #tpu.memory_space<vmem>>, vector<1x16xf32>
    %cst_21 = arith.constant 0.000000e+00 : f32
    %42 = vector.shape_cast %40 : vector<12x1xi1> to vector<12x1xi1>
    %43 = vector.broadcast %42 : vector<12x1xi1> to vector<12x16xi1>
    %44 = vector.shape_cast %41 : vector<1x16xf32> to vector<1x16xf32>
    %45 = vector.broadcast %44 : vector<1x16xf32> to vector<12x16xf32>
    %46 = vector.broadcast %cst_21 : f32 to vector<12x16xf32>
    %47 = arith.select %43, %45, %46 : vector<12x16xi1>, vector<12x16xf32>
    %48 = arith.addf %38, %47 : vector<12x16xf32>
    %c0_22 = arith.constant 0 : index
    %c0_23 = arith.constant 0 : index
    %49 = vector.load %arg6[%c0_22, %c0_23] : memref<12x16xf32, #tpu.memory_space<vmem>>, vector<12x16xf32>
    tpu.vector_store %arg6[%c0_22, %c0_23], %48 {strides = array<i32>} : memref<12x16xf32, #tpu.memory_space<vmem>>, vector<12x16xf32>,
    return
  }
}

module attributes {stable_mosaic.version = 11 : i64} {
  func.func @_encoder_kernel(%arg0: i32, %arg1: memref<1x16x192xf32, #tpu.memory_space<vmem>>, %arg2: memref<1x192xf32, #tpu.memory_space<vmem>>, %arg3: memref<1x192xf32, #tpu.memory_space<vmem>>, %arg4: memref<192x32xbf16, #tpu.memory_space<vmem>>, %arg5: memref<1x32xf32, #tpu.memory_space<vmem>>, %arg6: memref<16x32xf32, #tpu.memory_space<vmem>>, %arg7: memref<1x32xf32, #tpu.memory_space<vmem>>, %arg8: memref<1x32xf32, #tpu.memory_space<vmem>>, %arg9: memref<32x96xbf16, #tpu.memory_space<vmem>>, %arg10: memref<1x96xf32, #tpu.memory_space<vmem>>, %arg11: memref<32x32xbf16, #tpu.memory_space<vmem>>, %arg12: memref<1x32xf32, #tpu.memory_space<vmem>>, %arg13: memref<1x32xf32, #tpu.memory_space<vmem>>, %arg14: memref<1x32xf32, #tpu.memory_space<vmem>>, %arg15: memref<32x64xbf16, #tpu.memory_space<vmem>>, %arg16: memref<1x64xf32, #tpu.memory_space<vmem>>, %arg17: memref<64x32xbf16, #tpu.memory_space<vmem>>, %arg18: memref<1x32xf32, #tpu.memory_space<vmem>>, %arg19: memref<32x16xbf16, #tpu.memory_space<vmem>>, %arg20: memref<1x16xf32, #tpu.memory_space<vmem>>, %arg21: memref<1x16xf32, #tpu.memory_space<vmem>>, %arg22: memref<1x16xf32, #tpu.memory_space<vmem>>, %arg23: memref<1x16x16xf32, #tpu.memory_space<vmem>>) attributes {dimension_semantics = [#tpu.dimension_semantics<parallel>], iteration_bounds = array<i64: 1>, scalar_prefetch = 0 : i64, scratch_operands = 0 : i64, tpu.core_type = #tpu.core_type<tc>, window_params = [{transform_indices = @transform_0, window_bounds = array<i64: 1, 16, 192>}, {pipeline_mode = #tpu.pipeline_mode<synchronous>, transform_indices = @transform_1, window_bounds = array<i64: 1, 192>}, {pipeline_mode = #tpu.pipeline_mode<synchronous>, transform_indices = @transform_2, window_bounds = array<i64: 1, 192>}, {pipeline_mode = #tpu.pipeline_mode<synchronous>, transform_indices = @transform_3, window_bounds = array<i64: 192, 32>}, {pipeline_mode = #tpu.pipeline_mode<synchronous>, transform_indices = @transform_4, window_bounds = array<i64: 1, 32>}, {pipeline_mode = #tpu.pipeline_mode<synchronous>, transform_indices = @transform_5, window_bounds = array<i64: 16, 32>}, {pipeline_mode = #tpu.pipeline_mode<synchronous>, transform_indices = @transform_6, window_bounds = array<i64: 1, 32>}, {pipeline_mode = #tpu.pipeline_mode<synchronous>, transform_indices = @transform_7, window_bounds = array<i64: 1, 32>}, {pipeline_mode = #tpu.pipeline_mode<synchronous>, transform_indices = @transform_8, window_bounds = array<i64: 32, 96>}, {pipeline_mode = #tpu.pipeline_mode<synchronous>, transform_indices = @transform_9, window_bounds = array<i64: 1, 96>}, {pipeline_mode = #tpu.pipeline_mode<synchronous>, transform_indices = @transform_10, window_bounds = array<i64: 32, 32>}, {pipeline_mode = #tpu.pipeline_mode<synchronous>, transform_indices = @transform_11, window_bounds = array<i64: 1, 32>}, {pipeline_mode = #tpu.pipeline_mode<synchronous>, transform_indices = @transform_12, window_bounds = array<i64: 1, 32>}, {pipeline_mode = #tpu.pipeline_mode<synchronous>, transform_indices = @transform_13, window_bounds = array<i64: 1, 32>}, {pipeline_mode = #tpu.pipeline_mode<synchronous>, transform_indices = @transform_14, window_bounds = array<i64: 32, 64>}, {pipeline_mode = #tpu.pipeline_mode<synchronous>, transform_indices = @transform_15, window_bounds = array<i64: 1, 64>}, {pipeline_mode = #tpu.pipeline_mode<synchronous>, transform_indices = @transform_16, window_bounds = array<i64: 64, 32>}, {pipeline_mode = #tpu.pipeline_mode<synchronous>, transform_indices = @transform_17, window_bounds = array<i64: 1, 32>}, {pipeline_mode = #tpu.pipeline_mode<synchronous>, transform_indices = @transform_18, window_bounds = array<i64: 32, 16>}, {pipeline_mode = #tpu.pipeline_mode<synchronous>, transform_indices = @transform_19, window_bounds = array<i64: 1, 16>}, {pipeline_mode = #tpu.pipeline_mode<synchronous>, transform_indices = @transform_20, window_bounds = array<i64: 1, 16>}, {pipeline_mode = #tpu.pipeline_mode<synchronous>, transform_indices = @transform_21, window_bounds = array<i64: 1, 16>}, {transform_indices = @transform_22, window_bounds = array<i64: 1, 16, 16>}]} {
    %c0 = arith.constant 0 : index
    %c0_0 = arith.constant 0 : index
    %c0_1 = arith.constant 0 : index
    %0 = vector.load %arg1[%c0, %c0_0, %c0_1] : memref<1x16x192xf32, #tpu.memory_space<vmem>>, vector<1x16x192xf32>
    %1 = vector.shape_cast %0 : vector<1x16x192xf32> to vector<16x192xf32>
    %c0_2 = arith.constant 0 : index
    %c0_3 = arith.constant 0 : index
    %2 = vector.load %arg2[%c0_2, %c0_3] : memref<1x192xf32, #tpu.memory_space<vmem>>, vector<1x192xf32>
    %3 = vector.broadcast %2 : vector<1x192xf32> to vector<16x192xf32>
    %4 = arith.subf %1, %3 : vector<16x192xf32>
    %c0_4 = arith.constant 0 : index
    %c0_5 = arith.constant 0 : index
    %5 = vector.load %arg3[%c0_4, %c0_5] : memref<1x192xf32, #tpu.memory_space<vmem>>, vector<1x192xf32>
    %6 = vector.broadcast %5 : vector<1x192xf32> to vector<16x192xf32>
    %7 = arith.mulf %4, %6 : vector<16x192xf32>
    %c0_6 = arith.constant 0 : index
    %c0_7 = arith.constant 0 : index
    %8 = vector.load %arg4[%c0_6, %c0_7] : memref<192x32xbf16, #tpu.memory_space<vmem>>, vector<192x32xbf16>
    %9 = arith.truncf %7 : vector<16x192xf32> to vector<16x192xbf16>
    %cst = arith.constant dense<0.000000e+00> : vector<16x32xf32>
    %10 = tpu.matmul %9, %8, %cst {dimension_numbers = #tpu.dot_dimension_numbers<[1], [0], [0], [1], [0, 0, 1, 1], [], []>} : vector<16x192xbf16>, vector<192x32xbf16>, vector<16x32xf32> -> vector<16x32xf32>
    %c0_8 = arith.constant 0 : index
    %c0_9 = arith.constant 0 : index
    %11 = vector.load %arg5[%c0_8, %c0_9] : memref<1x32xf32, #tpu.memory_space<vmem>>, vector<1x32xf32>
    %12 = vector.broadcast %11 : vector<1x32xf32> to vector<16x32xf32>
    %13 = arith.addf %10, %12 : vector<16x32xf32>
    %c0_10 = arith.constant 0 : index
    %c0_11 = arith.constant 0 : index
    %14 = vector.load %arg6[%c0_10, %c0_11] : memref<16x32xf32, #tpu.memory_space<vmem>>, vector<16x32xf32>
    %15 = arith.addf %13, %14 : vector<16x32xf32>
    %c0_12 = arith.constant 0 : index
    %c0_13 = arith.constant 0 : index
    %16 = vector.load %arg7[%c0_12, %c0_13] : memref<1x32xf32, #tpu.memory_space<vmem>>, vector<1x32xf32>
    %c0_14 = arith.constant 0 : index
    %c0_15 = arith.constant 0 : index
    %17 = vector.load %arg8[%c0_14, %c0_15] : memref<1x32xf32, #tpu.memory_space<vmem>>, vector<1x32xf32>
    %cst_16 = arith.constant dense<0.000000e+00> : vector<16xf32>
    %18 = vector.multi_reduction <add>, %15, %cst_16 [1] : vector<16x32xf32> to vector<16xf32>
    %19 = vector.shape_cast %18 : vector<16xf32> to vector<16x1xf32>
    %cst_17 = arith.constant 3.200000e+01 : f32
    %20 = vector.broadcast %cst_17 : f32 to vector<16x1xf32>
    %21 = arith.divf %19, %20 : vector<16x1xf32>
    %22 = vector.broadcast %21 : vector<16x1xf32> to vector<16x32xf32>
    %23 = arith.subf %15, %22 : vector<16x32xf32>
    %24 = arith.mulf %23, %23 : vector<16x32xf32>
    %cst_18 = arith.constant dense<0.000000e+00> : vector<16xf32>
    %25 = vector.multi_reduction <add>, %24, %cst_18 [1] : vector<16x32xf32> to vector<16xf32>
    %26 = vector.shape_cast %25 : vector<16xf32> to vector<16x1xf32>
    %cst_19 = arith.constant 3.200000e+01 : f32
    %27 = vector.broadcast %cst_19 : f32 to vector<16x1xf32>
    %28 = arith.divf %26, %27 : vector<16x1xf32>
    %cst_20 = arith.constant 9.99999974E-6 : f32
    %29 = vector.broadcast %cst_20 : f32 to vector<16x1xf32>
    %30 = arith.addf %28, %29 : vector<16x1xf32>
    %31 = math.rsqrt %30 : vector<16x1xf32>
    %32 = vector.broadcast %31 : vector<16x1xf32> to vector<16x32xf32>
    %33 = arith.mulf %23, %32 : vector<16x32xf32>
    %34 = vector.broadcast %16 : vector<1x32xf32> to vector<16x32xf32>
    %35 = arith.mulf %33, %34 : vector<16x32xf32>
    %36 = vector.broadcast %17 : vector<1x32xf32> to vector<16x32xf32>
    %37 = arith.addf %35, %36 : vector<16x32xf32>
    %c0_21 = arith.constant 0 : index
    %c0_22 = arith.constant 0 : index
    %38 = vector.load %arg9[%c0_21, %c0_22] : memref<32x96xbf16, #tpu.memory_space<vmem>>, vector<32x96xbf16>
    %39 = arith.truncf %37 : vector<16x32xf32> to vector<16x32xbf16>
    %cst_23 = arith.constant dense<0.000000e+00> : vector<16x96xf32>
    %40 = tpu.matmul %39, %38, %cst_23 {dimension_numbers = #tpu.dot_dimension_numbers<[1], [0], [0], [1], [0, 0, 1, 1], [], []>} : vector<16x32xbf16>, vector<32x96xbf16>, vector<16x96xf32> -> vector<16x96xf32>
    %c0_24 = arith.constant 0 : index
    %c0_25 = arith.constant 0 : index
    %41 = vector.load %arg10[%c0_24, %c0_25] : memref<1x96xf32, #tpu.memory_space<vmem>>, vector<1x96xf32>
    %42 = vector.broadcast %41 : vector<1x96xf32> to vector<16x96xf32>
    %43 = arith.addf %40, %42 : vector<16x96xf32>
    %44 = vector.extract_strided_slice %43 {offsets = [0, 0], sizes = [16, 16], strides = [1, 1]} : vector<16x96xf32> to vector<16x16xf32>
    %45 = vector.extract_strided_slice %43 {offsets = [0, 32], sizes = [16, 16], strides = [1, 1]} : vector<16x96xf32> to vector<16x16xf32>
    %46 = vector.extract_strided_slice %43 {offsets = [0, 64], sizes = [16, 16], strides = [1, 1]} : vector<16x96xf32> to vector<16x16xf32>
    %47 = arith.truncf %44 : vector<16x16xf32> to vector<16x16xbf16>
    %48 = arith.truncf %45 : vector<16x16xf32> to vector<16x16xbf16>
    %cst_26 = arith.constant dense<0.000000e+00> : vector<16x16xf32>
    %49 = tpu.matmul %47, %48, %cst_26 {dimension_numbers = #tpu.dot_dimension_numbers<[1], [1], [0], [0], [0, 0, 1, 0], [], []>} : vector<16x16xbf16>, vector<16x16xbf16>, vector<16x16xf32> -> vector<16x16xf32>
    %cst_27 = arith.constant 2.500000e-01 : f32
    %50 = vector.broadcast %cst_27 : f32 to vector<16x16xf32>
    %51 = arith.mulf %49, %50 : vector<16x16xf32>
    %cst_28 = arith.constant dense<0xFF800000> : vector<16xf32>
    %52 = vector.multi_reduction <maximumf>, %51, %cst_28 [1] : vector<16x16xf32> to vector<16xf32>
    %53 = vector.shape_cast %52 : vector<16xf32> to vector<16x1xf32>
    %54 = vector.broadcast %53 : vector<16x1xf32> to vector<16x16xf32>
    %55 = arith.subf %51, %54 : vector<16x16xf32>
    %56 = math.exp %55 : vector<16x16xf32>
    %cst_29 = arith.constant dense<0.000000e+00> : vector<16xf32>
    %57 = vector.multi_reduction <add>, %56, %cst_29 [1] : vector<16x16xf32> to vector<16xf32>
    %58 = vector.shape_cast %57 : vector<16xf32> to vector<16x1xf32>
    %59 = tpu.reciprocal %58 {approx = true} : vector<16x1xf32> -> vector<16x1xf32>
    %60 = vector.broadcast %59 : vector<16x1xf32> to vector<16x16xf32>
    %61 = arith.mulf %56, %60 : vector<16x16xf32>
    %62 = arith.truncf %61 : vector<16x16xf32> to vector<16x16xbf16>
    %63 = arith.truncf %46 : vector<16x16xf32> to vector<16x16xbf16>
    %cst_30 = arith.constant dense<0.000000e+00> : vector<16x16xf32>
    %64 = tpu.matmul %62, %63, %cst_30 {dimension_numbers = #tpu.dot_dimension_numbers<[1], [0], [0], [1], [0, 0, 1, 1], [], []>} : vector<16x16xbf16>, vector<16x16xbf16>, vector<16x16xf32> -> vector<16x16xf32>
    %65 = vector.extract_strided_slice %43 {offsets = [0, 16], sizes = [16, 16], strides = [1, 1]} : vector<16x96xf32> to vector<16x16xf32>
    %66 = vector.extract_strided_slice %43 {offsets = [0, 48], sizes = [16, 16], strides = [1, 1]} : vector<16x96xf32> to vector<16x16xf32>
    %67 = vector.extract_strided_slice %43 {offsets = [0, 80], sizes = [16, 16], strides = [1, 1]} : vector<16x96xf32> to vector<16x16xf32>
    %68 = arith.truncf %65 : vector<16x16xf32> to vector<16x16xbf16>
    %69 = arith.truncf %66 : vector<16x16xf32> to vector<16x16xbf16>
    %cst_31 = arith.constant dense<0.000000e+00> : vector<16x16xf32>
    %70 = tpu.matmul %68, %69, %cst_31 {dimension_numbers = #tpu.dot_dimension_numbers<[1], [1], [0], [0], [0, 0, 1, 0], [], []>} : vector<16x16xbf16>, vector<16x16xbf16>, vector<16x16xf32> -> vector<16x16xf32>
    %cst_32 = arith.constant 2.500000e-01 : f32
    %71 = vector.broadcast %cst_32 : f32 to vector<16x16xf32>
    %72 = arith.mulf %70, %71 : vector<16x16xf32>
    %cst_33 = arith.constant dense<0xFF800000> : vector<16xf32>
    %73 = vector.multi_reduction <maximumf>, %72, %cst_33 [1] : vector<16x16xf32> to vector<16xf32>
    %74 = vector.shape_cast %73 : vector<16xf32> to vector<16x1xf32>
    %75 = vector.broadcast %74 : vector<16x1xf32> to vector<16x16xf32>
    %76 = arith.subf %72, %75 : vector<16x16xf32>
    %77 = math.exp %76 : vector<16x16xf32>
    %cst_34 = arith.constant dense<0.000000e+00> : vector<16xf32>
    %78 = vector.multi_reduction <add>, %77, %cst_34 [1] : vector<16x16xf32> to vector<16xf32>
    %79 = vector.shape_cast %78 : vector<16xf32> to vector<16x1xf32>
    %80 = tpu.reciprocal %79 {approx = true} : vector<16x1xf32> -> vector<16x1xf32>
    %81 = vector.broadcast %80 : vector<16x1xf32> to vector<16x16xf32>
    %82 = arith.mulf %77, %81 : vector<16x16xf32>
    %83 = arith.truncf %82 : vector<16x16xf32> to vector<16x16xbf16>
    %84 = arith.truncf %67 : vector<16x16xf32> to vector<16x16xbf16>
    %cst_35 = arith.constant dense<0.000000e+00> : vector<16x16xf32>
    %85 = tpu.matmul %83, %84, %cst_35 {dimension_numbers = #tpu.dot_dimension_numbers<[1], [0], [0], [1], [0, 0, 1, 1], [], []>} : vector<16x16xbf16>, vector<16x16xbf16>, vector<16x16xf32> -> vector<16x16xf32>
    %86 = tpu.concatenate %64, %85 in 1 : vector<16x16xf32>, vector<16x16xf32> -> vector<16x32xf32>
    %c0_36 = arith.constant 0 : index
    %c0_37 = arith.constant 0 : index
    %87 = vector.load %arg11[%c0_36, %c0_37] : memref<32x32xbf16, #tpu.memory_space<vmem>>, vector<32x32xbf16>
    %88 = arith.truncf %86 : vector<16x32xf32> to vector<16x32xbf16>
    %cst_38 = arith.constant dense<0.000000e+00> : vector<16x32xf32>
    %89 = tpu.matmul %88, %87, %cst_38 {dimension_numbers = #tpu.dot_dimension_numbers<[1], [0], [0], [1], [0, 0, 1, 1], [], []>} : vector<16x32xbf16>, vector<32x32xbf16>, vector<16x32xf32> -> vector<16x32xf32>
    %c0_39 = arith.constant 0 : index
    %c0_40 = arith.constant 0 : index
    %90 = vector.load %arg12[%c0_39, %c0_40] : memref<1x32xf32, #tpu.memory_space<vmem>>, vector<1x32xf32>
    %91 = vector.broadcast %90 : vector<1x32xf32> to vector<16x32xf32>
    %92 = arith.addf %89, %91 : vector<16x32xf32>
    %93 = arith.addf %15, %92 : vector<16x32xf32>
    %c0_41 = arith.constant 0 : index
    %c0_42 = arith.constant 0 : index
    %94 = vector.load %arg13[%c0_41, %c0_42] : memref<1x32xf32, #tpu.memory_space<vmem>>, vector<1x32xf32>
    %c0_43 = arith.constant 0 : index
    %c0_44 = arith.constant 0 : index
    %95 = vector.load %arg14[%c0_43, %c0_44] : memref<1x32xf32, #tpu.memory_space<vmem>>, vector<1x32xf32>
    %cst_45 = arith.constant dense<0.000000e+00> : vector<16xf32>
    %96 = vector.multi_reduction <add>, %93, %cst_45 [1] : vector<16x32xf32> to vector<16xf32>
    %97 = vector.shape_cast %96 : vector<16xf32> to vector<16x1xf32>
    %cst_46 = arith.constant 3.200000e+01 : f32
    %98 = vector.broadcast %cst_46 : f32 to vector<16x1xf32>
    %99 = arith.divf %97, %98 : vector<16x1xf32>
    %100 = vector.broadcast %99 : vector<16x1xf32> to vector<16x32xf32>
    %101 = arith.subf %93, %100 : vector<16x32xf32>
    %102 = arith.mulf %101, %101 : vector<16x32xf32>
    %cst_47 = arith.constant dense<0.000000e+00> : vector<16xf32>
    %103 = vector.multi_reduction <add>, %102, %cst_47 [1] : vector<16x32xf32> to vector<16xf32>
    %104 = vector.shape_cast %103 : vector<16xf32> to vector<16x1xf32>
    %cst_48 = arith.constant 3.200000e+01 : f32
    %105 = vector.broadcast %cst_48 : f32 to vector<16x1xf32>
    %106 = arith.divf %104, %105 : vector<16x1xf32>
    %cst_49 = arith.constant 9.99999974E-6 : f32
    %107 = vector.broadcast %cst_49 : f32 to vector<16x1xf32>
    %108 = arith.addf %106, %107 : vector<16x1xf32>
    %109 = math.rsqrt %108 : vector<16x1xf32>
    %110 = vector.broadcast %109 : vector<16x1xf32> to vector<16x32xf32>
    %111 = arith.mulf %101, %110 : vector<16x32xf32>
    %112 = vector.broadcast %94 : vector<1x32xf32> to vector<16x32xf32>
    %113 = arith.mulf %111, %112 : vector<16x32xf32>
    %114 = vector.broadcast %95 : vector<1x32xf32> to vector<16x32xf32>
    %115 = arith.addf %113, %114 : vector<16x32xf32>
    %c0_50 = arith.constant 0 : index
    %c0_51 = arith.constant 0 : index
    %116 = vector.load %arg15[%c0_50, %c0_51] : memref<32x64xbf16, #tpu.memory_space<vmem>>, vector<32x64xbf16>
    %117 = arith.truncf %115 : vector<16x32xf32> to vector<16x32xbf16>
    %cst_52 = arith.constant dense<0.000000e+00> : vector<16x64xf32>
    %118 = tpu.matmul %117, %116, %cst_52 {dimension_numbers = #tpu.dot_dimension_numbers<[1], [0], [0], [1], [0, 0, 1, 1], [], []>} : vector<16x32xbf16>, vector<32x64xbf16>, vector<16x64xf32> -> vector<16x64xf32>
    %c0_53 = arith.constant 0 : index
    %c0_54 = arith.constant 0 : index
    %119 = vector.load %arg16[%c0_53, %c0_54] : memref<1x64xf32, #tpu.memory_space<vmem>>, vector<1x64xf32>
    %120 = vector.broadcast %119 : vector<1x64xf32> to vector<16x64xf32>
    %121 = arith.addf %118, %120 : vector<16x64xf32>
    %122 = arith.mulf %121, %121 : vector<16x64xf32>
    %123 = arith.mulf %121, %122 : vector<16x64xf32>
    %cst_55 = arith.constant 4.471500e-02 : f32
    %124 = vector.broadcast %cst_55 : f32 to vector<16x64xf32>
    %125 = arith.mulf %124, %123 : vector<16x64xf32>
    %126 = arith.addf %121, %125 : vector<16x64xf32>
    %cst_56 = arith.constant 0.797884583 : f32
    %127 = vector.broadcast %cst_56 : f32 to vector<16x64xf32>
    %128 = arith.mulf %127, %126 : vector<16x64xf32>
    %129 = math.tanh %128 : vector<16x64xf32>
    %cst_57 = arith.constant 1.000000e+00 : f32
    %130 = vector.broadcast %cst_57 : f32 to vector<16x64xf32>
    %131 = arith.addf %130, %129 : vector<16x64xf32>
    %cst_58 = arith.constant 5.000000e-01 : f32
    %132 = vector.broadcast %cst_58 : f32 to vector<16x64xf32>
    %133 = arith.mulf %132, %131 : vector<16x64xf32>
    %134 = arith.mulf %121, %133 : vector<16x64xf32>
    %c0_59 = arith.constant 0 : index
    %c0_60 = arith.constant 0 : index
    %135 = vector.load %arg17[%c0_59, %c0_60] : memref<64x32xbf16, #tpu.memory_space<vmem>>, vector<64x32xbf16>
    %136 = arith.truncf %134 : vector<16x64xf32> to vector<16x64xbf16>
    %cst_61 = arith.constant dense<0.000000e+00> : vector<16x32xf32>
    %137 = tpu.matmul %136, %135, %cst_61 {dimension_numbers = #tpu.dot_dimension_numbers<[1], [0], [0], [1], [0, 0, 1, 1], [], []>} : vector<16x64xbf16>, vector<64x32xbf16>, vector<16x32xf32> -> vector<16x32xf32>
    %138 = arith.addf %93, %137 : vector<16x32xf32>
    %c0_62 = arith.constant 0 : index
    %c0_63 = arith.constant 0 : index
    %139 = vector.load %arg18[%c0_62, %c0_63] : memref<1x32xf32, #tpu.memory_space<vmem>>, vector<1x32xf32>
    %140 = vector.broadcast %139 : vector<1x32xf32> to vector<16x32xf32>
    %141 = arith.addf %138, %140 : vector<16x32xf32>
    %c0_64 = arith.constant 0 : index
    %c0_65 = arith.constant 0 : index
    %142 = vector.load %arg19[%c0_64, %c0_65] : memref<32x16xbf16, #tpu.memory_space<vmem>>, vector<32x16xbf16>
    %143 = arith.truncf %141 : vector<16x32xf32> to vector<16x32xbf16>
    %cst_66 = arith.constant dense<0.000000e+00> : vector<16x16xf32>
    %144 = tpu.matmul %143, %142, %cst_66 {dimension_numbers = #tpu.dot_dimension_numbers<[1], [0], [0], [1], [0, 0, 1, 1], [], []>} : vector<16x32xbf16>, vector<32x16xbf16>, vector<16x16xf32> -> vector<16x16xf32>
    %c0_67 = arith.constant 0 : index
    %c0_68 = arith.constant 0 : index
    %145 = vector.load %arg20[%c0_67, %c0_68] : memref<1x16xf32, #tpu.memory_space<vmem>>, vector<1x16xf32>
    %146 = vector.broadcast %145 : vector<1x16xf32> to vector<16x16xf32>
    %147 = arith.addf %144, %146 : vector<16x16xf32>
    %c0_69 = arith.constant 0 : index
    %c0_70 = arith.constant 0 : index
    %148 = vector.load %arg21[%c0_69, %c0_70] : memref<1x16xf32, #tpu.memory_space<vmem>>, vector<1x16xf32>
    %c0_71 = arith.constant 0 : index
    %c0_72 = arith.constant 0 : index
    %149 = vector.load %arg22[%c0_71, %c0_72] : memref<1x16xf32, #tpu.memory_space<vmem>>, vector<1x16xf32>
    %cst_73 = arith.constant dense<0.000000e+00> : vector<16xf32>
    %150 = vector.multi_reduction <add>, %147, %cst_73 [1] : vector<16x16xf32> to vector<16xf32>
    %151 = vector.shape_cast %150 : vector<16xf32> to vector<16x1xf32>
    %cst_74 = arith.constant 1.600000e+01 : f32
    %152 = vector.broadcast %cst_74 : f32 to vector<16x1xf32>
    %153 = arith.divf %151, %152 : vector<16x1xf32>
    %154 = vector.broadcast %153 : vector<16x1xf32> to vector<16x16xf32>
    %155 = arith.subf %147, %154 : vector<16x16xf32>
    %156 = arith.mulf %155, %155 : vector<16x16xf32>
    %cst_75 = arith.constant dense<0.000000e+00> : vector<16xf32>
    %157 = vector.multi_reduction <add>, %156, %cst_75 [1] : vector<16x16xf32> to vector<16xf32>
    %158 = vector.shape_cast %157 : vector<16xf32> to vector<16x1xf32>
    %cst_76 = arith.constant 1.600000e+01 : f32
    %159 = vector.broadcast %cst_76 : f32 to vector<16x1xf32>
    %160 = arith.divf %158, %159 : vector<16x1xf32>
    %cst_77 = arith.constant 9.99999997E-7 : f32
    %161 = vector.broadcast %cst_77 : f32 to vector<16x1xf32>
    %162 = arith.addf %160, %161 : vector<16x1xf32>
    %163 = math.rsqrt %162 : vector<16x1xf32>
    %164 = vector.broadcast %163 : vector<16x1xf32> to vector<16x16xf32>
    %165 = arith.mulf %155, %164 : vector<16x16xf32>
    %166 = vector.broadcast %148 : vector<1x16xf32> to vector<16x16xf32>
    %167 = arith.mulf %165, %166 : vector<16x16xf32>
    %168 = vector.broadcast %149 : vector<1x16xf32> to vector<16x16xf32>
    %169 = arith.addf %167, %168 : vector<16x16xf32>
    %170 = vector.shape_cast %169 : vector<16x16xf32> to vector<1x16x16xf32>
    %c0_78 = arith.constant 0 : index
    %c0_79 = arith.constant 0 : index
    %c0_80 = arith.constant 0 : index
    %171 = vector.load %arg23[%c0_78, %c0_79, %c0_80] : memref<1x16x16xf32, #tpu.memory_space<vmem>>, vector<1x16x16xf32>
    tpu.vector_store %arg23[%c0_78, %c0_79, %c0_80], %170 {strides = array<i32>} : memref<1x16x16xf32, #tpu.memory_space<vmem>>, vector<1x16x16xf32>,
    return
  }
  func.func @transform_0(%arg0: i32) -> (i32, i32, i32) {
    %c0_i32 = arith.constant 0 : i32
    %c0_i32_0 = arith.constant 0 : i32
    %c0_i32_1 = arith.constant 0 : i32
    return %arg0, %c0_i32, %c0_i32_0 : i32, i32, i32
  }
  func.func @transform_1(%arg0: i32) -> (i32, i32) {
    %c0_i32 = arith.constant 0 : i32
    %c0_i32_0 = arith.constant 0 : i32
    %c0_i32_1 = arith.constant 0 : i32
    return %c0_i32, %c0_i32_0 : i32, i32
  }
  func.func @transform_2(%arg0: i32) -> (i32, i32) {
    %c0_i32 = arith.constant 0 : i32
    %c0_i32_0 = arith.constant 0 : i32
    %c0_i32_1 = arith.constant 0 : i32
    return %c0_i32, %c0_i32_0 : i32, i32
  }
  func.func @transform_3(%arg0: i32) -> (i32, i32) {
    %c0_i32 = arith.constant 0 : i32
    %c0_i32_0 = arith.constant 0 : i32
    %c0_i32_1 = arith.constant 0 : i32
    return %c0_i32, %c0_i32_0 : i32, i32
  }
  func.func @transform_4(%arg0: i32) -> (i32, i32) {
    %c0_i32 = arith.constant 0 : i32
    %c0_i32_0 = arith.constant 0 : i32
    %c0_i32_1 = arith.constant 0 : i32
    return %c0_i32, %c0_i32_0 : i32, i32
  }
  func.func @transform_5(%arg0: i32) -> (i32, i32) {
    %c0_i32 = arith.constant 0 : i32
    %c0_i32_0 = arith.constant 0 : i32
    %c0_i32_1 = arith.constant 0 : i32
    return %c0_i32, %c0_i32_0 : i32, i32
  }
  func.func @transform_6(%arg0: i32) -> (i32, i32) {
    %c0_i32 = arith.constant 0 : i32
    %c0_i32_0 = arith.constant 0 : i32
    %c0_i32_1 = arith.constant 0 : i32
    return %c0_i32, %c0_i32_0 : i32, i32
  }
  func.func @transform_7(%arg0: i32) -> (i32, i32) {
    %c0_i32 = arith.constant 0 : i32
    %c0_i32_0 = arith.constant 0 : i32
    %c0_i32_1 = arith.constant 0 : i32
    return %c0_i32, %c0_i32_0 : i32, i32
  }
  func.func @transform_8(%arg0: i32) -> (i32, i32) {
    %c0_i32 = arith.constant 0 : i32
    %c0_i32_0 = arith.constant 0 : i32
    %c0_i32_1 = arith.constant 0 : i32
    return %c0_i32, %c0_i32_0 : i32, i32
  }
  func.func @transform_9(%arg0: i32) -> (i32, i32) {
    %c0_i32 = arith.constant 0 : i32
    %c0_i32_0 = arith.constant 0 : i32
    %c0_i32_1 = arith.constant 0 : i32
    return %c0_i32, %c0_i32_0 : i32, i32
  }
  func.func @transform_10(%arg0: i32) -> (i32, i32) {
    %c0_i32 = arith.constant 0 : i32
    %c0_i32_0 = arith.constant 0 : i32
    %c0_i32_1 = arith.constant 0 : i32
    return %c0_i32, %c0_i32_0 : i32, i32
  }
  func.func @transform_11(%arg0: i32) -> (i32, i32) {
    %c0_i32 = arith.constant 0 : i32
    %c0_i32_0 = arith.constant 0 : i32
    %c0_i32_1 = arith.constant 0 : i32
    return %c0_i32, %c0_i32_0 : i32, i32
  }
  func.func @transform_12(%arg0: i32) -> (i32, i32) {
    %c0_i32 = arith.constant 0 : i32
    %c0_i32_0 = arith.constant 0 : i32
    %c0_i32_1 = arith.constant 0 : i32
    return %c0_i32, %c0_i32_0 : i32, i32
  }
  func.func @transform_13(%arg0: i32) -> (i32, i32) {
    %c0_i32 = arith.constant 0 : i32
    %c0_i32_0 = arith.constant 0 : i32
    %c0_i32_1 = arith.constant 0 : i32
    return %c0_i32, %c0_i32_0 : i32, i32
  }
  func.func @transform_14(%arg0: i32) -> (i32, i32) {
    %c0_i32 = arith.constant 0 : i32
    %c0_i32_0 = arith.constant 0 : i32
    %c0_i32_1 = arith.constant 0 : i32
    return %c0_i32, %c0_i32_0 : i32, i32
  }
  func.func @transform_15(%arg0: i32) -> (i32, i32) {
    %c0_i32 = arith.constant 0 : i32
    %c0_i32_0 = arith.constant 0 : i32
    %c0_i32_1 = arith.constant 0 : i32
    return %c0_i32, %c0_i32_0 : i32, i32
  }
  func.func @transform_16(%arg0: i32) -> (i32, i32) {
    %c0_i32 = arith.constant 0 : i32
    %c0_i32_0 = arith.constant 0 : i32
    %c0_i32_1 = arith.constant 0 : i32
    return %c0_i32, %c0_i32_0 : i32, i32
  }
  func.func @transform_17(%arg0: i32) -> (i32, i32) {
    %c0_i32 = arith.constant 0 : i32
    %c0_i32_0 = arith.constant 0 : i32
    %c0_i32_1 = arith.constant 0 : i32
    return %c0_i32, %c0_i32_0 : i32, i32
  }
  func.func @transform_18(%arg0: i32) -> (i32, i32) {
    %c0_i32 = arith.constant 0 : i32
    %c0_i32_0 = arith.constant 0 : i32
    %c0_i32_1 = arith.constant 0 : i32
    return %c0_i32, %c0_i32_0 : i32, i32
  }
  func.func @transform_19(%arg0: i32) -> (i32, i32) {
    %c0_i32 = arith.constant 0 : i32
    %c0_i32_0 = arith.constant 0 : i32
    %c0_i32_1 = arith.constant 0 : i32
    return %c0_i32, %c0_i32_0 : i32, i32
  }
  func.func @transform_20(%arg0: i32) -> (i32, i32) {
    %c0_i32 = arith.constant 0 : i32
    %c0_i32_0 = arith.constant 0 : i32
    %c0_i32_1 = arith.constant 0 : i32
    return %c0_i32, %c0_i32_0 : i32, i32
  }
  func.func @transform_21(%arg0: i32) -> (i32, i32) {
    %c0_i32 = arith.constant 0 : i32
    %c0_i32_0 = arith.constant 0 : i32
    %c0_i32_1 = arith.constant 0 : i32
    return %c0_i32, %c0_i32_0 : i32, i32
  }
  func.func @transform_22(%arg0: i32) -> (i32, i32, i32) {
    %c0_i32 = arith.constant 0 : i32
    %c0_i32_0 = arith.constant 0 : i32
    %c0_i32_1 = arith.constant 0 : i32
    return %arg0, %c0_i32, %c0_i32_0 : i32, i32, i32
  }
}

module attributes {stable_mosaic.version = 11 : i64} {
  func.func @_decoder_kernel(%arg0: i32, %arg1: memref<1x11x16xf32, #tpu.memory_space<vmem>>, %arg2: memref<1x16x16xf32, #tpu.memory_space<vmem>>, %arg3: memref<16x16xf32, #tpu.memory_space<vmem>>, %arg4: memref<16x16x16xbf16, #tpu.memory_space<vmem>>, %arg5: memref<16x1x16xf32, #tpu.memory_space<vmem>>, %arg6: memref<5x1x16xf32, #tpu.memory_space<vmem>>, %arg7: memref<5x1x16xf32, #tpu.memory_space<vmem>>, %arg8: memref<16x32xbf16, #tpu.memory_space<vmem>>, %arg9: memref<1x32xf32, #tpu.memory_space<vmem>>, %arg10: memref<32x16xbf16, #tpu.memory_space<vmem>>, %arg11: memref<1x16xf32, #tpu.memory_space<vmem>>, %arg12: memref<1x11x16xf32, #tpu.memory_space<vmem>>, %arg13: memref<1x16x16xf32, #tpu.memory_space<vmem>>) attributes {dimension_semantics = [#tpu.dimension_semantics<parallel>], iteration_bounds = array<i64: 2>, scalar_prefetch = 0 : i64, scratch_operands = 0 : i64, tpu.core_type = #tpu.core_type<tc>, window_params = [{transform_indices = @transform_0, window_bounds = array<i64: 1, 11, 16>}, {transform_indices = @transform_1, window_bounds = array<i64: 1, 16, 16>}, {pipeline_mode = #tpu.pipeline_mode<synchronous>, transform_indices = @transform_2, window_bounds = array<i64: 16, 16>}, {pipeline_mode = #tpu.pipeline_mode<synchronous>, transform_indices = @transform_3, window_bounds = array<i64: 16, 16, 16>}, {pipeline_mode = #tpu.pipeline_mode<synchronous>, transform_indices = @transform_4, window_bounds = array<i64: 16, 1, 16>}, {pipeline_mode = #tpu.pipeline_mode<synchronous>, transform_indices = @transform_5, window_bounds = array<i64: 5, 1, 16>}, {pipeline_mode = #tpu.pipeline_mode<synchronous>, transform_indices = @transform_6, window_bounds = array<i64: 5, 1, 16>}, {pipeline_mode = #tpu.pipeline_mode<synchronous>, transform_indices = @transform_7, window_bounds = array<i64: 16, 32>}, {pipeline_mode = #tpu.pipeline_mode<synchronous>, transform_indices = @transform_8, window_bounds = array<i64: 1, 32>}, {pipeline_mode = #tpu.pipeline_mode<synchronous>, transform_indices = @transform_9, window_bounds = array<i64: 32, 16>}, {pipeline_mode = #tpu.pipeline_mode<synchronous>, transform_indices = @transform_10, window_bounds = array<i64: 1, 16>}, {transform_indices = @transform_11, window_bounds = array<i64: 1, 11, 16>}, {transform_indices = @transform_12, window_bounds = array<i64: 1, 16, 16>}]} {
    %c0 = arith.constant 0 : index
    %c0_0 = arith.constant 0 : index
    %c0_1 = arith.constant 0 : index
    %0 = vector.load %arg1[%c0, %c0_0, %c0_1] : memref<1x11x16xf32, #tpu.memory_space<vmem>>, vector<1x11x16xf32>
    %1 = vector.shape_cast %0 : vector<1x11x16xf32> to vector<11x16xf32>
    %c0_2 = arith.constant 0 : index
    %c0_3 = arith.constant 0 : index
    %c0_4 = arith.constant 0 : index
    %2 = vector.load %arg2[%c0_2, %c0_3, %c0_4] : memref<1x16x16xf32, #tpu.memory_space<vmem>>, vector<1x16x16xf32>
    %3 = vector.shape_cast %2 : vector<1x16x16xf32> to vector<16x16xf32>
    %c0_5 = arith.constant 0 : index
    %c0_6 = arith.constant 0 : index
    %4 = vector.load %arg3[%c0_5, %c0_6] : memref<16x16xf32, #tpu.memory_space<vmem>>, vector<16x16xf32>
    %c0_7 = arith.constant 0 : index
    %c0_8 = arith.constant 0 : index
    %c0_9 = arith.constant 0 : index
    %5 = vector.load %arg4[%c0_7, %c0_8, %c0_9] : memref<16x16x16xbf16, #tpu.memory_space<vmem>>, vector<1x16x16xbf16>
    %6 = vector.shape_cast %5 : vector<1x16x16xbf16> to vector<16x16xbf16>
    %7 = arith.truncf %1 : vector<11x16xf32> to vector<11x16xbf16>
    %cst = arith.constant dense<0.000000e+00> : vector<11x16xf32>
    %8 = tpu.matmul %7, %6, %cst {dimension_numbers = #tpu.dot_dimension_numbers<[1], [0], [0], [1], [0, 0, 1, 1], [], []>} : vector<11x16xbf16>, vector<16x16xbf16>, vector<11x16xf32> -> vector<11x16xf32>
    %c0_10 = arith.constant 0 : index
    %c0_11 = arith.constant 0 : index
    %c0_12 = arith.constant 0 : index
    %9 = vector.load %arg5[%c0_10, %c0_11, %c0_12] : memref<16x1x16xf32, #tpu.memory_space<vmem>>, vector<1x1x16xf32>
    %10 = vector.shape_cast %9 : vector<1x1x16xf32> to vector<1x16xf32>
    %11 = vector.broadcast %10 : vector<1x16xf32> to vector<11x16xf32>
    %12 = arith.addf %8, %11 : vector<11x16xf32>
    %c1 = arith.constant 1 : index
    %c0_13 = arith.constant 0 : index
    %c0_14 = arith.constant 0 : index
    %13 = vector.load %arg4[%c1, %c0_13, %c0_14] : memref<16x16x16xbf16, #tpu.memory_space<vmem>>, vector<1x16x16xbf16>
    %14 = vector.shape_cast %13 : vector<1x16x16xbf16> to vector<16x16xbf16>
    %15 = arith.truncf %1 : vector<11x16xf32> to vector<11x16xbf16>
    %cst_15 = arith.constant dense<0.000000e+00> : vector<11x16xf32>
    %16 = tpu.matmul %15, %14, %cst_15 {dimension_numbers = #tpu.dot_dimension_numbers<[1], [0], [0], [1], [0, 0, 1, 1], [], []>} : vector<11x16xbf16>, vector<16x16xbf16>, vector<11x16xf32> -> vector<11x16xf32>
    %c1_16 = arith.constant 1 : index
    %c0_17 = arith.constant 0 : index
    %c0_18 = arith.constant 0 : index
    %17 = vector.load %arg5[%c1_16, %c0_17, %c0_18] : memref<16x1x16xf32, #tpu.memory_space<vmem>>, vector<1x1x16xf32>
    %18 = vector.shape_cast %17 : vector<1x1x16xf32> to vector<1x16xf32>
    %19 = vector.broadcast %18 : vector<1x16xf32> to vector<11x16xf32>
    %20 = arith.addf %16, %19 : vector<11x16xf32>
    %c2 = arith.constant 2 : index
    %c0_19 = arith.constant 0 : index
    %c0_20 = arith.constant 0 : index
    %21 = vector.load %arg4[%c2, %c0_19, %c0_20] : memref<16x16x16xbf16, #tpu.memory_space<vmem>>, vector<1x16x16xbf16>
    %22 = vector.shape_cast %21 : vector<1x16x16xbf16> to vector<16x16xbf16>
    %23 = arith.truncf %1 : vector<11x16xf32> to vector<11x16xbf16>
    %cst_21 = arith.constant dense<0.000000e+00> : vector<11x16xf32>
    %24 = tpu.matmul %23, %22, %cst_21 {dimension_numbers = #tpu.dot_dimension_numbers<[1], [0], [0], [1], [0, 0, 1, 1], [], []>} : vector<11x16xbf16>, vector<16x16xbf16>, vector<11x16xf32> -> vector<11x16xf32>
    %c2_22 = arith.constant 2 : index
    %c0_23 = arith.constant 0 : index
    %c0_24 = arith.constant 0 : index
    %25 = vector.load %arg5[%c2_22, %c0_23, %c0_24] : memref<16x1x16xf32, #tpu.memory_space<vmem>>, vector<1x1x16xf32>
    %26 = vector.shape_cast %25 : vector<1x1x16xf32> to vector<1x16xf32>
    %27 = vector.broadcast %26 : vector<1x16xf32> to vector<11x16xf32>
    %28 = arith.addf %24, %27 : vector<11x16xf32>
    %29 = vector.extract_strided_slice %12 {offsets = [0, 0], sizes = [11, 8], strides = [1, 1]} : vector<11x16xf32> to vector<11x8xf32>
    %30 = vector.extract_strided_slice %20 {offsets = [0, 0], sizes = [11, 8], strides = [1, 1]} : vector<11x16xf32> to vector<11x8xf32>
    %31 = vector.extract_strided_slice %28 {offsets = [0, 0], sizes = [11, 8], strides = [1, 1]} : vector<11x16xf32> to vector<11x8xf32>
    %32 = arith.truncf %29 : vector<11x8xf32> to vector<11x8xbf16>
    %33 = arith.truncf %30 : vector<11x8xf32> to vector<11x8xbf16>
    %cst_25 = arith.constant dense<0.000000e+00> : vector<11x11xf32>
    %34 = tpu.matmul %32, %33, %cst_25 {dimension_numbers = #tpu.dot_dimension_numbers<[1], [1], [0], [0], [0, 0, 1, 0], [], []>} : vector<11x8xbf16>, vector<11x8xbf16>, vector<11x11xf32> -> vector<11x11xf32>
    %cst_26 = arith.constant 0.353553385 : f32
    %35 = vector.broadcast %cst_26 : f32 to vector<11x11xf32>
    %36 = arith.mulf %34, %35 : vector<11x11xf32>
    %cst_27 = arith.constant dense<0xFF800000> : vector<11xf32>
    %37 = vector.multi_reduction <maximumf>, %36, %cst_27 [1] : vector<11x11xf32> to vector<11xf32>
    %38 = vector.shape_cast %37 : vector<11xf32> to vector<11x1xf32>
    %39 = vector.broadcast %38 : vector<11x1xf32> to vector<11x11xf32>
    %40 = arith.subf %36, %39 : vector<11x11xf32>
    %41 = math.exp %40 : vector<11x11xf32>
    %cst_28 = arith.constant dense<0.000000e+00> : vector<11xf32>
    %42 = vector.multi_reduction <add>, %41, %cst_28 [1] : vector<11x11xf32> to vector<11xf32>
    %43 = vector.shape_cast %42 : vector<11xf32> to vector<11x1xf32>
    %44 = tpu.reciprocal %43 {approx = true} : vector<11x1xf32> -> vector<11x1xf32>
    %45 = vector.broadcast %44 : vector<11x1xf32> to vector<11x11xf32>
    %46 = arith.mulf %41, %45 : vector<11x11xf32>
    %47 = arith.truncf %46 : vector<11x11xf32> to vector<11x11xbf16>
    %48 = arith.truncf %31 : vector<11x8xf32> to vector<11x8xbf16>
    %cst_29 = arith.constant dense<0.000000e+00> : vector<11x8xf32>
    %49 = tpu.matmul %47, %48, %cst_29 {dimension_numbers = #tpu.dot_dimension_numbers<[1], [0], [0], [1], [0, 0, 1, 1], [], []>} : vector<11x11xbf16>, vector<11x8xbf16>, vector<11x8xf32> -> vector<11x8xf32>
    %50 = vector.extract_strided_slice %12 {offsets = [0, 8], sizes = [11, 8], strides = [1, 1]} : vector<11x16xf32> to vector<11x8xf32>
    %51 = vector.extract_strided_slice %20 {offsets = [0, 8], sizes = [11, 8], strides = [1, 1]} : vector<11x16xf32> to vector<11x8xf32>
    %52 = vector.extract_strided_slice %28 {offsets = [0, 8], sizes = [11, 8], strides = [1, 1]} : vector<11x16xf32> to vector<11x8xf32>
    %53 = arith.truncf %50 : vector<11x8xf32> to vector<11x8xbf16>
    %54 = arith.truncf %51 : vector<11x8xf32> to vector<11x8xbf16>
    %cst_30 = arith.constant dense<0.000000e+00> : vector<11x11xf32>
    %55 = tpu.matmul %53, %54, %cst_30 {dimension_numbers = #tpu.dot_dimension_numbers<[1], [1], [0], [0], [0, 0, 1, 0], [], []>} : vector<11x8xbf16>, vector<11x8xbf16>, vector<11x11xf32> -> vector<11x11xf32>
    %cst_31 = arith.constant 0.353553385 : f32
    %56 = vector.broadcast %cst_31 : f32 to vector<11x11xf32>
    %57 = arith.mulf %55, %56 : vector<11x11xf32>
    %cst_32 = arith.constant dense<0xFF800000> : vector<11xf32>
    %58 = vector.multi_reduction <maximumf>, %57, %cst_32 [1] : vector<11x11xf32> to vector<11xf32>
    %59 = vector.shape_cast %58 : vector<11xf32> to vector<11x1xf32>
    %60 = vector.broadcast %59 : vector<11x1xf32> to vector<11x11xf32>
    %61 = arith.subf %57, %60 : vector<11x11xf32>
    %62 = math.exp %61 : vector<11x11xf32>
    %cst_33 = arith.constant dense<0.000000e+00> : vector<11xf32>
    %63 = vector.multi_reduction <add>, %62, %cst_33 [1] : vector<11x11xf32> to vector<11xf32>
    %64 = vector.shape_cast %63 : vector<11xf32> to vector<11x1xf32>
    %65 = tpu.reciprocal %64 {approx = true} : vector<11x1xf32> -> vector<11x1xf32>
    %66 = vector.broadcast %65 : vector<11x1xf32> to vector<11x11xf32>
    %67 = arith.mulf %62, %66 : vector<11x11xf32>
    %68 = arith.truncf %67 : vector<11x11xf32> to vector<11x11xbf16>
    %69 = arith.truncf %52 : vector<11x8xf32> to vector<11x8xbf16>
    %cst_34 = arith.constant dense<0.000000e+00> : vector<11x8xf32>
    %70 = tpu.matmul %68, %69, %cst_34 {dimension_numbers = #tpu.dot_dimension_numbers<[1], [0], [0], [1], [0, 0, 1, 1], [], []>} : vector<11x11xbf16>, vector<11x8xbf16>, vector<11x8xf32> -> vector<11x8xf32>
    %71 = tpu.concatenate %49, %70 in 1 : vector<11x8xf32>, vector<11x8xf32> -> vector<11x16xf32>
    %c3 = arith.constant 3 : index
    %c0_35 = arith.constant 0 : index
    %c0_36 = arith.constant 0 : index
    %72 = vector.load %arg4[%c3, %c0_35, %c0_36] : memref<16x16x16xbf16, #tpu.memory_space<vmem>>, vector<1x16x16xbf16>
    %73 = vector.shape_cast %72 : vector<1x16x16xbf16> to vector<16x16xbf16>
    %74 = arith.truncf %71 : vector<11x16xf32> to vector<11x16xbf16>
    %cst_37 = arith.constant dense<0.000000e+00> : vector<11x16xf32>
    %75 = tpu.matmul %74, %73, %cst_37 {dimension_numbers = #tpu.dot_dimension_numbers<[1], [0], [0], [1], [0, 0, 1, 1], [], []>} : vector<11x16xbf16>, vector<16x16xbf16>, vector<11x16xf32> -> vector<11x16xf32>
    %c3_38 = arith.constant 3 : index
    %c0_39 = arith.constant 0 : index
    %c0_40 = arith.constant 0 : index
    %76 = vector.load %arg5[%c3_38, %c0_39, %c0_40] : memref<16x1x16xf32, #tpu.memory_space<vmem>>, vector<1x1x16xf32>
    %77 = vector.shape_cast %76 : vector<1x1x16xf32> to vector<1x16xf32>
    %78 = vector.broadcast %77 : vector<1x16xf32> to vector<11x16xf32>
    %79 = arith.addf %75, %78 : vector<11x16xf32>
    %80 = arith.addf %1, %79 : vector<11x16xf32>
    %c0_41 = arith.constant 0 : index
    %c0_42 = arith.constant 0 : index
    %c0_43 = arith.constant 0 : index
    %81 = vector.load %arg6[%c0_41, %c0_42, %c0_43] : memref<5x1x16xf32, #tpu.memory_space<vmem>>, vector<1x1x16xf32>
    %82 = vector.shape_cast %81 : vector<1x1x16xf32> to vector<1x16xf32>
    %c0_44 = arith.constant 0 : index
    %c0_45 = arith.constant 0 : index
    %c0_46 = arith.constant 0 : index
    %83 = vector.load %arg7[%c0_44, %c0_45, %c0_46] : memref<5x1x16xf32, #tpu.memory_space<vmem>>, vector<1x1x16xf32>
    %84 = vector.shape_cast %83 : vector<1x1x16xf32> to vector<1x16xf32>
    %cst_47 = arith.constant dense<0.000000e+00> : vector<11xf32>
    %85 = vector.multi_reduction <add>, %80, %cst_47 [1] : vector<11x16xf32> to vector<11xf32>
    %86 = vector.shape_cast %85 : vector<11xf32> to vector<11x1xf32>
    %cst_48 = arith.constant 1.600000e+01 : f32
    %87 = vector.broadcast %cst_48 : f32 to vector<11x1xf32>
    %88 = arith.divf %86, %87 : vector<11x1xf32>
    %89 = vector.broadcast %88 : vector<11x1xf32> to vector<11x16xf32>
    %90 = arith.subf %80, %89 : vector<11x16xf32>
    %91 = arith.mulf %90, %90 : vector<11x16xf32>
    %cst_49 = arith.constant dense<0.000000e+00> : vector<11xf32>
    %92 = vector.multi_reduction <add>, %91, %cst_49 [1] : vector<11x16xf32> to vector<11xf32>
    %93 = vector.shape_cast %92 : vector<11xf32> to vector<11x1xf32>
    %cst_50 = arith.constant 1.600000e+01 : f32
    %94 = vector.broadcast %cst_50 : f32 to vector<11x1xf32>
    %95 = arith.divf %93, %94 : vector<11x1xf32>
    %cst_51 = arith.constant 9.99999974E-6 : f32
    %96 = vector.broadcast %cst_51 : f32 to vector<11x1xf32>
    %97 = arith.addf %95, %96 : vector<11x1xf32>
    %98 = math.rsqrt %97 : vector<11x1xf32>
    %99 = vector.broadcast %98 : vector<11x1xf32> to vector<11x16xf32>
    %100 = arith.mulf %90, %99 : vector<11x16xf32>
    %101 = vector.broadcast %82 : vector<1x16xf32> to vector<11x16xf32>
    %102 = arith.mulf %100, %101 : vector<11x16xf32>
    %103 = vector.broadcast %84 : vector<1x16xf32> to vector<11x16xf32>
    %104 = arith.addf %102, %103 : vector<11x16xf32>
    %105 = arith.addf %3, %4 : vector<16x16xf32>
    %c4 = arith.constant 4 : index
    %c0_52 = arith.constant 0 : index
    %c0_53 = arith.constant 0 : index
    %106 = vector.load %arg4[%c4, %c0_52, %c0_53] : memref<16x16x16xbf16, #tpu.memory_space<vmem>>, vector<1x16x16xbf16>
    %107 = vector.shape_cast %106 : vector<1x16x16xbf16> to vector<16x16xbf16>
    %108 = arith.truncf %104 : vector<11x16xf32> to vector<11x16xbf16>
    %cst_54 = arith.constant dense<0.000000e+00> : vector<11x16xf32>
    %109 = tpu.matmul %108, %107, %cst_54 {dimension_numbers = #tpu.dot_dimension_numbers<[1], [0], [0], [1], [0, 0, 1, 1], [], []>} : vector<11x16xbf16>, vector<16x16xbf16>, vector<11x16xf32> -> vector<11x16xf32>
    %c4_55 = arith.constant 4 : index
    %c0_56 = arith.constant 0 : index
    %c0_57 = arith.constant 0 : index
    %110 = vector.load %arg5[%c4_55, %c0_56, %c0_57] : memref<16x1x16xf32, #tpu.memory_space<vmem>>, vector<1x1x16xf32>
    %111 = vector.shape_cast %110 : vector<1x1x16xf32> to vector<1x16xf32>
    %112 = vector.broadcast %111 : vector<1x16xf32> to vector<11x16xf32>
    %113 = arith.addf %109, %112 : vector<11x16xf32>
    %c5 = arith.constant 5 : index
    %c0_58 = arith.constant 0 : index
    %c0_59 = arith.constant 0 : index
    %114 = vector.load %arg4[%c5, %c0_58, %c0_59] : memref<16x16x16xbf16, #tpu.memory_space<vmem>>, vector<1x16x16xbf16>
    %115 = vector.shape_cast %114 : vector<1x16x16xbf16> to vector<16x16xbf16>
    %116 = arith.truncf %105 : vector<16x16xf32> to vector<16x16xbf16>
    %cst_60 = arith.constant dense<0.000000e+00> : vector<16x16xf32>
    %117 = tpu.matmul %116, %115, %cst_60 {dimension_numbers = #tpu.dot_dimension_numbers<[1], [0], [0], [1], [0, 0, 1, 1], [], []>} : vector<16x16xbf16>, vector<16x16xbf16>, vector<16x16xf32> -> vector<16x16xf32>
    %c5_61 = arith.constant 5 : index
    %c0_62 = arith.constant 0 : index
    %c0_63 = arith.constant 0 : index
    %118 = vector.load %arg5[%c5_61, %c0_62, %c0_63] : memref<16x1x16xf32, #tpu.memory_space<vmem>>, vector<1x1x16xf32>
    %119 = vector.shape_cast %118 : vector<1x1x16xf32> to vector<1x16xf32>
    %120 = vector.broadcast %119 : vector<1x16xf32> to vector<16x16xf32>
    %121 = arith.addf %117, %120 : vector<16x16xf32>
    %c6 = arith.constant 6 : index
    %c0_64 = arith.constant 0 : index
    %c0_65 = arith.constant 0 : index
    %122 = vector.load %arg4[%c6, %c0_64, %c0_65] : memref<16x16x16xbf16, #tpu.memory_space<vmem>>, vector<1x16x16xbf16>
    %123 = vector.shape_cast %122 : vector<1x16x16xbf16> to vector<16x16xbf16>
    %124 = arith.truncf %3 : vector<16x16xf32> to vector<16x16xbf16>
    %cst_66 = arith.constant dense<0.000000e+00> : vector<16x16xf32>
    %125 = tpu.matmul %124, %123, %cst_66 {dimension_numbers = #tpu.dot_dimension_numbers<[1], [0], [0], [1], [0, 0, 1, 1], [], []>} : vector<16x16xbf16>, vector<16x16xbf16>, vector<16x16xf32> -> vector<16x16xf32>
    %c6_67 = arith.constant 6 : index
    %c0_68 = arith.constant 0 : index
    %c0_69 = arith.constant 0 : index
    %126 = vector.load %arg5[%c6_67, %c0_68, %c0_69] : memref<16x1x16xf32, #tpu.memory_space<vmem>>, vector<1x1x16xf32>
    %127 = vector.shape_cast %126 : vector<1x1x16xf32> to vector<1x16xf32>
    %128 = vector.broadcast %127 : vector<1x16xf32> to vector<16x16xf32>
    %129 = arith.addf %125, %128 : vector<16x16xf32>
    %130 = vector.extract_strided_slice %113 {offsets = [0, 0], sizes = [11, 8], strides = [1, 1]} : vector<11x16xf32> to vector<11x8xf32>
    %131 = vector.extract_strided_slice %121 {offsets = [0, 0], sizes = [16, 8], strides = [1, 1]} : vector<16x16xf32> to vector<16x8xf32>
    %132 = vector.extract_strided_slice %129 {offsets = [0, 0], sizes = [16, 8], strides = [1, 1]} : vector<16x16xf32> to vector<16x8xf32>
    %133 = arith.truncf %130 : vector<11x8xf32> to vector<11x8xbf16>
    %134 = arith.truncf %131 : vector<16x8xf32> to vector<16x8xbf16>
    %cst_70 = arith.constant dense<0.000000e+00> : vector<11x16xf32>
    %135 = tpu.matmul %133, %134, %cst_70 {dimension_numbers = #tpu.dot_dimension_numbers<[1], [1], [0], [0], [0, 0, 1, 0], [], []>} : vector<11x8xbf16>, vector<16x8xbf16>, vector<11x16xf32> -> vector<11x16xf32>
    %cst_71 = arith.constant 0.353553385 : f32
    %136 = vector.broadcast %cst_71 : f32 to vector<11x16xf32>
    %137 = arith.mulf %135, %136 : vector<11x16xf32>
    %cst_72 = arith.constant dense<0xFF800000> : vector<11xf32>
    %138 = vector.multi_reduction <maximumf>, %137, %cst_72 [1] : vector<11x16xf32> to vector<11xf32>
    %139 = vector.shape_cast %138 : vector<11xf32> to vector<11x1xf32>
    %140 = vector.broadcast %139 : vector<11x1xf32> to vector<11x16xf32>
    %141 = arith.subf %137, %140 : vector<11x16xf32>
    %142 = math.exp %141 : vector<11x16xf32>
    %cst_73 = arith.constant dense<0.000000e+00> : vector<11xf32>
    %143 = vector.multi_reduction <add>, %142, %cst_73 [1] : vector<11x16xf32> to vector<11xf32>
    %144 = vector.shape_cast %143 : vector<11xf32> to vector<11x1xf32>
    %145 = tpu.reciprocal %144 {approx = true} : vector<11x1xf32> -> vector<11x1xf32>
    %146 = vector.broadcast %145 : vector<11x1xf32> to vector<11x16xf32>
    %147 = arith.mulf %142, %146 : vector<11x16xf32>
    %148 = arith.truncf %147 : vector<11x16xf32> to vector<11x16xbf16>
    %149 = arith.truncf %132 : vector<16x8xf32> to vector<16x8xbf16>
    %cst_74 = arith.constant dense<0.000000e+00> : vector<11x8xf32>
    %150 = tpu.matmul %148, %149, %cst_74 {dimension_numbers = #tpu.dot_dimension_numbers<[1], [0], [0], [1], [0, 0, 1, 1], [], []>} : vector<11x16xbf16>, vector<16x8xbf16>, vector<11x8xf32> -> vector<11x8xf32>
    %151 = vector.extract_strided_slice %113 {offsets = [0, 8], sizes = [11, 8], strides = [1, 1]} : vector<11x16xf32> to vector<11x8xf32>
    %152 = vector.extract_strided_slice %121 {offsets = [0, 8], sizes = [16, 8], strides = [1, 1]} : vector<16x16xf32> to vector<16x8xf32>
    %153 = vector.extract_strided_slice %129 {offsets = [0, 8], sizes = [16, 8], strides = [1, 1]} : vector<16x16xf32> to vector<16x8xf32>
    %154 = arith.truncf %151 : vector<11x8xf32> to vector<11x8xbf16>
    %155 = arith.truncf %152 : vector<16x8xf32> to vector<16x8xbf16>
    %cst_75 = arith.constant dense<0.000000e+00> : vector<11x16xf32>
    %156 = tpu.matmul %154, %155, %cst_75 {dimension_numbers = #tpu.dot_dimension_numbers<[1], [1], [0], [0], [0, 0, 1, 0], [], []>} : vector<11x8xbf16>, vector<16x8xbf16>, vector<11x16xf32> -> vector<11x16xf32>
    %cst_76 = arith.constant 0.353553385 : f32
    %157 = vector.broadcast %cst_76 : f32 to vector<11x16xf32>
    %158 = arith.mulf %156, %157 : vector<11x16xf32>
    %cst_77 = arith.constant dense<0xFF800000> : vector<11xf32>
    %159 = vector.multi_reduction <maximumf>, %158, %cst_77 [1] : vector<11x16xf32> to vector<11xf32>
    %160 = vector.shape_cast %159 : vector<11xf32> to vector<11x1xf32>
    %161 = vector.broadcast %160 : vector<11x1xf32> to vector<11x16xf32>
    %162 = arith.subf %158, %161 : vector<11x16xf32>
    %163 = math.exp %162 : vector<11x16xf32>
    %cst_78 = arith.constant dense<0.000000e+00> : vector<11xf32>
    %164 = vector.multi_reduction <add>, %163, %cst_78 [1] : vector<11x16xf32> to vector<11xf32>
    %165 = vector.shape_cast %164 : vector<11xf32> to vector<11x1xf32>
    %166 = tpu.reciprocal %165 {approx = true} : vector<11x1xf32> -> vector<11x1xf32>
    %167 = vector.broadcast %166 : vector<11x1xf32> to vector<11x16xf32>
    %168 = arith.mulf %163, %167 : vector<11x16xf32>
    %169 = arith.truncf %168 : vector<11x16xf32> to vector<11x16xbf16>
    %170 = arith.truncf %153 : vector<16x8xf32> to vector<16x8xbf16>
    %cst_79 = arith.constant dense<0.000000e+00> : vector<11x8xf32>
    %171 = tpu.matmul %169, %170, %cst_79 {dimension_numbers = #tpu.dot_dimension_numbers<[1], [0], [0], [1], [0, 0, 1, 1], [], []>} : vector<11x16xbf16>, vector<16x8xbf16>, vector<11x8xf32> -> vector<11x8xf32>
    %172 = tpu.concatenate %150, %171 in 1 : vector<11x8xf32>, vector<11x8xf32> -> vector<11x16xf32>
    %c7 = arith.constant 7 : index
    %c0_80 = arith.constant 0 : index
    %c0_81 = arith.constant 0 : index
    %173 = vector.load %arg4[%c7, %c0_80, %c0_81] : memref<16x16x16xbf16, #tpu.memory_space<vmem>>, vector<1x16x16xbf16>
    %174 = vector.shape_cast %173 : vector<1x16x16xbf16> to vector<16x16xbf16>
    %175 = arith.truncf %172 : vector<11x16xf32> to vector<11x16xbf16>
    %cst_82 = arith.constant dense<0.000000e+00> : vector<11x16xf32>
    %176 = tpu.matmul %175, %174, %cst_82 {dimension_numbers = #tpu.dot_dimension_numbers<[1], [0], [0], [1], [0, 0, 1, 1], [], []>} : vector<11x16xbf16>, vector<16x16xbf16>, vector<11x16xf32> -> vector<11x16xf32>
    %c7_83 = arith.constant 7 : index
    %c0_84 = arith.constant 0 : index
    %c0_85 = arith.constant 0 : index
    %177 = vector.load %arg5[%c7_83, %c0_84, %c0_85] : memref<16x1x16xf32, #tpu.memory_space<vmem>>, vector<1x1x16xf32>
    %178 = vector.shape_cast %177 : vector<1x1x16xf32> to vector<1x16xf32>
    %179 = vector.broadcast %178 : vector<1x16xf32> to vector<11x16xf32>
    %180 = arith.addf %176, %179 : vector<11x16xf32>
    %181 = arith.addf %104, %180 : vector<11x16xf32>
    %c1_86 = arith.constant 1 : index
    %c0_87 = arith.constant 0 : index
    %c0_88 = arith.constant 0 : index
    %182 = vector.load %arg6[%c1_86, %c0_87, %c0_88] : memref<5x1x16xf32, #tpu.memory_space<vmem>>, vector<1x1x16xf32>
    %183 = vector.shape_cast %182 : vector<1x1x16xf32> to vector<1x16xf32>
    %c1_89 = arith.constant 1 : index
    %c0_90 = arith.constant 0 : index
    %c0_91 = arith.constant 0 : index
    %184 = vector.load %arg7[%c1_89, %c0_90, %c0_91] : memref<5x1x16xf32, #tpu.memory_space<vmem>>, vector<1x1x16xf32>
    %185 = vector.shape_cast %184 : vector<1x1x16xf32> to vector<1x16xf32>
    %cst_92 = arith.constant dense<0.000000e+00> : vector<11xf32>
    %186 = vector.multi_reduction <add>, %181, %cst_92 [1] : vector<11x16xf32> to vector<11xf32>
    %187 = vector.shape_cast %186 : vector<11xf32> to vector<11x1xf32>
    %cst_93 = arith.constant 1.600000e+01 : f32
    %188 = vector.broadcast %cst_93 : f32 to vector<11x1xf32>
    %189 = arith.divf %187, %188 : vector<11x1xf32>
    %190 = vector.broadcast %189 : vector<11x1xf32> to vector<11x16xf32>
    %191 = arith.subf %181, %190 : vector<11x16xf32>
    %192 = arith.mulf %191, %191 : vector<11x16xf32>
    %cst_94 = arith.constant dense<0.000000e+00> : vector<11xf32>
    %193 = vector.multi_reduction <add>, %192, %cst_94 [1] : vector<11x16xf32> to vector<11xf32>
    %194 = vector.shape_cast %193 : vector<11xf32> to vector<11x1xf32>
    %cst_95 = arith.constant 1.600000e+01 : f32
    %195 = vector.broadcast %cst_95 : f32 to vector<11x1xf32>
    %196 = arith.divf %194, %195 : vector<11x1xf32>
    %cst_96 = arith.constant 9.99999974E-6 : f32
    %197 = vector.broadcast %cst_96 : f32 to vector<11x1xf32>
    %198 = arith.addf %196, %197 : vector<11x1xf32>
    %199 = math.rsqrt %198 : vector<11x1xf32>
    %200 = vector.broadcast %199 : vector<11x1xf32> to vector<11x16xf32>
    %201 = arith.mulf %191, %200 : vector<11x16xf32>
    %202 = vector.broadcast %183 : vector<1x16xf32> to vector<11x16xf32>
    %203 = arith.mulf %201, %202 : vector<11x16xf32>
    %204 = vector.broadcast %185 : vector<1x16xf32> to vector<11x16xf32>
    %205 = arith.addf %203, %204 : vector<11x16xf32>
    %c0_97 = arith.constant 0 : index
    %c0_98 = arith.constant 0 : index
    %206 = vector.load %arg8[%c0_97, %c0_98] : memref<16x32xbf16, #tpu.memory_space<vmem>>, vector<16x32xbf16>
    %207 = arith.truncf %205 : vector<11x16xf32> to vector<11x16xbf16>
    %cst_99 = arith.constant dense<0.000000e+00> : vector<11x32xf32>
    %208 = tpu.matmul %207, %206, %cst_99 {dimension_numbers = #tpu.dot_dimension_numbers<[1], [0], [0], [1], [0, 0, 1, 1], [], []>} : vector<11x16xbf16>, vector<16x32xbf16>, vector<11x32xf32> -> vector<11x32xf32>
    %c0_100 = arith.constant 0 : index
    %c0_101 = arith.constant 0 : index
    %209 = vector.load %arg9[%c0_100, %c0_101] : memref<1x32xf32, #tpu.memory_space<vmem>>, vector<1x32xf32>
    %210 = vector.broadcast %209 : vector<1x32xf32> to vector<11x32xf32>
    %211 = arith.addf %208, %210 : vector<11x32xf32>
    %212 = arith.mulf %211, %211 : vector<11x32xf32>
    %213 = arith.mulf %211, %212 : vector<11x32xf32>
    %cst_102 = arith.constant 4.471500e-02 : f32
    %214 = vector.broadcast %cst_102 : f32 to vector<11x32xf32>
    %215 = arith.mulf %214, %213 : vector<11x32xf32>
    %216 = arith.addf %211, %215 : vector<11x32xf32>
    %cst_103 = arith.constant 0.797884583 : f32
    %217 = vector.broadcast %cst_103 : f32 to vector<11x32xf32>
    %218 = arith.mulf %217, %216 : vector<11x32xf32>
    %219 = math.tanh %218 : vector<11x32xf32>
    %cst_104 = arith.constant 1.000000e+00 : f32
    %220 = vector.broadcast %cst_104 : f32 to vector<11x32xf32>
    %221 = arith.addf %220, %219 : vector<11x32xf32>
    %cst_105 = arith.constant 5.000000e-01 : f32
    %222 = vector.broadcast %cst_105 : f32 to vector<11x32xf32>
    %223 = arith.mulf %222, %221 : vector<11x32xf32>
    %224 = arith.mulf %211, %223 : vector<11x32xf32>
    %c0_106 = arith.constant 0 : index
    %c0_107 = arith.constant 0 : index
    %225 = vector.load %arg10[%c0_106, %c0_107] : memref<32x16xbf16, #tpu.memory_space<vmem>>, vector<32x16xbf16>
    %226 = arith.truncf %224 : vector<11x32xf32> to vector<11x32xbf16>
    %cst_108 = arith.constant dense<0.000000e+00> : vector<11x16xf32>
    %227 = tpu.matmul %226, %225, %cst_108 {dimension_numbers = #tpu.dot_dimension_numbers<[1], [0], [0], [1], [0, 0, 1, 1], [], []>} : vector<11x32xbf16>, vector<32x16xbf16>, vector<11x16xf32> -> vector<11x16xf32>
    %c0_109 = arith.constant 0 : index
    %c0_110 = arith.constant 0 : index
    %228 = vector.load %arg11[%c0_109, %c0_110] : memref<1x16xf32, #tpu.memory_space<vmem>>, vector<1x16xf32>
    %229 = vector.broadcast %228 : vector<1x16xf32> to vector<11x16xf32>
    %230 = arith.addf %227, %229 : vector<11x16xf32>
    %231 = arith.addf %205, %230 : vector<11x16xf32>
    %c2_111 = arith.constant 2 : index
    %c0_112 = arith.constant 0 : index
    %c0_113 = arith.constant 0 : index
    %232 = vector.load %arg6[%c2_111, %c0_112, %c0_113] : memref<5x1x16xf32, #tpu.memory_space<vmem>>, vector<1x1x16xf32>
    %233 = vector.shape_cast %232 : vector<1x1x16xf32> to vector<1x16xf32>
    %c2_114 = arith.constant 2 : index
    %c0_115 = arith.constant 0 : index
    %c0_116 = arith.constant 0 : index
    %234 = vector.load %arg7[%c2_114, %c0_115, %c0_116] : memref<5x1x16xf32, #tpu.memory_space<vmem>>, vector<1x1x16xf32>
    %235 = vector.shape_cast %234 : vector<1x1x16xf32> to vector<1x16xf32>
    %cst_117 = arith.constant dense<0.000000e+00> : vector<11xf32>
    %236 = vector.multi_reduction <add>, %231, %cst_117 [1] : vector<11x16xf32> to vector<11xf32>
    %237 = vector.shape_cast %236 : vector<11xf32> to vector<11x1xf32>
    %cst_118 = arith.constant 1.600000e+01 : f32
    %238 = vector.broadcast %cst_118 : f32 to vector<11x1xf32>
    %239 = arith.divf %237, %238 : vector<11x1xf32>
    %240 = vector.broadcast %239 : vector<11x1xf32> to vector<11x16xf32>
    %241 = arith.subf %231, %240 : vector<11x16xf32>
    %242 = arith.mulf %241, %241 : vector<11x16xf32>
    %cst_119 = arith.constant dense<0.000000e+00> : vector<11xf32>
    %243 = vector.multi_reduction <add>, %242, %cst_119 [1] : vector<11x16xf32> to vector<11xf32>
    %244 = vector.shape_cast %243 : vector<11xf32> to vector<11x1xf32>
    %cst_120 = arith.constant 1.600000e+01 : f32
    %245 = vector.broadcast %cst_120 : f32 to vector<11x1xf32>
    %246 = arith.divf %244, %245 : vector<11x1xf32>
    %cst_121 = arith.constant 9.99999974E-6 : f32
    %247 = vector.broadcast %cst_121 : f32 to vector<11x1xf32>
    %248 = arith.addf %246, %247 : vector<11x1xf32>
    %249 = math.rsqrt %248 : vector<11x1xf32>
    %250 = vector.broadcast %249 : vector<11x1xf32> to vector<11x16xf32>
    %251 = arith.mulf %241, %250 : vector<11x16xf32>
    %252 = vector.broadcast %233 : vector<1x16xf32> to vector<11x16xf32>
    %253 = arith.mulf %251, %252 : vector<11x16xf32>
    %254 = vector.broadcast %235 : vector<1x16xf32> to vector<11x16xf32>
    %255 = arith.addf %253, %254 : vector<11x16xf32>
    %256 = arith.addf %3, %4 : vector<16x16xf32>
    %c8 = arith.constant 8 : index
    %c0_122 = arith.constant 0 : index
    %c0_123 = arith.constant 0 : index
    %257 = vector.load %arg4[%c8, %c0_122, %c0_123] : memref<16x16x16xbf16, #tpu.memory_space<vmem>>, vector<1x16x16xbf16>
    %258 = vector.shape_cast %257 : vector<1x16x16xbf16> to vector<16x16xbf16>
    %259 = arith.truncf %256 : vector<16x16xf32> to vector<16x16xbf16>
    %cst_124 = arith.constant dense<0.000000e+00> : vector<16x16xf32>
    %260 = tpu.matmul %259, %258, %cst_124 {dimension_numbers = #tpu.dot_dimension_numbers<[1], [0], [0], [1], [0, 0, 1, 1], [], []>} : vector<16x16xbf16>, vector<16x16xbf16>, vector<16x16xf32> -> vector<16x16xf32>
    %c8_125 = arith.constant 8 : index
    %c0_126 = arith.constant 0 : index
    %c0_127 = arith.constant 0 : index
    %261 = vector.load %arg5[%c8_125, %c0_126, %c0_127] : memref<16x1x16xf32, #tpu.memory_space<vmem>>, vector<1x1x16xf32>
    %262 = vector.shape_cast %261 : vector<1x1x16xf32> to vector<1x16xf32>
    %263 = vector.broadcast %262 : vector<1x16xf32> to vector<16x16xf32>
    %264 = arith.addf %260, %263 : vector<16x16xf32>
    %c9 = arith.constant 9 : index
    %c0_128 = arith.constant 0 : index
    %c0_129 = arith.constant 0 : index
    %265 = vector.load %arg4[%c9, %c0_128, %c0_129] : memref<16x16x16xbf16, #tpu.memory_space<vmem>>, vector<1x16x16xbf16>
    %266 = vector.shape_cast %265 : vector<1x16x16xbf16> to vector<16x16xbf16>
    %267 = arith.truncf %255 : vector<11x16xf32> to vector<11x16xbf16>
    %cst_130 = arith.constant dense<0.000000e+00> : vector<11x16xf32>
    %268 = tpu.matmul %267, %266, %cst_130 {dimension_numbers = #tpu.dot_dimension_numbers<[1], [0], [0], [1], [0, 0, 1, 1], [], []>} : vector<11x16xbf16>, vector<16x16xbf16>, vector<11x16xf32> -> vector<11x16xf32>
    %c9_131 = arith.constant 9 : index
    %c0_132 = arith.constant 0 : index
    %c0_133 = arith.constant 0 : index
    %269 = vector.load %arg5[%c9_131, %c0_132, %c0_133] : memref<16x1x16xf32, #tpu.memory_space<vmem>>, vector<1x1x16xf32>
    %270 = vector.shape_cast %269 : vector<1x1x16xf32> to vector<1x16xf32>
    %271 = vector.broadcast %270 : vector<1x16xf32> to vector<11x16xf32>
    %272 = arith.addf %268, %271 : vector<11x16xf32>
    %c10 = arith.constant 10 : index
    %c0_134 = arith.constant 0 : index
    %c0_135 = arith.constant 0 : index
    %273 = vector.load %arg4[%c10, %c0_134, %c0_135] : memref<16x16x16xbf16, #tpu.memory_space<vmem>>, vector<1x16x16xbf16>
    %274 = vector.shape_cast %273 : vector<1x16x16xbf16> to vector<16x16xbf16>
    %275 = arith.truncf %255 : vector<11x16xf32> to vector<11x16xbf16>
    %cst_136 = arith.constant dense<0.000000e+00> : vector<11x16xf32>
    %276 = tpu.matmul %275, %274, %cst_136 {dimension_numbers = #tpu.dot_dimension_numbers<[1], [0], [0], [1], [0, 0, 1, 1], [], []>} : vector<11x16xbf16>, vector<16x16xbf16>, vector<11x16xf32> -> vector<11x16xf32>
    %c10_137 = arith.constant 10 : index
    %c0_138 = arith.constant 0 : index
    %c0_139 = arith.constant 0 : index
    %277 = vector.load %arg5[%c10_137, %c0_138, %c0_139] : memref<16x1x16xf32, #tpu.memory_space<vmem>>, vector<1x1x16xf32>
    %278 = vector.shape_cast %277 : vector<1x1x16xf32> to vector<1x16xf32>
    %279 = vector.broadcast %278 : vector<1x16xf32> to vector<11x16xf32>
    %280 = arith.addf %276, %279 : vector<11x16xf32>
    %281 = vector.extract_strided_slice %264 {offsets = [0, 0], sizes = [16, 8], strides = [1, 1]} : vector<16x16xf32> to vector<16x8xf32>
    %282 = vector.extract_strided_slice %272 {offsets = [0, 0], sizes = [11, 8], strides = [1, 1]} : vector<11x16xf32> to vector<11x8xf32>
    %283 = vector.extract_strided_slice %280 {offsets = [0, 0], sizes = [11, 8], strides = [1, 1]} : vector<11x16xf32> to vector<11x8xf32>
    %284 = arith.truncf %281 : vector<16x8xf32> to vector<16x8xbf16>
    %285 = arith.truncf %282 : vector<11x8xf32> to vector<11x8xbf16>
    %cst_140 = arith.constant dense<0.000000e+00> : vector<16x11xf32>
    %286 = tpu.matmul %284, %285, %cst_140 {dimension_numbers = #tpu.dot_dimension_numbers<[1], [1], [0], [0], [0, 0, 1, 0], [], []>} : vector<16x8xbf16>, vector<11x8xbf16>, vector<16x11xf32> -> vector<16x11xf32>
    %cst_141 = arith.constant 0.353553385 : f32
    %287 = vector.broadcast %cst_141 : f32 to vector<16x11xf32>
    %288 = arith.mulf %286, %287 : vector<16x11xf32>
    %cst_142 = arith.constant dense<0xFF800000> : vector<16xf32>
    %289 = vector.multi_reduction <maximumf>, %288, %cst_142 [1] : vector<16x11xf32> to vector<16xf32>
    %290 = vector.shape_cast %289 : vector<16xf32> to vector<16x1xf32>
    %291 = vector.broadcast %290 : vector<16x1xf32> to vector<16x11xf32>
    %292 = arith.subf %288, %291 : vector<16x11xf32>
    %293 = math.exp %292 : vector<16x11xf32>
    %cst_143 = arith.constant dense<0.000000e+00> : vector<16xf32>
    %294 = vector.multi_reduction <add>, %293, %cst_143 [1] : vector<16x11xf32> to vector<16xf32>
    %295 = vector.shape_cast %294 : vector<16xf32> to vector<16x1xf32>
    %296 = tpu.reciprocal %295 {approx = true} : vector<16x1xf32> -> vector<16x1xf32>
    %297 = vector.broadcast %296 : vector<16x1xf32> to vector<16x11xf32>
    %298 = arith.mulf %293, %297 : vector<16x11xf32>
    %299 = arith.truncf %298 : vector<16x11xf32> to vector<16x11xbf16>
    %300 = arith.truncf %283 : vector<11x8xf32> to vector<11x8xbf16>
    %cst_144 = arith.constant dense<0.000000e+00> : vector<16x8xf32>
    %301 = tpu.matmul %299, %300, %cst_144 {dimension_numbers = #tpu.dot_dimension_numbers<[1], [0], [0], [1], [0, 0, 1, 1], [], []>} : vector<16x11xbf16>, vector<11x8xbf16>, vector<16x8xf32> -> vector<16x8xf32>
    %302 = vector.extract_strided_slice %264 {offsets = [0, 8], sizes = [16, 8], strides = [1, 1]} : vector<16x16xf32> to vector<16x8xf32>
    %303 = vector.extract_strided_slice %272 {offsets = [0, 8], sizes = [11, 8], strides = [1, 1]} : vector<11x16xf32> to vector<11x8xf32>
    %304 = vector.extract_strided_slice %280 {offsets = [0, 8], sizes = [11, 8], strides = [1, 1]} : vector<11x16xf32> to vector<11x8xf32>
    %305 = arith.truncf %302 : vector<16x8xf32> to vector<16x8xbf16>
    %306 = arith.truncf %303 : vector<11x8xf32> to vector<11x8xbf16>
    %cst_145 = arith.constant dense<0.000000e+00> : vector<16x11xf32>
    %307 = tpu.matmul %305, %306, %cst_145 {dimension_numbers = #tpu.dot_dimension_numbers<[1], [1], [0], [0], [0, 0, 1, 0], [], []>} : vector<16x8xbf16>, vector<11x8xbf16>, vector<16x11xf32> -> vector<16x11xf32>
    %cst_146 = arith.constant 0.353553385 : f32
    %308 = vector.broadcast %cst_146 : f32 to vector<16x11xf32>
    %309 = arith.mulf %307, %308 : vector<16x11xf32>
    %cst_147 = arith.constant dense<0xFF800000> : vector<16xf32>
    %310 = vector.multi_reduction <maximumf>, %309, %cst_147 [1] : vector<16x11xf32> to vector<16xf32>
    %311 = vector.shape_cast %310 : vector<16xf32> to vector<16x1xf32>
    %312 = vector.broadcast %311 : vector<16x1xf32> to vector<16x11xf32>
    %313 = arith.subf %309, %312 : vector<16x11xf32>
    %314 = math.exp %313 : vector<16x11xf32>
    %cst_148 = arith.constant dense<0.000000e+00> : vector<16xf32>
    %315 = vector.multi_reduction <add>, %314, %cst_148 [1] : vector<16x11xf32> to vector<16xf32>
    %316 = vector.shape_cast %315 : vector<16xf32> to vector<16x1xf32>
    %317 = tpu.reciprocal %316 {approx = true} : vector<16x1xf32> -> vector<16x1xf32>
    %318 = vector.broadcast %317 : vector<16x1xf32> to vector<16x11xf32>
    %319 = arith.mulf %314, %318 : vector<16x11xf32>
    %320 = arith.truncf %319 : vector<16x11xf32> to vector<16x11xbf16>
    %321 = arith.truncf %304 : vector<11x8xf32> to vector<11x8xbf16>
    %cst_149 = arith.constant dense<0.000000e+00> : vector<16x8xf32>
    %322 = tpu.matmul %320, %321, %cst_149 {dimension_numbers = #tpu.dot_dimension_numbers<[1], [0], [0], [1], [0, 0, 1, 1], [], []>} : vector<16x11xbf16>, vector<11x8xbf16>, vector<16x8xf32> -> vector<16x8xf32>
    %323 = tpu.concatenate %301, %322 in 1 : vector<16x8xf32>, vector<16x8xf32> -> vector<16x16xf32>
    %c11 = arith.constant 11 : index
    %c0_150 = arith.constant 0 : index
    %c0_151 = arith.constant 0 : index
    %324 = vector.load %arg4[%c11, %c0_150, %c0_151] : memref<16x16x16xbf16, #tpu.memory_space<vmem>>, vector<1x16x16xbf16>
    %325 = vector.shape_cast %324 : vector<1x16x16xbf16> to vector<16x16xbf16>
    %326 = arith.truncf %323 : vector<16x16xf32> to vector<16x16xbf16>
    %cst_152 = arith.constant dense<0.000000e+00> : vector<16x16xf32>
    %327 = tpu.matmul %326, %325, %cst_152 {dimension_numbers = #tpu.dot_dimension_numbers<[1], [0], [0], [1], [0, 0, 1, 1], [], []>} : vector<16x16xbf16>, vector<16x16xbf16>, vector<16x16xf32> -> vector<16x16xf32>
    %c11_153 = arith.constant 11 : index
    %c0_154 = arith.constant 0 : index
    %c0_155 = arith.constant 0 : index
    %328 = vector.load %arg5[%c11_153, %c0_154, %c0_155] : memref<16x1x16xf32, #tpu.memory_space<vmem>>, vector<1x1x16xf32>
    %329 = vector.shape_cast %328 : vector<1x1x16xf32> to vector<1x16xf32>
    %330 = vector.broadcast %329 : vector<1x16xf32> to vector<16x16xf32>
    %331 = arith.addf %327, %330 : vector<16x16xf32>
    %332 = arith.addf %3, %331 : vector<16x16xf32>
    %c3_156 = arith.constant 3 : index
    %c0_157 = arith.constant 0 : index
    %c0_158 = arith.constant 0 : index
    %333 = vector.load %arg6[%c3_156, %c0_157, %c0_158] : memref<5x1x16xf32, #tpu.memory_space<vmem>>, vector<1x1x16xf32>
    %334 = vector.shape_cast %333 : vector<1x1x16xf32> to vector<1x16xf32>
    %c3_159 = arith.constant 3 : index
    %c0_160 = arith.constant 0 : index
    %c0_161 = arith.constant 0 : index
    %335 = vector.load %arg7[%c3_159, %c0_160, %c0_161] : memref<5x1x16xf32, #tpu.memory_space<vmem>>, vector<1x1x16xf32>
    %336 = vector.shape_cast %335 : vector<1x1x16xf32> to vector<1x16xf32>
    %cst_162 = arith.constant dense<0.000000e+00> : vector<16xf32>
    %337 = vector.multi_reduction <add>, %332, %cst_162 [1] : vector<16x16xf32> to vector<16xf32>
    %338 = vector.shape_cast %337 : vector<16xf32> to vector<16x1xf32>
    %cst_163 = arith.constant 1.600000e+01 : f32
    %339 = vector.broadcast %cst_163 : f32 to vector<16x1xf32>
    %340 = arith.divf %338, %339 : vector<16x1xf32>
    %341 = vector.broadcast %340 : vector<16x1xf32> to vector<16x16xf32>
    %342 = arith.subf %332, %341 : vector<16x16xf32>
    %343 = arith.mulf %342, %342 : vector<16x16xf32>
    %cst_164 = arith.constant dense<0.000000e+00> : vector<16xf32>
    %344 = vector.multi_reduction <add>, %343, %cst_164 [1] : vector<16x16xf32> to vector<16xf32>
    %345 = vector.shape_cast %344 : vector<16xf32> to vector<16x1xf32>
    %cst_165 = arith.constant 1.600000e+01 : f32
    %346 = vector.broadcast %cst_165 : f32 to vector<16x1xf32>
    %347 = arith.divf %345, %346 : vector<16x1xf32>
    %cst_166 = arith.constant 9.99999974E-6 : f32
    %348 = vector.broadcast %cst_166 : f32 to vector<16x1xf32>
    %349 = arith.addf %347, %348 : vector<16x1xf32>
    %350 = math.rsqrt %349 : vector<16x1xf32>
    %351 = vector.broadcast %350 : vector<16x1xf32> to vector<16x16xf32>
    %352 = arith.mulf %342, %351 : vector<16x16xf32>
    %353 = vector.broadcast %334 : vector<1x16xf32> to vector<16x16xf32>
    %354 = arith.mulf %352, %353 : vector<16x16xf32>
    %355 = vector.broadcast %336 : vector<1x16xf32> to vector<16x16xf32>
    %356 = arith.addf %354, %355 : vector<16x16xf32>
    %357 = arith.addf %356, %4 : vector<16x16xf32>
    %c12 = arith.constant 12 : index
    %c0_167 = arith.constant 0 : index
    %c0_168 = arith.constant 0 : index
    %358 = vector.load %arg4[%c12, %c0_167, %c0_168] : memref<16x16x16xbf16, #tpu.memory_space<vmem>>, vector<1x16x16xbf16>
    %359 = vector.shape_cast %358 : vector<1x16x16xbf16> to vector<16x16xbf16>
    %360 = arith.truncf %255 : vector<11x16xf32> to vector<11x16xbf16>
    %cst_169 = arith.constant dense<0.000000e+00> : vector<11x16xf32>
    %361 = tpu.matmul %360, %359, %cst_169 {dimension_numbers = #tpu.dot_dimension_numbers<[1], [0], [0], [1], [0, 0, 1, 1], [], []>} : vector<11x16xbf16>, vector<16x16xbf16>, vector<11x16xf32> -> vector<11x16xf32>
    %c12_170 = arith.constant 12 : index
    %c0_171 = arith.constant 0 : index
    %c0_172 = arith.constant 0 : index
    %362 = vector.load %arg5[%c12_170, %c0_171, %c0_172] : memref<16x1x16xf32, #tpu.memory_space<vmem>>, vector<1x1x16xf32>
    %363 = vector.shape_cast %362 : vector<1x1x16xf32> to vector<1x16xf32>
    %364 = vector.broadcast %363 : vector<1x16xf32> to vector<11x16xf32>
    %365 = arith.addf %361, %364 : vector<11x16xf32>
    %c13 = arith.constant 13 : index
    %c0_173 = arith.constant 0 : index
    %c0_174 = arith.constant 0 : index
    %366 = vector.load %arg4[%c13, %c0_173, %c0_174] : memref<16x16x16xbf16, #tpu.memory_space<vmem>>, vector<1x16x16xbf16>
    %367 = vector.shape_cast %366 : vector<1x16x16xbf16> to vector<16x16xbf16>
    %368 = arith.truncf %357 : vector<16x16xf32> to vector<16x16xbf16>
    %cst_175 = arith.constant dense<0.000000e+00> : vector<16x16xf32>
    %369 = tpu.matmul %368, %367, %cst_175 {dimension_numbers = #tpu.dot_dimension_numbers<[1], [0], [0], [1], [0, 0, 1, 1], [], []>} : vector<16x16xbf16>, vector<16x16xbf16>, vector<16x16xf32> -> vector<16x16xf32>
    %c13_176 = arith.constant 13 : index
    %c0_177 = arith.constant 0 : index
    %c0_178 = arith.constant 0 : index
    %370 = vector.load %arg5[%c13_176, %c0_177, %c0_178] : memref<16x1x16xf32, #tpu.memory_space<vmem>>, vector<1x1x16xf32>
    %371 = vector.shape_cast %370 : vector<1x1x16xf32> to vector<1x16xf32>
    %372 = vector.broadcast %371 : vector<1x16xf32> to vector<16x16xf32>
    %373 = arith.addf %369, %372 : vector<16x16xf32>
    %c14 = arith.constant 14 : index
    %c0_179 = arith.constant 0 : index
    %c0_180 = arith.constant 0 : index
    %374 = vector.load %arg4[%c14, %c0_179, %c0_180] : memref<16x16x16xbf16, #tpu.memory_space<vmem>>, vector<1x16x16xbf16>
    %375 = vector.shape_cast %374 : vector<1x16x16xbf16> to vector<16x16xbf16>
    %376 = arith.truncf %356 : vector<16x16xf32> to vector<16x16xbf16>
    %cst_181 = arith.constant dense<0.000000e+00> : vector<16x16xf32>
    %377 = tpu.matmul %376, %375, %cst_181 {dimension_numbers = #tpu.dot_dimension_numbers<[1], [0], [0], [1], [0, 0, 1, 1], [], []>} : vector<16x16xbf16>, vector<16x16xbf16>, vector<16x16xf32> -> vector<16x16xf32>
    %c14_182 = arith.constant 14 : index
    %c0_183 = arith.constant 0 : index
    %c0_184 = arith.constant 0 : index
    %378 = vector.load %arg5[%c14_182, %c0_183, %c0_184] : memref<16x1x16xf32, #tpu.memory_space<vmem>>, vector<1x1x16xf32>
    %379 = vector.shape_cast %378 : vector<1x1x16xf32> to vector<1x16xf32>
    %380 = vector.broadcast %379 : vector<1x16xf32> to vector<16x16xf32>
    %381 = arith.addf %377, %380 : vector<16x16xf32>
    %382 = vector.extract_strided_slice %365 {offsets = [0, 0], sizes = [11, 8], strides = [1, 1]} : vector<11x16xf32> to vector<11x8xf32>
    %383 = vector.extract_strided_slice %373 {offsets = [0, 0], sizes = [16, 8], strides = [1, 1]} : vector<16x16xf32> to vector<16x8xf32>
    %384 = vector.extract_strided_slice %381 {offsets = [0, 0], sizes = [16, 8], strides = [1, 1]} : vector<16x16xf32> to vector<16x8xf32>
    %385 = arith.truncf %382 : vector<11x8xf32> to vector<11x8xbf16>
    %386 = arith.truncf %383 : vector<16x8xf32> to vector<16x8xbf16>
    %cst_185 = arith.constant dense<0.000000e+00> : vector<11x16xf32>
    %387 = tpu.matmul %385, %386, %cst_185 {dimension_numbers = #tpu.dot_dimension_numbers<[1], [1], [0], [0], [0, 0, 1, 0], [], []>} : vector<11x8xbf16>, vector<16x8xbf16>, vector<11x16xf32> -> vector<11x16xf32>
    %cst_186 = arith.constant 0.353553385 : f32
    %388 = vector.broadcast %cst_186 : f32 to vector<11x16xf32>
    %389 = arith.mulf %387, %388 : vector<11x16xf32>
    %cst_187 = arith.constant dense<0xFF800000> : vector<11xf32>
    %390 = vector.multi_reduction <maximumf>, %389, %cst_187 [1] : vector<11x16xf32> to vector<11xf32>
    %391 = vector.shape_cast %390 : vector<11xf32> to vector<11x1xf32>
    %392 = vector.broadcast %391 : vector<11x1xf32> to vector<11x16xf32>
    %393 = arith.subf %389, %392 : vector<11x16xf32>
    %394 = math.exp %393 : vector<11x16xf32>
    %cst_188 = arith.constant dense<0.000000e+00> : vector<11xf32>
    %395 = vector.multi_reduction <add>, %394, %cst_188 [1] : vector<11x16xf32> to vector<11xf32>
    %396 = vector.shape_cast %395 : vector<11xf32> to vector<11x1xf32>
    %397 = tpu.reciprocal %396 {approx = true} : vector<11x1xf32> -> vector<11x1xf32>
    %398 = vector.broadcast %397 : vector<11x1xf32> to vector<11x16xf32>
    %399 = arith.mulf %394, %398 : vector<11x16xf32>
    %400 = arith.truncf %399 : vector<11x16xf32> to vector<11x16xbf16>
    %401 = arith.truncf %384 : vector<16x8xf32> to vector<16x8xbf16>
    %cst_189 = arith.constant dense<0.000000e+00> : vector<11x8xf32>
    %402 = tpu.matmul %400, %401, %cst_189 {dimension_numbers = #tpu.dot_dimension_numbers<[1], [0], [0], [1], [0, 0, 1, 1], [], []>} : vector<11x16xbf16>, vector<16x8xbf16>, vector<11x8xf32> -> vector<11x8xf32>
    %403 = vector.extract_strided_slice %365 {offsets = [0, 8], sizes = [11, 8], strides = [1, 1]} : vector<11x16xf32> to vector<11x8xf32>
    %404 = vector.extract_strided_slice %373 {offsets = [0, 8], sizes = [16, 8], strides = [1, 1]} : vector<16x16xf32> to vector<16x8xf32>
    %405 = vector.extract_strided_slice %381 {offsets = [0, 8], sizes = [16, 8], strides = [1, 1]} : vector<16x16xf32> to vector<16x8xf32>
    %406 = arith.truncf %403 : vector<11x8xf32> to vector<11x8xbf16>
    %407 = arith.truncf %404 : vector<16x8xf32> to vector<16x8xbf16>
    %cst_190 = arith.constant dense<0.000000e+00> : vector<11x16xf32>
    %408 = tpu.matmul %406, %407, %cst_190 {dimension_numbers = #tpu.dot_dimension_numbers<[1], [1], [0], [0], [0, 0, 1, 0], [], []>} : vector<11x8xbf16>, vector<16x8xbf16>, vector<11x16xf32> -> vector<11x16xf32>
    %cst_191 = arith.constant 0.353553385 : f32
    %409 = vector.broadcast %cst_191 : f32 to vector<11x16xf32>
    %410 = arith.mulf %408, %409 : vector<11x16xf32>
    %cst_192 = arith.constant dense<0xFF800000> : vector<11xf32>
    %411 = vector.multi_reduction <maximumf>, %410, %cst_192 [1] : vector<11x16xf32> to vector<11xf32>
    %412 = vector.shape_cast %411 : vector<11xf32> to vector<11x1xf32>
    %413 = vector.broadcast %412 : vector<11x1xf32> to vector<11x16xf32>
    %414 = arith.subf %410, %413 : vector<11x16xf32>
    %415 = math.exp %414 : vector<11x16xf32>
    %cst_193 = arith.constant dense<0.000000e+00> : vector<11xf32>
    %416 = vector.multi_reduction <add>, %415, %cst_193 [1] : vector<11x16xf32> to vector<11xf32>
    %417 = vector.shape_cast %416 : vector<11xf32> to vector<11x1xf32>
    %418 = tpu.reciprocal %417 {approx = true} : vector<11x1xf32> -> vector<11x1xf32>
    %419 = vector.broadcast %418 : vector<11x1xf32> to vector<11x16xf32>
    %420 = arith.mulf %415, %419 : vector<11x16xf32>
    %421 = arith.truncf %420 : vector<11x16xf32> to vector<11x16xbf16>
    %422 = arith.truncf %405 : vector<16x8xf32> to vector<16x8xbf16>
    %cst_194 = arith.constant dense<0.000000e+00> : vector<11x8xf32>
    %423 = tpu.matmul %421, %422, %cst_194 {dimension_numbers = #tpu.dot_dimension_numbers<[1], [0], [0], [1], [0, 0, 1, 1], [], []>} : vector<11x16xbf16>, vector<16x8xbf16>, vector<11x8xf32> -> vector<11x8xf32>
    %424 = tpu.concatenate %402, %423 in 1 : vector<11x8xf32>, vector<11x8xf32> -> vector<11x16xf32>
    %c15 = arith.constant 15 : index
    %c0_195 = arith.constant 0 : index
    %c0_196 = arith.constant 0 : index
    %425 = vector.load %arg4[%c15, %c0_195, %c0_196] : memref<16x16x16xbf16, #tpu.memory_space<vmem>>, vector<1x16x16xbf16>
    %426 = vector.shape_cast %425 : vector<1x16x16xbf16> to vector<16x16xbf16>
    %427 = arith.truncf %424 : vector<11x16xf32> to vector<11x16xbf16>
    %cst_197 = arith.constant dense<0.000000e+00> : vector<11x16xf32>
    %428 = tpu.matmul %427, %426, %cst_197 {dimension_numbers = #tpu.dot_dimension_numbers<[1], [0], [0], [1], [0, 0, 1, 1], [], []>} : vector<11x16xbf16>, vector<16x16xbf16>, vector<11x16xf32> -> vector<11x16xf32>
    %c15_198 = arith.constant 15 : index
    %c0_199 = arith.constant 0 : index
    %c0_200 = arith.constant 0 : index
    %429 = vector.load %arg5[%c15_198, %c0_199, %c0_200] : memref<16x1x16xf32, #tpu.memory_space<vmem>>, vector<1x1x16xf32>
    %430 = vector.shape_cast %429 : vector<1x1x16xf32> to vector<1x16xf32>
    %431 = vector.broadcast %430 : vector<1x16xf32> to vector<11x16xf32>
    %432 = arith.addf %428, %431 : vector<11x16xf32>
    %433 = arith.addf %255, %432 : vector<11x16xf32>
    %c4_201 = arith.constant 4 : index
    %c0_202 = arith.constant 0 : index
    %c0_203 = arith.constant 0 : index
    %434 = vector.load %arg6[%c4_201, %c0_202, %c0_203] : memref<5x1x16xf32, #tpu.memory_space<vmem>>, vector<1x1x16xf32>
    %435 = vector.shape_cast %434 : vector<1x1x16xf32> to vector<1x16xf32>
    %c4_204 = arith.constant 4 : index
    %c0_205 = arith.constant 0 : index
    %c0_206 = arith.constant 0 : index
    %436 = vector.load %arg7[%c4_204, %c0_205, %c0_206] : memref<5x1x16xf32, #tpu.memory_space<vmem>>, vector<1x1x16xf32>
    %437 = vector.shape_cast %436 : vector<1x1x16xf32> to vector<1x16xf32>
    %cst_207 = arith.constant dense<0.000000e+00> : vector<11xf32>
    %438 = vector.multi_reduction <add>, %433, %cst_207 [1] : vector<11x16xf32> to vector<11xf32>
    %439 = vector.shape_cast %438 : vector<11xf32> to vector<11x1xf32>
    %cst_208 = arith.constant 1.600000e+01 : f32
    %440 = vector.broadcast %cst_208 : f32 to vector<11x1xf32>
    %441 = arith.divf %439, %440 : vector<11x1xf32>
    %442 = vector.broadcast %441 : vector<11x1xf32> to vector<11x16xf32>
    %443 = arith.subf %433, %442 : vector<11x16xf32>
    %444 = arith.mulf %443, %443 : vector<11x16xf32>
    %cst_209 = arith.constant dense<0.000000e+00> : vector<11xf32>
    %445 = vector.multi_reduction <add>, %444, %cst_209 [1] : vector<11x16xf32> to vector<11xf32>
    %446 = vector.shape_cast %445 : vector<11xf32> to vector<11x1xf32>
    %cst_210 = arith.constant 1.600000e+01 : f32
    %447 = vector.broadcast %cst_210 : f32 to vector<11x1xf32>
    %448 = arith.divf %446, %447 : vector<11x1xf32>
    %cst_211 = arith.constant 9.99999974E-6 : f32
    %449 = vector.broadcast %cst_211 : f32 to vector<11x1xf32>
    %450 = arith.addf %448, %449 : vector<11x1xf32>
    %451 = math.rsqrt %450 : vector<11x1xf32>
    %452 = vector.broadcast %451 : vector<11x1xf32> to vector<11x16xf32>
    %453 = arith.mulf %443, %452 : vector<11x16xf32>
    %454 = vector.broadcast %435 : vector<1x16xf32> to vector<11x16xf32>
    %455 = arith.mulf %453, %454 : vector<11x16xf32>
    %456 = vector.broadcast %437 : vector<1x16xf32> to vector<11x16xf32>
    %457 = arith.addf %455, %456 : vector<11x16xf32>
    %458 = vector.shape_cast %457 : vector<11x16xf32> to vector<1x11x16xf32>
    %c0_212 = arith.constant 0 : index
    %c0_213 = arith.constant 0 : index
    %c0_214 = arith.constant 0 : index
    %459 = vector.load %arg12[%c0_212, %c0_213, %c0_214] : memref<1x11x16xf32, #tpu.memory_space<vmem>>, vector<1x11x16xf32>
    tpu.vector_store %arg12[%c0_212, %c0_213, %c0_214], %458 {strides = array<i32>} : memref<1x11x16xf32, #tpu.memory_space<vmem>>, vector<1x11x16xf32>,
    %460 = vector.shape_cast %356 : vector<16x16xf32> to vector<1x16x16xf32>
    %c0_215 = arith.constant 0 : index
    %c0_216 = arith.constant 0 : index
    %c0_217 = arith.constant 0 : index
    %461 = vector.load %arg13[%c0_215, %c0_216, %c0_217] : memref<1x16x16xf32, #tpu.memory_space<vmem>>, vector<1x16x16xf32>
    tpu.vector_store %arg13[%c0_215, %c0_216, %c0_217], %460 {strides = array<i32>} : memref<1x16x16xf32, #tpu.memory_space<vmem>>, vector<1x16x16xf32>,
    return
  }
  func.func @transform_0(%arg0: i32) -> (i32, i32, i32) {
    %c0_i32 = arith.constant 0 : i32
    %c0_i32_0 = arith.constant 0 : i32
    %c0_i32_1 = arith.constant 0 : i32
    return %arg0, %c0_i32, %c0_i32_0 : i32, i32, i32
  }
  func.func @transform_1(%arg0: i32) -> (i32, i32, i32) {
    %c0_i32 = arith.constant 0 : i32
    %c0_i32_0 = arith.constant 0 : i32
    %c0_i32_1 = arith.constant 0 : i32
    return %arg0, %c0_i32, %c0_i32_0 : i32, i32, i32
  }
  func.func @transform_2(%arg0: i32) -> (i32, i32) {
    %c0_i32 = arith.constant 0 : i32
    %c0_i32_0 = arith.constant 0 : i32
    %c0_i32_1 = arith.constant 0 : i32
    return %c0_i32, %c0_i32_0 : i32, i32
  }
  func.func @transform_3(%arg0: i32) -> (i32, i32, i32) {
    %c0_i32 = arith.constant 0 : i32
    %c0_i32_0 = arith.constant 0 : i32
    %c0_i32_1 = arith.constant 0 : i32
    %c0_i32_2 = arith.constant 0 : i32
    return %c0_i32, %c0_i32_0, %c0_i32_1 : i32, i32, i32
  }
  func.func @transform_4(%arg0: i32) -> (i32, i32, i32) {
    %c0_i32 = arith.constant 0 : i32
    %c0_i32_0 = arith.constant 0 : i32
    %c0_i32_1 = arith.constant 0 : i32
    %c0_i32_2 = arith.constant 0 : i32
    return %c0_i32, %c0_i32_0, %c0_i32_1 : i32, i32, i32
  }
  func.func @transform_5(%arg0: i32) -> (i32, i32, i32) {
    %c0_i32 = arith.constant 0 : i32
    %c0_i32_0 = arith.constant 0 : i32
    %c0_i32_1 = arith.constant 0 : i32
    %c0_i32_2 = arith.constant 0 : i32
    return %c0_i32, %c0_i32_0, %c0_i32_1 : i32, i32, i32
  }
  func.func @transform_6(%arg0: i32) -> (i32, i32, i32) {
    %c0_i32 = arith.constant 0 : i32
    %c0_i32_0 = arith.constant 0 : i32
    %c0_i32_1 = arith.constant 0 : i32
    %c0_i32_2 = arith.constant 0 : i32
    return %c0_i32, %c0_i32_0, %c0_i32_1 : i32, i32, i32
  }
  func.func @transform_7(%arg0: i32) -> (i32, i32) {
    %c0_i32 = arith.constant 0 : i32
    %c0_i32_0 = arith.constant 0 : i32
    %c0_i32_1 = arith.constant 0 : i32
    return %c0_i32, %c0_i32_0 : i32, i32
  }
  func.func @transform_8(%arg0: i32) -> (i32, i32) {
    %c0_i32 = arith.constant 0 : i32
    %c0_i32_0 = arith.constant 0 : i32
    %c0_i32_1 = arith.constant 0 : i32
    return %c0_i32, %c0_i32_0 : i32, i32
  }
  func.func @transform_9(%arg0: i32) -> (i32, i32) {
    %c0_i32 = arith.constant 0 : i32
    %c0_i32_0 = arith.constant 0 : i32
    %c0_i32_1 = arith.constant 0 : i32
    return %c0_i32, %c0_i32_0 : i32, i32
  }
  func.func @transform_10(%arg0: i32) -> (i32, i32) {
    %c0_i32 = arith.constant 0 : i32
    %c0_i32_0 = arith.constant 0 : i32
    %c0_i32_1 = arith.constant 0 : i32
    return %c0_i32, %c0_i32_0 : i32, i32
  }
  func.func @transform_11(%arg0: i32) -> (i32, i32, i32) {
    %c0_i32 = arith.constant 0 : i32
    %c0_i32_0 = arith.constant 0 : i32
    %c0_i32_1 = arith.constant 0 : i32
    return %arg0, %c0_i32, %c0_i32_0 : i32, i32, i32
  }
  func.func @transform_12(%arg0: i32) -> (i32, i32, i32) {
    %c0_i32 = arith.constant 0 : i32
    %c0_i32_0 = arith.constant 0 : i32
    %c0_i32_1 = arith.constant 0 : i32
    return %arg0, %c0_i32, %c0_i32_0 : i32, i32, i32
  }
}

module attributes {stable_mosaic.version = 11 : i64} {
  func.func @_up1_kernel(%arg0: memref<32x16xf32, #tpu.memory_space<vmem>>, %arg1: memref<16x16xbf16, #tpu.memory_space<vmem>>, %arg2: memref<1x16xf32, #tpu.memory_space<vmem>>, %arg3: memref<1x4xf32, #tpu.memory_space<vmem>>, %arg4: memref<1x4xf32, #tpu.memory_space<vmem>>, %arg5: memref<32x16xf32, #tpu.memory_space<vmem>>) attributes {dimension_semantics = [], scalar_prefetch = 0 : i64, scratch_operands = 0 : i64, tpu.core_type = #tpu.core_type<tc>} {
    %c0 = arith.constant 0 : index
    %c0_0 = arith.constant 0 : index
    %0 = vector.load %arg0[%c0, %c0_0] : memref<32x16xf32, #tpu.memory_space<vmem>>, vector<32x16xf32>
    %c0_1 = arith.constant 0 : index
    %c0_2 = arith.constant 0 : index
    %1 = vector.load %arg1[%c0_1, %c0_2] : memref<16x16xbf16, #tpu.memory_space<vmem>>, vector<16x16xbf16>
    %2 = arith.truncf %0 : vector<32x16xf32> to vector<32x16xbf16>
    %cst = arith.constant dense<0.000000e+00> : vector<32x16xf32>
    %3 = tpu.matmul %2, %1, %cst {dimension_numbers = #tpu.dot_dimension_numbers<[1], [0], [0], [1], [0, 0, 1, 1], [], []>} : vector<32x16xbf16>, vector<16x16xbf16>, vector<32x16xf32> -> vector<32x16xf32>
    %c0_3 = arith.constant 0 : index
    %c0_4 = arith.constant 0 : index
    %4 = vector.load %arg2[%c0_3, %c0_4] : memref<1x16xf32, #tpu.memory_space<vmem>>, vector<1x16xf32>
    %5 = vector.broadcast %4 : vector<1x16xf32> to vector<32x16xf32>
    %6 = arith.addf %3, %5 : vector<32x16xf32>
    %7 = vector.extract_strided_slice %6 {offsets = [0, 0], sizes = [32, 4], strides = [1, 1]} : vector<32x16xf32> to vector<32x4xf32>
    %c0_5 = arith.constant 0 : index
    %c0_6 = arith.constant 0 : index
    %8 = vector.load %arg3[%c0_5, %c0_6] : memref<1x4xf32, #tpu.memory_space<vmem>>, vector<1x4xf32>
    %c0_7 = arith.constant 0 : index
    %c0_8 = arith.constant 0 : index
    %9 = vector.load %arg4[%c0_7, %c0_8] : memref<1x4xf32, #tpu.memory_space<vmem>>, vector<1x4xf32>
    %cst_9 = arith.constant dense<0.000000e+00> : vector<32xf32>
    %10 = vector.multi_reduction <add>, %7, %cst_9 [1] : vector<32x4xf32> to vector<32xf32>
    %11 = vector.shape_cast %10 : vector<32xf32> to vector<32x1xf32>
    %cst_10 = arith.constant 4.000000e+00 : f32
    %12 = vector.broadcast %cst_10 : f32 to vector<32x1xf32>
    %13 = arith.divf %11, %12 : vector<32x1xf32>
    %14 = vector.broadcast %13 : vector<32x1xf32> to vector<32x4xf32>
    %15 = arith.subf %7, %14 : vector<32x4xf32>
    %16 = arith.mulf %15, %15 : vector<32x4xf32>
    %cst_11 = arith.constant dense<0.000000e+00> : vector<32xf32>
    %17 = vector.multi_reduction <add>, %16, %cst_11 [1] : vector<32x4xf32> to vector<32xf32>
    %18 = vector.shape_cast %17 : vector<32xf32> to vector<32x1xf32>
    %cst_12 = arith.constant 4.000000e+00 : f32
    %19 = vector.broadcast %cst_12 : f32 to vector<32x1xf32>
    %20 = arith.divf %18, %19 : vector<32x1xf32>
    %cst_13 = arith.constant 9.99999997E-7 : f32
    %21 = vector.broadcast %cst_13 : f32 to vector<32x1xf32>
    %22 = arith.addf %20, %21 : vector<32x1xf32>
    %23 = math.rsqrt %22 : vector<32x1xf32>
    %24 = vector.broadcast %23 : vector<32x1xf32> to vector<32x4xf32>
    %25 = arith.mulf %15, %24 : vector<32x4xf32>
    %26 = vector.broadcast %8 : vector<1x4xf32> to vector<32x4xf32>
    %27 = arith.mulf %25, %26 : vector<32x4xf32>
    %28 = vector.broadcast %9 : vector<1x4xf32> to vector<32x4xf32>
    %29 = arith.addf %27, %28 : vector<32x4xf32>
    %30 = arith.mulf %29, %29 : vector<32x4xf32>
    %31 = arith.mulf %29, %30 : vector<32x4xf32>
    %cst_14 = arith.constant 4.471500e-02 : f32
    %32 = vector.broadcast %cst_14 : f32 to vector<32x4xf32>
    %33 = arith.mulf %32, %31 : vector<32x4xf32>
    %34 = arith.addf %29, %33 : vector<32x4xf32>
    %cst_15 = arith.constant 0.797884583 : f32
    %35 = vector.broadcast %cst_15 : f32 to vector<32x4xf32>
    %36 = arith.mulf %35, %34 : vector<32x4xf32>
    %37 = math.tanh %36 : vector<32x4xf32>
    %cst_16 = arith.constant 1.000000e+00 : f32
    %38 = vector.broadcast %cst_16 : f32 to vector<32x4xf32>
    %39 = arith.addf %38, %37 : vector<32x4xf32>
    %cst_17 = arith.constant 5.000000e-01 : f32
    %40 = vector.broadcast %cst_17 : f32 to vector<32x4xf32>
    %41 = arith.mulf %40, %39 : vector<32x4xf32>
    %42 = arith.mulf %29, %41 : vector<32x4xf32>
    %c0_18 = arith.constant 0 : index
    %c0_19 = arith.constant 0 : index
    %43 = vector.load %arg5[%c0_18, %c0_19] : memref<32x16xf32, #tpu.memory_space<vmem>>, vector<32x4xf32>
    tpu.vector_store %arg5[%c0_18, %c0_19], %42 {strides = array<i32>} : memref<32x16xf32, #tpu.memory_space<vmem>>, vector<32x4xf32>,
    %44 = vector.extract_strided_slice %6 {offsets = [0, 4], sizes = [32, 4], strides = [1, 1]} : vector<32x16xf32> to vector<32x4xf32>
    %c0_20 = arith.constant 0 : index
    %c0_21 = arith.constant 0 : index
    %45 = vector.load %arg3[%c0_20, %c0_21] : memref<1x4xf32, #tpu.memory_space<vmem>>, vector<1x4xf32>
    %c0_22 = arith.constant 0 : index
    %c0_23 = arith.constant 0 : index
    %46 = vector.load %arg4[%c0_22, %c0_23] : memref<1x4xf32, #tpu.memory_space<vmem>>, vector<1x4xf32>
    %cst_24 = arith.constant dense<0.000000e+00> : vector<32xf32>
    %47 = vector.multi_reduction <add>, %44, %cst_24 [1] : vector<32x4xf32> to vector<32xf32>
    %48 = vector.shape_cast %47 : vector<32xf32> to vector<32x1xf32>
    %cst_25 = arith.constant 4.000000e+00 : f32
    %49 = vector.broadcast %cst_25 : f32 to vector<32x1xf32>
    %50 = arith.divf %48, %49 : vector<32x1xf32>
    %51 = vector.broadcast %50 : vector<32x1xf32> to vector<32x4xf32>
    %52 = arith.subf %44, %51 : vector<32x4xf32>
    %53 = arith.mulf %52, %52 : vector<32x4xf32>
    %cst_26 = arith.constant dense<0.000000e+00> : vector<32xf32>
    %54 = vector.multi_reduction <add>, %53, %cst_26 [1] : vector<32x4xf32> to vector<32xf32>
    %55 = vector.shape_cast %54 : vector<32xf32> to vector<32x1xf32>
    %cst_27 = arith.constant 4.000000e+00 : f32
    %56 = vector.broadcast %cst_27 : f32 to vector<32x1xf32>
    %57 = arith.divf %55, %56 : vector<32x1xf32>
    %cst_28 = arith.constant 9.99999997E-7 : f32
    %58 = vector.broadcast %cst_28 : f32 to vector<32x1xf32>
    %59 = arith.addf %57, %58 : vector<32x1xf32>
    %60 = math.rsqrt %59 : vector<32x1xf32>
    %61 = vector.broadcast %60 : vector<32x1xf32> to vector<32x4xf32>
    %62 = arith.mulf %52, %61 : vector<32x4xf32>
    %63 = vector.broadcast %45 : vector<1x4xf32> to vector<32x4xf32>
    %64 = arith.mulf %62, %63 : vector<32x4xf32>
    %65 = vector.broadcast %46 : vector<1x4xf32> to vector<32x4xf32>
    %66 = arith.addf %64, %65 : vector<32x4xf32>
    %67 = arith.mulf %66, %66 : vector<32x4xf32>
    %68 = arith.mulf %66, %67 : vector<32x4xf32>
    %cst_29 = arith.constant 4.471500e-02 : f32
    %69 = vector.broadcast %cst_29 : f32 to vector<32x4xf32>
    %70 = arith.mulf %69, %68 : vector<32x4xf32>
    %71 = arith.addf %66, %70 : vector<32x4xf32>
    %cst_30 = arith.constant 0.797884583 : f32
    %72 = vector.broadcast %cst_30 : f32 to vector<32x4xf32>
    %73 = arith.mulf %72, %71 : vector<32x4xf32>
    %74 = math.tanh %73 : vector<32x4xf32>
    %cst_31 = arith.constant 1.000000e+00 : f32
    %75 = vector.broadcast %cst_31 : f32 to vector<32x4xf32>
    %76 = arith.addf %75, %74 : vector<32x4xf32>
    %cst_32 = arith.constant 5.000000e-01 : f32
    %77 = vector.broadcast %cst_32 : f32 to vector<32x4xf32>
    %78 = arith.mulf %77, %76 : vector<32x4xf32>
    %79 = arith.mulf %66, %78 : vector<32x4xf32>
    %c0_33 = arith.constant 0 : index
    %c4 = arith.constant 4 : index
    %80 = vector.load %arg5[%c0_33, %c4] : memref<32x16xf32, #tpu.memory_space<vmem>>, vector<32x4xf32>
    tpu.vector_store %arg5[%c0_33, %c4], %79 {strides = array<i32>} : memref<32x16xf32, #tpu.memory_space<vmem>>, vector<32x4xf32>,
    %81 = vector.extract_strided_slice %6 {offsets = [0, 8], sizes = [32, 4], strides = [1, 1]} : vector<32x16xf32> to vector<32x4xf32>
    %c0_34 = arith.constant 0 : index
    %c0_35 = arith.constant 0 : index
    %82 = vector.load %arg3[%c0_34, %c0_35] : memref<1x4xf32, #tpu.memory_space<vmem>>, vector<1x4xf32>
    %c0_36 = arith.constant 0 : index
    %c0_37 = arith.constant 0 : index
    %83 = vector.load %arg4[%c0_36, %c0_37] : memref<1x4xf32, #tpu.memory_space<vmem>>, vector<1x4xf32>
    %cst_38 = arith.constant dense<0.000000e+00> : vector<32xf32>
    %84 = vector.multi_reduction <add>, %81, %cst_38 [1] : vector<32x4xf32> to vector<32xf32>
    %85 = vector.shape_cast %84 : vector<32xf32> to vector<32x1xf32>
    %cst_39 = arith.constant 4.000000e+00 : f32
    %86 = vector.broadcast %cst_39 : f32 to vector<32x1xf32>
    %87 = arith.divf %85, %86 : vector<32x1xf32>
    %88 = vector.broadcast %87 : vector<32x1xf32> to vector<32x4xf32>
    %89 = arith.subf %81, %88 : vector<32x4xf32>
    %90 = arith.mulf %89, %89 : vector<32x4xf32>
    %cst_40 = arith.constant dense<0.000000e+00> : vector<32xf32>
    %91 = vector.multi_reduction <add>, %90, %cst_40 [1] : vector<32x4xf32> to vector<32xf32>
    %92 = vector.shape_cast %91 : vector<32xf32> to vector<32x1xf32>
    %cst_41 = arith.constant 4.000000e+00 : f32
    %93 = vector.broadcast %cst_41 : f32 to vector<32x1xf32>
    %94 = arith.divf %92, %93 : vector<32x1xf32>
    %cst_42 = arith.constant 9.99999997E-7 : f32
    %95 = vector.broadcast %cst_42 : f32 to vector<32x1xf32>
    %96 = arith.addf %94, %95 : vector<32x1xf32>
    %97 = math.rsqrt %96 : vector<32x1xf32>
    %98 = vector.broadcast %97 : vector<32x1xf32> to vector<32x4xf32>
    %99 = arith.mulf %89, %98 : vector<32x4xf32>
    %100 = vector.broadcast %82 : vector<1x4xf32> to vector<32x4xf32>
    %101 = arith.mulf %99, %100 : vector<32x4xf32>
    %102 = vector.broadcast %83 : vector<1x4xf32> to vector<32x4xf32>
    %103 = arith.addf %101, %102 : vector<32x4xf32>
    %104 = arith.mulf %103, %103 : vector<32x4xf32>
    %105 = arith.mulf %103, %104 : vector<32x4xf32>
    %cst_43 = arith.constant 4.471500e-02 : f32
    %106 = vector.broadcast %cst_43 : f32 to vector<32x4xf32>
    %107 = arith.mulf %106, %105 : vector<32x4xf32>
    %108 = arith.addf %103, %107 : vector<32x4xf32>
    %cst_44 = arith.constant 0.797884583 : f32
    %109 = vector.broadcast %cst_44 : f32 to vector<32x4xf32>
    %110 = arith.mulf %109, %108 : vector<32x4xf32>
    %111 = math.tanh %110 : vector<32x4xf32>
    %cst_45 = arith.constant 1.000000e+00 : f32
    %112 = vector.broadcast %cst_45 : f32 to vector<32x4xf32>
    %113 = arith.addf %112, %111 : vector<32x4xf32>
    %cst_46 = arith.constant 5.000000e-01 : f32
    %114 = vector.broadcast %cst_46 : f32 to vector<32x4xf32>
    %115 = arith.mulf %114, %113 : vector<32x4xf32>
    %116 = arith.mulf %103, %115 : vector<32x4xf32>
    %c0_47 = arith.constant 0 : index
    %c8 = arith.constant 8 : index
    %117 = vector.load %arg5[%c0_47, %c8] : memref<32x16xf32, #tpu.memory_space<vmem>>, vector<32x4xf32>
    tpu.vector_store %arg5[%c0_47, %c8], %116 {strides = array<i32>} : memref<32x16xf32, #tpu.memory_space<vmem>>, vector<32x4xf32>,
    %118 = vector.extract_strided_slice %6 {offsets = [0, 12], sizes = [32, 4], strides = [1, 1]} : vector<32x16xf32> to vector<32x4xf32>
    %c0_48 = arith.constant 0 : index
    %c0_49 = arith.constant 0 : index
    %119 = vector.load %arg3[%c0_48, %c0_49] : memref<1x4xf32, #tpu.memory_space<vmem>>, vector<1x4xf32>
    %c0_50 = arith.constant 0 : index
    %c0_51 = arith.constant 0 : index
    %120 = vector.load %arg4[%c0_50, %c0_51] : memref<1x4xf32, #tpu.memory_space<vmem>>, vector<1x4xf32>
    %cst_52 = arith.constant dense<0.000000e+00> : vector<32xf32>
    %121 = vector.multi_reduction <add>, %118, %cst_52 [1] : vector<32x4xf32> to vector<32xf32>
    %122 = vector.shape_cast %121 : vector<32xf32> to vector<32x1xf32>
    %cst_53 = arith.constant 4.000000e+00 : f32
    %123 = vector.broadcast %cst_53 : f32 to vector<32x1xf32>
    %124 = arith.divf %122, %123 : vector<32x1xf32>
    %125 = vector.broadcast %124 : vector<32x1xf32> to vector<32x4xf32>
    %126 = arith.subf %118, %125 : vector<32x4xf32>
    %127 = arith.mulf %126, %126 : vector<32x4xf32>
    %cst_54 = arith.constant dense<0.000000e+00> : vector<32xf32>
    %128 = vector.multi_reduction <add>, %127, %cst_54 [1] : vector<32x4xf32> to vector<32xf32>
    %129 = vector.shape_cast %128 : vector<32xf32> to vector<32x1xf32>
    %cst_55 = arith.constant 4.000000e+00 : f32
    %130 = vector.broadcast %cst_55 : f32 to vector<32x1xf32>
    %131 = arith.divf %129, %130 : vector<32x1xf32>
    %cst_56 = arith.constant 9.99999997E-7 : f32
    %132 = vector.broadcast %cst_56 : f32 to vector<32x1xf32>
    %133 = arith.addf %131, %132 : vector<32x1xf32>
    %134 = math.rsqrt %133 : vector<32x1xf32>
    %135 = vector.broadcast %134 : vector<32x1xf32> to vector<32x4xf32>
    %136 = arith.mulf %126, %135 : vector<32x4xf32>
    %137 = vector.broadcast %119 : vector<1x4xf32> to vector<32x4xf32>
    %138 = arith.mulf %136, %137 : vector<32x4xf32>
    %139 = vector.broadcast %120 : vector<1x4xf32> to vector<32x4xf32>
    %140 = arith.addf %138, %139 : vector<32x4xf32>
    %141 = arith.mulf %140, %140 : vector<32x4xf32>
    %142 = arith.mulf %140, %141 : vector<32x4xf32>
    %cst_57 = arith.constant 4.471500e-02 : f32
    %143 = vector.broadcast %cst_57 : f32 to vector<32x4xf32>
    %144 = arith.mulf %143, %142 : vector<32x4xf32>
    %145 = arith.addf %140, %144 : vector<32x4xf32>
    %cst_58 = arith.constant 0.797884583 : f32
    %146 = vector.broadcast %cst_58 : f32 to vector<32x4xf32>
    %147 = arith.mulf %146, %145 : vector<32x4xf32>
    %148 = math.tanh %147 : vector<32x4xf32>
    %cst_59 = arith.constant 1.000000e+00 : f32
    %149 = vector.broadcast %cst_59 : f32 to vector<32x4xf32>
    %150 = arith.addf %149, %148 : vector<32x4xf32>
    %cst_60 = arith.constant 5.000000e-01 : f32
    %151 = vector.broadcast %cst_60 : f32 to vector<32x4xf32>
    %152 = arith.mulf %151, %150 : vector<32x4xf32>
    %153 = arith.mulf %140, %152 : vector<32x4xf32>
    %c0_61 = arith.constant 0 : index
    %c12 = arith.constant 12 : index
    %154 = vector.load %arg5[%c0_61, %c12] : memref<32x16xf32, #tpu.memory_space<vmem>>, vector<32x4xf32>
    tpu.vector_store %arg5[%c0_61, %c12], %153 {strides = array<i32>} : memref<32x16xf32, #tpu.memory_space<vmem>>, vector<32x4xf32>,
    return
  }
}

module attributes {stable_mosaic.version = 11 : i64} {
  func.func @_up2_kernel(%arg0: memref<128x4xf32, #tpu.memory_space<vmem>>, %arg1: memref<4x8xbf16, #tpu.memory_space<vmem>>, %arg2: memref<1x8xf32, #tpu.memory_space<vmem>>, %arg3: memref<128x8xf32, #tpu.memory_space<vmem>>) attributes {dimension_semantics = [], scalar_prefetch = 0 : i64, scratch_operands = 0 : i64, tpu.core_type = #tpu.core_type<tc>} {
    %c0 = arith.constant 0 : index
    %c0_0 = arith.constant 0 : index
    %0 = vector.load %arg0[%c0, %c0_0] : memref<128x4xf32, #tpu.memory_space<vmem>>, vector<128x4xf32>
    %c0_1 = arith.constant 0 : index
    %c0_2 = arith.constant 0 : index
    %1 = vector.load %arg1[%c0_1, %c0_2] : memref<4x8xbf16, #tpu.memory_space<vmem>>, vector<4x8xbf16>
    %2 = arith.truncf %0 : vector<128x4xf32> to vector<128x4xbf16>
    %cst = arith.constant dense<0.000000e+00> : vector<128x8xf32>
    %3 = tpu.matmul %2, %1, %cst {dimension_numbers = #tpu.dot_dimension_numbers<[1], [0], [0], [1], [0, 0, 1, 1], [], []>} : vector<128x4xbf16>, vector<4x8xbf16>, vector<128x8xf32> -> vector<128x8xf32>
    %c0_3 = arith.constant 0 : index
    %c0_4 = arith.constant 0 : index
    %4 = vector.load %arg2[%c0_3, %c0_4] : memref<1x8xf32, #tpu.memory_space<vmem>>, vector<1x8xf32>
    %5 = vector.broadcast %4 : vector<1x8xf32> to vector<128x8xf32>
    %6 = arith.addf %3, %5 : vector<128x8xf32>
    %7 = arith.mulf %6, %6 : vector<128x8xf32>
    %8 = arith.mulf %6, %7 : vector<128x8xf32>
    %cst_5 = arith.constant 4.471500e-02 : f32
    %9 = vector.broadcast %cst_5 : f32 to vector<128x8xf32>
    %10 = arith.mulf %9, %8 : vector<128x8xf32>
    %11 = arith.addf %6, %10 : vector<128x8xf32>
    %cst_6 = arith.constant 0.797884583 : f32
    %12 = vector.broadcast %cst_6 : f32 to vector<128x8xf32>
    %13 = arith.mulf %12, %11 : vector<128x8xf32>
    %14 = math.tanh %13 : vector<128x8xf32>
    %cst_7 = arith.constant 1.000000e+00 : f32
    %15 = vector.broadcast %cst_7 : f32 to vector<128x8xf32>
    %16 = arith.addf %15, %14 : vector<128x8xf32>
    %cst_8 = arith.constant 5.000000e-01 : f32
    %17 = vector.broadcast %cst_8 : f32 to vector<128x8xf32>
    %18 = arith.mulf %17, %16 : vector<128x8xf32>
    %19 = arith.mulf %6, %18 : vector<128x8xf32>
    %c0_9 = arith.constant 0 : index
    %c0_10 = arith.constant 0 : index
    %20 = vector.load %arg3[%c0_9, %c0_10] : memref<128x8xf32, #tpu.memory_space<vmem>>, vector<128x8xf32>
    tpu.vector_store %arg3[%c0_9, %c0_10], %19 {strides = array<i32>} : memref<128x8xf32, #tpu.memory_space<vmem>>, vector<128x8xf32>,
    return
  }
}

module attributes {stable_mosaic.version = 11 : i64} {
  func.func @_heads_kernel(%arg0: i32, %arg1: memref<1x1x64xf32, #tpu.memory_space<vmem>>, %arg2: memref<1x1x16xf32, #tpu.memory_space<vmem>>, %arg3: memref<1x2x256xf32, #tpu.memory_space<vmem>>, %arg4: memref<64x64xbf16, #tpu.memory_space<vmem>>, %arg5: memref<1x64xf32, #tpu.memory_space<vmem>>, %arg6: memref<64x64xbf16, #tpu.memory_space<vmem>>, %arg7: memref<1x64xf32, #tpu.memory_space<vmem>>, %arg8: memref<64x8xbf16, #tpu.memory_space<vmem>>, %arg9: memref<1x8xf32, #tpu.memory_space<vmem>>, %arg10: memref<16x16xbf16, #tpu.memory_space<vmem>>, %arg11: memref<1x16xf32, #tpu.memory_space<vmem>>, %arg12: memref<16x16xbf16, #tpu.memory_space<vmem>>, %arg13: memref<1x16xf32, #tpu.memory_space<vmem>>, %arg14: memref<16x4xbf16, #tpu.memory_space<vmem>>, %arg15: memref<1x4xf32, #tpu.memory_space<vmem>>, %arg16: memref<1x4x256xf32, #tpu.memory_space<vmem>>, %arg17: memref<1x1x4xf32, #tpu.memory_space<vmem>>) attributes {dimension_semantics = [#tpu.dimension_semantics<parallel>], iteration_bounds = array<i64: 2>, scalar_prefetch = 0 : i64, scratch_operands = 0 : i64, tpu.core_type = #tpu.core_type<tc>, window_params = [{transform_indices = @transform_0, window_bounds = array<i64: 1, 1, 64>}, {transform_indices = @transform_1, window_bounds = array<i64: 1, 1, 16>}, {transform_indices = @transform_2, window_bounds = array<i64: 1, 2, 256>}, {pipeline_mode = #tpu.pipeline_mode<synchronous>, transform_indices = @transform_3, window_bounds = array<i64: 64, 64>}, {pipeline_mode = #tpu.pipeline_mode<synchronous>, transform_indices = @transform_4, window_bounds = array<i64: 1, 64>}, {pipeline_mode = #tpu.pipeline_mode<synchronous>, transform_indices = @transform_5, window_bounds = array<i64: 64, 64>}, {pipeline_mode = #tpu.pipeline_mode<synchronous>, transform_indices = @transform_6, window_bounds = array<i64: 1, 64>}, {pipeline_mode = #tpu.pipeline_mode<synchronous>, transform_indices = @transform_7, window_bounds = array<i64: 64, 8>}, {pipeline_mode = #tpu.pipeline_mode<synchronous>, transform_indices = @transform_8, window_bounds = array<i64: 1, 8>}, {pipeline_mode = #tpu.pipeline_mode<synchronous>, transform_indices = @transform_9, window_bounds = array<i64: 16, 16>}, {pipeline_mode = #tpu.pipeline_mode<synchronous>, transform_indices = @transform_10, window_bounds = array<i64: 1, 16>}, {pipeline_mode = #tpu.pipeline_mode<synchronous>, transform_indices = @transform_11, window_bounds = array<i64: 16, 16>}, {pipeline_mode = #tpu.pipeline_mode<synchronous>, transform_indices = @transform_12, window_bounds = array<i64: 1, 16>}, {pipeline_mode = #tpu.pipeline_mode<synchronous>, transform_indices = @transform_13, window_bounds = array<i64: 16, 4>}, {pipeline_mode = #tpu.pipeline_mode<synchronous>, transform_indices = @transform_14, window_bounds = array<i64: 1, 4>}, {transform_indices = @transform_15, window_bounds = array<i64: 1, 4, 256>}, {transform_indices = @transform_16, window_bounds = array<i64: 1, 1, 4>}]} {
    %c0 = arith.constant 0 : index
    %c0_0 = arith.constant 0 : index
    %c0_1 = arith.constant 0 : index
    %0 = vector.load %arg1[%c0, %c0_0, %c0_1] : memref<1x1x64xf32, #tpu.memory_space<vmem>>, vector<1x1x64xf32>
    %1 = vector.shape_cast %0 : vector<1x1x64xf32> to vector<1x64xf32>
    %c0_2 = arith.constant 0 : index
    %c0_3 = arith.constant 0 : index
    %2 = vector.load %arg4[%c0_2, %c0_3] : memref<64x64xbf16, #tpu.memory_space<vmem>>, vector<64x64xbf16>
    %3 = arith.truncf %1 : vector<1x64xf32> to vector<1x64xbf16>
    %cst = arith.constant dense<0.000000e+00> : vector<1x64xf32>
    %4 = tpu.matmul %3, %2, %cst {dimension_numbers = #tpu.dot_dimension_numbers<[1], [0], [0], [1], [0, 0, 1, 1], [], []>} : vector<1x64xbf16>, vector<64x64xbf16>, vector<1x64xf32> -> vector<1x64xf32>
    %c0_4 = arith.constant 0 : index
    %c0_5 = arith.constant 0 : index
    %5 = vector.load %arg5[%c0_4, %c0_5] : memref<1x64xf32, #tpu.memory_space<vmem>>, vector<1x64xf32>
    %6 = arith.addf %4, %5 : vector<1x64xf32>
    %cst_6 = arith.constant 0.000000e+00 : f32
    %7 = vector.broadcast %cst_6 : f32 to vector<1x64xf32>
    %8 = arith.maximumf %6, %7 : vector<1x64xf32>
    %c0_7 = arith.constant 0 : index
    %c0_8 = arith.constant 0 : index
    %9 = vector.load %arg6[%c0_7, %c0_8] : memref<64x64xbf16, #tpu.memory_space<vmem>>, vector<64x64xbf16>
    %10 = arith.truncf %8 : vector<1x64xf32> to vector<1x64xbf16>
    %cst_9 = arith.constant dense<0.000000e+00> : vector<1x64xf32>
    %11 = tpu.matmul %10, %9, %cst_9 {dimension_numbers = #tpu.dot_dimension_numbers<[1], [0], [0], [1], [0, 0, 1, 1], [], []>} : vector<1x64xbf16>, vector<64x64xbf16>, vector<1x64xf32> -> vector<1x64xf32>
    %c0_10 = arith.constant 0 : index
    %c0_11 = arith.constant 0 : index
    %12 = vector.load %arg7[%c0_10, %c0_11] : memref<1x64xf32, #tpu.memory_space<vmem>>, vector<1x64xf32>
    %13 = arith.addf %11, %12 : vector<1x64xf32>
    %cst_12 = arith.constant 0.000000e+00 : f32
    %14 = vector.broadcast %cst_12 : f32 to vector<1x64xf32>
    %15 = arith.maximumf %13, %14 : vector<1x64xf32>
    %c0_13 = arith.constant 0 : index
    %c0_14 = arith.constant 0 : index
    %16 = vector.load %arg8[%c0_13, %c0_14] : memref<64x8xbf16, #tpu.memory_space<vmem>>, vector<64x8xbf16>
    %17 = arith.truncf %15 : vector<1x64xf32> to vector<1x64xbf16>
    %cst_15 = arith.constant dense<0.000000e+00> : vector<1x8xf32>
    %18 = tpu.matmul %17, %16, %cst_15 {dimension_numbers = #tpu.dot_dimension_numbers<[1], [0], [0], [1], [0, 0, 1, 1], [], []>} : vector<1x64xbf16>, vector<64x8xbf16>, vector<1x8xf32> -> vector<1x8xf32>
    %c0_16 = arith.constant 0 : index
    %c0_17 = arith.constant 0 : index
    %19 = vector.load %arg9[%c0_16, %c0_17] : memref<1x8xf32, #tpu.memory_space<vmem>>, vector<1x8xf32>
    %20 = arith.addf %18, %19 : vector<1x8xf32>
    %c0_18 = arith.constant 0 : index
    %c0_19 = arith.constant 0 : index
    %c0_20 = arith.constant 0 : index
    %21 = vector.load %arg3[%c0_18, %c0_19, %c0_20] : memref<1x2x256xf32, #tpu.memory_space<vmem>>, vector<1x2x256xf32>
    %22 = vector.shape_cast %21 : vector<1x2x256xf32> to vector<2x256xf32>
    %23 = vector.extract_strided_slice %20 {offsets = [0, 0], sizes = [1, 2], strides = [1, 1]} : vector<1x8xf32> to vector<1x2xf32>
    %24 = arith.truncf %23 : vector<1x2xf32> to vector<1x2xbf16>
    %25 = arith.truncf %22 : vector<2x256xf32> to vector<2x256xbf16>
    %cst_21 = arith.constant dense<0.000000e+00> : vector<1x256xf32>
    %26 = tpu.matmul %24, %25, %cst_21 {dimension_numbers = #tpu.dot_dimension_numbers<[1], [0], [0], [1], [0, 0, 1, 1], [], []>} : vector<1x2xbf16>, vector<2x256xbf16>, vector<1x256xf32> -> vector<1x256xf32>
    %27 = vector.extract_strided_slice %20 {offsets = [0, 2], sizes = [1, 2], strides = [1, 1]} : vector<1x8xf32> to vector<1x2xf32>
    %28 = arith.truncf %27 : vector<1x2xf32> to vector<1x2xbf16>
    %29 = arith.truncf %22 : vector<2x256xf32> to vector<2x256xbf16>
    %cst_22 = arith.constant dense<0.000000e+00> : vector<1x256xf32>
    %30 = tpu.matmul %28, %29, %cst_22 {dimension_numbers = #tpu.dot_dimension_numbers<[1], [0], [0], [1], [0, 0, 1, 1], [], []>} : vector<1x2xbf16>, vector<2x256xbf16>, vector<1x256xf32> -> vector<1x256xf32>
    %31 = vector.extract_strided_slice %20 {offsets = [0, 4], sizes = [1, 2], strides = [1, 1]} : vector<1x8xf32> to vector<1x2xf32>
    %32 = arith.truncf %31 : vector<1x2xf32> to vector<1x2xbf16>
    %33 = arith.truncf %22 : vector<2x256xf32> to vector<2x256xbf16>
    %cst_23 = arith.constant dense<0.000000e+00> : vector<1x256xf32>
    %34 = tpu.matmul %32, %33, %cst_23 {dimension_numbers = #tpu.dot_dimension_numbers<[1], [0], [0], [1], [0, 0, 1, 1], [], []>} : vector<1x2xbf16>, vector<2x256xbf16>, vector<1x256xf32> -> vector<1x256xf32>
    %35 = vector.extract_strided_slice %20 {offsets = [0, 6], sizes = [1, 2], strides = [1, 1]} : vector<1x8xf32> to vector<1x2xf32>
    %36 = arith.truncf %35 : vector<1x2xf32> to vector<1x2xbf16>
    %37 = arith.truncf %22 : vector<2x256xf32> to vector<2x256xbf16>
    %cst_24 = arith.constant dense<0.000000e+00> : vector<1x256xf32>
    %38 = tpu.matmul %36, %37, %cst_24 {dimension_numbers = #tpu.dot_dimension_numbers<[1], [0], [0], [1], [0, 0, 1, 1], [], []>} : vector<1x2xbf16>, vector<2x256xbf16>, vector<1x256xf32> -> vector<1x256xf32>
    %39 = tpu.concatenate %26, %30, %34, %38 in 0 : vector<1x256xf32>, vector<1x256xf32>, vector<1x256xf32>, vector<1x256xf32> -> vector<4x256xf32>
    %40 = vector.shape_cast %39 : vector<4x256xf32> to vector<1x4x256xf32>
    %c0_25 = arith.constant 0 : index
    %c0_26 = arith.constant 0 : index
    %c0_27 = arith.constant 0 : index
    %41 = vector.load %arg16[%c0_25, %c0_26, %c0_27] : memref<1x4x256xf32, #tpu.memory_space<vmem>>, vector<1x4x256xf32>
    tpu.vector_store %arg16[%c0_25, %c0_26, %c0_27], %40 {strides = array<i32>} : memref<1x4x256xf32, #tpu.memory_space<vmem>>, vector<1x4x256xf32>,
    %c0_28 = arith.constant 0 : index
    %c0_29 = arith.constant 0 : index
    %c0_30 = arith.constant 0 : index
    %42 = vector.load %arg2[%c0_28, %c0_29, %c0_30] : memref<1x1x16xf32, #tpu.memory_space<vmem>>, vector<1x1x16xf32>
    %43 = vector.shape_cast %42 : vector<1x1x16xf32> to vector<1x16xf32>
    %c0_31 = arith.constant 0 : index
    %c0_32 = arith.constant 0 : index
    %44 = vector.load %arg10[%c0_31, %c0_32] : memref<16x16xbf16, #tpu.memory_space<vmem>>, vector<16x16xbf16>
    %45 = arith.truncf %43 : vector<1x16xf32> to vector<1x16xbf16>
    %cst_33 = arith.constant dense<0.000000e+00> : vector<1x16xf32>
    %46 = tpu.matmul %45, %44, %cst_33 {dimension_numbers = #tpu.dot_dimension_numbers<[1], [0], [0], [1], [0, 0, 1, 1], [], []>} : vector<1x16xbf16>, vector<16x16xbf16>, vector<1x16xf32> -> vector<1x16xf32>
    %c0_34 = arith.constant 0 : index
    %c0_35 = arith.constant 0 : index
    %47 = vector.load %arg11[%c0_34, %c0_35] : memref<1x16xf32, #tpu.memory_space<vmem>>, vector<1x16xf32>
    %48 = arith.addf %46, %47 : vector<1x16xf32>
    %cst_36 = arith.constant 0.000000e+00 : f32
    %49 = vector.broadcast %cst_36 : f32 to vector<1x16xf32>
    %50 = arith.maximumf %48, %49 : vector<1x16xf32>
    %c0_37 = arith.constant 0 : index
    %c0_38 = arith.constant 0 : index
    %51 = vector.load %arg12[%c0_37, %c0_38] : memref<16x16xbf16, #tpu.memory_space<vmem>>, vector<16x16xbf16>
    %52 = arith.truncf %50 : vector<1x16xf32> to vector<1x16xbf16>
    %cst_39 = arith.constant dense<0.000000e+00> : vector<1x16xf32>
    %53 = tpu.matmul %52, %51, %cst_39 {dimension_numbers = #tpu.dot_dimension_numbers<[1], [0], [0], [1], [0, 0, 1, 1], [], []>} : vector<1x16xbf16>, vector<16x16xbf16>, vector<1x16xf32> -> vector<1x16xf32>
    %c0_40 = arith.constant 0 : index
    %c0_41 = arith.constant 0 : index
    %54 = vector.load %arg13[%c0_40, %c0_41] : memref<1x16xf32, #tpu.memory_space<vmem>>, vector<1x16xf32>
    %55 = arith.addf %53, %54 : vector<1x16xf32>
    %cst_42 = arith.constant 0.000000e+00 : f32
    %56 = vector.broadcast %cst_42 : f32 to vector<1x16xf32>
    %57 = arith.maximumf %55, %56 : vector<1x16xf32>
    %c0_43 = arith.constant 0 : index
    %c0_44 = arith.constant 0 : index
    %58 = vector.load %arg14[%c0_43, %c0_44] : memref<16x4xbf16, #tpu.memory_space<vmem>>, vector<16x4xbf16>
    %59 = arith.truncf %57 : vector<1x16xf32> to vector<1x16xbf16>
    %cst_45 = arith.constant dense<0.000000e+00> : vector<1x4xf32>
    %60 = tpu.matmul %59, %58, %cst_45 {dimension_numbers = #tpu.dot_dimension_numbers<[1], [0], [0], [1], [0, 0, 1, 1], [], []>} : vector<1x16xbf16>, vector<16x4xbf16>, vector<1x4xf32> -> vector<1x4xf32>
    %c0_46 = arith.constant 0 : index
    %c0_47 = arith.constant 0 : index
    %61 = vector.load %arg15[%c0_46, %c0_47] : memref<1x4xf32, #tpu.memory_space<vmem>>, vector<1x4xf32>
    %62 = arith.addf %60, %61 : vector<1x4xf32>
    %63 = vector.shape_cast %62 : vector<1x4xf32> to vector<1x1x4xf32>
    %c0_48 = arith.constant 0 : index
    %c0_49 = arith.constant 0 : index
    %c0_50 = arith.constant 0 : index
    %64 = vector.load %arg17[%c0_48, %c0_49, %c0_50] : memref<1x1x4xf32, #tpu.memory_space<vmem>>, vector<1x1x4xf32>
    tpu.vector_store %arg17[%c0_48, %c0_49, %c0_50], %63 {strides = array<i32>} : memref<1x1x4xf32, #tpu.memory_space<vmem>>, vector<1x1x4xf32>,
    return
  }
  func.func @transform_0(%arg0: i32) -> (i32, i32, i32) {
    %c0_i32 = arith.constant 0 : i32
    %c0_i32_0 = arith.constant 0 : i32
    %c0_i32_1 = arith.constant 0 : i32
    return %arg0, %c0_i32, %c0_i32_0 : i32, i32, i32
  }
  func.func @transform_1(%arg0: i32) -> (i32, i32, i32) {
    %c0_i32 = arith.constant 0 : i32
    %c0_i32_0 = arith.constant 0 : i32
    %c0_i32_1 = arith.constant 0 : i32
    return %arg0, %c0_i32, %c0_i32_0 : i32, i32, i32
  }
  func.func @transform_2(%arg0: i32) -> (i32, i32, i32) {
    %c0_i32 = arith.constant 0 : i32
    %c0_i32_0 = arith.constant 0 : i32
    %c0_i32_1 = arith.constant 0 : i32
    return %arg0, %c0_i32, %c0_i32_0 : i32, i32, i32
  }
  func.func @transform_3(%arg0: i32) -> (i32, i32) {
    %c0_i32 = arith.constant 0 : i32
    %c0_i32_0 = arith.constant 0 : i32
    %c0_i32_1 = arith.constant 0 : i32
    return %c0_i32, %c0_i32_0 : i32, i32
  }
  func.func @transform_4(%arg0: i32) -> (i32, i32) {
    %c0_i32 = arith.constant 0 : i32
    %c0_i32_0 = arith.constant 0 : i32
    %c0_i32_1 = arith.constant 0 : i32
    return %c0_i32, %c0_i32_0 : i32, i32
  }
  func.func @transform_5(%arg0: i32) -> (i32, i32) {
    %c0_i32 = arith.constant 0 : i32
    %c0_i32_0 = arith.constant 0 : i32
    %c0_i32_1 = arith.constant 0 : i32
    return %c0_i32, %c0_i32_0 : i32, i32
  }
  func.func @transform_6(%arg0: i32) -> (i32, i32) {
    %c0_i32 = arith.constant 0 : i32
    %c0_i32_0 = arith.constant 0 : i32
    %c0_i32_1 = arith.constant 0 : i32
    return %c0_i32, %c0_i32_0 : i32, i32
  }
  func.func @transform_7(%arg0: i32) -> (i32, i32) {
    %c0_i32 = arith.constant 0 : i32
    %c0_i32_0 = arith.constant 0 : i32
    %c0_i32_1 = arith.constant 0 : i32
    return %c0_i32, %c0_i32_0 : i32, i32
  }
  func.func @transform_8(%arg0: i32) -> (i32, i32) {
    %c0_i32 = arith.constant 0 : i32
    %c0_i32_0 = arith.constant 0 : i32
    %c0_i32_1 = arith.constant 0 : i32
    return %c0_i32, %c0_i32_0 : i32, i32
  }
  func.func @transform_9(%arg0: i32) -> (i32, i32) {
    %c0_i32 = arith.constant 0 : i32
    %c0_i32_0 = arith.constant 0 : i32
    %c0_i32_1 = arith.constant 0 : i32
    return %c0_i32, %c0_i32_0 : i32, i32
  }
  func.func @transform_10(%arg0: i32) -> (i32, i32) {
    %c0_i32 = arith.constant 0 : i32
    %c0_i32_0 = arith.constant 0 : i32
    %c0_i32_1 = arith.constant 0 : i32
    return %c0_i32, %c0_i32_0 : i32, i32
  }
  func.func @transform_11(%arg0: i32) -> (i32, i32) {
    %c0_i32 = arith.constant 0 : i32
    %c0_i32_0 = arith.constant 0 : i32
    %c0_i32_1 = arith.constant 0 : i32
    return %c0_i32, %c0_i32_0 : i32, i32
  }
  func.func @transform_12(%arg0: i32) -> (i32, i32) {
    %c0_i32 = arith.constant 0 : i32
    %c0_i32_0 = arith.constant 0 : i32
    %c0_i32_1 = arith.constant 0 : i32
    return %c0_i32, %c0_i32_0 : i32, i32
  }
  func.func @transform_13(%arg0: i32) -> (i32, i32) {
    %c0_i32 = arith.constant 0 : i32
    %c0_i32_0 = arith.constant 0 : i32
    %c0_i32_1 = arith.constant 0 : i32
    return %c0_i32, %c0_i32_0 : i32, i32
  }
  func.func @transform_14(%arg0: i32) -> (i32, i32) {
    %c0_i32 = arith.constant 0 : i32
    %c0_i32_0 = arith.constant 0 : i32
    %c0_i32_1 = arith.constant 0 : i32
    return %c0_i32, %c0_i32_0 : i32, i32
  }
  func.func @transform_15(%arg0: i32) -> (i32, i32, i32) {
    %c0_i32 = arith.constant 0 : i32
    %c0_i32_0 = arith.constant 0 : i32
    %c0_i32_1 = arith.constant 0 : i32
    return %arg0, %c0_i32, %c0_i32_0 : i32, i32, i32
  }
  func.func @transform_16(%arg0: i32) -> (i32, i32, i32) {
    %c0_i32 = arith.constant 0 : i32
    %c0_i32_0 = arith.constant 0 : i32
    %c0_i32_1 = arith.constant 0 : i32
    return %arg0, %c0_i32, %c0_i32_0 : i32, i32, i32
  }
}

module attributes {stable_mosaic.version = 11 : i64} {
  func.func @_bicubic_kernel(%arg0: i32, %arg1: memref<1x16x16xf32, #tpu.memory_space<vmem>>, %arg2: memref<32x16xf32, #tpu.memory_space<vmem>>, %arg3: memref<16x32xf32, #tpu.memory_space<vmem>>, %arg4: memref<1x32x32xf32, #tpu.memory_space<vmem>>) attributes {dimension_semantics = [#tpu.dimension_semantics<parallel>], iteration_bounds = array<i64: 6>, scalar_prefetch = 0 : i64, scratch_operands = 0 : i64, tpu.core_type = #tpu.core_type<tc>, window_params = [{transform_indices = @transform_0, window_bounds = array<i64: 1, 16, 16>}, {pipeline_mode = #tpu.pipeline_mode<synchronous>, transform_indices = @transform_1, window_bounds = array<i64: 32, 16>}, {pipeline_mode = #tpu.pipeline_mode<synchronous>, transform_indices = @transform_2, window_bounds = array<i64: 16, 32>}, {transform_indices = @transform_3, window_bounds = array<i64: 1, 32, 32>}]} {
    %c0 = arith.constant 0 : index
    %c0_0 = arith.constant 0 : index
    %0 = vector.load %arg2[%c0, %c0_0] : memref<32x16xf32, #tpu.memory_space<vmem>>, vector<32x16xf32>
    %c0_1 = arith.constant 0 : index
    %c0_2 = arith.constant 0 : index
    %c0_3 = arith.constant 0 : index
    %1 = vector.load %arg1[%c0_1, %c0_2, %c0_3] : memref<1x16x16xf32, #tpu.memory_space<vmem>>, vector<1x16x16xf32>
    %2 = vector.shape_cast %1 : vector<1x16x16xf32> to vector<16x16xf32>
    %cst = arith.constant dense<0.000000e+00> : vector<32x16xf32>
    %3 = tpu.matmul %0, %2, %cst {dimension_numbers = #tpu.dot_dimension_numbers<[1], [0], [0], [1], [0, 0, 1, 1], [], []>} : vector<32x16xf32>, vector<16x16xf32>, vector<32x16xf32> -> vector<32x16xf32>
    %c0_4 = arith.constant 0 : index
    %c0_5 = arith.constant 0 : index
    %4 = vector.load %arg3[%c0_4, %c0_5] : memref<16x32xf32, #tpu.memory_space<vmem>>, vector<16x32xf32>
    %cst_6 = arith.constant dense<0.000000e+00> : vector<32x32xf32>
    %5 = tpu.matmul %3, %4, %cst_6 {dimension_numbers = #tpu.dot_dimension_numbers<[1], [0], [0], [1], [0, 0, 1, 1], [], []>} : vector<32x16xf32>, vector<16x32xf32>, vector<32x32xf32> -> vector<32x32xf32>
    %6 = vector.shape_cast %5 : vector<32x32xf32> to vector<1x32x32xf32>
    %c0_7 = arith.constant 0 : index
    %c0_8 = arith.constant 0 : index
    %c0_9 = arith.constant 0 : index
    %7 = vector.load %arg4[%c0_7, %c0_8, %c0_9] : memref<1x32x32xf32, #tpu.memory_space<vmem>>, vector<1x32x32xf32>
    tpu.vector_store %arg4[%c0_7, %c0_8, %c0_9], %6 {strides = array<i32>} : memref<1x32x32xf32, #tpu.memory_space<vmem>>, vector<1x32x32xf32>,
    return
  }
  func.func @transform_0(%arg0: i32) -> (i32, i32, i32) {
    %c0_i32 = arith.constant 0 : i32
    %c0_i32_0 = arith.constant 0 : i32
    %c0_i32_1 = arith.constant 0 : i32
    return %arg0, %c0_i32, %c0_i32_0 : i32, i32, i32
  }
  func.func @transform_1(%arg0: i32) -> (i32, i32) {
    %c0_i32 = arith.constant 0 : i32
    %c0_i32_0 = arith.constant 0 : i32
    %c0_i32_1 = arith.constant 0 : i32
    return %c0_i32, %c0_i32_0 : i32, i32
  }
  func.func @transform_2(%arg0: i32) -> (i32, i32) {
    %c0_i32 = arith.constant 0 : i32
    %c0_i32_0 = arith.constant 0 : i32
    %c0_i32_1 = arith.constant 0 : i32
    return %c0_i32, %c0_i32_0 : i32, i32
  }
  func.func @transform_3(%arg0: i32) -> (i32, i32, i32) {
    %c0_i32 = arith.constant 0 : i32
    %c0_i32_0 = arith.constant 0 : i32
    %c0_i32_1 = arith.constant 0 : i32
    return %arg0, %c0_i32, %c0_i32_0 : i32, i32, i32
  }
}

</mosaic_0001>

<llo_original>
// kernel: efficient_sam_forward.8
$region0: #{efficient_sam_forward.8}
  #allocation0 [shape = 'u32[]', space=smem, size = 0x4, offset = 0x4, fixed_abs, tag = 'smem constant byte address 0x4 - core index']
  #allocation1 [shape = 'u32[144,128]{1,0:T(1,128)}', space=vmem, size = 0x12000, scoped, tag = 'internal scratch']
  %s0 = inlined_call_operand.vmem [shape: f32[12,2], index: 0, kind: input, shape index: {}]
  %s1 = inlined_call_operand.vmem [shape: f32[12,1], index: 1, kind: input, shape index: {}]
  %s2 = inlined_call_operand.vmem [shape: f32[2,8], index: 2, kind: input, shape index: {}]
  %s3 = inlined_call_operand.vmem [shape: f32[1,16], index: 3, kind: input, shape index: {}]
  %s4 = inlined_call_operand.vmem [shape: f32[1,16], index: 4, kind: input, shape index: {}]
  %s5 = inlined_call_operand.vmem [shape: f32[1,16], index: 5, kind: input, shape index: {}]
  %s6 = inlined_call_operand.vmem [shape: f32[12,16], index: 6, kind: output, shape index: {}]
  %s7 = sld [smem:[#allocation0]]
  $region34: #{efficient_sam_forward.8} parent=0
    _
  %s9 = ssub.s32 1, %s7
  %s10 = scalar_select 0, %s9, %s7
  // Predicated region
  $region2: #{efficient_sam_forward.8} parent=0 // pred_check
    _
  $region3: #{efficient_sam_forward.8} parent=0 // pred_check_branch
    %12 = sbr.rel (0) target = $region5
  $region4: #{efficient_sam_forward.8} parent=0 // pred_region
    _
  $region5: #{efficient_sam_forward.8} parent=0 // pred_fallthru
    _
  // Predicated region
  $region6: #{efficient_sam_forward.8} parent=0 // pred_check
    _
  $region7: #{efficient_sam_forward.8} parent=0 // pred_check_branch
    %14 = sbr.rel (0) target = $region9
  $region8: #{efficient_sam_forward.8} parent=0 // pred_region
    _
  $region9: #{efficient_sam_forward.8} parent=0 // pred_fallthru
    _
  // Predicated region
  $region10: #{efficient_sam_forward.8} parent=0 // pred_check
    _
  $region11: #{efficient_sam_forward.8} parent=0 // pred_check_branch
    %16 = sbr.rel (0) target = $region13
  $region12: #{efficient_sam_forward.8} parent=0 // pred_region
    _
  $region13: #{efficient_sam_forward.8} parent=0 // pred_fallthru
    _
  // Predicated region
  $region14: #{efficient_sam_forward.8} parent=0 // pred_check
    _
  $region15: #{efficient_sam_forward.8} parent=0 // pred_check_branch
    %18 = sbr.rel (0) target = $region17
  $region16: #{efficient_sam_forward.8} parent=0 // pred_region
    _
  $region17: #{efficient_sam_forward.8} parent=0 // pred_fallthru
    _
  // Predicated region
  $region18: #{efficient_sam_forward.8} parent=0 // pred_check
    _
  $region19: #{efficient_sam_forward.8} parent=0 // pred_check_branch
    %20 = sbr.rel (0) target = $region21
  $region20: #{efficient_sam_forward.8} parent=0 // pred_region
    _
  $region21: #{efficient_sam_forward.8} parent=0 // pred_fallthru
    _
  // Predicated region
  $region22: #{efficient_sam_forward.8} parent=0 // pred_check
    _
  $region23: #{efficient_sam_forward.8} parent=0 // pred_check_branch
    %22 = sbr.rel (0) target = $region25
  $region24: #{efficient_sam_forward.8} parent=0 // pred_region
    _
  $region25: #{efficient_sam_forward.8} parent=0 // pred_fallthru
    _
  %v23 = vld [vmem:[%s0] sm:$0xff]
  %v24 = vld [vmem:[%s0 + $0x8] sm:$0xf]
  %v25 = vmul.f32 %v23, 2.0
  %v26 = vmul.f32 %v24, 2.0
  %v27 = vsub.f32 %v25, 1.0
  %v28 = vsub.f32 %v26, 1.0
  %v29 = vld [vmem:[%s2] sm:$0x3]
  %vm30 = vcmask 15360
  %v32 = vsel %vm30, %v27, 0
  %v35 = vsel %vm30, %v28, 0
  %vm37 = vcmask 1041408
  %v39 = vsel %vm37, %v29, 0
  %41 = vmatprep.subr.mxu0 0.0
  %42 = vmatpush1.msra.mxu0 %v39
  %43 = vmatprep.subr.mxu0 0.0
  %44 = vmatpush1.msra.mxu0 0.0
  %45 = vmatprep.subr.mxu0 0.0
  %46 = vmatpush1.msra.mxu0 0.0
  %47 = vmatprep.subr.mxu0 0.0
  %48 = vmatpush1.msra.mxu0 0.0
  %49 = vmatprep.subr.mxu0 0.0
  %50 = vmatpush1.msra.mxu0 0.0
  %51 = vmatprep.subr.mxu0 0.0
  %52 = vmatpush1.msra.mxu0 0.0
  %53 = vmatprep.subr.mxu0 0.0
  %54 = vmatpush1.msra.mxu0 0.0
  %55 = vmatprep.subr.mxu0 0.0
  %56 = vmatpush1.msra.mxu0 0.0
  %57 = vmatprep.subr.mxu0 0.0
  %58 = vmatpush1.msra.mxu0 0.0
  %59 = vmatprep.subr.mxu0 0.0
  %60 = vmatpush1.msra.mxu0 0.0
  %61 = vmatprep.subr.mxu0 0.0
  %62 = vmatpush1.msra.mxu0 0.0
  %63 = vmatprep.subr.mxu0 0.0
  %64 = vmatpush1.msra.mxu0 0.0
  %65 = vmatprep.subr.mxu0 0.0
  %66 = vmatpush1.msra.mxu0 0.0
  %67 = vmatprep.subr.mxu0 0.0
  %68 = vmatpush1.msra.mxu0 0.0
  %69 = vmatprep.subr.mxu0 0.0
  %70 = vmatpush1.msra.mxu0 0.0
  %71 = vmatprep.subr.mxu0 0.0
  %72 = vmatpush1.msra.mxu0 0.0
  %73 = vmatprep.subr.mxu0 0.0
  %74 = vmatpush1.msra.mxu0 0.0
  %75 = vmatprep.subr.mxu0 0.0
  %76 = vmatpush1.msra.mxu0 0.0
  %77 = vmatprep.subr.mxu0 0.0
  %78 = vmatpush1.msra.mxu0 0.0
  %79 = vmatprep.subr.mxu0 0.0
  %80 = vmatpush1.msra.mxu0 0.0
  %81 = vmatprep.subr.mxu0 0.0
  %82 = vmatpush1.msra.mxu0 0.0
  %83 = vmatprep.subr.mxu0 0.0
  %84 = vmatpush1.msra.mxu0 0.0
  %85 = vmatprep.subr.mxu0 0.0
  %86 = vmatpush1.msra.mxu0 0.0
  %87 = vmatprep.subr.mxu0 0.0
  %88 = vmatpush1.msra.mxu0 0.0
  %89 = vmatprep.subr.mxu0 0.0
  %90 = vmatpush1.msra.mxu0 0.0
  %91 = vmatprep.subr.mxu0 0.0
  %92 = vmatpush1.msra.mxu0 0.0
  %93 = vmatprep.subr.mxu0 0.0
  %94 = vmatpush1.msra.mxu0 0.0
  %95 = vmatprep.subr.mxu0 0.0
  %96 = vmatpush1.msra.mxu0 0.0
  %97 = vmatprep.subr.mxu0 0.0
  %98 = vmatpush1.msra.mxu0 0.0
  %99 = vmatprep.subr.mxu0 0.0
  %100 = vmatpush1.msra.mxu0 0.0
  %101 = vmatprep.subr.mxu0 0.0
  %102 = vmatpush1.msra.mxu0 0.0
  %103 = vmatprep.subr.mxu0 0.0
  %104 = vmatpush1.msra.mxu0 0.0
  %105 = vmatprep.mubr.f32.mxu0 0.0
  %106 = vmatmul.mubr.f32.gmra.mrb[0].mxu0 %v32
  %v107 = vpop.f32.mrb[0].mxu0
  %v108 = vadd.f32 0.0, %v107
  %v109 = vpop.f32.mrb[0].mxu0
  %110 = vmatprep.mubr.f32.mxu0 0.0
  %111 = vmatmul.mubr.f32.gmra.mrb[0].mxu0 %v35
  %v112 = vpop.f32.mrb[0].mxu0
  %v113 = vadd.f32 0.0, %v112
  %v114 = vpop.f32.mrb[0].mxu0
  %115 = vdwg.mxu0
  %v116 = vmul.f32 %v108, 6.2831855
  %v117 = vmul.f32 %v113, 6.2831855
  %v118 = vand.u32 2147483647, %v116
  %vm119 = vcmp.le.f32.partialorder %v118, 0.7853982
  %vm120 = vcmp.lt.s32.totalorder %v116, 0
  %v121 = vand.u32 %v116, 2139095040
  %v122 = vshrl.u32 %v121, 23
  %v123 = vsub.s32 %v122, 127
  %v124 = vand.u32 2147483647, %v116
  %v125 = vand.u32 %v124, 8388607
  %v126 = vor.u32 %v125, 8388608
  %v127 = vsub.s32 0, %v126
  %v128 = vadd.s32 %v123, 1
  %vm129 = vcmp.gt.s32.totalorder %v128, 0
  %v130 = vsel %vm129, %v128, 0
  %v131 = vshrl.u32 %v130, 5
  %v132 = vand.u32 %v130, 31
  %v133 = vsub.s32 32, %v132
  %v134 = vshrl.u32 683565275, %v133
  %v135 = vshll.u32 683565275, %v132
  %v136 = vshrl.u32 2475754826, %v133
  %v137 = vor.u32 %v135, %v136
  %v138 = vshll.u32 2475754826, %v132
  %v139 = vshrl.u32 2131351028, %v133
  %v140 = vor.u32 %v138, %v139
  %v141 = vshll.u32 2131351028, %v132
  %v142 = vshrl.u32 2102212464, %v133
  %v143 = vor.u32 %v141, %v142
  %v144 = vshll.u32 2102212464, %v132
  %v145 = vshrl.u32 920167782, %v133
  %v146 = vor.u32 %v144, %v145
  %v147 = vshll.u32 920167782, %v132
  %v148 = vshrl.u32 1326507024, %v133
  %v149 = vor.u32 %v147, %v148
  %vm150 = vcmp.lt.s32.totalorder %v131, 1
  %vm151 = vcmp.lt.s32.totalorder %v131, 2
  %vm152 = vcmp.lt.s32.totalorder %v131, 3
  %vm153 = vcmp.lt.s32.totalorder %v131, 4
  %v154 = vsel %vm150, %v134, %v137
  %v155 = vsel %vm153, %v143, 2102212464
  %v156 = vsel %vm152, %v140, %v155
  %v157 = vsel %vm151, %v154, %v156
  %v158 = vsel %vm150, %v137, %v140
  %v159 = vsel %vm153, %v146, 920167782
  %v160 = vsel %vm152, %v143, %v159
  %v161 = vsel %vm151, %v158, %v160
  %v162 = vsel %vm150, %v140, %v143
  %v163 = vsel %vm153, %v149, 1326507024
  %v164 = vsel %vm152, %v146, %v163
  %v165 = vsel %vm151, %v162, %v164
  %v166 = vshll.u32 %v126, 8
  %v167 = vmul.u32.u64.compose %v166, %v165
  %v168 = vextract.low.u32 %v167
  %v169 = vextract.high.u32 %v167
  %v170 = vmul.u32.u64.compose %v166, %v161
  %v171 = vextract.low.u32 %v170
  %v172 = vextract.high.u32 %v170
  %v173 = vmul.u32 %v166, %v157
  %v174 = vadd.s32 %v169, %v171
  %vm175 = vc.u32 %v169, %v171
  %v176 = vadd.s32 %v172, 1
  %v177 = vsel %vm175, %v176, %v172
  %v178 = vadd.s32 %v173, %v177
  %v179 = vadd.s32 %v178, 536870912
  %v180 = vshrl.u32 %v179, 30
  %v181 = vshll.u32 %v180, 30
  %v182 = vsub.s32 %v178, %v181
  %vm183 = vcmp.lt.s32.totalorder %v182, 0
  %v184 = vsub.s32 0, %v182
  %v185 = vsel %vm183, %v184, %v182
  %v186 = vclz %v185
  %v187 = vsub.s32 %v186, 2
  %vm188 = vcmp.gt.s32.totalorder 0, %v187
  %v189 = vsel %vm188, 0, %v187
  %v190 = vsub.s32 32, %v189
  %v191 = vshll.u32 %v182, %v189
  %v192 = vshrl.u32 %v174, %v190
  %v193 = vor.u32 %v191, %v192
  %v194 = vsub.s32 4294967266, %v189
  %v195 = vadd.s32 %v194, 127
  %v196 = vshll.u32 %v195, 23
  %v197 = vor.u32 4788187, %v196
  %v198 = vand.u32 2147483647, %v197
  %v200 = vcvt.s32.f32 %v193
  %v201 = vmul.f32 %v200, %v198
  %v202 = vxor.u32 %v201, 2147483648
  %v203 = vsel %vm120, %v202, %v201
  %v204 = vsub.s32 4, %v180
  %v205 = vsel %vm120, %v204, %v180
  %v206 = vsel %vm119, %v116, %v203
  %v207 = vsel %vm119, 0, %v205
  %v208 = vcosq.f32.pop %v206
  %v209 = vsinq.f32.pop %v206
  %vm210 = vweird.f32 %v116
  %v211 = vadd.s32 %v207, 3
  %v212 = vand.u32 %v211, 3
  %vm213 = vcmp.lt.s32.totalorder %v212, 2
  %vm214 = vcmp.eq.s32.totalorder %v212, 0
  %v215 = vxor.u32 %v209, 2147483648
  %v216 = vsel %vm214, %v208, %v215
  %vm217 = vcmp.eq.s32.totalorder %v212, 2
  %v218 = vxor.u32 %v208, 2147483648
  %v219 = vsel %vm217, %v218, %v209
  %v220 = vsel %vm213, %v216, %v219
  %v221 = vsel %vm210, nan, %v220
  %v222 = vand.u32 2147483647, %v117
  %vm223 = vcmp.le.f32.partialorder %v222, 0.7853982
  %vm224 = vcmp.lt.s32.totalorder %v117, 0
  %v225 = vand.u32 %v117, 2139095040
  %v226 = vshrl.u32 %v225, 23
  %v227 = vsub.s32 %v226, 127
  %v228 = vand.u32 2147483647, %v117
  %v229 = vand.u32 %v228, 8388607
  %v230 = vor.u32 %v229, 8388608
  %v231 = vsub.s32 0, %v230
  %v232 = vadd.s32 %v227, 1
  %vm233 = vcmp.gt.s32.totalorder %v232, 0
  %v234 = vsel %vm233, %v232, 0
  %v235 = vshrl.u32 %v234, 5
  %v236 = vand.u32 %v234, 31
  %v237 = vsub.s32 32, %v236
  %v238 = vshrl.u32 683565275, %v237
  %v239 = vshll.u32 683565275, %v236
  %v240 = vshrl.u32 2475754826, %v237
  %v241 = vor.u32 %v239, %v240
  %v242 = vshll.u32 2475754826, %v236
  %v243 = vshrl.u32 2131351028, %v237
  %v244 = vor.u32 %v242, %v243
  %v245 = vshll.u32 2131351028, %v236
  %v246 = vshrl.u32 2102212464, %v237
  %v247 = vor.u32 %v245, %v246
  %v248 = vshll.u32 2102212464, %v236
  %v249 = vshrl.u32 920167782, %v237
  %v250 = vor.u32 %v248, %v249
  %v251 = vshll.u32 920167782, %v236
  %v252 = vshrl.u32 1326507024, %v237
  %v253 = vor.u32 %v251, %v252
  %vm254 = vcmp.lt.s32.totalorder %v235, 1
  %vm255 = vcmp.lt.s32.totalorder %v235, 2
  %vm256 = vcmp.lt.s32.totalorder %v235, 3
  %vm257 = vcmp.lt.s32.totalorder %v235, 4
  %v258 = vsel %vm254, %v238, %v241
  %v259 = vsel %vm257, %v247, 2102212464
  %v260 = vsel %vm256, %v244, %v259
  %v261 = vsel %vm255, %v258, %v260
  %v262 = vsel %vm254, %v241, %v244
  %v263 = vsel %vm257, %v250, 920167782
  %v264 = vsel %vm256, %v247, %v263
  %v265 = vsel %vm255, %v262, %v264
  %v266 = vsel %vm254, %v244, %v247
  %v267 = vsel %vm257, %v253, 1326507024
  %v268 = vsel %vm256, %v250, %v267
  %v269 = vsel %vm255, %v266, %v268
  %v270 = vshll.u32 %v230, 8
  %v271 = vmul.u32.u64.compose %v270, %v269
  %v272 = vextract.low.u32 %v271
  %v273 = vextract.high.u32 %v271
  %v274 = vmul.u32.u64.compose %v270, %v265
  %v275 = vextract.low.u32 %v274
  %v276 = vextract.high.u32 %v274
  %v277 = vmul.u32 %v270, %v261
  %v278 = vadd.s32 %v273, %v275
  %vm279 = vc.u32 %v273, %v275
  %v280 = vadd.s32 %v276, 1
  %v281 = vsel %vm279, %v280, %v276
  %v282 = vadd.s32 %v277, %v281
  %v283 = vadd.s32 %v282, 536870912
  %v284 = vshrl.u32 %v283, 30
  %v285 = vshll.u32 %v284, 30
  %v286 = vsub.s32 %v282, %v285
  %vm287 = vcmp.lt.s32.totalorder %v286, 0
  %v288 = vsub.s32 0, %v286
  %v289 = vsel %vm287, %v288, %v286
  %v290 = vclz %v289
  %v291 = vsub.s32 %v290, 2
  %vm292 = vcmp.gt.s32.totalorder 0, %v291
  %v293 = vsel %vm292, 0, %v291
  %v294 = vsub.s32 32, %v293
  %v295 = vshll.u32 %v286, %v293
  %v296 = vshrl.u32 %v278, %v294
  %v297 = vor.u32 %v295, %v296
  %v298 = vsub.s32 4294967266, %v293
  %v299 = vadd.s32 %v298, 127
  %v300 = vshll.u32 %v299, 23
  %v301 = vor.u32 4788187, %v300
  %v302 = vand.u32 2147483647, %v301
  %v304 = vcvt.s32.f32 %v297
  %v305 = vmul.f32 %v304, %v302
  %v306 = vxor.u32 %v305, 2147483648
  %v307 = vsel %vm224, %v306, %v305
  %v308 = vsub.s32 4, %v284
  %v309 = vsel %vm224, %v308, %v284
  %v310 = vsel %vm223, %v117, %v307
  %v311 = vsel %vm223, 0, %v309
  %v312 = vcosq.f32.pop %v310
  %v313 = vsinq.f32.pop %v310
  %vm314 = vweird.f32 %v117
  %v315 = vadd.s32 %v311, 3
  %v316 = vand.u32 %v315, 3
  %vm317 = vcmp.lt.s32.totalorder %v316, 2
  %vm318 = vcmp.eq.s32.totalorder %v316, 0
  %v319 = vxor.u32 %v313, 2147483648
  %v320 = vsel %vm318, %v312, %v319
  %vm321 = vcmp.eq.s32.totalorder %v316, 2
  %v322 = vxor.u32 %v312, 2147483648
  %v323 = vsel %vm321, %v322, %v313
  %v324 = vsel %vm317, %v320, %v323
  %v325 = vsel %vm314, nan, %v324
  %v326 = vand.u32 2147483647, %v116
  %vm327 = vcmp.le.f32.partialorder %v326, 0.7853982
  %vm328 = vcmp.lt.s32.totalorder %v116, 0
  %v329 = vand.u32 %v116, 2139095040
  %v330 = vshrl.u32 %v329, 23
  %v331 = vsub.s32 %v330, 127
  %v332 = vand.u32 2147483647, %v116
  %v333 = vand.u32 %v332, 8388607
  %v334 = vor.u32 %v333, 8388608
  %v335 = vsub.s32 0, %v334
  %v336 = vadd.s32 %v331, 1
  %vm337 = vcmp.gt.s32.totalorder %v336, 0
  %v338 = vsel %vm337, %v336, 0
  %v339 = vshrl.u32 %v338, 5
  %v340 = vand.u32 %v338, 31
  %v341 = vsub.s32 32, %v340
  %v342 = vshrl.u32 683565275, %v341
  %v343 = vshll.u32 683565275, %v340
  %v344 = vshrl.u32 2475754826, %v341
  %v345 = vor.u32 %v343, %v344
  %v346 = vshll.u32 2475754826, %v340
  %v347 = vshrl.u32 2131351028, %v341
  %v348 = vor.u32 %v346, %v347
  %v349 = vshll.u32 2131351028, %v340
  %v350 = vshrl.u32 2102212464, %v341
  %v351 = vor.u32 %v349, %v350
  %v352 = vshll.u32 2102212464, %v340
  %v353 = vshrl.u32 920167782, %v341
  %v354 = vor.u32 %v352, %v353
  %v355 = vshll.u32 920167782, %v340
  %v356 = vshrl.u32 1326507024, %v341
  %v357 = vor.u32 %v355, %v356
  %vm358 = vcmp.lt.s32.totalorder %v339, 1
  %vm359 = vcmp.lt.s32.totalorder %v339, 2
  %vm360 = vcmp.lt.s32.totalorder %v339, 3
  %vm361 = vcmp.lt.s32.totalorder %v339, 4
  %v362 = vsel %vm358, %v342, %v345
  %v363 = vsel %vm361, %v351, 2102212464
  %v364 = vsel %vm360, %v348, %v363
  %v365 = vsel %vm359, %v362, %v364
  %v366 = vsel %vm358, %v345, %v348
  %v367 = vsel %vm361, %v354, 920167782
  %v368 = vsel %vm360, %v351, %v367
  %v369 = vsel %vm359, %v366, %v368
  %v370 = vsel %vm358, %v348, %v351
  %v371 = vsel %vm361, %v357, 1326507024
  %v372 = vsel %vm360, %v354, %v371
  %v373 = vsel %vm359, %v370, %v372
  %v374 = vshll.u32 %v334, 8
  %v375 = vmul.u32.u64.compose %v374, %v373
  %v376 = vextract.low.u32 %v375
  %v377 = vextract.high.u32 %v375
  %v378 = vmul.u32.u64.compose %v374, %v369
  %v379 = vextract.low.u32 %v378
  %v380 = vextract.high.u32 %v378
  %v381 = vmul.u32 %v374, %v365
  %v382 = vadd.s32 %v377, %v379
  %vm383 = vc.u32 %v377, %v379
  %v384 = vadd.s32 %v380, 1
  %v385 = vsel %vm383, %v384, %v380
  %v386 = vadd.s32 %v381, %v385
  %v387 = vadd.s32 %v386, 536870912
  %v388 = vshrl.u32 %v387, 30
  %v389 = vshll.u32 %v388, 30
  %v390 = vsub.s32 %v386, %v389
  %vm391 = vcmp.lt.s32.totalorder %v390, 0
  %v392 = vsub.s32 0, %v390
  %v393 = vsel %vm391, %v392, %v390
  %v394 = vclz %v393
  %v395 = vsub.s32 %v394, 2
  %vm396 = vcmp.gt.s32.totalorder 0, %v395
  %v397 = vsel %vm396, 0, %v395
  %v398 = vsub.s32 32, %v397
  %v399 = vshll.u32 %v390, %v397
  %v400 = vshrl.u32 %v382, %v398
  %v401 = vor.u32 %v399, %v400
  %v402 = vsub.s32 4294967266, %v397
  %v403 = vadd.s32 %v402, 127
  %v404 = vshll.u32 %v403, 23
  %v405 = vor.u32 4788187, %v404
  %v406 = vand.u32 2147483647, %v405
  %v408 = vcvt.s32.f32 %v401
  %v409 = vmul.f32 %v408, %v406
  %v410 = vxor.u32 %v409, 2147483648
  %v411 = vsel %vm328, %v410, %v409
  %v412 = vsub.s32 4, %v388
  %v413 = vsel %vm328, %v412, %v388
  %v414 = vsel %vm327, %v116, %v411
  %v415 = vsel %vm327, 0, %v413
  %v416 = vcosq.f32.pop %v414
  %v417 = vsinq.f32.pop %v414
  %vm418 = vweird.f32 %v116
  %v419 = vand.u32 %v415, 3
  %vm420 = vcmp.lt.s32.totalorder %v419, 2
  %vm421 = vcmp.eq.s32.totalorder %v419, 0
  %v422 = vxor.u32 %v417, 2147483648
  %v423 = vsel %vm421, %v416, %v422
  %vm424 = vcmp.eq.s32.totalorder %v419, 2
  %v425 = vxor.u32 %v416, 2147483648
  %v426 = vsel %vm424, %v425, %v417
  %v427 = vsel %vm420, %v423, %v426
  %v428 = vsel %vm418, nan, %v427
  %v429 = vand.u32 2147483647, %v117
  %vm430 = vcmp.le.f32.partialorder %v429, 0.7853982
  %vm431 = vcmp.lt.s32.totalorder %v117, 0
  %v432 = vand.u32 %v117, 2139095040
  %v433 = vshrl.u32 %v432, 23
  %v434 = vsub.s32 %v433, 127
  %v435 = vand.u32 2147483647, %v117
  %v436 = vand.u32 %v435, 8388607
  %v437 = vor.u32 %v436, 8388608
  %v438 = vsub.s32 0, %v437
  %v439 = vadd.s32 %v434, 1
  %vm440 = vcmp.gt.s32.totalorder %v439, 0
  %v441 = vsel %vm440, %v439, 0
  %v442 = vshrl.u32 %v441, 5
  %v443 = vand.u32 %v441, 31
  %v444 = vsub.s32 32, %v443
  %v445 = vshrl.u32 683565275, %v444
  %v446 = vshll.u32 683565275, %v443
  %v447 = vshrl.u32 2475754826, %v444
  %v448 = vor.u32 %v446, %v447
  %v449 = vshll.u32 2475754826, %v443
  %v450 = vshrl.u32 2131351028, %v444
  %v451 = vor.u32 %v449, %v450
  %v452 = vshll.u32 2131351028, %v443
  %v453 = vshrl.u32 2102212464, %v444
  %v454 = vor.u32 %v452, %v453
  %v455 = vshll.u32 2102212464, %v443
  %v456 = vshrl.u32 920167782, %v444
  %v457 = vor.u32 %v455, %v456
  %v458 = vshll.u32 920167782, %v443
  %v459 = vshrl.u32 1326507024, %v444
  %v460 = vor.u32 %v458, %v459
  %vm461 = vcmp.lt.s32.totalorder %v442, 1
  %vm462 = vcmp.lt.s32.totalorder %v442, 2
  %vm463 = vcmp.lt.s32.totalorder %v442, 3
  %vm464 = vcmp.lt.s32.totalorder %v442, 4
  %v465 = vsel %vm461, %v445, %v448
  %v466 = vsel %vm464, %v454, 2102212464
  %v467 = vsel %vm463, %v451, %v466
  %v468 = vsel %vm462, %v465, %v467
  %v469 = vsel %vm461, %v448, %v451
  %v470 = vsel %vm464, %v457, 920167782
  %v471 = vsel %vm463, %v454, %v470
  %v472 = vsel %vm462, %v469, %v471
  %v473 = vsel %vm461, %v451, %v454
  %v474 = vsel %vm464, %v460, 1326507024
  %v475 = vsel %vm463, %v457, %v474
  %v476 = vsel %vm462, %v473, %v475
  %v477 = vshll.u32 %v437, 8
  %v478 = vmul.u32.u64.compose %v477, %v476
  %v479 = vextract.low.u32 %v478
  %v480 = vextract.high.u32 %v478
  %v481 = vmul.u32.u64.compose %v477, %v472
  %v482 = vextract.low.u32 %v481
  %v483 = vextract.high.u32 %v481
  %v484 = vmul.u32 %v477, %v468
  %v485 = vadd.s32 %v480, %v482
  %vm486 = vc.u32 %v480, %v482
  %v487 = vadd.s32 %v483, 1
  %v488 = vsel %vm486, %v487, %v483
  %v489 = vadd.s32 %v484, %v488
  %v490 = vadd.s32 %v489, 536870912
  %v491 = vshrl.u32 %v490, 30
  %v492 = vshll.u32 %v491, 30
  %v493 = vsub.s32 %v489, %v492
  %vm494 = vcmp.lt.s32.totalorder %v493, 0
  %v495 = vsub.s32 0, %v493
  %v496 = vsel %vm494, %v495, %v493
  %v497 = vclz %v496
  %v498 = vsub.s32 %v497, 2
  %vm499 = vcmp.gt.s32.totalorder 0, %v498
  %v500 = vsel %vm499, 0, %v498
  %v501 = vsub.s32 32, %v500
  %v502 = vshll.u32 %v493, %v500
  %v503 = vshrl.u32 %v485, %v501
  %v504 = vor.u32 %v502, %v503
  %v505 = vsub.s32 4294967266, %v500
  %v506 = vadd.s32 %v505, 127
  %v507 = vshll.u32 %v506, 23
  %v508 = vor.u32 4788187, %v507
  %v509 = vand.u32 2147483647, %v508
  %v511 = vcvt.s32.f32 %v504
  %v512 = vmul.f32 %v511, %v509
  %v513 = vxor.u32 %v512, 2147483648
  %v514 = vsel %vm431, %v513, %v512
  %v515 = vsub.s32 4, %v491
  %v516 = vsel %vm431, %v515, %v491
  %v517 = vsel %vm430, %v117, %v514
  %v518 = vsel %vm430, 0, %v516
  %v519 = vcosq.f32.pop %v517
  %v520 = vsinq.f32.pop %v517
  %vm521 = vweird.f32 %v117
  %v522 = vand.u32 %v518, 3
  %vm523 = vcmp.lt.s32.totalorder %v522, 2
  %vm524 = vcmp.eq.s32.totalorder %v522, 0
  %v525 = vxor.u32 %v520, 2147483648
  %v526 = vsel %vm524, %v519, %v525
  %vm527 = vcmp.eq.s32.totalorder %v522, 2
  %v528 = vxor.u32 %v519, 2147483648
  %v529 = vsel %vm527, %v528, %v520
  %v530 = vsel %vm523, %v526, %v529
  %v531 = vsel %vm521, nan, %v530
  %534 = vrot.lane.b32.xlu0 %v428, 8
  %v535 = vpop.permute.xlu0 %534
  %536 = vrot.lane.b32.xlu0 %v531, 8
  %v537 = vpop.permute.xlu0 %536
  %vm540 = vcmask 64512
  %v541 = vsel %vm540, %v221, %v535
  %v542 = vsel %vm540, %v325, %v537
  %v543 = vld [vmem:[%s1] sm:$0xff]
  %v544 = vld [vmem:[%s1 + $0x8] sm:$0xf]
  %vm545 = vcmp.eq.f32.partialorder %v543, -1.0
  %vm546 = vcmp.eq.f32.partialorder %v544, -1.0
  %v547 = vsel %vm545, 1, 0
  %v548 = vsel %vm546, 1, 0
  %549 = vset.pattern.permute.xlu0 0
  %550 = vperm.xlu0 %549, %v547
  %v551 = vpop.permute.xlu0 %550
  %552 = vset.pattern.permute.xlu0 0
  %553 = vperm.xlu0 %552, %v548
  %v554 = vpop.permute.xlu0 %553
  %vm555 = vcmp.eq.s32.totalorder %v551, 1
  %vm556 = vcmp.eq.s32.totalorder %v554, 1
  %v557 = vsel %vm555, 0.0, %v541
  %v558 = vsel %vm556, 0.0, %v542
  %v559 = vld [vmem:[%s3] sm:$0x1]
  %v561 = vlaneseq
  %v562 = vshrl.u32 %v561, 7
  %v563 = vsub.s32 0, %v562
  %v564 = vrot.slane %v559, %v563
  %v566 = vsel %vm555, %v564, 0.0
  %v567 = vsel %vm556, %v564, 0.0
  %v568 = vadd.f32 %v557, %v566
  %v569 = vadd.f32 %v558, %v567
  %vm570 = vcmp.eq.f32.partialorder %v543, 0.0
  %vm571 = vcmp.eq.f32.partialorder %v544, 0.0
  %v572 = vld [vmem:[%s4] sm:$0x1]
  %v573 = vsel %vm570, 1, 0
  %v574 = vsel %vm571, 1, 0
  %575 = vset.pattern.permute.xlu0 0
  %576 = vperm.xlu0 %575, %v573
  %v577 = vpop.permute.xlu0 %576
  %578 = vset.pattern.permute.xlu0 0
  %579 = vperm.xlu0 %578, %v574
  %v580 = vpop.permute.xlu0 %579
  %vm581 = vcmp.eq.s32.totalorder %v577, 1
  %vm582 = vcmp.eq.s32.totalorder %v580, 1
  %v584 = vlaneseq
  %v585 = vshrl.u32 %v584, 7
  %v586 = vsub.s32 0, %v585
  %v587 = vrot.slane %v572, %v586
  %v589 = vsel %vm581, %v587, 0.0
  %v590 = vsel %vm582, %v587, 0.0
  %v591 = vadd.f32 %v568, %v589
  %v592 = vadd.f32 %v569, %v590
  %vm593 = vcmp.eq.f32.partialorder %v543, 1.0
  %vm594 = vcmp.eq.f32.partialorder %v544, 1.0
  %v595 = vld [vmem:[%s5] sm:$0x1]
  %v596 = vsel %vm593, 1, 0
  %v597 = vsel %vm594, 1, 0
  %598 = vset.pattern.permute.xlu0 0
  %599 = vperm.xlu0 %598, %v596
  %v600 = vpop.permute.xlu0 %599
  %601 = vset.pattern.permute.xlu0 0
  %602 = vperm.xlu0 %601, %v597
  %v603 = vpop.permute.xlu0 %602
  %vm604 = vcmp.eq.s32.totalorder %v600, 1
  %vm605 = vcmp.eq.s32.totalorder %v603, 1
  %v607 = vlaneseq
  %v608 = vshrl.u32 %v607, 7
  %v609 = vsub.s32 0, %v608
  %v610 = vrot.slane %v595, %v609
  %v612 = vsel %vm604, %v610, 0.0
  %v613 = vsel %vm605, %v610, 0.0
  %v614 = vadd.f32 %v591, %v612
  %v615 = vadd.f32 %v592, %v613
  %vm616 = vcmask 130048
  %617 = vst.msk [vmem:[%s6] sm:$0xff] %vm616, %v614
  %vm618 = vcmask 125952
  %619 = vst.msk [vmem:[%s6 + $0x8] sm:$0xf] %vm618, %v615
  // Predicated region
  $region26: #{efficient_sam_forward.8} parent=0 // pred_check
    _
  $region27: #{efficient_sam_forward.8} parent=0 // pred_check_branch
    %621 = sbr.rel (0) target = $region29
  $region28: #{efficient_sam_forward.8} parent=0 // pred_region
    _
  $region29: #{efficient_sam_forward.8} parent=0 // pred_fallthru
    _
  // Predicated region
  $region30: #{efficient_sam_forward.8} parent=0 // pred_check
    _
  $region31: #{efficient_sam_forward.8} parent=0 // pred_check_branch
    %623 = sbr.rel (0) target = $region33
  $region32: #{efficient_sam_forward.8} parent=0 // pred_region
    _
  $region33: #{efficient_sam_forward.8} parent=0 // pred_fallthru
    _

// kernel: efficient_sam_forward.10
$region0: #{efficient_sam_forward.10}
  #allocation0 [shape = 'u32[]', space=smem, size = 0x4, offset = 0x4, fixed_abs, tag = 'smem constant byte address 0x4 - core index']
  #allocation1 [shape = 'u32[144,128]{1,0:T(1,128)}', space=vmem, size = 0x12000, scoped, tag = 'internal scratch']
  %s0 = inlined_call_operand.vmem [shape: f32[32,16], index: 0, kind: input, shape index: {}]
  %s1 = inlined_call_operand.vmem [shape: bf16[16,16], index: 1, kind: input, shape index: {}]
  %s2 = inlined_call_operand.vmem [shape: f32[1,16], index: 2, kind: input, shape index: {}]
  %s3 = inlined_call_operand.vmem [shape: f32[1,4], index: 3, kind: input, shape index: {}]
  %s4 = inlined_call_operand.vmem [shape: f32[1,4], index: 4, kind: input, shape index: {}]
  %s5 = inlined_call_operand.vmem [shape: f32[32,16], index: 5, kind: output, shape index: {}]
  %s6 = sld [smem:[#allocation0]]
  $region30: #{efficient_sam_forward.10} parent=0
    _
  %s8 = ssub.s32 1, %s6
  %s9 = scalar_select 0, %s8, %s6
  // Predicated region
  $region2: #{efficient_sam_forward.10} parent=0 // pred_check
    _
  $region3: #{efficient_sam_forward.10} parent=0 // pred_check_branch
    %11 = sbr.rel (0) target = $region5
  $region4: #{efficient_sam_forward.10} parent=0 // pred_region
    _
  $region5: #{efficient_sam_forward.10} parent=0 // pred_fallthru
    _
  // Predicated region
  $region6: #{efficient_sam_forward.10} parent=0 // pred_check
    _
  $region7: #{efficient_sam_forward.10} parent=0 // pred_check_branch
    %13 = sbr.rel (0) target = $region9
  $region8: #{efficient_sam_forward.10} parent=0 // pred_region
    _
  $region9: #{efficient_sam_forward.10} parent=0 // pred_fallthru
    _
  // Predicated region
  $region10: #{efficient_sam_forward.10} parent=0 // pred_check
    _
  $region11: #{efficient_sam_forward.10} parent=0 // pred_check_branch
    %15 = sbr.rel (0) target = $region13
  $region12: #{efficient_sam_forward.10} parent=0 // pred_region
    _
  $region13: #{efficient_sam_forward.10} parent=0 // pred_fallthru
    _
  // Predicated region
  $region14: #{efficient_sam_forward.10} parent=0 // pred_check
    _
  $region15: #{efficient_sam_forward.10} parent=0 // pred_check_branch
    %17 = sbr.rel (0) target = $region17
  $region16: #{efficient_sam_forward.10} parent=0 // pred_region
    _
  $region17: #{efficient_sam_forward.10} parent=0 // pred_fallthru
    _
  // Predicated region
  $region18: #{efficient_sam_forward.10} parent=0 // pred_check
    _
  $region19: #{efficient_sam_forward.10} parent=0 // pred_check_branch
    %19 = sbr.rel (0) target = $region21
  $region20: #{efficient_sam_forward.10} parent=0 // pred_region
    _
  $region21: #{efficient_sam_forward.10} parent=0 // pred_fallthru
    _
  %v21 = vld [vmem:[%s0] sm:$0xff]
  %v22 = vld [vmem:[%s0 + $0x8] sm:$0xff]
  %v23 = vld [vmem:[%s0 + $0x10] sm:$0xff]
  %v24 = vld [vmem:[%s0 + $0x18] sm:$0xff]
  %v25 = vld [vmem:[%s1] sm:$0xf]
  %v26 = vld [vmem:[%s1 + $0x4] sm:$0xf]
  %v27 = vpack.c.bf16 %v22, %v21
  %v28 = vpack.c.bf16 %v24, %v23
  %v29 = vld [vmem:[%s2] sm:$0x1]
  %v31 = vlaneseq
  %v32 = vshrl.u32 %v31, 7
  %v33 = vsub.s32 0, %v32
  %v34 = vrot.slane %v29, %v33
  %v38 = vunpack.c.l.b16 %v25
  %v39 = vunpack.c.l.b16 %v26
  %v40 = vpack.c.b16 %v39, %v38
  %vm42 = vcmask 130048
  %v44 = vsel %vm42, %v27, 0
  %v47 = vsel %vm42, %v28, 0
  %49 = vmatprep.subr.bf16.mxu0 0
  %50 = vmatpush1.bf16.msra.mxu0 %v40
  %51 = vmatprep.subr.bf16.mxu0 0
  %52 = vmatpush1.bf16.msra.mxu0 0
  %53 = vmatprep.subr.bf16.mxu0 0
  %54 = vmatpush1.bf16.msra.mxu0 0
  %55 = vmatprep.subr.bf16.mxu0 0
  %56 = vmatpush1.bf16.msra.mxu0 0
  %57 = vmatprep.subr.bf16.mxu0 0
  %58 = vmatpush1.bf16.msra.mxu0 0
  %59 = vmatprep.subr.bf16.mxu0 0
  %60 = vmatpush1.bf16.msra.mxu0 0
  %61 = vmatprep.subr.bf16.mxu0 0
  %62 = vmatpush1.bf16.msra.mxu0 0
  %63 = vmatprep.subr.bf16.mxu0 0
  %64 = vmatpush1.bf16.msra.mxu0 0
  %65 = vmatprep.subr.bf16.mxu0 0
  %66 = vmatpush1.bf16.msra.mxu0 0
  %67 = vmatprep.subr.bf16.mxu0 0
  %68 = vmatpush1.bf16.msra.mxu0 0
  %69 = vmatprep.subr.bf16.mxu0 0
  %70 = vmatpush1.bf16.msra.mxu0 0
  %71 = vmatprep.subr.bf16.mxu0 0
  %72 = vmatpush1.bf16.msra.mxu0 0
  %73 = vmatprep.subr.bf16.mxu0 0
  %74 = vmatpush1.bf16.msra.mxu0 0
  %75 = vmatprep.subr.bf16.mxu0 0
  %76 = vmatpush1.bf16.msra.mxu0 0
  %77 = vmatprep.subr.bf16.mxu0 0
  %78 = vmatpush1.bf16.msra.mxu0 0
  %79 = vmatprep.subr.bf16.mxu0 0
  %80 = vmatpush1.bf16.msra.mxu0 0
  %81 = vmatprep.mubr.bf16.mxu0 0
  %82 = vmatmul.mubr.bf16.gmra.mrb[0].mxu0 %v44
  %v83 = vpop.f32.mrb[0].mxu0
  %v84 = vadd.f32 %v34, %v83
  %v85 = vpop.f32.mrb[0].mxu0
  %v86 = vpop.f32.mrb[0].mxu0
  %v87 = vadd.f32 %v34, %v86
  %v88 = vpop.f32.mrb[0].mxu0
  %89 = vmatprep.mubr.bf16.mxu0 0
  %90 = vmatmul.mubr.bf16.gmra.mrb[0].mxu0 %v47
  %v91 = vpop.f32.mrb[0].mxu0
  %v92 = vadd.f32 %v34, %v91
  %v93 = vpop.f32.mrb[0].mxu0
  %v94 = vpop.f32.mrb[0].mxu0
  %v95 = vadd.f32 %v34, %v94
  %v96 = vpop.f32.mrb[0].mxu0
  %97 = vdwg.mxu0
  %v98 = vld [vmem:[%s3] sm:$0x1]
  %v99 = vld [vmem:[%s4] sm:$0x1]
  %vm100 = vcmask 31744
  %v101 = vsel %vm100, %v84, 0.0
  %102 = vadd.xlane.f32.xlu0 %v101
  %v103 = vpop.xlane.xlu0 %102
  %v104 = vsel %vm100, %v87, 0.0
  %105 = vadd.xlane.f32.xlu0 %v104
  %v106 = vpop.xlane.xlu0 %105
  %v107 = vsel %vm100, %v92, 0.0
  %108 = vadd.xlane.f32.xlu0 %v107
  %v109 = vpop.xlane.xlu0 %108
  %v110 = vsel %vm100, %v95, 0.0
  %111 = vadd.xlane.f32.xlu0 %v110
  %v112 = vpop.xlane.xlu0 %111
  %v113 = vrcp.pop 4.0
  %v114 = vmul.f32 %v103, %v113
  %v115 = vmul.f32 %v106, %v113
  %v116 = vmul.f32 %v109, %v113
  %v117 = vmul.f32 %v112, %v113
  %v118 = vsub.f32 %v84, %v114
  %v119 = vsub.f32 %v87, %v115
  %v120 = vsub.f32 %v92, %v116
  %v121 = vsub.f32 %v95, %v117
  %v122 = vmul.f32 %v118, %v118
  %v123 = vmul.f32 %v119, %v119
  %v124 = vmul.f32 %v120, %v120
  %v125 = vmul.f32 %v121, %v121
  %v126 = vsel %vm100, %v122, 0.0
  %127 = vadd.xlane.f32.xlu0 %v126
  %v128 = vpop.xlane.xlu0 %127
  %v129 = vsel %vm100, %v123, 0.0
  %130 = vadd.xlane.f32.xlu0 %v129
  %v131 = vpop.xlane.xlu0 %130
  %v132 = vsel %vm100, %v124, 0.0
  %133 = vadd.xlane.f32.xlu0 %v132
  %v134 = vpop.xlane.xlu0 %133
  %v135 = vsel %vm100, %v125, 0.0
  %136 = vadd.xlane.f32.xlu0 %v135
  %v137 = vpop.xlane.xlu0 %136
  %v138 = vmul.f32 %v128, %v113
  %v139 = vmul.f32 %v131, %v113
  %v140 = vmul.f32 %v134, %v113
  %v141 = vmul.f32 %v137, %v113
  %v142 = vadd.f32 %v138, 1e-06
  %v143 = vadd.f32 %v139, 1e-06
  %v144 = vadd.f32 %v140, 1e-06
  %v145 = vadd.f32 %v141, 1e-06
  %v146 = vrsqrt.pop %v142
  %v147 = vrsqrt.pop %v143
  %v148 = vrsqrt.pop %v144
  %v149 = vrsqrt.pop %v145
  %v150 = vmul.f32 %v118, %v146
  %v151 = vmul.f32 %v119, %v147
  %v152 = vmul.f32 %v120, %v148
  %v153 = vmul.f32 %v121, %v149
  %v155 = vlaneseq
  %v156 = vshrl.u32 %v155, 7
  %v157 = vsub.s32 0, %v156
  %v158 = vrot.slane %v98, %v157
  %v160 = vmul.f32 %v150, %v158
  %v161 = vmul.f32 %v151, %v158
  %v162 = vmul.f32 %v152, %v158
  %v163 = vmul.f32 %v153, %v158
  %v165 = vlaneseq
  %v166 = vshrl.u32 %v165, 7
  %v167 = vsub.s32 0, %v166
  %v168 = vrot.slane %v99, %v167
  %v170 = vadd.f32 %v160, %v168
  %v171 = vadd.f32 %v161, %v168
  %v172 = vadd.f32 %v162, %v168
  %v173 = vadd.f32 %v163, %v168
  %v174 = vmul.f32 %v170, %v170
  %v175 = vmul.f32 %v171, %v171
  %v176 = vmul.f32 %v172, %v172
  %v177 = vmul.f32 %v173, %v173
  %v178 = vmul.f32 %v170, %v174
  %v179 = vmul.f32 %v171, %v175
  %v180 = vmul.f32 %v172, %v176
  %v181 = vmul.f32 %v173, %v177
  %v182 = vmul.f32 %v178, 0.044715
  %v183 = vmul.f32 %v179, 0.044715
  %v184 = vmul.f32 %v180, 0.044715
  %v185 = vmul.f32 %v181, 0.044715
  %v186 = vadd.f32 %v170, %v182
  %v187 = vadd.f32 %v171, %v183
  %v188 = vadd.f32 %v172, %v184
  %v189 = vadd.f32 %v173, %v185
  %v190 = vmul.f32 %v186, 0.7978846
  %v191 = vmul.f32 %v187, 0.7978846
  %v192 = vmul.f32 %v188, 0.7978846
  %v193 = vmul.f32 %v189, 0.7978846
  %v194 = vtanh.pop %v190
  %v195 = vtanh.pop %v191
  %v196 = vtanh.pop %v192
  %v197 = vtanh.pop %v193
  %v198 = vadd.f32 %v194, 1.0
  %v199 = vadd.f32 %v195, 1.0
  %v200 = vadd.f32 %v196, 1.0
  %v201 = vadd.f32 %v197, 1.0
  %v202 = vmul.f32 %v198, 0.5
  %v203 = vmul.f32 %v199, 0.5
  %v204 = vmul.f32 %v200, 0.5
  %v205 = vmul.f32 %v201, 0.5
  %v206 = vmul.f32 %v170, %v202
  %v207 = vmul.f32 %v171, %v203
  %v208 = vmul.f32 %v172, %v204
  %v209 = vmul.f32 %v173, %v205
  %210 = vst.msk [vmem:[%s5] sm:$0xff] %vm100, %v206
  %211 = vst.msk [vmem:[%s5 + $0x8] sm:$0xff] %vm100, %v207
  %212 = vst.msk [vmem:[%s5 + $0x10] sm:$0xff] %vm100, %v208
  %213 = vst.msk [vmem:[%s5 + $0x18] sm:$0xff] %vm100, %v209
  %v214 = vld [vmem:[%s3] sm:$0x1]
  %v215 = vld [vmem:[%s4] sm:$0x1]
  %220 = vrot.lane.b32.xlu0 %v84, 124
  %v221 = vpop.permute.xlu0 %220
  %222 = vrot.lane.b32.xlu0 %v87, 124
  %v223 = vpop.permute.xlu0 %222
  %224 = vrot.lane.b32.xlu0 %v92, 124
  %v225 = vpop.permute.xlu0 %224
  %226 = vrot.lane.b32.xlu0 %v95, 124
  %v227 = vpop.permute.xlu0 %226
  %v232 = vsel %vm100, %v221, 0.0
  %233 = vadd.xlane.f32.xlu0 %v232
  %v234 = vpop.xlane.xlu0 %233
  %v235 = vsel %vm100, %v223, 0.0
  %236 = vadd.xlane.f32.xlu0 %v235
  %v237 = vpop.xlane.xlu0 %236
  %v238 = vsel %vm100, %v225, 0.0
  %239 = vadd.xlane.f32.xlu0 %v238
  %v240 = vpop.xlane.xlu0 %239
  %v241 = vsel %vm100, %v227, 0.0
  %242 = vadd.xlane.f32.xlu0 %v241
  %v243 = vpop.xlane.xlu0 %242
  %v244 = vmul.f32 %v234, %v113
  %v245 = vmul.f32 %v237, %v113
  %v246 = vmul.f32 %v240, %v113
  %v247 = vmul.f32 %v243, %v113
  %v248 = vsub.f32 %v84, %v244
  %v249 = vsub.f32 %v87, %v245
  %v250 = vsub.f32 %v92, %v246
  %v251 = vsub.f32 %v95, %v247
  %v252 = vmul.f32 %v248, %v248
  %v253 = vmul.f32 %v249, %v249
  %v254 = vmul.f32 %v250, %v250
  %v255 = vmul.f32 %v251, %v251
  %260 = vrot.lane.b32.xlu0 %v252, 124
  %v261 = vpop.permute.xlu0 %260
  %262 = vrot.lane.b32.xlu0 %v253, 124
  %v263 = vpop.permute.xlu0 %262
  %264 = vrot.lane.b32.xlu0 %v254, 124
  %v265 = vpop.permute.xlu0 %264
  %266 = vrot.lane.b32.xlu0 %v255, 124
  %v267 = vpop.permute.xlu0 %266
  %v272 = vsel %vm100, %v261, 0.0
  %273 = vadd.xlane.f32.xlu0 %v272
  %v274 = vpop.xlane.xlu0 %273
  %v275 = vsel %vm100, %v263, 0.0
  %276 = vadd.xlane.f32.xlu0 %v275
  %v277 = vpop.xlane.xlu0 %276
  %v278 = vsel %vm100, %v265, 0.0
  %279 = vadd.xlane.f32.xlu0 %v278
  %v280 = vpop.xlane.xlu0 %279
  %v281 = vsel %vm100, %v267, 0.0
  %282 = vadd.xlane.f32.xlu0 %v281
  %v283 = vpop.xlane.xlu0 %282
  %v284 = vmul.f32 %v274, %v113
  %v285 = vmul.f32 %v277, %v113
  %v286 = vmul.f32 %v280, %v113
  %v287 = vmul.f32 %v283, %v113
  %v288 = vadd.f32 %v284, 1e-06
  %v289 = vadd.f32 %v285, 1e-06
  %v290 = vadd.f32 %v286, 1e-06
  %v291 = vadd.f32 %v287, 1e-06
  %v292 = vrsqrt.pop %v288
  %v293 = vrsqrt.pop %v289
  %v294 = vrsqrt.pop %v290
  %v295 = vrsqrt.pop %v291
  %v296 = vmul.f32 %v248, %v292
  %v297 = vmul.f32 %v249, %v293
  %v298 = vmul.f32 %v250, %v294
  %v299 = vmul.f32 %v251, %v295
  %v301 = vlaneseq
  %v302 = vshrl.u32 %v301, 7
  %v303 = vsub.s32 0, %v302
  %v304 = vrot.slane %v214, %v303
  %305 = vrot.lane.b32.xlu0 %v304, 4
  %v306 = vpop.permute.xlu0 %305
  %v308 = vmul.f32 %v296, %v306
  %v309 = vmul.f32 %v297, %v306
  %v310 = vmul.f32 %v298, %v306
  %v311 = vmul.f32 %v299, %v306
  %v313 = vlaneseq
  %v314 = vshrl.u32 %v313, 7
  %v315 = vsub.s32 0, %v314
  %v316 = vrot.slane %v215, %v315
  %317 = vrot.lane.b32.xlu0 %v316, 4
  %v318 = vpop.permute.xlu0 %317
  %v320 = vadd.f32 %v308, %v318
  %v321 = vadd.f32 %v309, %v318
  %v322 = vadd.f32 %v310, %v318
  %v323 = vadd.f32 %v311, %v318
  %v324 = vmul.f32 %v320, %v320
  %v325 = vmul.f32 %v321, %v321
  %v326 = vmul.f32 %v322, %v322
  %v327 = vmul.f32 %v323, %v323
  %v328 = vmul.f32 %v320, %v324
  %v329 = vmul.f32 %v321, %v325
  %v330 = vmul.f32 %v322, %v326
  %v331 = vmul.f32 %v323, %v327
  %v332 = vmul.f32 %v328, 0.044715
  %v333 = vmul.f32 %v329, 0.044715
  %v334 = vmul.f32 %v330, 0.044715
  %v335 = vmul.f32 %v331, 0.044715
  %v336 = vadd.f32 %v320, %v332
  %v337 = vadd.f32 %v321, %v333
  %v338 = vadd.f32 %v322, %v334
  %v339 = vadd.f32 %v323, %v335
  %v340 = vmul.f32 %v336, 0.7978846
  %v341 = vmul.f32 %v337, 0.7978846
  %v342 = vmul.f32 %v338, 0.7978846
  %v343 = vmul.f32 %v339, 0.7978846
  %v344 = vtanh.pop %v340
  %v345 = vtanh.pop %v341
  %v346 = vtanh.pop %v342
  %v347 = vtanh.pop %v343
  %v348 = vadd.f32 %v344, 1.0
  %v349 = vadd.f32 %v345, 1.0
  %v350 = vadd.f32 %v346, 1.0
  %v351 = vadd.f32 %v347, 1.0
  %v352 = vmul.f32 %v348, 0.5
  %v353 = vmul.f32 %v349, 0.5
  %v354 = vmul.f32 %v350, 0.5
  %v355 = vmul.f32 %v351, 0.5
  %v356 = vmul.f32 %v320, %v352
  %v357 = vmul.f32 %v321, %v353
  %v358 = vmul.f32 %v322, %v354
  %v359 = vmul.f32 %v323, %v355
  %vm360 = vcmask 64544
  %361 = vst.msk [vmem:[%s5] sm:$0xff] %vm360, %v356
  %362 = vst.msk [vmem:[%s5 + $0x8] sm:$0xff] %vm360, %v357
  %363 = vst.msk [vmem:[%s5 + $0x10] sm:$0xff] %vm360, %v358
  %364 = vst.msk [vmem:[%s5 + $0x18] sm:$0xff] %vm360, %v359
  %v365 = vld [vmem:[%s3] sm:$0x1]
  %v366 = vld [vmem:[%s4] sm:$0x1]
  %367 = vrot.lane.b32.xlu0 %v84, 120
  %v368 = vpop.permute.xlu0 %367
  %369 = vrot.lane.b32.xlu0 %v87, 120
  %v370 = vpop.permute.xlu0 %369
  %371 = vrot.lane.b32.xlu0 %v92, 120
  %v372 = vpop.permute.xlu0 %371
  %373 = vrot.lane.b32.xlu0 %v95, 120
  %v374 = vpop.permute.xlu0 %373
  %v379 = vsel %vm100, %v368, 0.0
  %380 = vadd.xlane.f32.xlu0 %v379
  %v381 = vpop.xlane.xlu0 %380
  %v382 = vsel %vm100, %v370, 0.0
  %383 = vadd.xlane.f32.xlu0 %v382
  %v384 = vpop.xlane.xlu0 %383
  %v385 = vsel %vm100, %v372, 0.0
  %386 = vadd.xlane.f32.xlu0 %v385
  %v387 = vpop.xlane.xlu0 %386
  %v388 = vsel %vm100, %v374, 0.0
  %389 = vadd.xlane.f32.xlu0 %v388
  %v390 = vpop.xlane.xlu0 %389
  %v391 = vmul.f32 %v381, %v113
  %v392 = vmul.f32 %v384, %v113
  %v393 = vmul.f32 %v387, %v113
  %v394 = vmul.f32 %v390, %v113
  %v395 = vsub.f32 %v84, %v391
  %v396 = vsub.f32 %v87, %v392
  %v397 = vsub.f32 %v92, %v393
  %v398 = vsub.f32 %v95, %v394
  %v399 = vmul.f32 %v395, %v395
  %v400 = vmul.f32 %v396, %v396
  %v401 = vmul.f32 %v397, %v397
  %v402 = vmul.f32 %v398, %v398
  %407 = vrot.lane.b32.xlu0 %v399, 120
  %v408 = vpop.permute.xlu0 %407
  %409 = vrot.lane.b32.xlu0 %v400, 120
  %v410 = vpop.permute.xlu0 %409
  %411 = vrot.lane.b32.xlu0 %v401, 120
  %v412 = vpop.permute.xlu0 %411
  %413 = vrot.lane.b32.xlu0 %v402, 120
  %v414 = vpop.permute.xlu0 %413
  %v419 = vsel %vm100, %v408, 0.0
  %420 = vadd.xlane.f32.xlu0 %v419
  %v421 = vpop.xlane.xlu0 %420
  %v422 = vsel %vm100, %v410, 0.0
  %423 = vadd.xlane.f32.xlu0 %v422
  %v424 = vpop.xlane.xlu0 %423
  %v425 = vsel %vm100, %v412, 0.0
  %426 = vadd.xlane.f32.xlu0 %v425
  %v427 = vpop.xlane.xlu0 %426
  %v428 = vsel %vm100, %v414, 0.0
  %429 = vadd.xlane.f32.xlu0 %v428
  %v430 = vpop.xlane.xlu0 %429
  %v431 = vmul.f32 %v421, %v113
  %v432 = vmul.f32 %v424, %v113
  %v433 = vmul.f32 %v427, %v113
  %v434 = vmul.f32 %v430, %v113
  %v435 = vadd.f32 %v431, 1e-06
  %v436 = vadd.f32 %v432, 1e-06
  %v437 = vadd.f32 %v433, 1e-06
  %v438 = vadd.f32 %v434, 1e-06
  %v439 = vrsqrt.pop %v435
  %v440 = vrsqrt.pop %v436
  %v441 = vrsqrt.pop %v437
  %v442 = vrsqrt.pop %v438
  %v443 = vmul.f32 %v395, %v439
  %v444 = vmul.f32 %v396, %v440
  %v445 = vmul.f32 %v397, %v441
  %v446 = vmul.f32 %v398, %v442
  %v448 = vlaneseq
  %v449 = vshrl.u32 %v448, 7
  %v450 = vsub.s32 0, %v449
  %v451 = vrot.slane %v365, %v450
  %452 = vrot.lane.b32.xlu0 %v451, 8
  %v453 = vpop.permute.xlu0 %452
  %v455 = vmul.f32 %v443, %v453
  %v456 = vmul.f32 %v444, %v453
  %v457 = vmul.f32 %v445, %v453
  %v458 = vmul.f32 %v446, %v453
  %v460 = vlaneseq
  %v461 = vshrl.u32 %v460, 7
  %v462 = vsub.s32 0, %v461
  %v463 = vrot.slane %v366, %v462
  %464 = vrot.lane.b32.xlu0 %v463, 8
  %v465 = vpop.permute.xlu0 %464
  %v467 = vadd.f32 %v455, %v465
  %v468 = vadd.f32 %v456, %v465
  %v469 = vadd.f32 %v457, %v465
  %v470 = vadd.f32 %v458, %v465
  %v471 = vmul.f32 %v467, %v467
  %v472 = vmul.f32 %v468, %v468
  %v473 = vmul.f32 %v469, %v469
  %v474 = vmul.f32 %v470, %v470
  %v475 = vmul.f32 %v467, %v471
  %v476 = vmul.f32 %v468, %v472
  %v477 = vmul.f32 %v469, %v473
  %v478 = vmul.f32 %v470, %v474
  %v479 = vmul.f32 %v475, 0.044715
  %v480 = vmul.f32 %v476, 0.044715
  %v481 = vmul.f32 %v477, 0.044715
  %v482 = vmul.f32 %v478, 0.044715
  %v483 = vadd.f32 %v467, %v479
  %v484 = vadd.f32 %v468, %v480
  %v485 = vadd.f32 %v469, %v481
  %v486 = vadd.f32 %v470, %v482
  %v487 = vmul.f32 %v483, 0.7978846
  %v488 = vmul.f32 %v484, 0.7978846
  %v489 = vmul.f32 %v485, 0.7978846
  %v490 = vmul.f32 %v486, 0.7978846
  %v491 = vtanh.pop %v487
  %v492 = vtanh.pop %v488
  %v493 = vtanh.pop %v489
  %v494 = vtanh.pop %v490
  %v495 = vadd.f32 %v491, 1.0
  %v496 = vadd.f32 %v492, 1.0
  %v497 = vadd.f32 %v493, 1.0
  %v498 = vadd.f32 %v494, 1.0
  %v499 = vmul.f32 %v495, 0.5
  %v500 = vmul.f32 %v496, 0.5
  %v501 = vmul.f32 %v497, 0.5
  %v502 = vmul.f32 %v498, 0.5
  %v503 = vmul.f32 %v467, %v499
  %v504 = vmul.f32 %v468, %v500
  %v505 = vmul.f32 %v469, %v501
  %v506 = vmul.f32 %v470, %v502
  %vm507 = vcmask 97344
  %508 = vst.msk [vmem:[%s5] sm:$0xff] %vm507, %v503
  %509 = vst.msk [vmem:[%s5 + $0x8] sm:$0xff] %vm507, %v504
  %510 = vst.msk [vmem:[%s5 + $0x10] sm:$0xff] %vm507, %v505
  %511 = vst.msk [vmem:[%s5 + $0x18] sm:$0xff] %vm507, %v506
  %v512 = vld [vmem:[%s3] sm:$0x1]
  %v513 = vld [vmem:[%s4] sm:$0x1]
  %514 = vrot.lane.b32.xlu0 %v84, 116
  %v515 = vpop.permute.xlu0 %514
  %516 = vrot.lane.b32.xlu0 %v87, 116
  %v517 = vpop.permute.xlu0 %516
  %518 = vrot.lane.b32.xlu0 %v92, 116
  %v519 = vpop.permute.xlu0 %518
  %520 = vrot.lane.b32.xlu0 %v95, 116
  %v521 = vpop.permute.xlu0 %520
  %v526 = vsel %vm100, %v515, 0.0
  %527 = vadd.xlane.f32.xlu0 %v526
  %v528 = vpop.xlane.xlu0 %527
  %v529 = vsel %vm100, %v517, 0.0
  %530 = vadd.xlane.f32.xlu0 %v529
  %v531 = vpop.xlane.xlu0 %530
  %v532 = vsel %vm100, %v519, 0.0
  %533 = vadd.xlane.f32.xlu0 %v532
  %v534 = vpop.xlane.xlu0 %533
  %v535 = vsel %vm100, %v521, 0.0
  %536 = vadd.xlane.f32.xlu0 %v535
  %v537 = vpop.xlane.xlu0 %536
  %v538 = vmul.f32 %v528, %v113
  %v539 = vmul.f32 %v531, %v113
  %v540 = vmul.f32 %v534, %v113
  %v541 = vmul.f32 %v537, %v113
  %v542 = vsub.f32 %v84, %v538
  %v543 = vsub.f32 %v87, %v539
  %v544 = vsub.f32 %v92, %v540
  %v545 = vsub.f32 %v95, %v541
  %v546 = vmul.f32 %v542, %v542
  %v547 = vmul.f32 %v543, %v543
  %v548 = vmul.f32 %v544, %v544
  %v549 = vmul.f32 %v545, %v545
  %554 = vrot.lane.b32.xlu0 %v546, 116
  %v555 = vpop.permute.xlu0 %554
  %556 = vrot.lane.b32.xlu0 %v547, 116
  %v557 = vpop.permute.xlu0 %556
  %558 = vrot.lane.b32.xlu0 %v548, 116
  %v559 = vpop.permute.xlu0 %558
  %560 = vrot.lane.b32.xlu0 %v549, 116
  %v561 = vpop.permute.xlu0 %560
  %v566 = vsel %vm100, %v555, 0.0
  %567 = vadd.xlane.f32.xlu0 %v566
  %v568 = vpop.xlane.xlu0 %567
  %v569 = vsel %vm100, %v557, 0.0
  %570 = vadd.xlane.f32.xlu0 %v569
  %v571 = vpop.xlane.xlu0 %570
  %v572 = vsel %vm100, %v559, 0.0
  %573 = vadd.xlane.f32.xlu0 %v572
  %v574 = vpop.xlane.xlu0 %573
  %v575 = vsel %vm100, %v561, 0.0
  %576 = vadd.xlane.f32.xlu0 %v575
  %v577 = vpop.xlane.xlu0 %576
  %v578 = vmul.f32 %v568, %v113
  %v579 = vmul.f32 %v571, %v113
  %v580 = vmul.f32 %v574, %v113
  %v581 = vmul.f32 %v577, %v113
  %v582 = vadd.f32 %v578, 1e-06
  %v583 = vadd.f32 %v579, 1e-06
  %v584 = vadd.f32 %v580, 1e-06
  %v585 = vadd.f32 %v581, 1e-06
  %v586 = vrsqrt.pop %v582
  %v587 = vrsqrt.pop %v583
  %v588 = vrsqrt.pop %v584
  %v589 = vrsqrt.pop %v585
  %v590 = vmul.f32 %v542, %v586
  %v591 = vmul.f32 %v543, %v587
  %v592 = vmul.f32 %v544, %v588
  %v593 = vmul.f32 %v545, %v589
  %v595 = vlaneseq
  %v596 = vshrl.u32 %v595, 7
  %v597 = vsub.s32 0, %v596
  %v598 = vrot.slane %v512, %v597
  %599 = vrot.lane.b32.xlu0 %v598, 12
  %v600 = vpop.permute.xlu0 %599
  %v602 = vmul.f32 %v590, %v600
  %v603 = vmul.f32 %v591, %v600
  %v604 = vmul.f32 %v592, %v600
  %v605 = vmul.f32 %v593, %v600
  %v607 = vlaneseq
  %v608 = vshrl.u32 %v607, 7
  %v609 = vsub.s32 0, %v608
  %v610 = vrot.slane %v513, %v609
  %611 = vrot.lane.b32.xlu0 %v610, 12
  %v612 = vpop.permute.xlu0 %611
  %v614 = vadd.f32 %v602, %v612
  %v615 = vadd.f32 %v603, %v612
  %v616 = vadd.f32 %v604, %v612
  %v617 = vadd.f32 %v605, %v612
  %v618 = vmul.f32 %v614, %v614
  %v619 = vmul.f32 %v615, %v615
  %v620 = vmul.f32 %v616, %v616
  %v621 = vmul.f32 %v617, %v617
  %v622 = vmul.f32 %v614, %v618
  %v623 = vmul.f32 %v615, %v619
  %v624 = vmul.f32 %v616, %v620
  %v625 = vmul.f32 %v617, %v621
  %v626 = vmul.f32 %v622, 0.044715
  %v627 = vmul.f32 %v623, 0.044715
  %v628 = vmul.f32 %v624, 0.044715
  %v629 = vmul.f32 %v625, 0.044715
  %v630 = vadd.f32 %v614, %v626
  %v631 = vadd.f32 %v615, %v627
  %v632 = vadd.f32 %v616, %v628
  %v633 = vadd.f32 %v617, %v629
  %v634 = vmul.f32 %v630, 0.7978846
  %v635 = vmul.f32 %v631, 0.7978846
  %v636 = vmul.f32 %v632, 0.7978846
  %v637 = vmul.f32 %v633, 0.7978846
  %v638 = vtanh.pop %v634
  %v639 = vtanh.pop %v635
  %v640 = vtanh.pop %v636
  %v641 = vtanh.pop %v637
  %v642 = vadd.f32 %v638, 1.0
  %v643 = vadd.f32 %v639, 1.0
  %v644 = vadd.f32 %v640, 1.0
  %v645 = vadd.f32 %v641, 1.0
  %v646 = vmul.f32 %v642, 0.5
  %v647 = vmul.f32 %v643, 0.5
  %v648 = vmul.f32 %v644, 0.5
  %v649 = vmul.f32 %v645, 0.5
  %v650 = vmul.f32 %v614, %v646
  %v651 = vmul.f32 %v615, %v647
  %v652 = vmul.f32 %v616, %v648
  %v653 = vmul.f32 %v617, %v649
  %vm654 = vcmask 130144
  %655 = vst.msk [vmem:[%s5] sm:$0xff] %vm654, %v650
  %656 = vst.msk [vmem:[%s5 + $0x8] sm:$0xff] %vm654, %v651
  %657 = vst.msk [vmem:[%s5 + $0x10] sm:$0xff] %vm654, %v652
  %658 = vst.msk [vmem:[%s5 + $0x18] sm:$0xff] %vm654, %v653
  // Predicated region
  $region22: #{efficient_sam_forward.10} parent=0 // pred_check
    _
  $region23: #{efficient_sam_forward.10} parent=0 // pred_check_branch
    %660 = sbr.rel (0) target = $region25
  $region24: #{efficient_sam_forward.10} parent=0 // pred_region
    _
  $region25: #{efficient_sam_forward.10} parent=0 // pred_fallthru
    _
  // Predicated region
  $region26: #{efficient_sam_forward.10} parent=0 // pred_check
    _
  $region27: #{efficient_sam_forward.10} parent=0 // pred_check_branch
    %662 = sbr.rel (0) target = $region29
  $region28: #{efficient_sam_forward.10} parent=0 // pred_region
    _
  $region29: #{efficient_sam_forward.10} parent=0 // pred_fallthru
    _

// kernel: efficient_sam_forward.7
$region0: #{efficient_sam_forward.7}
  #allocation0 [shape = 'u32[]', space=smem, size = 0x4, offset = 0x4, fixed_abs, tag = 'smem constant byte address 0x4 - core index']
  #allocation1 [shape = 'u32[144,128]{1,0:T(1,128)}', space=vmem, size = 0x12000, scoped, tag = 'internal scratch']
  %s0 = inlined_call_operand.vmem [shape: f32[1,16,192], index: 0, kind: input, shape index: {}]
  %s1 = inlined_call_operand.vmem [shape: f32[1,192], index: 1, kind: input, shape index: {}]
  %s2 = inlined_call_operand.vmem [shape: f32[1,192], index: 2, kind: input, shape index: {}]
  %s3 = inlined_call_operand.vmem [shape: bf16[192,32], index: 3, kind: input, shape index: {}]
  %s4 = inlined_call_operand.vmem [shape: f32[1,32], index: 4, kind: input, shape index: {}]
  %s5 = inlined_call_operand.vmem [shape: f32[16,32], index: 5, kind: input, shape index: {}]
  %s6 = inlined_call_operand.vmem [shape: f32[1,32], index: 6, kind: input, shape index: {}]
  %s7 = inlined_call_operand.vmem [shape: f32[1,32], index: 7, kind: input, shape index: {}]
  %s8 = inlined_call_operand.vmem [shape: bf16[32,96], index: 8, kind: input, shape index: {}]
  %s9 = inlined_call_operand.vmem [shape: f32[1,96], index: 9, kind: input, shape index: {}]
  %s10 = inlined_call_operand.vmem [shape: bf16[32,32], index: 10, kind: input, shape index: {}]
  %s11 = inlined_call_operand.vmem [shape: f32[1,32], index: 11, kind: input, shape index: {}]
  %s12 = inlined_call_operand.vmem [shape: f32[1,32], index: 12, kind: input, shape index: {}]
  %s13 = inlined_call_operand.vmem [shape: f32[1,32], index: 13, kind: input, shape index: {}]
  %s14 = inlined_call_operand.vmem [shape: bf16[32,64], index: 14, kind: input, shape index: {}]
  %s15 = inlined_call_operand.vmem [shape: f32[1,64], index: 15, kind: input, shape index: {}]
  %s16 = inlined_call_operand.vmem [shape: bf16[64,32], index: 16, kind: input, shape index: {}]
  %s17 = inlined_call_operand.vmem [shape: f32[1,32], index: 17, kind: input, shape index: {}]
  %s18 = inlined_call_operand.vmem [shape: bf16[32,16], index: 18, kind: input, shape index: {}]
  %s19 = inlined_call_operand.vmem [shape: f32[1,16], index: 19, kind: input, shape index: {}]
  %s20 = inlined_call_operand.vmem [shape: f32[1,16], index: 20, kind: input, shape index: {}]
  %s21 = inlined_call_operand.vmem [shape: f32[1,16], index: 21, kind: input, shape index: {}]
  %s22 = inlined_call_operand.vmem [shape: f32[1,16,16], index: 22, kind: output, shape index: {}]
  %s23 = sld [smem:[#allocation0]]
  $region98: #{efficient_sam_forward.7} parent=0
    _
  %s25 = ssub.s32 1, %s23
  %s26 = scalar_select 0, %s25, %s23
  // Predicated region
  $region2: #{efficient_sam_forward.7} parent=0 // pred_check
    _
  $region3: #{efficient_sam_forward.7} parent=0 // pred_check_branch
    %28 = sbr.rel (0) target = $region5
  $region4: #{efficient_sam_forward.7} parent=0 // pred_region
    _
  $region5: #{efficient_sam_forward.7} parent=0 // pred_fallthru
    _
  // Predicated region
  $region6: #{efficient_sam_forward.7} parent=0 // pred_check
    _
  $region7: #{efficient_sam_forward.7} parent=0 // pred_check_branch
    %30 = sbr.rel (0) target = $region9
  $region8: #{efficient_sam_forward.7} parent=0 // pred_region
    _
  $region9: #{efficient_sam_forward.7} parent=0 // pred_fallthru
    _
  // Predicated region
  $region10: #{efficient_sam_forward.7} parent=0 // pred_check
    _
  $region11: #{efficient_sam_forward.7} parent=0 // pred_check_branch
    %32 = sbr.rel (0) target = $region13
  $region12: #{efficient_sam_forward.7} parent=0 // pred_region
    _
  $region13: #{efficient_sam_forward.7} parent=0 // pred_fallthru
    _
  // Predicated region
  $region14: #{efficient_sam_forward.7} parent=0 // pred_check
    _
  $region15: #{efficient_sam_forward.7} parent=0 // pred_check_branch
    %34 = sbr.rel (0) target = $region17
  $region16: #{efficient_sam_forward.7} parent=0 // pred_region
    _
  $region17: #{efficient_sam_forward.7} parent=0 // pred_fallthru
    _
  // Predicated region
  $region18: #{efficient_sam_forward.7} parent=0 // pred_check
    _
  $region19: #{efficient_sam_forward.7} parent=0 // pred_check_branch
    %36 = sbr.rel (0) target = $region21
  $region20: #{efficient_sam_forward.7} parent=0 // pred_region
    _
  $region21: #{efficient_sam_forward.7} parent=0 // pred_fallthru
    _
  // Predicated region
  $region22: #{efficient_sam_forward.7} parent=0 // pred_check
    _
  $region23: #{efficient_sam_forward.7} parent=0 // pred_check_branch
    %38 = sbr.rel (0) target = $region25
  $region24: #{efficient_sam_forward.7} parent=0 // pred_region
    _
  $region25: #{efficient_sam_forward.7} parent=0 // pred_fallthru
    _
  // Predicated region
  $region26: #{efficient_sam_forward.7} parent=0 // pred_check
    _
  $region27: #{efficient_sam_forward.7} parent=0 // pred_check_branch
    %40 = sbr.rel (0) target = $region29
  $region28: #{efficient_sam_forward.7} parent=0 // pred_region
    _
  $region29: #{efficient_sam_forward.7} parent=0 // pred_fallthru
    _
  // Predicated region
  $region30: #{efficient_sam_forward.7} parent=0 // pred_check
    _
  $region31: #{efficient_sam_forward.7} parent=0 // pred_check_branch
    %42 = sbr.rel (0) target = $region33
  $region32: #{efficient_sam_forward.7} parent=0 // pred_region
    _
  $region33: #{efficient_sam_forward.7} parent=0 // pred_fallthru
    _
  // Predicated region
  $region34: #{efficient_sam_forward.7} parent=0 // pred_check
    _
  $region35: #{efficient_sam_forward.7} parent=0 // pred_check_branch
    %44 = sbr.rel (0) target = $region37
  $region36: #{efficient_sam_forward.7} parent=0 // pred_region
    _
  $region37: #{efficient_sam_forward.7} parent=0 // pred_fallthru
    _
  // Predicated region
  $region38: #{efficient_sam_forward.7} parent=0 // pred_check
    _
  $region39: #{efficient_sam_forward.7} parent=0 // pred_check_branch
    %46 = sbr.rel (0) target = $region41
  $region40: #{efficient_sam_forward.7} parent=0 // pred_region
    _
  $region41: #{efficient_sam_forward.7} parent=0 // pred_fallthru
    _
  // Predicated region
  $region42: #{efficient_sam_forward.7} parent=0 // pred_check
    _
  $region43: #{efficient_sam_forward.7} parent=0 // pred_check_branch
    %48 = sbr.rel (0) target = $region45
  $region44: #{efficient_sam_forward.7} parent=0 // pred_region
    _
  $region45: #{efficient_sam_forward.7} parent=0 // pred_fallthru
    _
  // Predicated region
  $region46: #{efficient_sam_forward.7} parent=0 // pred_check
    _
  $region47: #{efficient_sam_forward.7} parent=0 // pred_check_branch
    %50 = sbr.rel (0) target = $region49
  $region48: #{efficient_sam_forward.7} parent=0 // pred_region
    _
  $region49: #{efficient_sam_forward.7} parent=0 // pred_fallthru
    _
  // Predicated region
  $region50: #{efficient_sam_forward.7} parent=0 // pred_check
    _
  $region51: #{efficient_sam_forward.7} parent=0 // pred_check_branch
    %52 = sbr.rel (0) target = $region53
  $region52: #{efficient_sam_forward.7} parent=0 // pred_region
    _
  $region53: #{efficient_sam_forward.7} parent=0 // pred_fallthru
    _
  // Predicated region
  $region54: #{efficient_sam_forward.7} parent=0 // pred_check
    _
  $region55: #{efficient_sam_forward.7} parent=0 // pred_check_branch
    %54 = sbr.rel (0) target = $region57
  $region56: #{efficient_sam_forward.7} parent=0 // pred_region
    _
  $region57: #{efficient_sam_forward.7} parent=0 // pred_fallthru
    _
  // Predicated region
  $region58: #{efficient_sam_forward.7} parent=0 // pred_check
    _
  $region59: #{efficient_sam_forward.7} parent=0 // pred_check_branch
    %56 = sbr.rel (0) target = $region61
  $region60: #{efficient_sam_forward.7} parent=0 // pred_region
    _
  $region61: #{efficient_sam_forward.7} parent=0 // pred_fallthru
    _
  // Predicated region
  $region62: #{efficient_sam_forward.7} parent=0 // pred_check
    _
  $region63: #{efficient_sam_forward.7} parent=0 // pred_check_branch
    %58 = sbr.rel (0) target = $region65
  $region64: #{efficient_sam_forward.7} parent=0 // pred_region
    _
  $region65: #{efficient_sam_forward.7} parent=0 // pred_fallthru
    _
  // Predicated region
  $region66: #{efficient_sam_forward.7} parent=0 // pred_check
    _
  $region67: #{efficient_sam_forward.7} parent=0 // pred_check_branch
    %60 = sbr.rel (0) target = $region69
  $region68: #{efficient_sam_forward.7} parent=0 // pred_region
    _
  $region69: #{efficient_sam_forward.7} parent=0 // pred_fallthru
    _
  // Predicated region
  $region70: #{efficient_sam_forward.7} parent=0 // pred_check
    _
  $region71: #{efficient_sam_forward.7} parent=0 // pred_check_branch
    %62 = sbr.rel (0) target = $region73
  $region72: #{efficient_sam_forward.7} parent=0 // pred_region
    _
  $region73: #{efficient_sam_forward.7} parent=0 // pred_fallthru
    _
  // Predicated region
  $region74: #{efficient_sam_forward.7} parent=0 // pred_check
    _
  $region75: #{efficient_sam_forward.7} parent=0 // pred_check_branch
    %64 = sbr.rel (0) target = $region77
  $region76: #{efficient_sam_forward.7} parent=0 // pred_region
    _
  $region77: #{efficient_sam_forward.7} parent=0 // pred_fallthru
    _
  // Predicated region
  $region78: #{efficient_sam_forward.7} parent=0 // pred_check
    _
  $region79: #{efficient_sam_forward.7} parent=0 // pred_check_branch
    %66 = sbr.rel (0) target = $region81
  $region80: #{efficient_sam_forward.7} parent=0 // pred_region
    _
  $region81: #{efficient_sam_forward.7} parent=0 // pred_fallthru
    _
  // Predicated region
  $region82: #{efficient_sam_forward.7} parent=0 // pred_check
    _
  $region83: #{efficient_sam_forward.7} parent=0 // pred_check_branch
    %68 = sbr.rel (0) target = $region85
  $region84: #{efficient_sam_forward.7} parent=0 // pred_region
    _
  $region85: #{efficient_sam_forward.7} parent=0 // pred_fallthru
    _
  // Predicated region
  $region86: #{efficient_sam_forward.7} parent=0 // pred_check
    _
  $region87: #{efficient_sam_forward.7} parent=0 // pred_check_branch
    %70 = sbr.rel (0) target = $region89
  $region88: #{efficient_sam_forward.7} parent=0 // pred_region
    _
  $region89: #{efficient_sam_forward.7} parent=0 // pred_fallthru
    _
  %v72 = vld [vmem:[%s0] sm:$0xff]
  %v73 = vld [vmem:[%s0 + $0x8] sm:$0xff]
  %v74 = vld [vmem:[%s0 + $0x10] sm:$0xff]
  %v75 = vld [vmem:[%s0 + $0x18] sm:$0xff]
  %v76 = vld [vmem:[%s1] sm:$0x3]
  %v78 = vlaneseq
  %v79 = vshrl.u32 %v78, 7
  %v80 = vsub.s32 0, %v79
  %v81 = vrot.slane %v76, %v80
  %v82 = vlaneseq
  %v83 = vshrl.u32 %v82, 7
  %v84 = vsub.s32 1, %v83
  %v85 = vrot.slane %v76, %v84
  %v88 = vsub.f32 %v72, %v81
  %v89 = vsub.f32 %v73, %v85
  %v90 = vsub.f32 %v74, %v81
  %v91 = vsub.f32 %v75, %v85
  %v92 = vld [vmem:[%s2] sm:$0x3]
  %v94 = vlaneseq
  %v95 = vshrl.u32 %v94, 7
  %v96 = vsub.s32 0, %v95
  %v97 = vrot.slane %v92, %v96
  %v98 = vlaneseq
  %v99 = vshrl.u32 %v98, 7
  %v100 = vsub.s32 1, %v99
  %v101 = vrot.slane %v92, %v100
  %v104 = vmul.f32 %v88, %v97
  %v105 = vmul.f32 %v89, %v101
  %v106 = vmul.f32 %v90, %v97
  %v107 = vmul.f32 %v91, %v101
  %v108 = vld [vmem:[%s3] sm:$0xf]
  %v109 = vld [vmem:[%s3 + $0x4] sm:$0xf]
  %v110 = vld [vmem:[%s3 + $0x8] sm:$0xf]
  %v111 = vld [vmem:[%s3 + $0xc] sm:$0xf]
  %v112 = vld [vmem:[%s3 + $0x10] sm:$0xf]
  %v113 = vld [vmem:[%s3 + $0x14] sm:$0xf]
  %v114 = vld [vmem:[%s3 + $0x18] sm:$0xf]
  %v115 = vld [vmem:[%s3 + $0x1c] sm:$0xf]
  %v116 = vld [vmem:[%s3 + $0x20] sm:$0xf]
  %v117 = vld [vmem:[%s3 + $0x24] sm:$0xf]
  %v118 = vld [vmem:[%s3 + $0x28] sm:$0xf]
  %v119 = vld [vmem:[%s3 + $0x2c] sm:$0xf]
  %v120 = vld [vmem:[%s3 + $0x30] sm:$0xf]
  %v121 = vld [vmem:[%s3 + $0x34] sm:$0xf]
  %v122 = vld [vmem:[%s3 + $0x38] sm:$0xf]
  %v123 = vld [vmem:[%s3 + $0x3c] sm:$0xf]
  %v124 = vld [vmem:[%s3 + $0x40] sm:$0xf]
  %v125 = vld [vmem:[%s3 + $0x44] sm:$0xf]
  %v126 = vld [vmem:[%s3 + $0x48] sm:$0xf]
  %v127 = vld [vmem:[%s3 + $0x4c] sm:$0xf]
  %v128 = vld [vmem:[%s3 + $0x50] sm:$0xf]
  %v129 = vld [vmem:[%s3 + $0x54] sm:$0xf]
  %v130 = vld [vmem:[%s3 + $0x58] sm:$0xf]
  %v131 = vld [vmem:[%s3 + $0x5c] sm:$0xf]
  %v132 = vpack.c.bf16 %v106, %v104
  %v133 = vpack.c.bf16 %v107, %v105
  %v134 = vld [vmem:[%s4] sm:$0x1]
  %v136 = vlaneseq
  %v137 = vshrl.u32 %v136, 7
  %v138 = vsub.s32 0, %v137
  %v139 = vrot.slane %v134, %v138
  %v165 = vunpack.c.l.b16 %v108
  %v166 = vunpack.c.l.b16 %v109
  %v167 = vunpack.c.l.b16 %v110
  %v168 = vunpack.c.l.b16 %v111
  %v169 = vunpack.c.l.b16 %v112
  %v170 = vunpack.c.l.b16 %v113
  %v171 = vunpack.c.l.b16 %v114
  %v172 = vunpack.c.l.b16 %v115
  %v173 = vunpack.c.l.b16 %v116
  %v174 = vunpack.c.l.b16 %v117
  %v175 = vunpack.c.l.b16 %v118
  %v176 = vunpack.c.l.b16 %v119
  %v177 = vunpack.c.l.b16 %v120
  %v178 = vunpack.c.l.b16 %v121
  %v179 = vunpack.c.l.b16 %v122
  %v180 = vunpack.c.l.b16 %v123
  %v181 = vunpack.c.l.b16 %v124
  %v182 = vunpack.c.l.b16 %v125
  %v183 = vunpack.c.l.b16 %v126
  %v184 = vunpack.c.l.b16 %v127
  %v185 = vunpack.c.l.b16 %v128
  %v186 = vunpack.c.l.b16 %v129
  %v187 = vunpack.c.l.b16 %v130
  %v188 = vunpack.c.l.b16 %v131
  %v189 = vpack.c.b16 %v166, %v165
  %v190 = vpack.c.b16 %v168, %v167
  %v191 = vpack.c.b16 %v170, %v169
  %v192 = vpack.c.b16 %v172, %v171
  %v193 = vpack.c.b16 %v174, %v173
  %v194 = vpack.c.b16 %v176, %v175
  %v195 = vpack.c.b16 %v178, %v177
  %v196 = vpack.c.b16 %v180, %v179
  %v197 = vpack.c.b16 %v182, %v181
  %v198 = vpack.c.b16 %v184, %v183
  %v199 = vpack.c.b16 %v186, %v185
  %v200 = vpack.c.b16 %v188, %v187
  %vm213 = vcmask 523264
  %v215 = vsel %vm213, %v133, 0
  %217 = vmatprep.subr.bf16.mxu0 0
  %218 = vmatpush1.bf16.msra.mxu0 %v189
  %219 = vmatprep.subr.bf16.mxu0 0
  %220 = vmatpush1.bf16.msra.mxu0 %v190
  %221 = vmatprep.subr.bf16.mxu0 0
  %222 = vmatpush1.bf16.msra.mxu0 %v191
  %223 = vmatprep.subr.bf16.mxu0 0
  %224 = vmatpush1.bf16.msra.mxu0 %v192
  %225 = vmatprep.subr.bf16.mxu0 0
  %226 = vmatpush1.bf16.msra.mxu0 %v193
  %227 = vmatprep.subr.bf16.mxu0 0
  %228 = vmatpush1.bf16.msra.mxu0 %v194
  %229 = vmatprep.subr.bf16.mxu0 0
  %230 = vmatpush1.bf16.msra.mxu0 %v195
  %231 = vmatprep.subr.bf16.mxu0 0
  %232 = vmatpush1.bf16.msra.mxu0 %v196
  %233 = vmatprep.subr.bf16.mxu0 0
  %234 = vmatpush1.bf16.msra.mxu0 %v197
  %235 = vmatprep.subr.bf16.mxu0 0
  %236 = vmatpush1.bf16.msra.mxu0 %v198
  %237 = vmatprep.subr.bf16.mxu0 0
  %238 = vmatpush1.bf16.msra.mxu0 %v199
  %239 = vmatprep.subr.bf16.mxu0 0
  %240 = vmatpush1.bf16.msra.mxu0 %v200
  %241 = vmatprep.subr.bf16.mxu0 0
  %242 = vmatpush1.bf16.msra.mxu0 0
  %243 = vmatprep.subr.bf16.mxu0 0
  %244 = vmatpush1.bf16.msra.mxu0 0
  %245 = vmatprep.subr.bf16.mxu0 0
  %246 = vmatpush1.bf16.msra.mxu0 0
  %247 = vmatprep.subr.bf16.mxu0 0
  %248 = vmatpush1.bf16.msra.mxu0 0
  %249 = vmatprep.mubr.bf16.mxu0 %v215
  %250 = vmatmul.mubr.bf16.gmra.mrb[0].mxu0 %v132
  %v251 = vpop.f32.mrb[0].mxu0
  %v252 = vadd.f32 %v139, %v251
  %v253 = vpop.f32.mrb[0].mxu0
  %v254 = vpop.f32.mrb[0].mxu0
  %v255 = vadd.f32 %v139, %v254
  %v256 = vpop.f32.mrb[0].mxu0
  %257 = vdwg.mxu0
  %v258 = vld [vmem:[%s5] sm:$0xff]
  %v259 = vld [vmem:[%s5 + $0x8] sm:$0xff]
  %v260 = vadd.f32 %v252, %v258
  %v261 = vadd.f32 %v255, %v259
  %v262 = vld [vmem:[%s6] sm:$0x1]
  %v263 = vld [vmem:[%s7] sm:$0x1]
  %vm264 = vcmask 261120
  %v265 = vsel %vm264, %v260, 0.0
  %266 = vadd.xlane.f32.xlu0 %v265
  %v267 = vpop.xlane.xlu0 %266
  %v268 = vsel %vm264, %v261, 0.0
  %269 = vadd.xlane.f32.xlu0 %v268
  %v270 = vpop.xlane.xlu0 %269
  %v271 = vrcp.pop 32.0
  %v272 = vmul.f32 %v267, %v271
  %v273 = vmul.f32 %v270, %v271
  %v274 = vsub.f32 %v260, %v272
  %v275 = vsub.f32 %v261, %v273
  %v276 = vmul.f32 %v274, %v274
  %v277 = vmul.f32 %v275, %v275
  %v278 = vsel %vm264, %v276, 0.0
  %279 = vadd.xlane.f32.xlu0 %v278
  %v280 = vpop.xlane.xlu0 %279
  %v281 = vsel %vm264, %v277, 0.0
  %282 = vadd.xlane.f32.xlu0 %v281
  %v283 = vpop.xlane.xlu0 %282
  %v284 = vmul.f32 %v280, %v271
  %v285 = vmul.f32 %v283, %v271
  %v286 = vadd.f32 %v284, 1e-05
  %v287 = vadd.f32 %v285, 1e-05
  %v288 = vrsqrt.pop %v286
  %v289 = vrsqrt.pop %v287
  %v290 = vmul.f32 %v274, %v288
  %v291 = vmul.f32 %v275, %v289
  %v293 = vlaneseq
  %v294 = vshrl.u32 %v293, 7
  %v295 = vsub.s32 0, %v294
  %v296 = vrot.slane %v262, %v295
  %v298 = vmul.f32 %v290, %v296
  %v299 = vmul.f32 %v291, %v296
  %v301 = vlaneseq
  %v302 = vshrl.u32 %v301, 7
  %v303 = vsub.s32 0, %v302
  %v304 = vrot.slane %v263, %v303
  %v306 = vadd.f32 %v298, %v304
  %v307 = vadd.f32 %v299, %v304
  %v308 = vld [vmem:[%s8] sm:$0xf]
  %v309 = vld [vmem:[%s8 + $0x4] sm:$0xf]
  %v310 = vld [vmem:[%s8 + $0x8] sm:$0xf]
  %v311 = vld [vmem:[%s8 + $0xc] sm:$0xf]
  %v312 = vpack.c.bf16 %v307, %v306
  %v313 = vld [vmem:[%s9] sm:$0x1]
  %v315 = vlaneseq
  %v316 = vshrl.u32 %v315, 7
  %v317 = vsub.s32 0, %v316
  %v318 = vrot.slane %v313, %v317
  %v324 = vunpack.c.l.b16 %v308
  %v325 = vunpack.c.l.b16 %v309
  %v326 = vunpack.c.l.b16 %v310
  %v327 = vunpack.c.l.b16 %v311
  %v328 = vpack.c.b16 %v325, %v324
  %v329 = vpack.c.b16 %v327, %v326
  %v333 = vsel %vm264, %v312, 0
  %335 = vmatprep.subr.bf16.mxu0 0
  %336 = vmatpush1.bf16.msra.mxu0 %v328
  %337 = vmatprep.subr.bf16.mxu0 0
  %338 = vmatpush1.bf16.msra.mxu0 %v329
  %339 = vmatprep.subr.bf16.mxu0 0
  %340 = vmatpush1.bf16.msra.mxu0 0
  %341 = vmatprep.subr.bf16.mxu0 0
  %342 = vmatpush1.bf16.msra.mxu0 0
  %343 = vmatprep.subr.bf16.mxu0 0
  %344 = vmatpush1.bf16.msra.mxu0 0
  %345 = vmatprep.subr.bf16.mxu0 0
  %346 = vmatpush1.bf16.msra.mxu0 0
  %347 = vmatprep.subr.bf16.mxu0 0
  %348 = vmatpush1.bf16.msra.mxu0 0
  %349 = vmatprep.subr.bf16.mxu0 0
  %350 = vmatpush1.bf16.msra.mxu0 0
  %351 = vmatprep.subr.bf16.mxu0 0
  %352 = vmatpush1.bf16.msra.mxu0 0
  %353 = vmatprep.subr.bf16.mxu0 0
  %354 = vmatpush1.bf16.msra.mxu0 0
  %355 = vmatprep.subr.bf16.mxu0 0
  %356 = vmatpush1.bf16.msra.mxu0 0
  %357 = vmatprep.subr.bf16.mxu0 0
  %358 = vmatpush1.bf16.msra.mxu0 0
  %359 = vmatprep.subr.bf16.mxu0 0
  %360 = vmatpush1.bf16.msra.mxu0 0
  %361 = vmatprep.subr.bf16.mxu0 0
  %362 = vmatpush1.bf16.msra.mxu0 0
  %363 = vmatprep.subr.bf16.mxu0 0
  %364 = vmatpush1.bf16.msra.mxu0 0
  %365 = vmatprep.subr.bf16.mxu0 0
  %366 = vmatpush1.bf16.msra.mxu0 0
  %367 = vmatprep.mubr.bf16.mxu0 0
  %368 = vmatmul.mubr.bf16.gmra.mrb[0].mxu0 %v333
  %v369 = vpop.f32.mrb[0].mxu0
  %v370 = vadd.f32 %v318, %v369
  %v371 = vpop.f32.mrb[0].mxu0
  %v372 = vpop.f32.mrb[0].mxu0
  %v373 = vadd.f32 %v318, %v372
  %v374 = vpop.f32.mrb[0].mxu0
  %375 = vdwg.mxu0
  %v376 = vpack.c.bf16 %v373, %v370
  %378 = vrot.lane.b32.xlu0 %v376, 96
  %v379 = vpop.permute.xlu0 %378
  %vm380 = vcmask 130048
  %v382 = vsel %vm380, %v376, 0
  %v385 = vsel %vm380, %v379, 0
  %387 = vmatprep.subr.bf16.mxu0 0
  %388 = vmatpush1.bf16.xpose.msra.mxu0 %v385
  %389 = vmatprep.subr.bf16.mxu0 0
  %390 = vmatpush1.bf16.xpose.msra.mxu0 0
  %391 = vmatprep.subr.bf16.mxu0 0
  %392 = vmatpush1.bf16.xpose.msra.mxu0 0
  %393 = vmatprep.subr.bf16.mxu0 0
  %394 = vmatpush1.bf16.xpose.msra.mxu0 0
  %395 = vmatprep.subr.bf16.mxu0 0
  %396 = vmatpush1.bf16.xpose.msra.mxu0 0
  %397 = vmatprep.subr.bf16.mxu0 0
  %398 = vmatpush1.bf16.xpose.msra.mxu0 0
  %399 = vmatprep.subr.bf16.mxu0 0
  %400 = vmatpush1.bf16.xpose.msra.mxu0 0
  %401 = vmatprep.subr.bf16.mxu0 0
  %402 = vmatpush1.bf16.xpose.msra.mxu0 0
  %403 = vmatprep.subr.bf16.mxu0 0
  %404 = vmatpush1.bf16.xpose.msra.mxu0 0
  %405 = vmatprep.subr.bf16.mxu0 0
  %406 = vmatpush1.bf16.xpose.msra.mxu0 0
  %407 = vmatprep.subr.bf16.mxu0 0
  %408 = vmatpush1.bf16.xpose.msra.mxu0 0
  %409 = vmatprep.subr.bf16.mxu0 0
  %410 = vmatpush1.bf16.xpose.msra.mxu0 0
  %411 = vmatprep.subr.bf16.mxu0 0
  %412 = vmatpush1.bf16.xpose.msra.mxu0 0
  %413 = vmatprep.subr.bf16.mxu0 0
  %414 = vmatpush1.bf16.xpose.msra.mxu0 0
  %415 = vmatprep.subr.bf16.mxu0 0
  %416 = vmatpush1.bf16.xpose.msra.mxu0 0
  %417 = vmatprep.subr.bf16.mxu0 0
  %418 = vmatpush1.bf16.xpose.msra.mxu0 0
  %419 = vmatprep.mubr.bf16.mxu0 0
  %420 = vmatmul.mubr.bf16.gmra.mrb[0].mxu0 %v382
  %v421 = vpop.f32.mrb[0].mxu0
  %v422 = vadd.f32 0.0, %v421
  %v423 = vpop.f32.mrb[0].mxu0
  %v424 = vpop.f32.mrb[0].mxu0
  %v425 = vadd.f32 0.0, %v424
  %v426 = vpop.f32.mrb[0].mxu0
  %427 = vdwg.mxu0
  %v428 = vmul.f32 %v422, 0.25
  %v429 = vmul.f32 %v425, 0.25
  %v430 = vsel %vm380, %v428, -inf
  %431 = vmax.xlane.f32.xlu0 %v430
  %v432 = vpop.xlane.xlu0 %431
  %v433 = vsel %vm380, %v429, -inf
  %434 = vmax.xlane.f32.xlu0 %v433
  %v435 = vpop.xlane.xlu0 %434
  %v436 = vsub.f32 %v428, %v432
  %v437 = vsub.f32 %v429, %v435
  %v438 = vmul.f32 %v436, 1.442695
  %v439 = vpow.pop %v438
  %v440 = vmul.f32 %v437, 1.442695
  %v441 = vpow.pop %v440
  %v442 = vsel %vm380, %v439, 0.0
  %443 = vadd.xlane.f32.xlu0 %v442
  %v444 = vpop.xlane.xlu0 %443
  %v445 = vsel %vm380, %v441, 0.0
  %446 = vadd.xlane.f32.xlu0 %v445
  %v447 = vpop.xlane.xlu0 %446
  %v448 = vrcp.pop %v444
  %v449 = vrcp.pop %v447
  %v450 = vmul.f32 %v439, %v448
  %v451 = vmul.f32 %v441, %v449
  %v452 = vpack.c.bf16 %v451, %v450
  %453 = vrot.lane.b32.xlu0 %v376, 64
  %v454 = vpop.permute.xlu0 %453
  %v457 = vsel %vm380, %v452, 0
  %459 = vmatprep.subr.bf16.mxu0 0
  %460 = vmatpush1.bf16.msra.mxu0 %v454
  %461 = vmatprep.subr.bf16.mxu0 0
  %462 = vmatpush1.bf16.msra.mxu0 0
  %463 = vmatprep.subr.bf16.mxu0 0
  %464 = vmatpush1.bf16.msra.mxu0 0
  %465 = vmatprep.subr.bf16.mxu0 0
  %466 = vmatpush1.bf16.msra.mxu0 0
  %467 = vmatprep.subr.bf16.mxu0 0
  %468 = vmatpush1.bf16.msra.mxu0 0
  %469 = vmatprep.subr.bf16.mxu0 0
  %470 = vmatpush1.bf16.msra.mxu0 0
  %471 = vmatprep.subr.bf16.mxu0 0
  %472 = vmatpush1.bf16.msra.mxu0 0
  %473 = vmatprep.subr.bf16.mxu0 0
  %474 = vmatpush1.bf16.msra.mxu0 0
  %475 = vmatprep.subr.bf16.mxu0 0
  %476 = vmatpush1.bf16.msra.mxu0 0
  %477 = vmatprep.subr.bf16.mxu0 0
  %478 = vmatpush1.bf16.msra.mxu0 0
  %479 = vmatprep.subr.bf16.mxu0 0
  %480 = vmatpush1.bf16.msra.mxu0 0
  %481 = vmatprep.subr.bf16.mxu0 0
  %482 = vmatpush1.bf16.msra.mxu0 0
  %483 = vmatprep.subr.bf16.mxu0 0
  %484 = vmatpush1.bf16.msra.mxu0 0
  %485 = vmatprep.subr.bf16.mxu0 0
  %486 = vmatpush1.bf16.msra.mxu0 0
  %487 = vmatprep.subr.bf16.mxu0 0
  %488 = vmatpush1.bf16.msra.mxu0 0
  %489 = vmatprep.subr.bf16.mxu0 0
  %490 = vmatpush1.bf16.msra.mxu0 0
  %491 = vmatprep.mubr.bf16.mxu0 0
  %492 = vmatmul.mubr.bf16.gmra.mrb[0].mxu0 %v457
  %v493 = vpop.f32.mrb[0].mxu0
  %v494 = vadd.f32 0.0, %v493
  %v495 = vpop.f32.mrb[0].mxu0
  %v496 = vpop.f32.mrb[0].mxu0
  %v497 = vadd.f32 0.0, %v496
  %v498 = vpop.f32.mrb[0].mxu0
  %499 = vdwg.mxu0
  %500 = vrot.lane.b32.xlu0 %v376, 112
  %v501 = vpop.permute.xlu0 %500
  %502 = vrot.lane.b32.xlu0 %v376, 80
  %v503 = vpop.permute.xlu0 %502
  %v505 = vsel %vm380, %v501, 0
  %v508 = vsel %vm380, %v503, 0
  %510 = vmatprep.subr.bf16.mxu0 0
  %511 = vmatpush1.bf16.xpose.msra.mxu0 %v508
  %512 = vmatprep.subr.bf16.mxu0 0
  %513 = vmatpush1.bf16.xpose.msra.mxu0 0
  %514 = vmatprep.subr.bf16.mxu0 0
  %515 = vmatpush1.bf16.xpose.msra.mxu0 0
  %516 = vmatprep.subr.bf16.mxu0 0
  %517 = vmatpush1.bf16.xpose.msra.mxu0 0
  %518 = vmatprep.subr.bf16.mxu0 0
  %519 = vmatpush1.bf16.xpose.msra.mxu0 0
  %520 = vmatprep.subr.bf16.mxu0 0
  %521 = vmatpush1.bf16.xpose.msra.mxu0 0
  %522 = vmatprep.subr.bf16.mxu0 0
  %523 = vmatpush1.bf16.xpose.msra.mxu0 0
  %524 = vmatprep.subr.bf16.mxu0 0
  %525 = vmatpush1.bf16.xpose.msra.mxu0 0
  %526 = vmatprep.subr.bf16.mxu0 0
  %527 = vmatpush1.bf16.xpose.msra.mxu0 0
  %528 = vmatprep.subr.bf16.mxu0 0
  %529 = vmatpush1.bf16.xpose.msra.mxu0 0
  %530 = vmatprep.subr.bf16.mxu0 0
  %531 = vmatpush1.bf16.xpose.msra.mxu0 0
  %532 = vmatprep.subr.bf16.mxu0 0
  %533 = vmatpush1.bf16.xpose.msra.mxu0 0
  %534 = vmatprep.subr.bf16.mxu0 0
  %535 = vmatpush1.bf16.xpose.msra.mxu0 0
  %536 = vmatprep.subr.bf16.mxu0 0
  %537 = vmatpush1.bf16.xpose.msra.mxu0 0
  %538 = vmatprep.subr.bf16.mxu0 0
  %539 = vmatpush1.bf16.xpose.msra.mxu0 0
  %540 = vmatprep.subr.bf16.mxu0 0
  %541 = vmatpush1.bf16.xpose.msra.mxu0 0
  %542 = vmatprep.mubr.bf16.mxu0 0
  %543 = vmatmul.mubr.bf16.gmra.mrb[0].mxu0 %v505
  %v544 = vpop.f32.mrb[0].mxu0
  %v545 = vadd.f32 0.0, %v544
  %v546 = vpop.f32.mrb[0].mxu0
  %v547 = vpop.f32.mrb[0].mxu0
  %v548 = vadd.f32 0.0, %v547
  %v549 = vpop.f32.mrb[0].mxu0
  %550 = vdwg.mxu0
  %v551 = vmul.f32 %v545, 0.25
  %v552 = vmul.f32 %v548, 0.25
  %v553 = vsel %vm380, %v551, -inf
  %554 = vmax.xlane.f32.xlu0 %v553
  %v555 = vpop.xlane.xlu0 %554
  %v556 = vsel %vm380, %v552, -inf
  %557 = vmax.xlane.f32.xlu0 %v556
  %v558 = vpop.xlane.xlu0 %557
  %v559 = vsub.f32 %v551, %v555
  %v560 = vsub.f32 %v552, %v558
  %v561 = vmul.f32 %v559, 1.442695
  %v562 = vpow.pop %v561
  %v563 = vmul.f32 %v560, 1.442695
  %v564 = vpow.pop %v563
  %v565 = vsel %vm380, %v562, 0.0
  %566 = vadd.xlane.f32.xlu0 %v565
  %v567 = vpop.xlane.xlu0 %566
  %v568 = vsel %vm380, %v564, 0.0
  %569 = vadd.xlane.f32.xlu0 %v568
  %v570 = vpop.xlane.xlu0 %569
  %v571 = vrcp.pop %v567
  %v572 = vrcp.pop %v570
  %v573 = vmul.f32 %v562, %v571
  %v574 = vmul.f32 %v564, %v572
  %v575 = vpack.c.bf16 %v574, %v573
  %576 = vrot.lane.b32.xlu0 %v376, 48
  %v577 = vpop.permute.xlu0 %576
  %v580 = vsel %vm380, %v575, 0
  %582 = vmatprep.subr.bf16.mxu0 0
  %583 = vmatpush1.bf16.msra.mxu0 %v577
  %584 = vmatprep.subr.bf16.mxu0 0
  %585 = vmatpush1.bf16.msra.mxu0 0
  %586 = vmatprep.subr.bf16.mxu0 0
  %587 = vmatpush1.bf16.msra.mxu0 0
  %588 = vmatprep.subr.bf16.mxu0 0
  %589 = vmatpush1.bf16.msra.mxu0 0
  %590 = vmatprep.subr.bf16.mxu0 0
  %591 = vmatpush1.bf16.msra.mxu0 0
  %592 = vmatprep.subr.bf16.mxu0 0
  %593 = vmatpush1.bf16.msra.mxu0 0
  %594 = vmatprep.subr.bf16.mxu0 0
  %595 = vmatpush1.bf16.msra.mxu0 0
  %596 = vmatprep.subr.bf16.mxu0 0
  %597 = vmatpush1.bf16.msra.mxu0 0
  %598 = vmatprep.subr.bf16.mxu0 0
  %599 = vmatpush1.bf16.msra.mxu0 0
  %600 = vmatprep.subr.bf16.mxu0 0
  %601 = vmatpush1.bf16.msra.mxu0 0
  %602 = vmatprep.subr.bf16.mxu0 0
  %603 = vmatpush1.bf16.msra.mxu0 0
  %604 = vmatprep.subr.bf16.mxu0 0
  %605 = vmatpush1.bf16.msra.mxu0 0
  %606 = vmatprep.subr.bf16.mxu0 0
  %607 = vmatpush1.bf16.msra.mxu0 0
  %608 = vmatprep.subr.bf16.mxu0 0
  %609 = vmatpush1.bf16.msra.mxu0 0
  %610 = vmatprep.subr.bf16.mxu0 0
  %611 = vmatpush1.bf16.msra.mxu0 0
  %612 = vmatprep.subr.bf16.mxu0 0
  %613 = vmatpush1.bf16.msra.mxu0 0
  %614 = vmatprep.mubr.bf16.mxu0 0
  %615 = vmatmul.mubr.bf16.gmra.mrb[0].mxu0 %v580
  %v616 = vpop.f32.mrb[0].mxu0
  %v617 = vadd.f32 0.0, %v616
  %v618 = vpop.f32.mrb[0].mxu0
  %v619 = vpop.f32.mrb[0].mxu0
  %v620 = vadd.f32 0.0, %v619
  %v621 = vpop.f32.mrb[0].mxu0
  %622 = vdwg.mxu0
  %625 = vrot.lane.b32.xlu0 %v617, 16
  %v626 = vpop.permute.xlu0 %625
  %627 = vrot.lane.b32.xlu0 %v620, 16
  %v628 = vpop.permute.xlu0 %627
  %v631 = vsel %vm380, %v494, %v626
  %v632 = vsel %vm380, %v497, %v628
  %v633 = vld [vmem:[%s10] sm:$0xf]
  %v634 = vld [vmem:[%s10 + $0x4] sm:$0xf]
  %v635 = vld [vmem:[%s10 + $0x8] sm:$0xf]
  %v636 = vld [vmem:[%s10 + $0xc] sm:$0xf]
  %v637 = vpack.c.bf16 %v632, %v631
  %v638 = vld [vmem:[%s11] sm:$0x1]
  %v640 = vlaneseq
  %v641 = vshrl.u32 %v640, 7
  %v642 = vsub.s32 0, %v641
  %v643 = vrot.slane %v638, %v642
  %v649 = vunpack.c.l.b16 %v633
  %v650 = vunpack.c.l.b16 %v634
  %v651 = vunpack.c.l.b16 %v635
  %v652 = vunpack.c.l.b16 %v636
  %v653 = vpack.c.b16 %v650, %v649
  %v654 = vpack.c.b16 %v652, %v651
  %v658 = vsel %vm264, %v637, 0
  %660 = vmatprep.subr.bf16.mxu0 0
  %661 = vmatpush1.bf16.msra.mxu0 %v653
  %662 = vmatprep.subr.bf16.mxu0 0
  %663 = vmatpush1.bf16.msra.mxu0 %v654
  %664 = vmatprep.subr.bf16.mxu0 0
  %665 = vmatpush1.bf16.msra.mxu0 0
  %666 = vmatprep.subr.bf16.mxu0 0
  %667 = vmatpush1.bf16.msra.mxu0 0
  %668 = vmatprep.subr.bf16.mxu0 0
  %669 = vmatpush1.bf16.msra.mxu0 0
  %670 = vmatprep.subr.bf16.mxu0 0
  %671 = vmatpush1.bf16.msra.mxu0 0
  %672 = vmatprep.subr.bf16.mxu0 0
  %673 = vmatpush1.bf16.msra.mxu0 0
  %674 = vmatprep.subr.bf16.mxu0 0
  %675 = vmatpush1.bf16.msra.mxu0 0
  %676 = vmatprep.subr.bf16.mxu0 0
  %677 = vmatpush1.bf16.msra.mxu0 0
  %678 = vmatprep.subr.bf16.mxu0 0
  %679 = vmatpush1.bf16.msra.mxu0 0
  %680 = vmatprep.subr.bf16.mxu0 0
  %681 = vmatpush1.bf16.msra.mxu0 0
  %682 = vmatprep.subr.bf16.mxu0 0
  %683 = vmatpush1.bf16.msra.mxu0 0
  %684 = vmatprep.subr.bf16.mxu0 0
  %685 = vmatpush1.bf16.msra.mxu0 0
  %686 = vmatprep.subr.bf16.mxu0 0
  %687 = vmatpush1.bf16.msra.mxu0 0
  %688 = vmatprep.subr.bf16.mxu0 0
  %689 = vmatpush1.bf16.msra.mxu0 0
  %690 = vmatprep.subr.bf16.mxu0 0
  %691 = vmatpush1.bf16.msra.mxu0 0
  %692 = vmatprep.mubr.bf16.mxu0 0
  %693 = vmatmul.mubr.bf16.gmra.mrb[0].mxu0 %v658
  %v694 = vpop.f32.mrb[0].mxu0
  %v695 = vadd.f32 %v643, %v694
  %v696 = vpop.f32.mrb[0].mxu0
  %v697 = vpop.f32.mrb[0].mxu0
  %v698 = vadd.f32 %v643, %v697
  %v699 = vpop.f32.mrb[0].mxu0
  %700 = vdwg.mxu0
  %v701 = vadd.f32 %v260, %v695
  %v702 = vadd.f32 %v261, %v698
  %v703 = vld [vmem:[%s12] sm:$0x1]
  %v704 = vld [vmem:[%s13] sm:$0x1]
  %v705 = vsel %vm264, %v701, 0.0
  %706 = vadd.xlane.f32.xlu0 %v705
  %v707 = vpop.xlane.xlu0 %706
  %v708 = vsel %vm264, %v702, 0.0
  %709 = vadd.xlane.f32.xlu0 %v708
  %v710 = vpop.xlane.xlu0 %709
  %v711 = vmul.f32 %v707, %v271
  %v712 = vmul.f32 %v710, %v271
  %v713 = vsub.f32 %v701, %v711
  %v714 = vsub.f32 %v702, %v712
  %v715 = vmul.f32 %v713, %v713
  %v716 = vmul.f32 %v714, %v714
  %v717 = vsel %vm264, %v715, 0.0
  %718 = vadd.xlane.f32.xlu0 %v717
  %v719 = vpop.xlane.xlu0 %718
  %v720 = vsel %vm264, %v716, 0.0
  %721 = vadd.xlane.f32.xlu0 %v720
  %v722 = vpop.xlane.xlu0 %721
  %v723 = vmul.f32 %v719, %v271
  %v724 = vmul.f32 %v722, %v271
  %v725 = vadd.f32 %v723, 1e-05
  %v726 = vadd.f32 %v724, 1e-05
  %v727 = vrsqrt.pop %v725
  %v728 = vrsqrt.pop %v726
  %v729 = vmul.f32 %v713, %v727
  %v730 = vmul.f32 %v714, %v728
  %v732 = vlaneseq
  %v733 = vshrl.u32 %v732, 7
  %v734 = vsub.s32 0, %v733
  %v735 = vrot.slane %v703, %v734
  %v737 = vmul.f32 %v729, %v735
  %v738 = vmul.f32 %v730, %v735
  %v740 = vlaneseq
  %v741 = vshrl.u32 %v740, 7
  %v742 = vsub.s32 0, %v741
  %v743 = vrot.slane %v704, %v742
  %v745 = vadd.f32 %v737, %v743
  %v746 = vadd.f32 %v738, %v743
  %v747 = vld [vmem:[%s14] sm:$0xf]
  %v748 = vld [vmem:[%s14 + $0x4] sm:$0xf]
  %v749 = vld [vmem:[%s14 + $0x8] sm:$0xf]
  %v750 = vld [vmem:[%s14 + $0xc] sm:$0xf]
  %v751 = vpack.c.bf16 %v746, %v745
  %v752 = vld [vmem:[%s15] sm:$0x1]
  %v754 = vlaneseq
  %v755 = vshrl.u32 %v754, 7
  %v756 = vsub.s32 0, %v755
  %v757 = vrot.slane %v752, %v756
  %v763 = vunpack.c.l.b16 %v747
  %v764 = vunpack.c.l.b16 %v748
  %v765 = vunpack.c.l.b16 %v749
  %v766 = vunpack.c.l.b16 %v750
  %v767 = vpack.c.b16 %v764, %v763
  %v768 = vpack.c.b16 %v766, %v765
  %v772 = vsel %vm264, %v751, 0
  %774 = vmatprep.subr.bf16.mxu0 0
  %775 = vmatpush1.bf16.msra.mxu0 %v767
  %776 = vmatprep.subr.bf16.mxu0 0
  %777 = vmatpush1.bf16.msra.mxu0 %v768
  %778 = vmatprep.subr.bf16.mxu0 0
  %779 = vmatpush1.bf16.msra.mxu0 0
  %780 = vmatprep.subr.bf16.mxu0 0
  %781 = vmatpush1.bf16.msra.mxu0 0
  %782 = vmatprep.subr.bf16.mxu0 0
  %783 = vmatpush1.bf16.msra.mxu0 0
  %784 = vmatprep.subr.bf16.mxu0 0
  %785 = vmatpush1.bf16.msra.mxu0 0
  %786 = vmatprep.subr.bf16.mxu0 0
  %787 = vmatpush1.bf16.msra.mxu0 0
  %788 = vmatprep.subr.bf16.mxu0 0
  %789 = vmatpush1.bf16.msra.mxu0 0
  %790 = vmatprep.subr.bf16.mxu0 0
  %791 = vmatpush1.bf16.msra.mxu0 0
  %792 = vmatprep.subr.bf16.mxu0 0
  %793 = vmatpush1.bf16.msra.mxu0 0
  %794 = vmatprep.subr.bf16.mxu0 0
  %795 = vmatpush1.bf16.msra.mxu0 0
  %796 = vmatprep.subr.bf16.mxu0 0
  %797 = vmatpush1.bf16.msra.mxu0 0
  %798 = vmatprep.subr.bf16.mxu0 0
  %799 = vmatpush1.bf16.msra.mxu0 0
  %800 = vmatprep.subr.bf16.mxu0 0
  %801 = vmatpush1.bf16.msra.mxu0 0
  %802 = vmatprep.subr.bf16.mxu0 0
  %803 = vmatpush1.bf16.msra.mxu0 0
  %804 = vmatprep.subr.bf16.mxu0 0
  %805 = vmatpush1.bf16.msra.mxu0 0
  %806 = vmatprep.mubr.bf16.mxu0 0
  %807 = vmatmul.mubr.bf16.gmra.mrb[0].mxu0 %v772
  %v808 = vpop.f32.mrb[0].mxu0
  %v809 = vadd.f32 %v757, %v808
  %v810 = vpop.f32.mrb[0].mxu0
  %v811 = vpop.f32.mrb[0].mxu0
  %v812 = vadd.f32 %v757, %v811
  %v813 = vpop.f32.mrb[0].mxu0
  %814 = vdwg.mxu0
  %v815 = vmul.f32 %v809, %v809
  %v816 = vmul.f32 %v812, %v812
  %v817 = vmul.f32 %v809, %v815
  %v818 = vmul.f32 %v812, %v816
  %v819 = vmul.f32 %v817, 0.044715
  %v820 = vmul.f32 %v818, 0.044715
  %v821 = vadd.f32 %v809, %v819
  %v822 = vadd.f32 %v812, %v820
  %v823 = vmul.f32 %v821, 0.7978846
  %v824 = vmul.f32 %v822, 0.7978846
  %v825 = vtanh.pop %v823
  %v826 = vtanh.pop %v824
  %v827 = vadd.f32 %v825, 1.0
  %v828 = vadd.f32 %v826, 1.0
  %v829 = vmul.f32 %v827, 0.5
  %v830 = vmul.f32 %v828, 0.5
  %v831 = vmul.f32 %v809, %v829
  %v832 = vmul.f32 %v812, %v830
  %v833 = vld [vmem:[%s16] sm:$0xf]
  %v834 = vld [vmem:[%s16 + $0x4] sm:$0xf]
  %v835 = vld [vmem:[%s16 + $0x8] sm:$0xf]
  %v836 = vld [vmem:[%s16 + $0xc] sm:$0xf]
  %v837 = vld [vmem:[%s16 + $0x10] sm:$0xf]
  %v838 = vld [vmem:[%s16 + $0x14] sm:$0xf]
  %v839 = vld [vmem:[%s16 + $0x18] sm:$0xf]
  %v840 = vld [vmem:[%s16 + $0x1c] sm:$0xf]
  %v841 = vpack.c.bf16 %v832, %v831
  %v850 = vunpack.c.l.b16 %v833
  %v851 = vunpack.c.l.b16 %v834
  %v852 = vunpack.c.l.b16 %v835
  %v853 = vunpack.c.l.b16 %v836
  %v854 = vunpack.c.l.b16 %v837
  %v855 = vunpack.c.l.b16 %v838
  %v856 = vunpack.c.l.b16 %v839
  %v857 = vunpack.c.l.b16 %v840
  %v858 = vpack.c.b16 %v851, %v850
  %v859 = vpack.c.b16 %v853, %v852
  %v860 = vpack.c.b16 %v855, %v854
  %v861 = vpack.c.b16 %v857, %v856
  %v867 = vsel %vm213, %v841, 0
  %869 = vmatprep.subr.bf16.mxu0 0
  %870 = vmatpush1.bf16.msra.mxu0 %v858
  %871 = vmatprep.subr.bf16.mxu0 0
  %872 = vmatpush1.bf16.msra.mxu0 %v859
  %873 = vmatprep.subr.bf16.mxu0 0
  %874 = vmatpush1.bf16.msra.mxu0 %v860
  %875 = vmatprep.subr.bf16.mxu0 0
  %876 = vmatpush1.bf16.msra.mxu0 %v861
  %877 = vmatprep.subr.bf16.mxu0 0
  %878 = vmatpush1.bf16.msra.mxu0 0
  %879 = vmatprep.subr.bf16.mxu0 0
  %880 = vmatpush1.bf16.msra.mxu0 0
  %881 = vmatprep.subr.bf16.mxu0 0
  %882 = vmatpush1.bf16.msra.mxu0 0
  %883 = vmatprep.subr.bf16.mxu0 0
  %884 = vmatpush1.bf16.msra.mxu0 0
  %885 = vmatprep.subr.bf16.mxu0 0
  %886 = vmatpush1.bf16.msra.mxu0 0
  %887 = vmatprep.subr.bf16.mxu0 0
  %888 = vmatpush1.bf16.msra.mxu0 0
  %889 = vmatprep.subr.bf16.mxu0 0
  %890 = vmatpush1.bf16.msra.mxu0 0
  %891 = vmatprep.subr.bf16.mxu0 0
  %892 = vmatpush1.bf16.msra.mxu0 0
  %893 = vmatprep.subr.bf16.mxu0 0
  %894 = vmatpush1.bf16.msra.mxu0 0
  %895 = vmatprep.subr.bf16.mxu0 0
  %896 = vmatpush1.bf16.msra.mxu0 0
  %897 = vmatprep.subr.bf16.mxu0 0
  %898 = vmatpush1.bf16.msra.mxu0 0
  %899 = vmatprep.subr.bf16.mxu0 0
  %900 = vmatpush1.bf16.msra.mxu0 0
  %901 = vmatprep.mubr.bf16.mxu0 0
  %902 = vmatmul.mubr.bf16.gmra.mrb[0].mxu0 %v867
  %v903 = vpop.f32.mrb[0].mxu0
  %v904 = vadd.f32 0.0, %v903
  %v905 = vpop.f32.mrb[0].mxu0
  %v906 = vpop.f32.mrb[0].mxu0
  %v907 = vadd.f32 0.0, %v906
  %v908 = vpop.f32.mrb[0].mxu0
  %909 = vdwg.mxu0
  %v910 = vadd.f32 %v701, %v904
  %v911 = vadd.f32 %v702, %v907
  %v912 = vld [vmem:[%s17] sm:$0x1]
  %v914 = vlaneseq
  %v915 = vshrl.u32 %v914, 7
  %v916 = vsub.s32 0, %v915
  %v917 = vrot.slane %v912, %v916
  %v919 = vadd.f32 %v910, %v917
  %v920 = vadd.f32 %v911, %v917
  %v921 = vld [vmem:[%s18] sm:$0xf]
  %v922 = vld [vmem:[%s18 + $0x4] sm:$0xf]
  %v923 = vld [vmem:[%s18 + $0x8] sm:$0xf]
  %v924 = vld [vmem:[%s18 + $0xc] sm:$0xf]
  %v925 = vpack.c.bf16 %v920, %v919
  %v926 = vld [vmem:[%s19] sm:$0x1]
  %v928 = vlaneseq
  %v929 = vshrl.u32 %v928, 7
  %v930 = vsub.s32 0, %v929
  %v931 = vrot.slane %v926, %v930
  %v937 = vunpack.c.l.b16 %v921
  %v938 = vunpack.c.l.b16 %v922
  %v939 = vunpack.c.l.b16 %v923
  %v940 = vunpack.c.l.b16 %v924
  %v941 = vpack.c.b16 %v938, %v937
  %v942 = vpack.c.b16 %v940, %v939
  %v946 = vsel %vm264, %v925, 0
  %948 = vmatprep.subr.bf16.mxu0 0
  %949 = vmatpush1.bf16.msra.mxu0 %v941
  %950 = vmatprep.subr.bf16.mxu0 0
  %951 = vmatpush1.bf16.msra.mxu0 %v942
  %952 = vmatprep.subr.bf16.mxu0 0
  %953 = vmatpush1.bf16.msra.mxu0 0
  %954 = vmatprep.subr.bf16.mxu0 0
  %955 = vmatpush1.bf16.msra.mxu0 0
  %956 = vmatprep.subr.bf16.mxu0 0
  %957 = vmatpush1.bf16.msra.mxu0 0
  %958 = vmatprep.subr.bf16.mxu0 0
  %959 = vmatpush1.bf16.msra.mxu0 0
  %960 = vmatprep.subr.bf16.mxu0 0
  %961 = vmatpush1.bf16.msra.mxu0 0
  %962 = vmatprep.subr.bf16.mxu0 0
  %963 = vmatpush1.bf16.msra.mxu0 0
  %964 = vmatprep.subr.bf16.mxu0 0
  %965 = vmatpush1.bf16.msra.mxu0 0
  %966 = vmatprep.subr.bf16.mxu0 0
  %967 = vmatpush1.bf16.msra.mxu0 0
  %968 = vmatprep.subr.bf16.mxu0 0
  %969 = vmatpush1.bf16.msra.mxu0 0
  %970 = vmatprep.subr.bf16.mxu0 0
  %971 = vmatpush1.bf16.msra.mxu0 0
  %972 = vmatprep.subr.bf16.mxu0 0
  %973 = vmatpush1.bf16.msra.mxu0 0
  %974 = vmatprep.subr.bf16.mxu0 0
  %975 = vmatpush1.bf16.msra.mxu0 0
  %976 = vmatprep.subr.bf16.mxu0 0
  %977 = vmatpush1.bf16.msra.mxu0 0
  %978 = vmatprep.subr.bf16.mxu0 0
  %979 = vmatpush1.bf16.msra.mxu0 0
  %980 = vmatprep.mubr.bf16.mxu0 0
  %981 = vmatmul.mubr.bf16.gmra.mrb[0].mxu0 %v946
  %v982 = vpop.f32.mrb[0].mxu0
  %v983 = vadd.f32 %v931, %v982
  %v984 = vpop.f32.mrb[0].mxu0
  %v985 = vpop.f32.mrb[0].mxu0
  %v986 = vadd.f32 %v931, %v985
  %v987 = vpop.f32.mrb[0].mxu0
  %988 = vdwg.mxu0
  %v989 = vld [vmem:[%s20] sm:$0x1]
  %v990 = vld [vmem:[%s21] sm:$0x1]
  %v991 = vsel %vm380, %v983, 0.0
  %992 = vadd.xlane.f32.xlu0 %v991
  %v993 = vpop.xlane.xlu0 %992
  %v994 = vsel %vm380, %v986, 0.0
  %995 = vadd.xlane.f32.xlu0 %v994
  %v996 = vpop.xlane.xlu0 %995
  %v997 = vrcp.pop 16.0
  %v998 = vmul.f32 %v993, %v997
  %v999 = vmul.f32 %v996, %v997
  %v1000 = vsub.f32 %v983, %v998
  %v1001 = vsub.f32 %v986, %v999
  %v1002 = vmul.f32 %v1000, %v1000
  %v1003 = vmul.f32 %v1001, %v1001
  %v1004 = vsel %vm380, %v1002, 0.0
  %1005 = vadd.xlane.f32.xlu0 %v1004
  %v1006 = vpop.xlane.xlu0 %1005
  %v1007 = vsel %vm380, %v1003, 0.0
  %1008 = vadd.xlane.f32.xlu0 %v1007
  %v1009 = vpop.xlane.xlu0 %1008
  %v1010 = vmul.f32 %v1006, %v997
  %v1011 = vmul.f32 %v1009, %v997
  %v1012 = vadd.f32 %v1010, 1e-06
  %v1013 = vadd.f32 %v1011, 1e-06
  %v1014 = vrsqrt.pop %v1012
  %v1015 = vrsqrt.pop %v1013
  %v1016 = vmul.f32 %v1000, %v1014
  %v1017 = vmul.f32 %v1001, %v1015
  %v1019 = vlaneseq
  %v1020 = vshrl.u32 %v1019, 7
  %v1021 = vsub.s32 0, %v1020
  %v1022 = vrot.slane %v989, %v1021
  %v1024 = vmul.f32 %v1016, %v1022
  %v1025 = vmul.f32 %v1017, %v1022
  %v1027 = vlaneseq
  %v1028 = vshrl.u32 %v1027, 7
  %v1029 = vsub.s32 0, %v1028
  %v1030 = vrot.slane %v990, %v1029
  %v1032 = vadd.f32 %v1024, %v1030
  %v1033 = vadd.f32 %v1025, %v1030
  %1034 = vst.msk [vmem:[%s22] sm:$0xff] %vm380, %v1032
  %1035 = vst.msk [vmem:[%s22 + $0x8] sm:$0xff] %vm380, %v1033
  // Predicated region
  $region90: #{efficient_sam_forward.7} parent=0 // pred_check
    _
  $region91: #{efficient_sam_forward.7} parent=0 // pred_check_branch
    %1037 = sbr.rel (0) target = $region93
  $region92: #{efficient_sam_forward.7} parent=0 // pred_region
    _
  $region93: #{efficient_sam_forward.7} parent=0 // pred_fallthru
    _
  // Predicated region
  $region94: #{efficient_sam_forward.7} parent=0 // pred_check
    _
  $region95: #{efficient_sam_forward.7} parent=0 // pred_check_branch
    %1039 = sbr.rel (0) target = $region97
  $region96: #{efficient_sam_forward.7} parent=0 // pred_region
    _
  $region97: #{efficient_sam_forward.7} parent=0 // pred_fallthru
    _

// kernel: efficient_sam_forward.9
$region0: #{efficient_sam_forward.9}
  #allocation0 [shape = 'u32[]', space=smem, size = 0x4, offset = 0x4, fixed_abs, tag = 'smem constant byte address 0x4 - core index']
  #allocation1 [shape = 'u32[144,128]{1,0:T(1,128)}', space=vmem, size = 0x12000, scoped, tag = 'internal scratch']
  %s0 = inlined_call_operand.vmem [shape: f32[2,11,16], index: 0, kind: input, shape index: {}]
  %s1 = inlined_call_operand.vmem [shape: f32[2,16,16], index: 1, kind: input, shape index: {}]
  %s2 = inlined_call_operand.vmem [shape: f32[16,16], index: 2, kind: input, shape index: {}]
  %s3 = inlined_call_operand.vmem [shape: bf16[16,16,16], index: 3, kind: input, shape index: {}]
  %s4 = inlined_call_operand.vmem [shape: f32[16,1,16], index: 4, kind: input, shape index: {}]
  %s5 = inlined_call_operand.vmem [shape: f32[5,1,16], index: 5, kind: input, shape index: {}]
  %s6 = inlined_call_operand.vmem [shape: f32[5,1,16], index: 6, kind: input, shape index: {}]
  %s7 = inlined_call_operand.vmem [shape: bf16[16,32], index: 7, kind: input, shape index: {}]
  %s8 = inlined_call_operand.vmem [shape: f32[1,32], index: 8, kind: input, shape index: {}]
  %s9 = inlined_call_operand.vmem [shape: bf16[32,16], index: 9, kind: input, shape index: {}]
  %s10 = inlined_call_operand.vmem [shape: f32[1,16], index: 10, kind: input, shape index: {}]
  %s11 = inlined_call_operand.vmem [shape: f32[2,11,16], index: 11, kind: output, shape index: {0}]
  %s12 = inlined_call_operand.vmem [shape: f32[2,16,16], index: 12, kind: output, shape index: {1}]
  %13 = xla_tuple %s11, %s12
  %s14 = sld [smem:[#allocation0]]
  $region85: #{efficient_sam_forward.9} parent=0
    _
  %s16 = ssub.s32 1, %s14
  %s17 = scalar_select 0, %s16, %s14
  loop: start=0, step=1, limit=4
  $region2: #{efficient_sam_forward.9} parent=0 // loop_pre_header
    _
  $region3: #{efficient_sam_forward.9} parent=0 // loop_header
    %s19 = sphi 0, %s23
    %p20 = scmp.ge.s32.totalorder %s19, 4
    %s29 = sphi 0, %s31
    %s32 = sphi 0, %s29
    %s33 = sphi 0, %s32
    %s49 = sphi 0, %s33
    %s55 = sphi 0, %s57
    %s58 = sphi 0, %s55
    %s59 = sphi 0, %s58
    %s75 = sphi 0, %s59
    %s79 = sphi 0, %s79
    %s81 = sphi 0, %s79
    %s82 = sphi 0, %s81
    %s96 = sphi 0, %s82
    %s100 = sphi 0, %s100
    %s102 = sphi 0, %s100
    %s103 = sphi 0, %s102
    %s117 = sphi 0, %s103
    %s121 = sphi 0, %s121
    %s123 = sphi 0, %s121
    %s124 = sphi 0, %s123
    %s138 = sphi 0, %s124
    %s142 = sphi 0, %s142
    %s144 = sphi 0, %s142
    %s145 = sphi 0, %s144
    %s159 = sphi 0, %s145
    %s163 = sphi 0, %s163
    %s165 = sphi 0, %s163
    %s166 = sphi 0, %s165
    %s180 = sphi 0, %s166
    %s184 = sphi 0, %s184
    %s186 = sphi 0, %s184
    %s187 = sphi 0, %s186
    %s201 = sphi 0, %s187
    %s205 = sphi 0, %s205
    %s207 = sphi 0, %s205
    %s208 = sphi 0, %s207
    %s222 = sphi 0, %s208
    %s226 = sphi 0, %s226
    %s228 = sphi 0, %s226
    %s229 = sphi 0, %s228
    %s243 = sphi 0, %s229
    %s247 = sphi 0, %s247
    %s249 = sphi 0, %s247
    %s250 = sphi 0, %s249
    %s264 = sphi 0, %s250
    %s270 = sphi 0, %s272
    %s273 = sphi 0, %s270
    %s274 = sphi 0, %s273
    %s290 = sphi 0, %s274
    %s296 = sphi 0, %s298
    %s299 = sphi 0, %s296
    %s300 = sphi 0, %s299
    %s316 = sphi 0, %s300
  $region4: #{efficient_sam_forward.9} parent=0 // loop_header_branch
    %22 = sbr.rel (%p20) target = $region8
  $region5: #{efficient_sam_forward.9} parent=0 // loop_body
    %s24 = ssub.s32 %s19, 1
    %s25 = ssub.s32 %s19, 2
    %s26 = sadd.s32 %s19, 1
    %s27 = ssub.s32 %s19, %s26
    %p28 = scmp.eq.s32.totalorder %s27, 0
    %s30 = sadd.s32 %s29, 1
    %s31 = scalar_select %p28, %s29, %s30
    %p34 = pneg %p28
    %p35 = scmp.eq.s32.totalorder %s19, 1
    %p36 = por %p34, %p35
    %p37 = scmp.ne.s32.totalorder %s29, %s32
    %p38 = scmp.eq.s32.totalorder %s19, 0
    %p39 = por %p37, %p38
    %p40 = scmp.ne.s32.totalorder %s29, %s32
    %p41 = scmp.eq.s32.totalorder %s24, 1
    %p42 = por %p40, %p41
    %p43 = scmp.ne.s32.totalorder %s32, %s33
    %p44 = scmp.eq.s32.totalorder %s24, 0
    %p45 = por %p43, %p44
    %p46 = scmp.ne.s32.totalorder %s32, %s33
    %p47 = scmp.eq.s32.totalorder %s25, 1
    %p48 = por %p46, %p47
    %p50 = scmp.ne.s32.totalorder %s33, %s49
    %p51 = scmp.eq.s32.totalorder %s25, 0
    %p52 = por %p50, %p51
    %s53 = ssub.s32 %s19, %s26
    %p54 = scmp.eq.s32.totalorder %s53, 0
    %s56 = sadd.s32 %s55, 1
    %s57 = scalar_select %p54, %s55, %s56
    %p60 = pneg %p54
    %p61 = scmp.eq.s32.totalorder %s19, 1
    %p62 = por %p60, %p61
    %p63 = scmp.ne.s32.totalorder %s55, %s58
    %p64 = scmp.eq.s32.totalorder %s19, 0
    %p65 = por %p63, %p64
    %p66 = scmp.ne.s32.totalorder %s55, %s58
    %p67 = scmp.eq.s32.totalorder %s24, 1
    %p68 = por %p66, %p67
    %p69 = scmp.ne.s32.totalorder %s58, %s59
    %p70 = scmp.eq.s32.totalorder %s24, 0
    %p71 = por %p69, %p70
    %p72 = scmp.ne.s32.totalorder %s58, %s59
    %p73 = scmp.eq.s32.totalorder %s25, 1
    %p74 = por %p72, %p73
    %p76 = scmp.ne.s32.totalorder %s59, %s75
    %p77 = scmp.eq.s32.totalorder %s25, 0
    %p78 = por %p76, %p77
    %s80 = sadd.s32 %s79, 1
    %p83 = scmp.eq.s32.totalorder %s19, 1
    %p84 = scmp.ne.s32.totalorder %s79, %s81
    %p85 = scmp.eq.s32.totalorder %s19, 0
    %p86 = por %p84, %p85
    %p87 = scmp.ne.s32.totalorder %s79, %s81
    %p88 = scmp.eq.s32.totalorder %s24, 1
    %p89 = por %p87, %p88
    %p90 = scmp.ne.s32.totalorder %s81, %s82
    %p91 = scmp.eq.s32.totalorder %s24, 0
    %p92 = por %p90, %p91
    %p93 = scmp.ne.s32.totalorder %s81, %s82
    %p94 = scmp.eq.s32.totalorder %s25, 1
    %p95 = por %p93, %p94
    %p97 = scmp.ne.s32.totalorder %s82, %s96
    %p98 = scmp.eq.s32.totalorder %s25, 0
    %p99 = por %p97, %p98
    %s101 = sadd.s32 %s100, 1
    %p104 = scmp.eq.s32.totalorder %s19, 1
    %p105 = scmp.ne.s32.totalorder %s100, %s102
    %p106 = scmp.eq.s32.totalorder %s19, 0
    %p107 = por %p105, %p106
    %p108 = scmp.ne.s32.totalorder %s100, %s102
    %p109 = scmp.eq.s32.totalorder %s24, 1
    %p110 = por %p108, %p109
    %p111 = scmp.ne.s32.totalorder %s102, %s103
    %p112 = scmp.eq.s32.totalorder %s24, 0
    %p113 = por %p111, %p112
    %p114 = scmp.ne.s32.totalorder %s102, %s103
    %p115 = scmp.eq.s32.totalorder %s25, 1
    %p116 = por %p114, %p115
    %p118 = scmp.ne.s32.totalorder %s103, %s117
    %p119 = scmp.eq.s32.totalorder %s25, 0
    %p120 = por %p118, %p119
    %s122 = sadd.s32 %s121, 1
    %p125 = scmp.eq.s32.totalorder %s19, 1
    %p126 = scmp.ne.s32.totalorder %s121, %s123
    %p127 = scmp.eq.s32.totalorder %s19, 0
    %p128 = por %p126, %p127
    %p129 = scmp.ne.s32.totalorder %s121, %s123
    %p130 = scmp.eq.s32.totalorder %s24, 1
    %p131 = por %p129, %p130
    %p132 = scmp.ne.s32.totalorder %s123, %s124
    %p133 = scmp.eq.s32.totalorder %s24, 0
    %p134 = por %p132, %p133
    %p135 = scmp.ne.s32.totalorder %s123, %s124
    %p136 = scmp.eq.s32.totalorder %s25, 1
    %p137 = por %p135, %p136
    %p139 = scmp.ne.s32.totalorder %s124, %s138
    %p140 = scmp.eq.s32.totalorder %s25, 0
    %p141 = por %p139, %p140
    %s143 = sadd.s32 %s142, 1
    %p146 = scmp.eq.s32.totalorder %s19, 1
    %p147 = scmp.ne.s32.totalorder %s142, %s144
    %p148 = scmp.eq.s32.totalorder %s19, 0
    %p149 = por %p147, %p148
    %p150 = scmp.ne.s32.totalorder %s142, %s144
    %p151 = scmp.eq.s32.totalorder %s24, 1
    %p152 = por %p150, %p151
    %p153 = scmp.ne.s32.totalorder %s144, %s145
    %p154 = scmp.eq.s32.totalorder %s24, 0
    %p155 = por %p153, %p154
    %p156 = scmp.ne.s32.totalorder %s144, %s145
    %p157 = scmp.eq.s32.totalorder %s25, 1
    %p158 = por %p156, %p157
    %p160 = scmp.ne.s32.totalorder %s145, %s159
    %p161 = scmp.eq.s32.totalorder %s25, 0
    %p162 = por %p160, %p161
    %s164 = sadd.s32 %s163, 1
    %p167 = scmp.eq.s32.totalorder %s19, 1
    %p168 = scmp.ne.s32.totalorder %s163, %s165
    %p169 = scmp.eq.s32.totalorder %s19, 0
    %p170 = por %p168, %p169
    %p171 = scmp.ne.s32.totalorder %s163, %s165
    %p172 = scmp.eq.s32.totalorder %s24, 1
    %p173 = por %p171, %p172
    %p174 = scmp.ne.s32.totalorder %s165, %s166
    %p175 = scmp.eq.s32.totalorder %s24, 0
    %p176 = por %p174, %p175
    %p177 = scmp.ne.s32.totalorder %s165, %s166
    %p178 = scmp.eq.s32.totalorder %s25, 1
    %p179 = por %p177, %p178
    %p181 = scmp.ne.s32.totalorder %s166, %s180
    %p182 = scmp.eq.s32.totalorder %s25, 0
    %p183 = por %p181, %p182
    %s185 = sadd.s32 %s184, 1
    %p188 = scmp.eq.s32.totalorder %s19, 1
    %p189 = scmp.ne.s32.totalorder %s184, %s186
    %p190 = scmp.eq.s32.totalorder %s19, 0
    %p191 = por %p189, %p190
    %p192 = scmp.ne.s32.totalorder %s184, %s186
    %p193 = scmp.eq.s32.totalorder %s24, 1
    %p194 = por %p192, %p193
    %p195 = scmp.ne.s32.totalorder %s186, %s187
    %p196 = scmp.eq.s32.totalorder %s24, 0
    %p197 = por %p195, %p196
    %p198 = scmp.ne.s32.totalorder %s186, %s187
    %p199 = scmp.eq.s32.totalorder %s25, 1
    %p200 = por %p198, %p199
    %p202 = scmp.ne.s32.totalorder %s187, %s201
    %p203 = scmp.eq.s32.totalorder %s25, 0
    %p204 = por %p202, %p203
    %s206 = sadd.s32 %s205, 1
    %p209 = scmp.eq.s32.totalorder %s19, 1
    %p210 = scmp.ne.s32.totalorder %s205, %s207
    %p211 = scmp.eq.s32.totalorder %s19, 0
    %p212 = por %p210, %p211
    %p213 = scmp.ne.s32.totalorder %s205, %s207
    %p214 = scmp.eq.s32.totalorder %s24, 1
    %p215 = por %p213, %p214
    %p216 = scmp.ne.s32.totalorder %s207, %s208
    %p217 = scmp.eq.s32.totalorder %s24, 0
    %p218 = por %p216, %p217
    %p219 = scmp.ne.s32.totalorder %s207, %s208
    %p220 = scmp.eq.s32.totalorder %s25, 1
    %p221 = por %p219, %p220
    %p223 = scmp.ne.s32.totalorder %s208, %s222
    %p224 = scmp.eq.s32.totalorder %s25, 0
    %p225 = por %p223, %p224
    %s227 = sadd.s32 %s226, 1
    %p230 = scmp.eq.s32.totalorder %s19, 1
    %p231 = scmp.ne.s32.totalorder %s226, %s228
    %p232 = scmp.eq.s32.totalorder %s19, 0
    %p233 = por %p231, %p232
    %p234 = scmp.ne.s32.totalorder %s226, %s228
    %p235 = scmp.eq.s32.totalorder %s24, 1
    %p236 = por %p234, %p235
    %p237 = scmp.ne.s32.totalorder %s228, %s229
    %p238 = scmp.eq.s32.totalorder %s24, 0
    %p239 = por %p237, %p238
    %p240 = scmp.ne.s32.totalorder %s228, %s229
    %p241 = scmp.eq.s32.totalorder %s25, 1
    %p242 = por %p240, %p241
    %p244 = scmp.ne.s32.totalorder %s229, %s243
    %p245 = scmp.eq.s32.totalorder %s25, 0
    %p246 = por %p244, %p245
    %s248 = sadd.s32 %s247, 1
    %p251 = scmp.eq.s32.totalorder %s19, 1
    %p252 = scmp.ne.s32.totalorder %s247, %s249
    %p253 = scmp.eq.s32.totalorder %s19, 0
    %p254 = por %p252, %p253
    %p255 = scmp.ne.s32.totalorder %s247, %s249
    %p256 = scmp.eq.s32.totalorder %s24, 1
    %p257 = por %p255, %p256
    %p258 = scmp.ne.s32.totalorder %s249, %s250
    %p259 = scmp.eq.s32.totalorder %s24, 0
    %p260 = por %p258, %p259
    %p261 = scmp.ne.s32.totalorder %s249, %s250
    %p262 = scmp.eq.s32.totalorder %s25, 1
    %p263 = por %p261, %p262
    %p265 = scmp.ne.s32.totalorder %s250, %s264
    %p266 = scmp.eq.s32.totalorder %s25, 0
    %p267 = por %p265, %p266
    %s268 = ssub.s32 %s19, %s26
    %p269 = scmp.eq.s32.totalorder %s268, 0
    %s271 = sadd.s32 %s270, 1
    %s272 = scalar_select %p269, %s270, %s271
    %p275 = pneg %p269
    %p276 = scmp.eq.s32.totalorder %s19, 1
    %p277 = por %p275, %p276
    %p278 = scmp.ne.s32.totalorder %s270, %s273
    %p279 = scmp.eq.s32.totalorder %s19, 0
    %p280 = por %p278, %p279
    %p281 = scmp.ne.s32.totalorder %s270, %s273
    %p282 = scmp.eq.s32.totalorder %s24, 1
    %p283 = por %p281, %p282
    %p284 = scmp.ne.s32.totalorder %s273, %s274
    %p285 = scmp.eq.s32.totalorder %s24, 0
    %p286 = por %p284, %p285
    %p287 = scmp.ne.s32.totalorder %s273, %s274
    %p288 = scmp.eq.s32.totalorder %s25, 1
    %p289 = por %p287, %p288
    %p291 = scmp.ne.s32.totalorder %s274, %s290
    %p292 = scmp.eq.s32.totalorder %s25, 0
    %p293 = por %p291, %p292
    %s294 = ssub.s32 %s19, %s26
    %p295 = scmp.eq.s32.totalorder %s294, 0
    %s297 = sadd.s32 %s296, 1
    %s298 = scalar_select %p295, %s296, %s297
    %p301 = pneg %p295
    %p302 = scmp.eq.s32.totalorder %s19, 1
    %p303 = por %p301, %p302
    %p304 = scmp.ne.s32.totalorder %s296, %s299
    %p305 = scmp.eq.s32.totalorder %s19, 0
    %p306 = por %p304, %p305
    %p307 = scmp.ne.s32.totalorder %s296, %s299
    %p308 = scmp.eq.s32.totalorder %s24, 1
    %p309 = por %p307, %p308
    %p310 = scmp.ne.s32.totalorder %s299, %s300
    %p311 = scmp.eq.s32.totalorder %s24, 0
    %p312 = por %p310, %p311
    %p313 = scmp.ne.s32.totalorder %s299, %s300
    %p314 = scmp.eq.s32.totalorder %s25, 1
    %p315 = por %p313, %p314
    %p317 = scmp.ne.s32.totalorder %s300, %s316
    %p318 = scmp.eq.s32.totalorder %s25, 0
    %p319 = por %p317, %p318
    %p320 = scmp.le.s32.totalorder 1, %s19
    %p321 = scmp.lt.s32.totalorder %s19, 3
    %p322 = pnand %p320, %p321
    %p323 = pneg %p322
    // Predicated region
    $region9: #{efficient_sam_forward.9} parent=5 // pred_check
      _
    $region10: #{efficient_sam_forward.9} parent=5 // pred_check_branch
      %325 = sbr.rel (%p322) target = $region12
    $region11: #{efficient_sam_forward.9} parent=5 // pred_region
      %s326 = ssub.s32 %s19, 1
      // Predicated region
      $region13: #{efficient_sam_forward.9} parent=11 // pred_check
        %p327 = pneg %p92
      $region14: #{efficient_sam_forward.9} parent=11 // pred_check_branch
        %329 = sbr.rel (%p327) target = $region16
      $region15: #{efficient_sam_forward.9} parent=11 // pred_region
        _
      $region16: #{efficient_sam_forward.9} parent=11 // pred_fallthru
        _
      // Predicated region
      $region17: #{efficient_sam_forward.9} parent=11 // pred_check
        %p330 = pneg %p113
      $region18: #{efficient_sam_forward.9} parent=11 // pred_check_branch
        %332 = sbr.rel (%p330) target = $region20
      $region19: #{efficient_sam_forward.9} parent=11 // pred_region
        _
      $region20: #{efficient_sam_forward.9} parent=11 // pred_fallthru
        _
      // Predicated region
      $region21: #{efficient_sam_forward.9} parent=11 // pred_check
        %p333 = pneg %p134
      $region22: #{efficient_sam_forward.9} parent=11 // pred_check_branch
        %335 = sbr.rel (%p333) target = $region24
      $region23: #{efficient_sam_forward.9} parent=11 // pred_region
        _
      $region24: #{efficient_sam_forward.9} parent=11 // pred_fallthru
        _
      // Predicated region
      $region25: #{efficient_sam_forward.9} parent=11 // pred_check
        %p336 = pneg %p155
      $region26: #{efficient_sam_forward.9} parent=11 // pred_check_branch
        %338 = sbr.rel (%p336) target = $region28
      $region27: #{efficient_sam_forward.9} parent=11 // pred_region
        _
      $region28: #{efficient_sam_forward.9} parent=11 // pred_fallthru
        _
      // Predicated region
      $region29: #{efficient_sam_forward.9} parent=11 // pred_check
        %p339 = pneg %p176
      $region30: #{efficient_sam_forward.9} parent=11 // pred_check_branch
        %341 = sbr.rel (%p339) target = $region32
      $region31: #{efficient_sam_forward.9} parent=11 // pred_region
        _
      $region32: #{efficient_sam_forward.9} parent=11 // pred_fallthru
        _
      // Predicated region
      $region33: #{efficient_sam_forward.9} parent=11 // pred_check
        %p342 = pneg %p197
      $region34: #{efficient_sam_forward.9} parent=11 // pred_check_branch
        %344 = sbr.rel (%p342) target = $region36
      $region35: #{efficient_sam_forward.9} parent=11 // pred_region
        _
      $region36: #{efficient_sam_forward.9} parent=11 // pred_fallthru
        _
      // Predicated region
      $region37: #{efficient_sam_forward.9} parent=11 // pred_check
        %p345 = pneg %p218
      $region38: #{efficient_sam_forward.9} parent=11 // pred_check_branch
        %347 = sbr.rel (%p345) target = $region40
      $region39: #{efficient_sam_forward.9} parent=11 // pred_region
        _
      $region40: #{efficient_sam_forward.9} parent=11 // pred_fallthru
        _
      // Predicated region
      $region41: #{efficient_sam_forward.9} parent=11 // pred_check
        %p348 = pneg %p239
      $region42: #{efficient_sam_forward.9} parent=11 // pred_check_branch
        %350 = sbr.rel (%p348) target = $region44
      $region43: #{efficient_sam_forward.9} parent=11 // pred_region
        _
      $region44: #{efficient_sam_forward.9} parent=11 // pred_fallthru
        _
      // Predicated region
      $region45: #{efficient_sam_forward.9} parent=11 // pred_check
        %p351 = pneg %p260
      $region46: #{efficient_sam_forward.9} parent=11 // pred_check_branch
        %353 = sbr.rel (%p351) target = $region48
      $region47: #{efficient_sam_forward.9} parent=11 // pred_region
        _
      $region48: #{efficient_sam_forward.9} parent=11 // pred_fallthru
        _
    $region12: #{efficient_sam_forward.9} parent=5 // pred_fallthru
      _
    %p354 = scmp.lt.s32.totalorder %s19, 2
    // Predicated region
    $region49: #{efficient_sam_forward.9} parent=5 // pred_check
      %p355 = pneg %p354
    $region50: #{efficient_sam_forward.9} parent=5 // pred_check_branch
      %357 = sbr.rel (%p355) target = $region52
    $region51: #{efficient_sam_forward.9} parent=5 // pred_region
      // Predicated region
      $region53: #{efficient_sam_forward.9} parent=51 // pred_check
        %p358 = pneg %p39
      $region54: #{efficient_sam_forward.9} parent=51 // pred_check_branch
        %360 = sbr.rel (%p358) target = $region56
      $region55: #{efficient_sam_forward.9} parent=51 // pred_region
        %p361 = scmp.lt.s32.totalorder %s19, 1
        %s362 = scalar_select %p361, %s19, 1
        %s363 = smul.addr %s362, 2
        %s364 = smul.addr %s363, 8
        %s365 = scalar_lea.vmem %s0, %s364
      $region56: #{efficient_sam_forward.9} parent=51 // pred_fallthru
        _
      // Predicated region
      $region57: #{efficient_sam_forward.9} parent=51 // pred_check
        %p366 = pneg %p65
      $region58: #{efficient_sam_forward.9} parent=51 // pred_check_branch
        %368 = sbr.rel (%p366) target = $region60
      $region59: #{efficient_sam_forward.9} parent=51 // pred_region
        %p369 = scmp.lt.s32.totalorder %s19, 1
        %s370 = scalar_select %p369, %s19, 1
        %s371 = smul.addr %s370, 2
        %s372 = smul.addr %s371, 8
        %s373 = scalar_lea.vmem %s1, %s372
      $region60: #{efficient_sam_forward.9} parent=51 // pred_fallthru
        _
    $region52: #{efficient_sam_forward.9} parent=5 // pred_fallthru
      _
    %p374 = scmp.le.s32.totalorder 1, %s19
    %p375 = scmp.lt.s32.totalorder %s19, 3
    %p376 = pnand %p374, %p375
    %p377 = pneg %p376
    // Predicated region
    $region61: #{efficient_sam_forward.9} parent=5 // pred_check
      _
    $region62: #{efficient_sam_forward.9} parent=5 // pred_check_branch
      %379 = sbr.rel (%p376) target = $region64
    $region63: #{efficient_sam_forward.9} parent=5 // pred_region
      %s380 = ssub.s32 %s19, 1
      %p381 = scmp.lt.s32.totalorder %s24, 1
      %s382 = scalar_select %p381, %s24, 1
      %s383 = smul.addr %s382, 2
      %s384 = smul.addr %s383, 8
      %s385 = scalar_lea.vmem %s0, %s384
      %p386 = pneg %p45
      %p387 = pneg %p42
      %p388 = scmp.lt.s32.totalorder %s24, 1
      %s389 = scalar_select %p388, %s24, 1
      %s390 = smul.addr %s389, 2
      %s391 = smul.addr %s390, 8
      %s392 = scalar_lea.vmem %s1, %s391
      %p393 = pneg %p71
      %p394 = pneg %p68
      %p395 = pneg %p92
      %p396 = pneg %p89
      %p397 = pneg %p113
      %p398 = pneg %p110
      %p399 = pneg %p134
      %p400 = pneg %p131
      %p401 = pneg %p155
      %p402 = pneg %p152
      %p403 = pneg %p176
      %p404 = pneg %p173
      %p405 = pneg %p197
      %p406 = pneg %p194
      %p407 = pneg %p218
      %p408 = pneg %p215
      %p409 = pneg %p239
      %p410 = pneg %p236
      %p411 = pneg %p260
      %p412 = pneg %p257
      %p413 = pneg %p286
      %p414 = pneg %p283
      %p415 = scmp.lt.s32.totalorder %s24, 1
      %s416 = scalar_select %p415, %s24, 1
      %s417 = smul.addr %s416, 2
      %s418 = smul.addr %s417, 8
      %s419 = scalar_lea.vmem %s11, %s418
      %p420 = pneg %p312
      %p421 = pneg %p309
      %p422 = scmp.lt.s32.totalorder %s24, 1
      %s423 = scalar_select %p422, %s24, 1
      %s424 = smul.addr %s423, 2
      %s425 = smul.addr %s424, 8
      %s426 = scalar_lea.vmem %s12, %s425
      %p427 = scmp.lt.s32.totalorder %s24, 1
      %s428 = scalar_select %p427, %s24, 1
      %s429 = smul.addr %s428, 2
      %s430 = smul.addr %s429, 8
      %s431 = scalar_lea.vmem %s0, %s430
      %p432 = scmp.lt.s32.totalorder %s24, 1
      %s433 = scalar_select %p432, %s24, 1
      %s434 = smul.addr %s433, 2
      %s435 = smul.addr %s434, 8
      %s436 = scalar_lea.vmem %s1, %s435
      %p437 = scmp.lt.s32.totalorder %s24, 1
      %s438 = scalar_select %p437, %s24, 1
      %s439 = smul.addr %s438, 2
      %s440 = smul.addr %s439, 8
      %s441 = scalar_lea.vmem %s11, %s440
      %p442 = scmp.lt.s32.totalorder %s24, 1
      %s443 = scalar_select %p442, %s24, 1
      %s444 = smul.addr %s443, 2
      %s445 = smul.addr %s444, 8
      %s446 = scalar_lea.vmem %s12, %s445
      %v448 = vld [vmem:[%s431] sm:$0xff]
      %v449 = vld [vmem:[%s431 + $0x8] sm:$0x7]
      %v450 = vld [vmem:[%s436] sm:$0xff]
      %v451 = vld [vmem:[%s436 + $0x8] sm:$0xff]
      %v452 = vld [vmem:[%s2] sm:$0xff]
      %v453 = vld [vmem:[%s2 + $0x8] sm:$0xff]
      %v454 = vld [vmem:[%s3] sm:$0xf]
      %v455 = vld [vmem:[%s3 + $0x4] sm:$0xf]
      %v456 = vpack.c.bf16 %v449, %v448
      %v457 = vld [vmem:[%s4] sm:$0x1]
      %v459 = vlaneseq
      %v460 = vshrl.u32 %v459, 7
      %v461 = vsub.s32 0, %v460
      %v462 = vrot.slane %v457, %v461
      %v466 = vunpack.c.l.b16 %v454
      %v467 = vunpack.c.l.b16 %v455
      %v468 = vpack.c.b16 %v467, %v466
      %vm470 = vcmask 130048
      %v472 = vsel %vm470, %v456, 0
      %474 = vmatprep.subr.bf16.mxu0 0
      %475 = vmatpush1.bf16.msra.mxu0 %v468
      %476 = vmatprep.subr.bf16.mxu0 0
      %477 = vmatpush1.bf16.msra.mxu0 0
      %478 = vmatprep.subr.bf16.mxu0 0
      %479 = vmatpush1.bf16.msra.mxu0 0
      %480 = vmatprep.subr.bf16.mxu0 0
      %481 = vmatpush1.bf16.msra.mxu0 0
      %482 = vmatprep.subr.bf16.mxu0 0
      %483 = vmatpush1.bf16.msra.mxu0 0
      %484 = vmatprep.subr.bf16.mxu0 0
      %485 = vmatpush1.bf16.msra.mxu0 0
      %486 = vmatprep.subr.bf16.mxu0 0
      %487 = vmatpush1.bf16.msra.mxu0 0
      %488 = vmatprep.subr.bf16.mxu0 0
      %489 = vmatpush1.bf16.msra.mxu0 0
      %490 = vmatprep.subr.bf16.mxu0 0
      %491 = vmatpush1.bf16.msra.mxu0 0
      %492 = vmatprep.subr.bf16.mxu0 0
      %493 = vmatpush1.bf16.msra.mxu0 0
      %494 = vmatprep.subr.bf16.mxu0 0
      %495 = vmatpush1.bf16.msra.mxu0 0
      %496 = vmatprep.subr.bf16.mxu0 0
      %497 = vmatpush1.bf16.msra.mxu0 0
      %498 = vmatprep.subr.bf16.mxu0 0
      %499 = vmatpush1.bf16.msra.mxu0 0
      %500 = vmatprep.subr.bf16.mxu0 0
      %501 = vmatpush1.bf16.msra.mxu0 0
      %502 = vmatprep.subr.bf16.mxu0 0
      %503 = vmatpush1.bf16.msra.mxu0 0
      %504 = vmatprep.subr.bf16.mxu0 0
      %505 = vmatpush1.bf16.msra.mxu0 0
      %506 = vmatprep.mubr.bf16.mxu0 0
      %507 = vmatmul.mubr.bf16.gmra.mrb[0].mxu0 %v472
      %v508 = vpop.f32.mrb[0].mxu0
      %v509 = vadd.f32 %v462, %v508
      %v510 = vpop.f32.mrb[0].mxu0
      %v511 = vpop.f32.mrb[0].mxu0
      %v512 = vadd.f32 %v462, %v511
      %v513 = vpop.f32.mrb[0].mxu0
      %514 = vdwg.mxu0
      %s515 = scalar_lea.vmem %s3, 8
      %v516 = vld [vmem:[%s515] sm:$0xf]
      %v517 = vld [vmem:[%s515 + $0x4] sm:$0xf]
      %s518 = scalar_lea.vmem %s4, 1
      %v519 = vld [vmem:[%s518] sm:$0x1]
      %v521 = vlaneseq
      %v522 = vshrl.u32 %v521, 7
      %v523 = vsub.s32 0, %v522
      %v524 = vrot.slane %v519, %v523
      %v528 = vunpack.c.l.b16 %v516
      %v529 = vunpack.c.l.b16 %v517
      %v530 = vpack.c.b16 %v529, %v528
      %532 = vmatprep.subr.bf16.mxu0 0
      %533 = vmatpush1.bf16.msra.mxu0 %v530
      %534 = vmatprep.subr.bf16.mxu0 0
      %535 = vmatpush1.bf16.msra.mxu0 0
      %536 = vmatprep.subr.bf16.mxu0 0
      %537 = vmatpush1.bf16.msra.mxu0 0
      %538 = vmatprep.subr.bf16.mxu0 0
      %539 = vmatpush1.bf16.msra.mxu0 0
      %540 = vmatprep.subr.bf16.mxu0 0
      %541 = vmatpush1.bf16.msra.mxu0 0
      %542 = vmatprep.subr.bf16.mxu0 0
      %543 = vmatpush1.bf16.msra.mxu0 0
      %544 = vmatprep.subr.bf16.mxu0 0
      %545 = vmatpush1.bf16.msra.mxu0 0
      %546 = vmatprep.subr.bf16.mxu0 0
      %547 = vmatpush1.bf16.msra.mxu0 0
      %548 = vmatprep.subr.bf16.mxu0 0
      %549 = vmatpush1.bf16.msra.mxu0 0
      %550 = vmatprep.subr.bf16.mxu0 0
      %551 = vmatpush1.bf16.msra.mxu0 0
      %552 = vmatprep.subr.bf16.mxu0 0
      %553 = vmatpush1.bf16.msra.mxu0 0
      %554 = vmatprep.subr.bf16.mxu0 0
      %555 = vmatpush1.bf16.msra.mxu0 0
      %556 = vmatprep.subr.bf16.mxu0 0
      %557 = vmatpush1.bf16.msra.mxu0 0
      %558 = vmatprep.subr.bf16.mxu0 0
      %559 = vmatpush1.bf16.msra.mxu0 0
      %560 = vmatprep.subr.bf16.mxu0 0
      %561 = vmatpush1.bf16.msra.mxu0 0
      %562 = vmatprep.subr.bf16.mxu0 0
      %563 = vmatpush1.bf16.msra.mxu0 0
      %564 = vmatprep.mubr.bf16.mxu0 0
      %565 = vmatmul.mubr.bf16.gmra.mrb[0].mxu0 %v472
      %v566 = vpop.f32.mrb[0].mxu0
      %v567 = vadd.f32 %v524, %v566
      %v568 = vpop.f32.mrb[0].mxu0
      %v569 = vpop.f32.mrb[0].mxu0
      %v570 = vadd.f32 %v524, %v569
      %v571 = vpop.f32.mrb[0].mxu0
      %572 = vdwg.mxu0
      %s573 = scalar_lea.vmem %s3, 16
      %v574 = vld [vmem:[%s573] sm:$0xf]
      %v575 = vld [vmem:[%s573 + $0x4] sm:$0xf]
      %s576 = scalar_lea.vmem %s4, 2
      %v577 = vld [vmem:[%s576] sm:$0x1]
      %v579 = vlaneseq
      %v580 = vshrl.u32 %v579, 7
      %v581 = vsub.s32 0, %v580
      %v582 = vrot.slane %v577, %v581
      %v586 = vunpack.c.l.b16 %v574
      %v587 = vunpack.c.l.b16 %v575
      %v588 = vpack.c.b16 %v587, %v586
      %590 = vmatprep.subr.bf16.mxu0 0
      %591 = vmatpush1.bf16.msra.mxu0 %v588
      %592 = vmatprep.subr.bf16.mxu0 0
      %593 = vmatpush1.bf16.msra.mxu0 0
      %594 = vmatprep.subr.bf16.mxu0 0
      %595 = vmatpush1.bf16.msra.mxu0 0
      %596 = vmatprep.subr.bf16.mxu0 0
      %597 = vmatpush1.bf16.msra.mxu0 0
      %598 = vmatprep.subr.bf16.mxu0 0
      %599 = vmatpush1.bf16.msra.mxu0 0
      %600 = vmatprep.subr.bf16.mxu0 0
      %601 = vmatpush1.bf16.msra.mxu0 0
      %602 = vmatprep.subr.bf16.mxu0 0
      %603 = vmatpush1.bf16.msra.mxu0 0
      %604 = vmatprep.subr.bf16.mxu0 0
      %605 = vmatpush1.bf16.msra.mxu0 0
      %606 = vmatprep.subr.bf16.mxu0 0
      %607 = vmatpush1.bf16.msra.mxu0 0
      %608 = vmatprep.subr.bf16.mxu0 0
      %609 = vmatpush1.bf16.msra.mxu0 0
      %610 = vmatprep.subr.bf16.mxu0 0
      %611 = vmatpush1.bf16.msra.mxu0 0
      %612 = vmatprep.subr.bf16.mxu0 0
      %613 = vmatpush1.bf16.msra.mxu0 0
      %614 = vmatprep.subr.bf16.mxu0 0
      %615 = vmatpush1.bf16.msra.mxu0 0
      %616 = vmatprep.subr.bf16.mxu0 0
      %617 = vmatpush1.bf16.msra.mxu0 0
      %618 = vmatprep.subr.bf16.mxu0 0
      %619 = vmatpush1.bf16.msra.mxu0 0
      %620 = vmatprep.subr.bf16.mxu0 0
      %621 = vmatpush1.bf16.msra.mxu0 0
      %622 = vmatprep.mubr.bf16.mxu0 0
      %623 = vmatmul.mubr.bf16.gmra.mrb[0].mxu0 %v472
      %v624 = vpop.f32.mrb[0].mxu0
      %v625 = vadd.f32 %v582, %v624
      %v626 = vpop.f32.mrb[0].mxu0
      %v627 = vpop.f32.mrb[0].mxu0
      %v628 = vadd.f32 %v582, %v627
      %v629 = vpop.f32.mrb[0].mxu0
      %630 = vdwg.mxu0
      %v631 = vpack.c.bf16 %v512, %v509
      %v632 = vpack.c.bf16 %v570, %v567
      %vm633 = vcmask 64512
      %v635 = vsel %vm633, %v631, 0
      %v638 = vsel %vm633, %v632, 0
      %640 = vmatprep.subr.bf16.mxu0 0
      %641 = vmatpush1.bf16.xpose.msra.mxu0 %v638
      %642 = vmatprep.subr.bf16.mxu0 0
      %643 = vmatpush1.bf16.xpose.msra.mxu0 0
      %644 = vmatprep.subr.bf16.mxu0 0
      %645 = vmatpush1.bf16.xpose.msra.mxu0 0
      %646 = vmatprep.subr.bf16.mxu0 0
      %647 = vmatpush1.bf16.xpose.msra.mxu0 0
      %648 = vmatprep.subr.bf16.mxu0 0
      %649 = vmatpush1.bf16.xpose.msra.mxu0 0
      %650 = vmatprep.subr.bf16.mxu0 0
      %651 = vmatpush1.bf16.xpose.msra.mxu0 0
      %652 = vmatprep.subr.bf16.mxu0 0
      %653 = vmatpush1.bf16.xpose.msra.mxu0 0
      %654 = vmatprep.subr.bf16.mxu0 0
      %655 = vmatpush1.bf16.xpose.msra.mxu0 0
      %656 = vmatprep.subr.bf16.mxu0 0
      %657 = vmatpush1.bf16.xpose.msra.mxu0 0
      %658 = vmatprep.subr.bf16.mxu0 0
      %659 = vmatpush1.bf16.xpose.msra.mxu0 0
      %660 = vmatprep.subr.bf16.mxu0 0
      %661 = vmatpush1.bf16.xpose.msra.mxu0 0
      %662 = vmatprep.subr.bf16.mxu0 0
      %663 = vmatpush1.bf16.xpose.msra.mxu0 0
      %664 = vmatprep.subr.bf16.mxu0 0
      %665 = vmatpush1.bf16.xpose.msra.mxu0 0
      %666 = vmatprep.subr.bf16.mxu0 0
      %667 = vmatpush1.bf16.xpose.msra.mxu0 0
      %668 = vmatprep.subr.bf16.mxu0 0
      %669 = vmatpush1.bf16.xpose.msra.mxu0 0
      %670 = vmatprep.subr.bf16.mxu0 0
      %671 = vmatpush1.bf16.xpose.msra.mxu0 0
      %672 = vmatprep.mubr.bf16.mxu0 0
      %673 = vmatmul.mubr.bf16.gmra.mrb[0].mxu0 %v635
      %v674 = vpop.f32.mrb[0].mxu0
      %v675 = vadd.f32 0.0, %v674
      %v676 = vpop.f32.mrb[0].mxu0
      %v677 = vpop.f32.mrb[0].mxu0
      %v678 = vadd.f32 0.0, %v677
      %v679 = vpop.f32.mrb[0].mxu0
      %680 = vdwg.mxu0
      %v681 = vmul.f32 %v675, 0.35355338
      %v682 = vmul.f32 %v678, 0.35355338
      %vm683 = vcmask 89088
      %v684 = vsel %vm683, %v681, -inf
      %685 = vmax.xlane.f32.xlu0 %v684
      %v686 = vpop.xlane.xlu0 %685
      %vm687 = vcmask 83968
      %v688 = vsel %vm687, %v682, -inf
      %689 = vmax.xlane.f32.xlu0 %v688
      %v690 = vpop.xlane.xlu0 %689
      %v691 = vsub.f32 %v681, %v686
      %v692 = vsub.f32 %v682, %v690
      %v693 = vmul.f32 %v691, 1.442695
      %v694 = vpow.pop %v693
      %v695 = vmul.f32 %v692, 1.442695
      %v696 = vpow.pop %v695
      %v697 = vsel %vm683, %v694, 0.0
      %698 = vadd.xlane.f32.xlu0 %v697
      %v699 = vpop.xlane.xlu0 %698
      %v700 = vsel %vm687, %v696, 0.0
      %701 = vadd.xlane.f32.xlu0 %v700
      %v702 = vpop.xlane.xlu0 %701
      %v703 = vrcp.pop %v699
      %v704 = vrcp.pop %v702
      %v705 = vmul.f32 %v694, %v703
      %v706 = vmul.f32 %v696, %v704
      %v707 = vpack.c.bf16 %v706, %v705
      %v708 = vpack.c.bf16 %v628, %v625
      %v710 = vsel %vm683, %v707, 0
      %vm712 = vcmask 1044480
      %vm713 = vcmask 1045504
      %v714 = vsel %vm712, 4294967295, 65535
      %v715 = vsel %vm713, %v714, 0
      %v717 = vand.u32 %v708, %v715
      %719 = vmatprep.subr.bf16.mxu0 0
      %720 = vmatpush1.bf16.msra.mxu0 %v717
      %721 = vmatprep.subr.bf16.mxu0 0
      %722 = vmatpush1.bf16.msra.mxu0 0
      %723 = vmatprep.subr.bf16.mxu0 0
      %724 = vmatpush1.bf16.msra.mxu0 0
      %725 = vmatprep.subr.bf16.mxu0 0
      %726 = vmatpush1.bf16.msra.mxu0 0
      %727 = vmatprep.subr.bf16.mxu0 0
      %728 = vmatpush1.bf16.msra.mxu0 0
      %729 = vmatprep.subr.bf16.mxu0 0
      %730 = vmatpush1.bf16.msra.mxu0 0
      %731 = vmatprep.subr.bf16.mxu0 0
      %732 = vmatpush1.bf16.msra.mxu0 0
      %733 = vmatprep.subr.bf16.mxu0 0
      %734 = vmatpush1.bf16.msra.mxu0 0
      %735 = vmatprep.subr.bf16.mxu0 0
      %736 = vmatpush1.bf16.msra.mxu0 0
      %737 = vmatprep.subr.bf16.mxu0 0
      %738 = vmatpush1.bf16.msra.mxu0 0
      %739 = vmatprep.subr.bf16.mxu0 0
      %740 = vmatpush1.bf16.msra.mxu0 0
      %741 = vmatprep.subr.bf16.mxu0 0
      %742 = vmatpush1.bf16.msra.mxu0 0
      %743 = vmatprep.subr.bf16.mxu0 0
      %744 = vmatpush1.bf16.msra.mxu0 0
      %745 = vmatprep.subr.bf16.mxu0 0
      %746 = vmatpush1.bf16.msra.mxu0 0
      %747 = vmatprep.subr.bf16.mxu0 0
      %748 = vmatpush1.bf16.msra.mxu0 0
      %749 = vmatprep.subr.bf16.mxu0 0
      %750 = vmatpush1.bf16.msra.mxu0 0
      %751 = vmatprep.mubr.bf16.mxu0 0
      %752 = vmatmul.mubr.bf16.gmra.mrb[0].mxu0 %v710
      %v753 = vpop.f32.mrb[0].mxu0
      %v754 = vadd.f32 0.0, %v753
      %v755 = vpop.f32.mrb[0].mxu0
      %v756 = vpop.f32.mrb[0].mxu0
      %v757 = vadd.f32 0.0, %v756
      %v758 = vpop.f32.mrb[0].mxu0
      %759 = vdwg.mxu0
      %761 = vrot.lane.b32.xlu0 %v631, 120
      %v762 = vpop.permute.xlu0 %761
      %764 = vrot.lane.b32.xlu0 %v632, 120
      %v765 = vpop.permute.xlu0 %764
      %v767 = vsel %vm633, %v762, 0
      %v770 = vsel %vm633, %v765, 0
      %772 = vmatprep.subr.bf16.mxu0 0
      %773 = vmatpush1.bf16.xpose.msra.mxu0 %v770
      %774 = vmatprep.subr.bf16.mxu0 0
      %775 = vmatpush1.bf16.xpose.msra.mxu0 0
      %776 = vmatprep.subr.bf16.mxu0 0
      %777 = vmatpush1.bf16.xpose.msra.mxu0 0
      %778 = vmatprep.subr.bf16.mxu0 0
      %779 = vmatpush1.bf16.xpose.msra.mxu0 0
      %780 = vmatprep.subr.bf16.mxu0 0
      %781 = vmatpush1.bf16.xpose.msra.mxu0 0
      %782 = vmatprep.subr.bf16.mxu0 0
      %783 = vmatpush1.bf16.xpose.msra.mxu0 0
      %784 = vmatprep.subr.bf16.mxu0 0
      %785 = vmatpush1.bf16.xpose.msra.mxu0 0
      %786 = vmatprep.subr.bf16.mxu0 0
      %787 = vmatpush1.bf16.xpose.msra.mxu0 0
      %788 = vmatprep.subr.bf16.mxu0 0
      %789 = vmatpush1.bf16.xpose.msra.mxu0 0
      %790 = vmatprep.subr.bf16.mxu0 0
      %791 = vmatpush1.bf16.xpose.msra.mxu0 0
      %792 = vmatprep.subr.bf16.mxu0 0
      %793 = vmatpush1.bf16.xpose.msra.mxu0 0
      %794 = vmatprep.subr.bf16.mxu0 0
      %795 = vmatpush1.bf16.xpose.msra.mxu0 0
      %796 = vmatprep.subr.bf16.mxu0 0
      %797 = vmatpush1.bf16.xpose.msra.mxu0 0
      %798 = vmatprep.subr.bf16.mxu0 0
      %799 = vmatpush1.bf16.xpose.msra.mxu0 0
      %800 = vmatprep.subr.bf16.mxu0 0
      %801 = vmatpush1.bf16.xpose.msra.mxu0 0
      %802 = vmatprep.subr.bf16.mxu0 0
      %803 = vmatpush1.bf16.xpose.msra.mxu0 0
      %804 = vmatprep.mubr.bf16.mxu0 0
      %805 = vmatmul.mubr.bf16.gmra.mrb[0].mxu0 %v767
      %v806 = vpop.f32.mrb[0].mxu0
      %v807 = vadd.f32 0.0, %v806
      %v808 = vpop.f32.mrb[0].mxu0
      %v809 = vpop.f32.mrb[0].mxu0
      %v810 = vadd.f32 0.0, %v809
      %v811 = vpop.f32.mrb[0].mxu0
      %812 = vdwg.mxu0
      %v813 = vmul.f32 %v807, 0.35355338
      %v814 = vmul.f32 %v810, 0.35355338
      %v815 = vsel %vm683, %v813, -inf
      %816 = vmax.xlane.f32.xlu0 %v815
      %v817 = vpop.xlane.xlu0 %816
      %v818 = vsel %vm687, %v814, -inf
      %819 = vmax.xlane.f32.xlu0 %v818
      %v820 = vpop.xlane.xlu0 %819
      %v821 = vsub.f32 %v813, %v817
      %v822 = vsub.f32 %v814, %v820
      %v823 = vmul.f32 %v821, 1.442695
      %v824 = vpow.pop %v823
      %v825 = vmul.f32 %v822, 1.442695
      %v826 = vpow.pop %v825
      %v827 = vsel %vm683, %v824, 0.0
      %828 = vadd.xlane.f32.xlu0 %v827
      %v829 = vpop.xlane.xlu0 %828
      %v830 = vsel %vm687, %v826, 0.0
      %831 = vadd.xlane.f32.xlu0 %v830
      %v832 = vpop.xlane.xlu0 %831
      %v833 = vrcp.pop %v829
      %v834 = vrcp.pop %v832
      %v835 = vmul.f32 %v824, %v833
      %v836 = vmul.f32 %v826, %v834
      %v837 = vpack.c.bf16 %v836, %v835
      %839 = vrot.lane.b32.xlu0 %v708, 120
      %v840 = vpop.permute.xlu0 %839
      %v842 = vsel %vm683, %v837, 0
      %v845 = vand.u32 %v840, %v715
      %847 = vmatprep.subr.bf16.mxu0 0
      %848 = vmatpush1.bf16.msra.mxu0 %v845
      %849 = vmatprep.subr.bf16.mxu0 0
      %850 = vmatpush1.bf16.msra.mxu0 0
      %851 = vmatprep.subr.bf16.mxu0 0
      %852 = vmatpush1.bf16.msra.mxu0 0
      %853 = vmatprep.subr.bf16.mxu0 0
      %854 = vmatpush1.bf16.msra.mxu0 0
      %855 = vmatprep.subr.bf16.mxu0 0
      %856 = vmatpush1.bf16.msra.mxu0 0
      %857 = vmatprep.subr.bf16.mxu0 0
      %858 = vmatpush1.bf16.msra.mxu0 0
      %859 = vmatprep.subr.bf16.mxu0 0
      %860 = vmatpush1.bf16.msra.mxu0 0
      %861 = vmatprep.subr.bf16.mxu0 0
      %862 = vmatpush1.bf16.msra.mxu0 0
      %863 = vmatprep.subr.bf16.mxu0 0
      %864 = vmatpush1.bf16.msra.mxu0 0
      %865 = vmatprep.subr.bf16.mxu0 0
      %866 = vmatpush1.bf16.msra.mxu0 0
      %867 = vmatprep.subr.bf16.mxu0 0
      %868 = vmatpush1.bf16.msra.mxu0 0
      %869 = vmatprep.subr.bf16.mxu0 0
      %870 = vmatpush1.bf16.msra.mxu0 0
      %871 = vmatprep.subr.bf16.mxu0 0
      %872 = vmatpush1.bf16.msra.mxu0 0
      %873 = vmatprep.subr.bf16.mxu0 0
      %874 = vmatpush1.bf16.msra.mxu0 0
      %875 = vmatprep.subr.bf16.mxu0 0
      %876 = vmatpush1.bf16.msra.mxu0 0
      %877 = vmatprep.subr.bf16.mxu0 0
      %878 = vmatpush1.bf16.msra.mxu0 0
      %879 = vmatprep.mubr.bf16.mxu0 0
      %880 = vmatmul.mubr.bf16.gmra.mrb[0].mxu0 %v842
      %v881 = vpop.f32.mrb[0].mxu0
      %v882 = vadd.f32 0.0, %v881
      %v883 = vpop.f32.mrb[0].mxu0
      %v884 = vpop.f32.mrb[0].mxu0
      %v885 = vadd.f32 0.0, %v884
      %v886 = vpop.f32.mrb[0].mxu0
      %887 = vdwg.mxu0
      %890 = vrot.lane.b32.xlu0 %v882, 8
      %v891 = vpop.permute.xlu0 %890
      %892 = vrot.lane.b32.xlu0 %v885, 8
      %v893 = vpop.permute.xlu0 %892
      %v896 = vsel %vm633, %v754, %v891
      %v897 = vsel %vm633, %v757, %v893
      %s898 = scalar_lea.vmem %s3, 24
      %v899 = vld [vmem:[%s898] sm:$0xf]
      %v900 = vld [vmem:[%s898 + $0x4] sm:$0xf]
      %v901 = vpack.c.bf16 %v897, %v896
      %s902 = scalar_lea.vmem %s4, 3
      %v903 = vld [vmem:[%s902] sm:$0x1]
      %v905 = vlaneseq
      %v906 = vshrl.u32 %v905, 7
      %v907 = vsub.s32 0, %v906
      %v908 = vrot.slane %v903, %v907
      %v912 = vunpack.c.l.b16 %v899
      %v913 = vunpack.c.l.b16 %v900
      %v914 = vpack.c.b16 %v913, %v912
      %v917 = vsel %vm470, %v901, 0
      %919 = vmatprep.subr.bf16.mxu0 0
      %920 = vmatpush1.bf16.msra.mxu0 %v914
      %921 = vmatprep.subr.bf16.mxu0 0
      %922 = vmatpush1.bf16.msra.mxu0 0
      %923 = vmatprep.subr.bf16.mxu0 0
      %924 = vmatpush1.bf16.msra.mxu0 0
      %925 = vmatprep.subr.bf16.mxu0 0
      %926 = vmatpush1.bf16.msra.mxu0 0
      %927 = vmatprep.subr.bf16.mxu0 0
      %928 = vmatpush1.bf16.msra.mxu0 0
      %929 = vmatprep.subr.bf16.mxu0 0
      %930 = vmatpush1.bf16.msra.mxu0 0
      %931 = vmatprep.subr.bf16.mxu0 0
      %932 = vmatpush1.bf16.msra.mxu0 0
      %933 = vmatprep.subr.bf16.mxu0 0
      %934 = vmatpush1.bf16.msra.mxu0 0
      %935 = vmatprep.subr.bf16.mxu0 0
      %936 = vmatpush1.bf16.msra.mxu0 0
      %937 = vmatprep.subr.bf16.mxu0 0
      %938 = vmatpush1.bf16.msra.mxu0 0
      %939 = vmatprep.subr.bf16.mxu0 0
      %940 = vmatpush1.bf16.msra.mxu0 0
      %941 = vmatprep.subr.bf16.mxu0 0
      %942 = vmatpush1.bf16.msra.mxu0 0
      %943 = vmatprep.subr.bf16.mxu0 0
      %944 = vmatpush1.bf16.msra.mxu0 0
      %945 = vmatprep.subr.bf16.mxu0 0
      %946 = vmatpush1.bf16.msra.mxu0 0
      %947 = vmatprep.subr.bf16.mxu0 0
      %948 = vmatpush1.bf16.msra.mxu0 0
      %949 = vmatprep.subr.bf16.mxu0 0
      %950 = vmatpush1.bf16.msra.mxu0 0
      %951 = vmatprep.mubr.bf16.mxu0 0
      %952 = vmatmul.mubr.bf16.gmra.mrb[0].mxu0 %v917
      %v953 = vpop.f32.mrb[0].mxu0
      %v954 = vadd.f32 %v908, %v953
      %v955 = vpop.f32.mrb[0].mxu0
      %v956 = vpop.f32.mrb[0].mxu0
      %v957 = vadd.f32 %v908, %v956
      %v958 = vpop.f32.mrb[0].mxu0
      %959 = vdwg.mxu0
      %v960 = vadd.f32 %v448, %v954
      %v961 = vadd.f32 %v449, %v957
      %v962 = vld [vmem:[%s5] sm:$0x1]
      %v963 = vld [vmem:[%s6] sm:$0x1]
      %v964 = vsel %vm470, %v960, 0.0
      %965 = vadd.xlane.f32.xlu0 %v964
      %v966 = vpop.xlane.xlu0 %965
      %vm967 = vcmask 124928
      %v968 = vsel %vm967, %v961, 0.0
      %969 = vadd.xlane.f32.xlu0 %v968
      %v970 = vpop.xlane.xlu0 %969
      %v971 = vrcp.pop 16.0
      %v972 = vmul.f32 %v966, %v971
      %v973 = vmul.f32 %v970, %v971
      %v974 = vsub.f32 %v960, %v972
      %v975 = vsub.f32 %v961, %v973
      %v976 = vmul.f32 %v974, %v974
      %v977 = vmul.f32 %v975, %v975
      %v978 = vsel %vm470, %v976, 0.0
      %979 = vadd.xlane.f32.xlu0 %v978
      %v980 = vpop.xlane.xlu0 %979
      %v981 = vsel %vm967, %v977, 0.0
      %982 = vadd.xlane.f32.xlu0 %v981
      %v983 = vpop.xlane.xlu0 %982
      %v984 = vmul.f32 %v980, %v971
      %v985 = vmul.f32 %v983, %v971
      %v986 = vadd.f32 %v984, 1e-05
      %v987 = vadd.f32 %v985, 1e-05
      %v988 = vrsqrt.pop %v986
      %v989 = vrsqrt.pop %v987
      %v990 = vmul.f32 %v974, %v988
      %v991 = vmul.f32 %v975, %v989
      %v993 = vlaneseq
      %v994 = vshrl.u32 %v993, 7
      %v995 = vsub.s32 0, %v994
      %v996 = vrot.slane %v962, %v995
      %v998 = vmul.f32 %v990, %v996
      %v999 = vmul.f32 %v991, %v996
      %v1001 = vlaneseq
      %v1002 = vshrl.u32 %v1001, 7
      %v1003 = vsub.s32 0, %v1002
      %v1004 = vrot.slane %v963, %v1003
      %v1006 = vadd.f32 %v998, %v1004
      %v1007 = vadd.f32 %v999, %v1004
      %v1008 = vadd.f32 %v450, %v452
      %v1009 = vadd.f32 %v451, %v453
      %s1010 = scalar_lea.vmem %s3, 32
      %v1011 = vld [vmem:[%s1010] sm:$0xf]
      %v1012 = vld [vmem:[%s1010 + $0x4] sm:$0xf]
      %v1013 = vpack.c.bf16 %v1007, %v1006
      %s1014 = scalar_lea.vmem %s4, 4
      %v1015 = vld [vmem:[%s1014] sm:$0x1]
      %v1017 = vlaneseq
      %v1018 = vshrl.u32 %v1017, 7
      %v1019 = vsub.s32 0, %v1018
      %v1020 = vrot.slane %v1015, %v1019
      %v1024 = vunpack.c.l.b16 %v1011
      %v1025 = vunpack.c.l.b16 %v1012
      %v1026 = vpack.c.b16 %v1025, %v1024
      %v1029 = vsel %vm470, %v1013, 0
      %1031 = vmatprep.subr.bf16.mxu0 0
      %1032 = vmatpush1.bf16.msra.mxu0 %v1026
      %1033 = vmatprep.subr.bf16.mxu0 0
      %1034 = vmatpush1.bf16.msra.mxu0 0
      %1035 = vmatprep.subr.bf16.mxu0 0
      %1036 = vmatpush1.bf16.msra.mxu0 0
      %1037 = vmatprep.subr.bf16.mxu0 0
      %1038 = vmatpush1.bf16.msra.mxu0 0
      %1039 = vmatprep.subr.bf16.mxu0 0
      %1040 = vmatpush1.bf16.msra.mxu0 0
      %1041 = vmatprep.subr.bf16.mxu0 0
      %1042 = vmatpush1.bf16.msra.mxu0 0
      %1043 = vmatprep.subr.bf16.mxu0 0
      %1044 = vmatpush1.bf16.msra.mxu0 0
      %1045 = vmatprep.subr.bf16.mxu0 0
      %1046 = vmatpush1.bf16.msra.mxu0 0
      %1047 = vmatprep.subr.bf16.mxu0 0
      %1048 = vmatpush1.bf16.msra.mxu0 0
      %1049 = vmatprep.subr.bf16.mxu0 0
      %1050 = vmatpush1.bf16.msra.mxu0 0
      %1051 = vmatprep.subr.bf16.mxu0 0
      %1052 = vmatpush1.bf16.msra.mxu0 0
      %1053 = vmatprep.subr.bf16.mxu0 0
      %1054 = vmatpush1.bf16.msra.mxu0 0
      %1055 = vmatprep.subr.bf16.mxu0 0
      %1056 = vmatpush1.bf16.msra.mxu0 0
      %1057 = vmatprep.subr.bf16.mxu0 0
      %1058 = vmatpush1.bf16.msra.mxu0 0
      %1059 = vmatprep.subr.bf16.mxu0 0
      %1060 = vmatpush1.bf16.msra.mxu0 0
      %1061 = vmatprep.subr.bf16.mxu0 0
      %1062 = vmatpush1.bf16.msra.mxu0 0
      %1063 = vmatprep.mubr.bf16.mxu0 0
      %1064 = vmatmul.mubr.bf16.gmra.mrb[0].mxu0 %v1029
      %v1065 = vpop.f32.mrb[0].mxu0
      %v1066 = vadd.f32 %v1020, %v1065
      %v1067 = vpop.f32.mrb[0].mxu0
      %v1068 = vpop.f32.mrb[0].mxu0
      %v1069 = vadd.f32 %v1020, %v1068
      %v1070 = vpop.f32.mrb[0].mxu0
      %1071 = vdwg.mxu0
      %s1072 = scalar_lea.vmem %s3, 40
      %v1073 = vld [vmem:[%s1072] sm:$0xf]
      %v1074 = vld [vmem:[%s1072 + $0x4] sm:$0xf]
      %v1075 = vpack.c.bf16 %v1009, %v1008
      %s1076 = scalar_lea.vmem %s4, 5
      %v1077 = vld [vmem:[%s1076] sm:$0x1]
      %v1079 = vlaneseq
      %v1080 = vshrl.u32 %v1079, 7
      %v1081 = vsub.s32 0, %v1080
      %v1082 = vrot.slane %v1077, %v1081
      %v1086 = vunpack.c.l.b16 %v1073
      %v1087 = vunpack.c.l.b16 %v1074
      %v1088 = vpack.c.b16 %v1087, %v1086
      %v1091 = vsel %vm470, %v1075, 0
      %1093 = vmatprep.subr.bf16.mxu0 0
      %1094 = vmatpush1.bf16.msra.mxu0 %v1088
      %1095 = vmatprep.subr.bf16.mxu0 0
      %1096 = vmatpush1.bf16.msra.mxu0 0
      %1097 = vmatprep.subr.bf16.mxu0 0
      %1098 = vmatpush1.bf16.msra.mxu0 0
      %1099 = vmatprep.subr.bf16.mxu0 0
      %1100 = vmatpush1.bf16.msra.mxu0 0
      %1101 = vmatprep.subr.bf16.mxu0 0
      %1102 = vmatpush1.bf16.msra.mxu0 0
      %1103 = vmatprep.subr.bf16.mxu0 0
      %1104 = vmatpush1.bf16.msra.mxu0 0
      %1105 = vmatprep.subr.bf16.mxu0 0
      %1106 = vmatpush1.bf16.msra.mxu0 0
      %1107 = vmatprep.subr.bf16.mxu0 0
      %1108 = vmatpush1.bf16.msra.mxu0 0
      %1109 = vmatprep.subr.bf16.mxu0 0
      %1110 = vmatpush1.bf16.msra.mxu0 0
      %1111 = vmatprep.subr.bf16.mxu0 0
      %1112 = vmatpush1.bf16.msra.mxu0 0
      %1113 = vmatprep.subr.bf16.mxu0 0
      %1114 = vmatpush1.bf16.msra.mxu0 0
      %1115 = vmatprep.subr.bf16.mxu0 0
      %1116 = vmatpush1.bf16.msra.mxu0 0
      %1117 = vmatprep.subr.bf16.mxu0 0
      %1118 = vmatpush1.bf16.msra.mxu0 0
      %1119 = vmatprep.subr.bf16.mxu0 0
      %1120 = vmatpush1.bf16.msra.mxu0 0
      %1121 = vmatprep.subr.bf16.mxu0 0
      %1122 = vmatpush1.bf16.msra.mxu0 0
      %1123 = vmatprep.subr.bf16.mxu0 0
      %1124 = vmatpush1.bf16.msra.mxu0 0
      %1125 = vmatprep.mubr.bf16.mxu0 0
      %1126 = vmatmul.mubr.bf16.gmra.mrb[0].mxu0 %v1091
      %v1127 = vpop.f32.mrb[0].mxu0
      %v1128 = vadd.f32 %v1082, %v1127
      %v1129 = vpop.f32.mrb[0].mxu0
      %v1130 = vpop.f32.mrb[0].mxu0
      %v1131 = vadd.f32 %v1082, %v1130
      %v1132 = vpop.f32.mrb[0].mxu0
      %1133 = vdwg.mxu0
      %s1134 = scalar_lea.vmem %s3, 48
      %v1135 = vld [vmem:[%s1134] sm:$0xf]
      %v1136 = vld [vmem:[%s1134 + $0x4] sm:$0xf]
      %v1137 = vpack.c.bf16 %v451, %v450
      %s1138 = scalar_lea.vmem %s4, 6
      %v1139 = vld [vmem:[%s1138] sm:$0x1]
      %v1141 = vlaneseq
      %v1142 = vshrl.u32 %v1141, 7
      %v1143 = vsub.s32 0, %v1142
      %v1144 = vrot.slane %v1139, %v1143
      %v1148 = vunpack.c.l.b16 %v1135
      %v1149 = vunpack.c.l.b16 %v1136
      %v1150 = vpack.c.b16 %v1149, %v1148
      %v1153 = vsel %vm470, %v1137, 0
      %1155 = vmatprep.subr.bf16.mxu0 0
      %1156 = vmatpush1.bf16.msra.mxu0 %v1150
      %1157 = vmatprep.subr.bf16.mxu0 0
      %1158 = vmatpush1.bf16.msra.mxu0 0
      %1159 = vmatprep.subr.bf16.mxu0 0
      %1160 = vmatpush1.bf16.msra.mxu0 0
      %1161 = vmatprep.subr.bf16.mxu0 0
      %1162 = vmatpush1.bf16.msra.mxu0 0
      %1163 = vmatprep.subr.bf16.mxu0 0
      %1164 = vmatpush1.bf16.msra.mxu0 0
      %1165 = vmatprep.subr.bf16.mxu0 0
      %1166 = vmatpush1.bf16.msra.mxu0 0
      %1167 = vmatprep.subr.bf16.mxu0 0
      %1168 = vmatpush1.bf16.msra.mxu0 0
      %1169 = vmatprep.subr.bf16.mxu0 0
      %1170 = vmatpush1.bf16.msra.mxu0 0
      %1171 = vmatprep.subr.bf16.mxu0 0
      %1172 = vmatpush1.bf16.msra.mxu0 0
      %1173 = vmatprep.subr.bf16.mxu0 0
      %1174 = vmatpush1.bf16.msra.mxu0 0
      %1175 = vmatprep.subr.bf16.mxu0 0
      %1176 = vmatpush1.bf16.msra.mxu0 0
      %1177 = vmatprep.subr.bf16.mxu0 0
      %1178 = vmatpush1.bf16.msra.mxu0 0
      %1179 = vmatprep.subr.bf16.mxu0 0
      %1180 = vmatpush1.bf16.msra.mxu0 0
      %1181 = vmatprep.subr.bf16.mxu0 0
      %1182 = vmatpush1.bf16.msra.mxu0 0
      %1183 = vmatprep.subr.bf16.mxu0 0
      %1184 = vmatpush1.bf16.msra.mxu0 0
      %1185 = vmatprep.subr.bf16.mxu0 0
      %1186 = vmatpush1.bf16.msra.mxu0 0
      %1187 = vmatprep.mubr.bf16.mxu0 0
      %1188 = vmatmul.mubr.bf16.gmra.mrb[0].mxu0 %v1153
      %v1189 = vpop.f32.mrb[0].mxu0
      %v1190 = vadd.f32 %v1144, %v1189
      %v1191 = vpop.f32.mrb[0].mxu0
      %v1192 = vpop.f32.mrb[0].mxu0
      %v1193 = vadd.f32 %v1144, %v1192
      %v1194 = vpop.f32.mrb[0].mxu0
      %1195 = vdwg.mxu0
      %v1196 = vpack.c.bf16 %v1069, %v1066
      %v1197 = vpack.c.bf16 %v1131, %v1128
      %v1199 = vsel %vm633, %v1196, 0
      %v1202 = vsel %vm633, %v1197, 0
      %1204 = vmatprep.subr.bf16.mxu0 0
      %1205 = vmatpush1.bf16.xpose.msra.mxu0 %v1202
      %1206 = vmatprep.subr.bf16.mxu0 0
      %1207 = vmatpush1.bf16.xpose.msra.mxu0 0
      %1208 = vmatprep.subr.bf16.mxu0 0
      %1209 = vmatpush1.bf16.xpose.msra.mxu0 0
      %1210 = vmatprep.subr.bf16.mxu0 0
      %1211 = vmatpush1.bf16.xpose.msra.mxu0 0
      %1212 = vmatprep.subr.bf16.mxu0 0
      %1213 = vmatpush1.bf16.xpose.msra.mxu0 0
      %1214 = vmatprep.subr.bf16.mxu0 0
      %1215 = vmatpush1.bf16.xpose.msra.mxu0 0
      %1216 = vmatprep.subr.bf16.mxu0 0
      %1217 = vmatpush1.bf16.xpose.msra.mxu0 0
      %1218 = vmatprep.subr.bf16.mxu0 0
      %1219 = vmatpush1.bf16.xpose.msra.mxu0 0
      %1220 = vmatprep.subr.bf16.mxu0 0
      %1221 = vmatpush1.bf16.xpose.msra.mxu0 0
      %1222 = vmatprep.subr.bf16.mxu0 0
      %1223 = vmatpush1.bf16.xpose.msra.mxu0 0
      %1224 = vmatprep.subr.bf16.mxu0 0
      %1225 = vmatpush1.bf16.xpose.msra.mxu0 0
      %1226 = vmatprep.subr.bf16.mxu0 0
      %1227 = vmatpush1.bf16.xpose.msra.mxu0 0
      %1228 = vmatprep.subr.bf16.mxu0 0
      %1229 = vmatpush1.bf16.xpose.msra.mxu0 0
      %1230 = vmatprep.subr.bf16.mxu0 0
      %1231 = vmatpush1.bf16.xpose.msra.mxu0 0
      %1232 = vmatprep.subr.bf16.mxu0 0
      %1233 = vmatpush1.bf16.xpose.msra.mxu0 0
      %1234 = vmatprep.subr.bf16.mxu0 0
      %1235 = vmatpush1.bf16.xpose.msra.mxu0 0
      %1236 = vmatprep.mubr.bf16.mxu0 0
      %1237 = vmatmul.mubr.bf16.gmra.mrb[0].mxu0 %v1199
      %v1238 = vpop.f32.mrb[0].mxu0
      %v1239 = vadd.f32 0.0, %v1238
      %v1240 = vpop.f32.mrb[0].mxu0
      %v1241 = vpop.f32.mrb[0].mxu0
      %v1242 = vadd.f32 0.0, %v1241
      %v1243 = vpop.f32.mrb[0].mxu0
      %1244 = vdwg.mxu0
      %v1245 = vmul.f32 %v1239, 0.35355338
      %v1246 = vmul.f32 %v1242, 0.35355338
      %v1247 = vsel %vm470, %v1245, -inf
      %1248 = vmax.xlane.f32.xlu0 %v1247
      %v1249 = vpop.xlane.xlu0 %1248
      %v1250 = vsel %vm967, %v1246, -inf
      %1251 = vmax.xlane.f32.xlu0 %v1250
      %v1252 = vpop.xlane.xlu0 %1251
      %v1253 = vsub.f32 %v1245, %v1249
      %v1254 = vsub.f32 %v1246, %v1252
      %v1255 = vmul.f32 %v1253, 1.442695
      %v1256 = vpow.pop %v1255
      %v1257 = vmul.f32 %v1254, 1.442695
      %v1258 = vpow.pop %v1257
      %v1259 = vsel %vm470, %v1256, 0.0
      %1260 = vadd.xlane.f32.xlu0 %v1259
      %v1261 = vpop.xlane.xlu0 %1260
      %v1262 = vsel %vm967, %v1258, 0.0
      %1263 = vadd.xlane.f32.xlu0 %v1262
      %v1264 = vpop.xlane.xlu0 %1263
      %v1265 = vrcp.pop %v1261
      %v1266 = vrcp.pop %v1264
      %v1267 = vmul.f32 %v1256, %v1265
      %v1268 = vmul.f32 %v1258, %v1266
      %v1269 = vpack.c.bf16 %v1268, %v1267
      %v1270 = vpack.c.bf16 %v1193, %v1190
      %v1272 = vsel %vm470, %v1269, 0
      %1274 = vmatprep.subr.bf16.mxu0 0
      %1275 = vmatpush1.bf16.msra.mxu0 %v1270
      %1276 = vmatprep.subr.bf16.mxu0 0
      %1277 = vmatpush1.bf16.msra.mxu0 0
      %1278 = vmatprep.subr.bf16.mxu0 0
      %1279 = vmatpush1.bf16.msra.mxu0 0
      %1280 = vmatprep.subr.bf16.mxu0 0
      %1281 = vmatpush1.bf16.msra.mxu0 0
      %1282 = vmatprep.subr.bf16.mxu0 0
      %1283 = vmatpush1.bf16.msra.mxu0 0
      %1284 = vmatprep.subr.bf16.mxu0 0
      %1285 = vmatpush1.bf16.msra.mxu0 0
      %1286 = vmatprep.subr.bf16.mxu0 0
      %1287 = vmatpush1.bf16.msra.mxu0 0
      %1288 = vmatprep.subr.bf16.mxu0 0
      %1289 = vmatpush1.bf16.msra.mxu0 0
      %1290 = vmatprep.subr.bf16.mxu0 0
      %1291 = vmatpush1.bf16.msra.mxu0 0
      %1292 = vmatprep.subr.bf16.mxu0 0
      %1293 = vmatpush1.bf16.msra.mxu0 0
      %1294 = vmatprep.subr.bf16.mxu0 0
      %1295 = vmatpush1.bf16.msra.mxu0 0
      %1296 = vmatprep.subr.bf16.mxu0 0
      %1297 = vmatpush1.bf16.msra.mxu0 0
      %1298 = vmatprep.subr.bf16.mxu0 0
      %1299 = vmatpush1.bf16.msra.mxu0 0
      %1300 = vmatprep.subr.bf16.mxu0 0
      %1301 = vmatpush1.bf16.msra.mxu0 0
      %1302 = vmatprep.subr.bf16.mxu0 0
      %1303 = vmatpush1.bf16.msra.mxu0 0
      %1304 = vmatprep.subr.bf16.mxu0 0
      %1305 = vmatpush1.bf16.msra.mxu0 0
      %1306 = vmatprep.mubr.bf16.mxu0 0
      %1307 = vmatmul.mubr.bf16.gmra.mrb[0].mxu0 %v1272
      %v1308 = vpop.f32.mrb[0].mxu0
      %v1309 = vadd.f32 0.0, %v1308
      %v1310 = vpop.f32.mrb[0].mxu0
      %v1311 = vpop.f32.mrb[0].mxu0
      %v1312 = vadd.f32 0.0, %v1311
      %v1313 = vpop.f32.mrb[0].mxu0
      %1314 = vdwg.mxu0
      %1316 = vrot.lane.b32.xlu0 %v1196, 120
      %v1317 = vpop.permute.xlu0 %1316
      %1319 = vrot.lane.b32.xlu0 %v1197, 120
      %v1320 = vpop.permute.xlu0 %1319
      %v1322 = vsel %vm633, %v1317, 0
      %v1325 = vsel %vm633, %v1320, 0
      %1327 = vmatprep.subr.bf16.mxu0 0
      %1328 = vmatpush1.bf16.xpose.msra.mxu0 %v1325
      %1329 = vmatprep.subr.bf16.mxu0 0
      %1330 = vmatpush1.bf16.xpose.msra.mxu0 0
      %1331 = vmatprep.subr.bf16.mxu0 0
      %1332 = vmatpush1.bf16.xpose.msra.mxu0 0
      %1333 = vmatprep.subr.bf16.mxu0 0
      %1334 = vmatpush1.bf16.xpose.msra.mxu0 0
      %1335 = vmatprep.subr.bf16.mxu0 0
      %1336 = vmatpush1.bf16.xpose.msra.mxu0 0
      %1337 = vmatprep.subr.bf16.mxu0 0
      %1338 = vmatpush1.bf16.xpose.msra.mxu0 0
      %1339 = vmatprep.subr.bf16.mxu0 0
      %1340 = vmatpush1.bf16.xpose.msra.mxu0 0
      %1341 = vmatprep.subr.bf16.mxu0 0
      %1342 = vmatpush1.bf16.xpose.msra.mxu0 0
      %1343 = vmatprep.subr.bf16.mxu0 0
      %1344 = vmatpush1.bf16.xpose.msra.mxu0 0
      %1345 = vmatprep.subr.bf16.mxu0 0
      %1346 = vmatpush1.bf16.xpose.msra.mxu0 0
      %1347 = vmatprep.subr.bf16.mxu0 0
      %1348 = vmatpush1.bf16.xpose.msra.mxu0 0
      %1349 = vmatprep.subr.bf16.mxu0 0
      %1350 = vmatpush1.bf16.xpose.msra.mxu0 0
      %1351 = vmatprep.subr.bf16.mxu0 0
      %1352 = vmatpush1.bf16.xpose.msra.mxu0 0
      %1353 = vmatprep.subr.bf16.mxu0 0
      %1354 = vmatpush1.bf16.xpose.msra.mxu0 0
      %1355 = vmatprep.subr.bf16.mxu0 0
      %1356 = vmatpush1.bf16.xpose.msra.mxu0 0
      %1357 = vmatprep.subr.bf16.mxu0 0
      %1358 = vmatpush1.bf16.xpose.msra.mxu0 0
      %1359 = vmatprep.mubr.bf16.mxu0 0
      %1360 = vmatmul.mubr.bf16.gmra.mrb[0].mxu0 %v1322
      %v1361 = vpop.f32.mrb[0].mxu0
      %v1362 = vadd.f32 0.0, %v1361
      %v1363 = vpop.f32.mrb[0].mxu0
      %v1364 = vpop.f32.mrb[0].mxu0
      %v1365 = vadd.f32 0.0, %v1364
      %v1366 = vpop.f32.mrb[0].mxu0
      %1367 = vdwg.mxu0
      %v1368 = vmul.f32 %v1362, 0.35355338
      %v1369 = vmul.f32 %v1365, 0.35355338
      %v1370 = vsel %vm470, %v1368, -inf
      %1371 = vmax.xlane.f32.xlu0 %v1370
      %v1372 = vpop.xlane.xlu0 %1371
      %v1373 = vsel %vm967, %v1369, -inf
      %1374 = vmax.xlane.f32.xlu0 %v1373
      %v1375 = vpop.xlane.xlu0 %1374
      %v1376 = vsub.f32 %v1368, %v1372
      %v1377 = vsub.f32 %v1369, %v1375
      %v1378 = vmul.f32 %v1376, 1.442695
      %v1379 = vpow.pop %v1378
      %v1380 = vmul.f32 %v1377, 1.442695
      %v1381 = vpow.pop %v1380
      %v1382 = vsel %vm470, %v1379, 0.0
      %1383 = vadd.xlane.f32.xlu0 %v1382
      %v1384 = vpop.xlane.xlu0 %1383
      %v1385 = vsel %vm967, %v1381, 0.0
      %1386 = vadd.xlane.f32.xlu0 %v1385
      %v1387 = vpop.xlane.xlu0 %1386
      %v1388 = vrcp.pop %v1384
      %v1389 = vrcp.pop %v1387
      %v1390 = vmul.f32 %v1379, %v1388
      %v1391 = vmul.f32 %v1381, %v1389
      %v1392 = vpack.c.bf16 %v1391, %v1390
      %1394 = vrot.lane.b32.xlu0 %v1270, 120
      %v1395 = vpop.permute.xlu0 %1394
      %v1398 = vsel %vm470, %v1392, 0
      %1400 = vmatprep.subr.bf16.mxu0 0
      %1401 = vmatpush1.bf16.msra.mxu0 %v1395
      %1402 = vmatprep.subr.bf16.mxu0 0
      %1403 = vmatpush1.bf16.msra.mxu0 0
      %1404 = vmatprep.subr.bf16.mxu0 0
      %1405 = vmatpush1.bf16.msra.mxu0 0
      %1406 = vmatprep.subr.bf16.mxu0 0
      %1407 = vmatpush1.bf16.msra.mxu0 0
      %1408 = vmatprep.subr.bf16.mxu0 0
      %1409 = vmatpush1.bf16.msra.mxu0 0
      %1410 = vmatprep.subr.bf16.mxu0 0
      %1411 = vmatpush1.bf16.msra.mxu0 0
      %1412 = vmatprep.subr.bf16.mxu0 0
      %1413 = vmatpush1.bf16.msra.mxu0 0
      %1414 = vmatprep.subr.bf16.mxu0 0
      %1415 = vmatpush1.bf16.msra.mxu0 0
      %1416 = vmatprep.subr.bf16.mxu0 0
      %1417 = vmatpush1.bf16.msra.mxu0 0
      %1418 = vmatprep.subr.bf16.mxu0 0
      %1419 = vmatpush1.bf16.msra.mxu0 0
      %1420 = vmatprep.subr.bf16.mxu0 0
      %1421 = vmatpush1.bf16.msra.mxu0 0
      %1422 = vmatprep.subr.bf16.mxu0 0
      %1423 = vmatpush1.bf16.msra.mxu0 0
      %1424 = vmatprep.subr.bf16.mxu0 0
      %1425 = vmatpush1.bf16.msra.mxu0 0
      %1426 = vmatprep.subr.bf16.mxu0 0
      %1427 = vmatpush1.bf16.msra.mxu0 0
      %1428 = vmatprep.subr.bf16.mxu0 0
      %1429 = vmatpush1.bf16.msra.mxu0 0
      %1430 = vmatprep.subr.bf16.mxu0 0
      %1431 = vmatpush1.bf16.msra.mxu0 0
      %1432 = vmatprep.mubr.bf16.mxu0 0
      %1433 = vmatmul.mubr.bf16.gmra.mrb[0].mxu0 %v1398
      %v1434 = vpop.f32.mrb[0].mxu0
      %v1435 = vadd.f32 0.0, %v1434
      %v1436 = vpop.f32.mrb[0].mxu0
      %v1437 = vpop.f32.mrb[0].mxu0
      %v1438 = vadd.f32 0.0, %v1437
      %v1439 = vpop.f32.mrb[0].mxu0
      %1440 = vdwg.mxu0
      %1443 = vrot.lane.b32.xlu0 %v1435, 8
      %v1444 = vpop.permute.xlu0 %1443
      %1445 = vrot.lane.b32.xlu0 %v1438, 8
      %v1446 = vpop.permute.xlu0 %1445
      %v1449 = vsel %vm633, %v1309, %v1444
      %v1450 = vsel %vm633, %v1312, %v1446
      %s1451 = scalar_lea.vmem %s3, 56
      %v1452 = vld [vmem:[%s1451] sm:$0xf]
      %v1453 = vld [vmem:[%s1451 + $0x4] sm:$0xf]
      %v1454 = vpack.c.bf16 %v1450, %v1449
      %s1455 = scalar_lea.vmem %s4, 7
      %v1456 = vld [vmem:[%s1455] sm:$0x1]
      %v1458 = vlaneseq
      %v1459 = vshrl.u32 %v1458, 7
      %v1460 = vsub.s32 0, %v1459
      %v1461 = vrot.slane %v1456, %v1460
      %v1465 = vunpack.c.l.b16 %v1452
      %v1466 = vunpack.c.l.b16 %v1453
      %v1467 = vpack.c.b16 %v1466, %v1465
      %v1470 = vsel %vm470, %v1454, 0
      %1472 = vmatprep.subr.bf16.mxu0 0
      %1473 = vmatpush1.bf16.msra.mxu0 %v1467
      %1474 = vmatprep.subr.bf16.mxu0 0
      %1475 = vmatpush1.bf16.msra.mxu0 0
      %1476 = vmatprep.subr.bf16.mxu0 0
      %1477 = vmatpush1.bf16.msra.mxu0 0
      %1478 = vmatprep.subr.bf16.mxu0 0
      %1479 = vmatpush1.bf16.msra.mxu0 0
      %1480 = vmatprep.subr.bf16.mxu0 0
      %1481 = vmatpush1.bf16.msra.mxu0 0
      %1482 = vmatprep.subr.bf16.mxu0 0
      %1483 = vmatpush1.bf16.msra.mxu0 0
      %1484 = vmatprep.subr.bf16.mxu0 0
      %1485 = vmatpush1.bf16.msra.mxu0 0
      %1486 = vmatprep.subr.bf16.mxu0 0
      %1487 = vmatpush1.bf16.msra.mxu0 0
      %1488 = vmatprep.subr.bf16.mxu0 0
      %1489 = vmatpush1.bf16.msra.mxu0 0
      %1490 = vmatprep.subr.bf16.mxu0 0
      %1491 = vmatpush1.bf16.msra.mxu0 0
      %1492 = vmatprep.subr.bf16.mxu0 0
      %1493 = vmatpush1.bf16.msra.mxu0 0
      %1494 = vmatprep.subr.bf16.mxu0 0
      %1495 = vmatpush1.bf16.msra.mxu0 0
      %1496 = vmatprep.subr.bf16.mxu0 0
      %1497 = vmatpush1.bf16.msra.mxu0 0
      %1498 = vmatprep.subr.bf16.mxu0 0
      %1499 = vmatpush1.bf16.msra.mxu0 0
      %1500 = vmatprep.subr.bf16.mxu0 0
      %1501 = vmatpush1.bf16.msra.mxu0 0
      %1502 = vmatprep.subr.bf16.mxu0 0
      %1503 = vmatpush1.bf16.msra.mxu0 0
      %1504 = vmatprep.mubr.bf16.mxu0 0
      %1505 = vmatmul.mubr.bf16.gmra.mrb[0].mxu0 %v1470
      %v1506 = vpop.f32.mrb[0].mxu0
      %v1507 = vadd.f32 %v1461, %v1506
      %v1508 = vpop.f32.mrb[0].mxu0
      %v1509 = vpop.f32.mrb[0].mxu0
      %v1510 = vadd.f32 %v1461, %v1509
      %v1511 = vpop.f32.mrb[0].mxu0
      %1512 = vdwg.mxu0
      %v1513 = vadd.f32 %v1006, %v1507
      %v1514 = vadd.f32 %v1007, %v1510
      %s1515 = scalar_lea.vmem %s5, 1
      %v1516 = vld [vmem:[%s1515] sm:$0x1]
      %s1517 = scalar_lea.vmem %s6, 1
      %v1518 = vld [vmem:[%s1517] sm:$0x1]
      %v1519 = vsel %vm470, %v1513, 0.0
      %1520 = vadd.xlane.f32.xlu0 %v1519
      %v1521 = vpop.xlane.xlu0 %1520
      %v1522 = vsel %vm967, %v1514, 0.0
      %1523 = vadd.xlane.f32.xlu0 %v1522
      %v1524 = vpop.xlane.xlu0 %1523
      %v1525 = vmul.f32 %v1521, %v971
      %v1526 = vmul.f32 %v1524, %v971
      %v1527 = vsub.f32 %v1513, %v1525
      %v1528 = vsub.f32 %v1514, %v1526
      %v1529 = vmul.f32 %v1527, %v1527
      %v1530 = vmul.f32 %v1528, %v1528
      %v1531 = vsel %vm470, %v1529, 0.0
      %1532 = vadd.xlane.f32.xlu0 %v1531
      %v1533 = vpop.xlane.xlu0 %1532
      %v1534 = vsel %vm967, %v1530, 0.0
      %1535 = vadd.xlane.f32.xlu0 %v1534
      %v1536 = vpop.xlane.xlu0 %1535
      %v1537 = vmul.f32 %v1533, %v971
      %v1538 = vmul.f32 %v1536, %v971
      %v1539 = vadd.f32 %v1537, 1e-05
      %v1540 = vadd.f32 %v1538, 1e-05
      %v1541 = vrsqrt.pop %v1539
      %v1542 = vrsqrt.pop %v1540
      %v1543 = vmul.f32 %v1527, %v1541
      %v1544 = vmul.f32 %v1528, %v1542
      %v1546 = vlaneseq
      %v1547 = vshrl.u32 %v1546, 7
      %v1548 = vsub.s32 0, %v1547
      %v1549 = vrot.slane %v1516, %v1548
      %v1551 = vmul.f32 %v1543, %v1549
      %v1552 = vmul.f32 %v1544, %v1549
      %v1554 = vlaneseq
      %v1555 = vshrl.u32 %v1554, 7
      %v1556 = vsub.s32 0, %v1555
      %v1557 = vrot.slane %v1518, %v1556
      %v1559 = vadd.f32 %v1551, %v1557
      %v1560 = vadd.f32 %v1552, %v1557
      %v1561 = vld [vmem:[%s7] sm:$0xf]
      %v1562 = vld [vmem:[%s7 + $0x4] sm:$0xf]
      %v1563 = vpack.c.bf16 %v1560, %v1559
      %v1564 = vld [vmem:[%s8] sm:$0x1]
      %v1566 = vlaneseq
      %v1567 = vshrl.u32 %v1566, 7
      %v1568 = vsub.s32 0, %v1567
      %v1569 = vrot.slane %v1564, %v1568
      %v1573 = vunpack.c.l.b16 %v1561
      %v1574 = vunpack.c.l.b16 %v1562
      %v1575 = vpack.c.b16 %v1574, %v1573
      %v1578 = vsel %vm470, %v1563, 0
      %1580 = vmatprep.subr.bf16.mxu0 0
      %1581 = vmatpush1.bf16.msra.mxu0 %v1575
      %1582 = vmatprep.subr.bf16.mxu0 0
      %1583 = vmatpush1.bf16.msra.mxu0 0
      %1584 = vmatprep.subr.bf16.mxu0 0
      %1585 = vmatpush1.bf16.msra.mxu0 0
      %1586 = vmatprep.subr.bf16.mxu0 0
      %1587 = vmatpush1.bf16.msra.mxu0 0
      %1588 = vmatprep.subr.bf16.mxu0 0
      %1589 = vmatpush1.bf16.msra.mxu0 0
      %1590 = vmatprep.subr.bf16.mxu0 0
      %1591 = vmatpush1.bf16.msra.mxu0 0
      %1592 = vmatprep.subr.bf16.mxu0 0
      %1593 = vmatpush1.bf16.msra.mxu0 0
      %1594 = vmatprep.subr.bf16.mxu0 0
      %1595 = vmatpush1.bf16.msra.mxu0 0
      %1596 = vmatprep.subr.bf16.mxu0 0
      %1597 = vmatpush1.bf16.msra.mxu0 0
      %1598 = vmatprep.subr.bf16.mxu0 0
      %1599 = vmatpush1.bf16.msra.mxu0 0
      %1600 = vmatprep.subr.bf16.mxu0 0
      %1601 = vmatpush1.bf16.msra.mxu0 0
      %1602 = vmatprep.subr.bf16.mxu0 0
      %1603 = vmatpush1.bf16.msra.mxu0 0
      %1604 = vmatprep.subr.bf16.mxu0 0
      %1605 = vmatpush1.bf16.msra.mxu0 0
      %1606 = vmatprep.subr.bf16.mxu0 0
      %1607 = vmatpush1.bf16.msra.mxu0 0
      %1608 = vmatprep.subr.bf16.mxu0 0
      %1609 = vmatpush1.bf16.msra.mxu0 0
      %1610 = vmatprep.subr.bf16.mxu0 0
      %1611 = vmatpush1.bf16.msra.mxu0 0
      %1612 = vmatprep.mubr.bf16.mxu0 0
      %1613 = vmatmul.mubr.bf16.gmra.mrb[0].mxu0 %v1578
      %v1614 = vpop.f32.mrb[0].mxu0
      %v1615 = vadd.f32 %v1569, %v1614
      %v1616 = vpop.f32.mrb[0].mxu0
      %v1617 = vpop.f32.mrb[0].mxu0
      %v1618 = vadd.f32 %v1569, %v1617
      %v1619 = vpop.f32.mrb[0].mxu0
      %1620 = vdwg.mxu0
      %v1621 = vmul.f32 %v1615, %v1615
      %v1622 = vmul.f32 %v1618, %v1618
      %v1623 = vmul.f32 %v1615, %v1621
      %v1624 = vmul.f32 %v1618, %v1622
      %v1625 = vmul.f32 %v1623, 0.044715
      %v1626 = vmul.f32 %v1624, 0.044715
      %v1627 = vadd.f32 %v1615, %v1625
      %v1628 = vadd.f32 %v1618, %v1626
      %v1629 = vmul.f32 %v1627, 0.7978846
      %v1630 = vmul.f32 %v1628, 0.7978846
      %v1631 = vtanh.pop %v1629
      %v1632 = vtanh.pop %v1630
      %v1633 = vadd.f32 %v1631, 1.0
      %v1634 = vadd.f32 %v1632, 1.0
      %v1635 = vmul.f32 %v1633, 0.5
      %v1636 = vmul.f32 %v1634, 0.5
      %v1637 = vmul.f32 %v1615, %v1635
      %v1638 = vmul.f32 %v1618, %v1636
      %v1639 = vld [vmem:[%s9] sm:$0xf]
      %v1640 = vld [vmem:[%s9 + $0x4] sm:$0xf]
      %v1641 = vld [vmem:[%s9 + $0x8] sm:$0xf]
      %v1642 = vld [vmem:[%s9 + $0xc] sm:$0xf]
      %v1643 = vpack.c.bf16 %v1638, %v1637
      %v1644 = vld [vmem:[%s10] sm:$0x1]
      %v1646 = vlaneseq
      %v1647 = vshrl.u32 %v1646, 7
      %v1648 = vsub.s32 0, %v1647
      %v1649 = vrot.slane %v1644, %v1648
      %v1655 = vunpack.c.l.b16 %v1639
      %v1656 = vunpack.c.l.b16 %v1640
      %v1657 = vunpack.c.l.b16 %v1641
      %v1658 = vunpack.c.l.b16 %v1642
      %v1659 = vpack.c.b16 %v1656, %v1655
      %v1660 = vpack.c.b16 %v1658, %v1657
      %vm1663 = vcmask 261120
      %v1665 = vsel %vm1663, %v1643, 0
      %1667 = vmatprep.subr.bf16.mxu0 0
      %1668 = vmatpush1.bf16.msra.mxu0 %v1659
      %1669 = vmatprep.subr.bf16.mxu0 0
      %1670 = vmatpush1.bf16.msra.mxu0 %v1660
      %1671 = vmatprep.subr.bf16.mxu0 0
      %1672 = vmatpush1.bf16.msra.mxu0 0
      %1673 = vmatprep.subr.bf16.mxu0 0
      %1674 = vmatpush1.bf16.msra.mxu0 0
      %1675 = vmatprep.subr.bf16.mxu0 0
      %1676 = vmatpush1.bf16.msra.mxu0 0
      %1677 = vmatprep.subr.bf16.mxu0 0
      %1678 = vmatpush1.bf16.msra.mxu0 0
      %1679 = vmatprep.subr.bf16.mxu0 0
      %1680 = vmatpush1.bf16.msra.mxu0 0
      %1681 = vmatprep.subr.bf16.mxu0 0
      %1682 = vmatpush1.bf16.msra.mxu0 0
      %1683 = vmatprep.subr.bf16.mxu0 0
      %1684 = vmatpush1.bf16.msra.mxu0 0
      %1685 = vmatprep.subr.bf16.mxu0 0
      %1686 = vmatpush1.bf16.msra.mxu0 0
      %1687 = vmatprep.subr.bf16.mxu0 0
      %1688 = vmatpush1.bf16.msra.mxu0 0
      %1689 = vmatprep.subr.bf16.mxu0 0
      %1690 = vmatpush1.bf16.msra.mxu0 0
      %1691 = vmatprep.subr.bf16.mxu0 0
      %1692 = vmatpush1.bf16.msra.mxu0 0
      %1693 = vmatprep.subr.bf16.mxu0 0
      %1694 = vmatpush1.bf16.msra.mxu0 0
      %1695 = vmatprep.subr.bf16.mxu0 0
      %1696 = vmatpush1.bf16.msra.mxu0 0
      %1697 = vmatprep.subr.bf16.mxu0 0
      %1698 = vmatpush1.bf16.msra.mxu0 0
      %1699 = vmatprep.mubr.bf16.mxu0 0
      %1700 = vmatmul.mubr.bf16.gmra.mrb[0].mxu0 %v1665
      %v1701 = vpop.f32.mrb[0].mxu0
      %v1702 = vadd.f32 %v1649, %v1701
      %v1703 = vpop.f32.mrb[0].mxu0
      %v1704 = vpop.f32.mrb[0].mxu0
      %v1705 = vadd.f32 %v1649, %v1704
      %v1706 = vpop.f32.mrb[0].mxu0
      %1707 = vdwg.mxu0
      %v1708 = vadd.f32 %v1559, %v1702
      %v1709 = vadd.f32 %v1560, %v1705
      %s1710 = scalar_lea.vmem %s5, 2
      %v1711 = vld [vmem:[%s1710] sm:$0x1]
      %s1712 = scalar_lea.vmem %s6, 2
      %v1713 = vld [vmem:[%s1712] sm:$0x1]
      %v1714 = vsel %vm470, %v1708, 0.0
      %1715 = vadd.xlane.f32.xlu0 %v1714
      %v1716 = vpop.xlane.xlu0 %1715
      %v1717 = vsel %vm967, %v1709, 0.0
      %1718 = vadd.xlane.f32.xlu0 %v1717
      %v1719 = vpop.xlane.xlu0 %1718
      %v1720 = vmul.f32 %v1716, %v971
      %v1721 = vmul.f32 %v1719, %v971
      %v1722 = vsub.f32 %v1708, %v1720
      %v1723 = vsub.f32 %v1709, %v1721
      %v1724 = vmul.f32 %v1722, %v1722
      %v1725 = vmul.f32 %v1723, %v1723
      %v1726 = vsel %vm470, %v1724, 0.0
      %1727 = vadd.xlane.f32.xlu0 %v1726
      %v1728 = vpop.xlane.xlu0 %1727
      %v1729 = vsel %vm967, %v1725, 0.0
      %1730 = vadd.xlane.f32.xlu0 %v1729
      %v1731 = vpop.xlane.xlu0 %1730
      %v1732 = vmul.f32 %v1728, %v971
      %v1733 = vmul.f32 %v1731, %v971
      %v1734 = vadd.f32 %v1732, 1e-05
      %v1735 = vadd.f32 %v1733, 1e-05
      %v1736 = vrsqrt.pop %v1734
      %v1737 = vrsqrt.pop %v1735
      %v1738 = vmul.f32 %v1722, %v1736
      %v1739 = vmul.f32 %v1723, %v1737
      %v1741 = vlaneseq
      %v1742 = vshrl.u32 %v1741, 7
      %v1743 = vsub.s32 0, %v1742
      %v1744 = vrot.slane %v1711, %v1743
      %v1746 = vmul.f32 %v1738, %v1744
      %v1747 = vmul.f32 %v1739, %v1744
      %v1749 = vlaneseq
      %v1750 = vshrl.u32 %v1749, 7
      %v1751 = vsub.s32 0, %v1750
      %v1752 = vrot.slane %v1713, %v1751
      %v1754 = vadd.f32 %v1746, %v1752
      %v1755 = vadd.f32 %v1747, %v1752
      %s1756 = scalar_lea.vmem %s3, 64
      %v1757 = vld [vmem:[%s1756] sm:$0xf]
      %v1758 = vld [vmem:[%s1756 + $0x4] sm:$0xf]
      %s1759 = scalar_lea.vmem %s4, 8
      %v1760 = vld [vmem:[%s1759] sm:$0x1]
      %v1762 = vlaneseq
      %v1763 = vshrl.u32 %v1762, 7
      %v1764 = vsub.s32 0, %v1763
      %v1765 = vrot.slane %v1760, %v1764
      %v1769 = vunpack.c.l.b16 %v1757
      %v1770 = vunpack.c.l.b16 %v1758
      %v1771 = vpack.c.b16 %v1770, %v1769
      %1773 = vmatprep.subr.bf16.mxu0 0
      %1774 = vmatpush1.bf16.msra.mxu0 %v1771
      %1775 = vmatprep.subr.bf16.mxu0 0
      %1776 = vmatpush1.bf16.msra.mxu0 0
      %1777 = vmatprep.subr.bf16.mxu0 0
      %1778 = vmatpush1.bf16.msra.mxu0 0
      %1779 = vmatprep.subr.bf16.mxu0 0
      %1780 = vmatpush1.bf16.msra.mxu0 0
      %1781 = vmatprep.subr.bf16.mxu0 0
      %1782 = vmatpush1.bf16.msra.mxu0 0
      %1783 = vmatprep.subr.bf16.mxu0 0
      %1784 = vmatpush1.bf16.msra.mxu0 0
      %1785 = vmatprep.subr.bf16.mxu0 0
      %1786 = vmatpush1.bf16.msra.mxu0 0
      %1787 = vmatprep.subr.bf16.mxu0 0
      %1788 = vmatpush1.bf16.msra.mxu0 0
      %1789 = vmatprep.subr.bf16.mxu0 0
      %1790 = vmatpush1.bf16.msra.mxu0 0
      %1791 = vmatprep.subr.bf16.mxu0 0
      %1792 = vmatpush1.bf16.msra.mxu0 0
      %1793 = vmatprep.subr.bf16.mxu0 0
      %1794 = vmatpush1.bf16.msra.mxu0 0
      %1795 = vmatprep.subr.bf16.mxu0 0
      %1796 = vmatpush1.bf16.msra.mxu0 0
      %1797 = vmatprep.subr.bf16.mxu0 0
      %1798 = vmatpush1.bf16.msra.mxu0 0
      %1799 = vmatprep.subr.bf16.mxu0 0
      %1800 = vmatpush1.bf16.msra.mxu0 0
      %1801 = vmatprep.subr.bf16.mxu0 0
      %1802 = vmatpush1.bf16.msra.mxu0 0
      %1803 = vmatprep.subr.bf16.mxu0 0
      %1804 = vmatpush1.bf16.msra.mxu0 0
      %1805 = vmatprep.mubr.bf16.mxu0 0
      %1806 = vmatmul.mubr.bf16.gmra.mrb[0].mxu0 %v1091
      %v1807 = vpop.f32.mrb[0].mxu0
      %v1808 = vadd.f32 %v1765, %v1807
      %v1809 = vpop.f32.mrb[0].mxu0
      %v1810 = vpop.f32.mrb[0].mxu0
      %v1811 = vadd.f32 %v1765, %v1810
      %v1812 = vpop.f32.mrb[0].mxu0
      %1813 = vdwg.mxu0
      %s1814 = scalar_lea.vmem %s3, 72
      %v1815 = vld [vmem:[%s1814] sm:$0xf]
      %v1816 = vld [vmem:[%s1814 + $0x4] sm:$0xf]
      %v1817 = vpack.c.bf16 %v1755, %v1754
      %s1818 = scalar_lea.vmem %s4, 9
      %v1819 = vld [vmem:[%s1818] sm:$0x1]
      %v1821 = vlaneseq
      %v1822 = vshrl.u32 %v1821, 7
      %v1823 = vsub.s32 0, %v1822
      %v1824 = vrot.slane %v1819, %v1823
      %v1828 = vunpack.c.l.b16 %v1815
      %v1829 = vunpack.c.l.b16 %v1816
      %v1830 = vpack.c.b16 %v1829, %v1828
      %v1833 = vsel %vm470, %v1817, 0
      %1835 = vmatprep.subr.bf16.mxu0 0
      %1836 = vmatpush1.bf16.msra.mxu0 %v1830
      %1837 = vmatprep.subr.bf16.mxu0 0
      %1838 = vmatpush1.bf16.msra.mxu0 0
      %1839 = vmatprep.subr.bf16.mxu0 0
      %1840 = vmatpush1.bf16.msra.mxu0 0
      %1841 = vmatprep.subr.bf16.mxu0 0
      %1842 = vmatpush1.bf16.msra.mxu0 0
      %1843 = vmatprep.subr.bf16.mxu0 0
      %1844 = vmatpush1.bf16.msra.mxu0 0
      %1845 = vmatprep.subr.bf16.mxu0 0
      %1846 = vmatpush1.bf16.msra.mxu0 0
      %1847 = vmatprep.subr.bf16.mxu0 0
      %1848 = vmatpush1.bf16.msra.mxu0 0
      %1849 = vmatprep.subr.bf16.mxu0 0
      %1850 = vmatpush1.bf16.msra.mxu0 0
      %1851 = vmatprep.subr.bf16.mxu0 0
      %1852 = vmatpush1.bf16.msra.mxu0 0
      %1853 = vmatprep.subr.bf16.mxu0 0
      %1854 = vmatpush1.bf16.msra.mxu0 0
      %1855 = vmatprep.subr.bf16.mxu0 0
      %1856 = vmatpush1.bf16.msra.mxu0 0
      %1857 = vmatprep.subr.bf16.mxu0 0
      %1858 = vmatpush1.bf16.msra.mxu0 0
      %1859 = vmatprep.subr.bf16.mxu0 0
      %1860 = vmatpush1.bf16.msra.mxu0 0
      %1861 = vmatprep.subr.bf16.mxu0 0
      %1862 = vmatpush1.bf16.msra.mxu0 0
      %1863 = vmatprep.subr.bf16.mxu0 0
      %1864 = vmatpush1.bf16.msra.mxu0 0
      %1865 = vmatprep.subr.bf16.mxu0 0
      %1866 = vmatpush1.bf16.msra.mxu0 0
      %1867 = vmatprep.mubr.bf16.mxu0 0
      %1868 = vmatmul.mubr.bf16.gmra.mrb[0].mxu0 %v1833
      %v1869 = vpop.f32.mrb[0].mxu0
      %v1870 = vadd.f32 %v1824, %v1869
      %v1871 = vpop.f32.mrb[0].mxu0
      %v1872 = vpop.f32.mrb[0].mxu0
      %v1873 = vadd.f32 %v1824, %v1872
      %v1874 = vpop.f32.mrb[0].mxu0
      %1875 = vdwg.mxu0
      %s1876 = scalar_lea.vmem %s3, 80
      %v1877 = vld [vmem:[%s1876] sm:$0xf]
      %v1878 = vld [vmem:[%s1876 + $0x4] sm:$0xf]
      %s1879 = scalar_lea.vmem %s4, 10
      %v1880 = vld [vmem:[%s1879] sm:$0x1]
      %v1882 = vlaneseq
      %v1883 = vshrl.u32 %v1882, 7
      %v1884 = vsub.s32 0, %v1883
      %v1885 = vrot.slane %v1880, %v1884
      %v1889 = vunpack.c.l.b16 %v1877
      %v1890 = vunpack.c.l.b16 %v1878
      %v1891 = vpack.c.b16 %v1890, %v1889
      %1893 = vmatprep.subr.bf16.mxu0 0
      %1894 = vmatpush1.bf16.msra.mxu0 %v1891
      %1895 = vmatprep.subr.bf16.mxu0 0
      %1896 = vmatpush1.bf16.msra.mxu0 0
      %1897 = vmatprep.subr.bf16.mxu0 0
      %1898 = vmatpush1.bf16.msra.mxu0 0
      %1899 = vmatprep.subr.bf16.mxu0 0
      %1900 = vmatpush1.bf16.msra.mxu0 0
      %1901 = vmatprep.subr.bf16.mxu0 0
      %1902 = vmatpush1.bf16.msra.mxu0 0
      %1903 = vmatprep.subr.bf16.mxu0 0
      %1904 = vmatpush1.bf16.msra.mxu0 0
      %1905 = vmatprep.subr.bf16.mxu0 0
      %1906 = vmatpush1.bf16.msra.mxu0 0
      %1907 = vmatprep.subr.bf16.mxu0 0
      %1908 = vmatpush1.bf16.msra.mxu0 0
      %1909 = vmatprep.subr.bf16.mxu0 0
      %1910 = vmatpush1.bf16.msra.mxu0 0
      %1911 = vmatprep.subr.bf16.mxu0 0
      %1912 = vmatpush1.bf16.msra.mxu0 0
      %1913 = vmatprep.subr.bf16.mxu0 0
      %1914 = vmatpush1.bf16.msra.mxu0 0
      %1915 = vmatprep.subr.bf16.mxu0 0
      %1916 = vmatpush1.bf16.msra.mxu0 0
      %1917 = vmatprep.subr.bf16.mxu0 0
      %1918 = vmatpush1.bf16.msra.mxu0 0
      %1919 = vmatprep.subr.bf16.mxu0 0
      %1920 = vmatpush1.bf16.msra.mxu0 0
      %1921 = vmatprep.subr.bf16.mxu0 0
      %1922 = vmatpush1.bf16.msra.mxu0 0
      %1923 = vmatprep.subr.bf16.mxu0 0
      %1924 = vmatpush1.bf16.msra.mxu0 0
      %1925 = vmatprep.mubr.bf16.mxu0 0
      %1926 = vmatmul.mubr.bf16.gmra.mrb[0].mxu0 %v1833
      %v1927 = vpop.f32.mrb[0].mxu0
      %v1928 = vadd.f32 %v1885, %v1927
      %v1929 = vpop.f32.mrb[0].mxu0
      %v1930 = vpop.f32.mrb[0].mxu0
      %v1931 = vadd.f32 %v1885, %v1930
      %v1932 = vpop.f32.mrb[0].mxu0
      %1933 = vdwg.mxu0
      %v1934 = vpack.c.bf16 %v1811, %v1808
      %v1935 = vpack.c.bf16 %v1873, %v1870
      %v1937 = vsel %vm633, %v1934, 0
      %v1940 = vsel %vm633, %v1935, 0
      %1942 = vmatprep.subr.bf16.mxu0 0
      %1943 = vmatpush1.bf16.xpose.msra.mxu0 %v1940
      %1944 = vmatprep.subr.bf16.mxu0 0
      %1945 = vmatpush1.bf16.xpose.msra.mxu0 0
      %1946 = vmatprep.subr.bf16.mxu0 0
      %1947 = vmatpush1.bf16.xpose.msra.mxu0 0
      %1948 = vmatprep.subr.bf16.mxu0 0
      %1949 = vmatpush1.bf16.xpose.msra.mxu0 0
      %1950 = vmatprep.subr.bf16.mxu0 0
      %1951 = vmatpush1.bf16.xpose.msra.mxu0 0
      %1952 = vmatprep.subr.bf16.mxu0 0
      %1953 = vmatpush1.bf16.xpose.msra.mxu0 0
      %1954 = vmatprep.subr.bf16.mxu0 0
      %1955 = vmatpush1.bf16.xpose.msra.mxu0 0
      %1956 = vmatprep.subr.bf16.mxu0 0
      %1957 = vmatpush1.bf16.xpose.msra.mxu0 0
      %1958 = vmatprep.subr.bf16.mxu0 0
      %1959 = vmatpush1.bf16.xpose.msra.mxu0 0
      %1960 = vmatprep.subr.bf16.mxu0 0
      %1961 = vmatpush1.bf16.xpose.msra.mxu0 0
      %1962 = vmatprep.subr.bf16.mxu0 0
      %1963 = vmatpush1.bf16.xpose.msra.mxu0 0
      %1964 = vmatprep.subr.bf16.mxu0 0
      %1965 = vmatpush1.bf16.xpose.msra.mxu0 0
      %1966 = vmatprep.subr.bf16.mxu0 0
      %1967 = vmatpush1.bf16.xpose.msra.mxu0 0
      %1968 = vmatprep.subr.bf16.mxu0 0
      %1969 = vmatpush1.bf16.xpose.msra.mxu0 0
      %1970 = vmatprep.subr.bf16.mxu0 0
      %1971 = vmatpush1.bf16.xpose.msra.mxu0 0
      %1972 = vmatprep.subr.bf16.mxu0 0
      %1973 = vmatpush1.bf16.xpose.msra.mxu0 0
      %1974 = vmatprep.mubr.bf16.mxu0 0
      %1975 = vmatmul.mubr.bf16.gmra.mrb[0].mxu0 %v1937
      %v1976 = vpop.f32.mrb[0].mxu0
      %v1977 = vadd.f32 0.0, %v1976
      %v1978 = vpop.f32.mrb[0].mxu0
      %v1979 = vpop.f32.mrb[0].mxu0
      %v1980 = vadd.f32 0.0, %v1979
      %v1981 = vpop.f32.mrb[0].mxu0
      %1982 = vdwg.mxu0
      %v1983 = vmul.f32 %v1977, 0.35355338
      %v1984 = vmul.f32 %v1980, 0.35355338
      %v1985 = vsel %vm683, %v1983, -inf
      %1986 = vmax.xlane.f32.xlu0 %v1985
      %v1987 = vpop.xlane.xlu0 %1986
      %v1988 = vsel %vm683, %v1984, -inf
      %1989 = vmax.xlane.f32.xlu0 %v1988
      %v1990 = vpop.xlane.xlu0 %1989
      %v1991 = vsub.f32 %v1983, %v1987
      %v1992 = vsub.f32 %v1984, %v1990
      %v1993 = vmul.f32 %v1991, 1.442695
      %v1994 = vpow.pop %v1993
      %v1995 = vmul.f32 %v1992, 1.442695
      %v1996 = vpow.pop %v1995
      %v1997 = vsel %vm683, %v1994, 0.0
      %1998 = vadd.xlane.f32.xlu0 %v1997
      %v1999 = vpop.xlane.xlu0 %1998
      %v2000 = vsel %vm683, %v1996, 0.0
      %2001 = vadd.xlane.f32.xlu0 %v2000
      %v2002 = vpop.xlane.xlu0 %2001
      %v2003 = vrcp.pop %v1999
      %v2004 = vrcp.pop %v2002
      %v2005 = vmul.f32 %v1994, %v2003
      %v2006 = vmul.f32 %v1996, %v2004
      %v2007 = vpack.c.bf16 %v2006, %v2005
      %v2008 = vpack.c.bf16 %v1931, %v1928
      %v2010 = vsel %vm683, %v2007, 0
      %v2013 = vand.u32 %v2008, %v715
      %2015 = vmatprep.subr.bf16.mxu0 0
      %2016 = vmatpush1.bf16.msra.mxu0 %v2013
      %2017 = vmatprep.subr.bf16.mxu0 0
      %2018 = vmatpush1.bf16.msra.mxu0 0
      %2019 = vmatprep.subr.bf16.mxu0 0
      %2020 = vmatpush1.bf16.msra.mxu0 0
      %2021 = vmatprep.subr.bf16.mxu0 0
      %2022 = vmatpush1.bf16.msra.mxu0 0
      %2023 = vmatprep.subr.bf16.mxu0 0
      %2024 = vmatpush1.bf16.msra.mxu0 0
      %2025 = vmatprep.subr.bf16.mxu0 0
      %2026 = vmatpush1.bf16.msra.mxu0 0
      %2027 = vmatprep.subr.bf16.mxu0 0
      %2028 = vmatpush1.bf16.msra.mxu0 0
      %2029 = vmatprep.subr.bf16.mxu0 0
      %2030 = vmatpush1.bf16.msra.mxu0 0
      %2031 = vmatprep.subr.bf16.mxu0 0
      %2032 = vmatpush1.bf16.msra.mxu0 0
      %2033 = vmatprep.subr.bf16.mxu0 0
      %2034 = vmatpush1.bf16.msra.mxu0 0
      %2035 = vmatprep.subr.bf16.mxu0 0
      %2036 = vmatpush1.bf16.msra.mxu0 0
      %2037 = vmatprep.subr.bf16.mxu0 0
      %2038 = vmatpush1.bf16.msra.mxu0 0
      %2039 = vmatprep.subr.bf16.mxu0 0
      %2040 = vmatpush1.bf16.msra.mxu0 0
      %2041 = vmatprep.subr.bf16.mxu0 0
      %2042 = vmatpush1.bf16.msra.mxu0 0
      %2043 = vmatprep.subr.bf16.mxu0 0
      %2044 = vmatpush1.bf16.msra.mxu0 0
      %2045 = vmatprep.subr.bf16.mxu0 0
      %2046 = vmatpush1.bf16.msra.mxu0 0
      %2047 = vmatprep.mubr.bf16.mxu0 0
      %2048 = vmatmul.mubr.bf16.gmra.mrb[0].mxu0 %v2010
      %v2049 = vpop.f32.mrb[0].mxu0
      %v2050 = vadd.f32 0.0, %v2049
      %v2051 = vpop.f32.mrb[0].mxu0
      %v2052 = vpop.f32.mrb[0].mxu0
      %v2053 = vadd.f32 0.0, %v2052
      %v2054 = vpop.f32.mrb[0].mxu0
      %2055 = vdwg.mxu0
      %2057 = vrot.lane.b32.xlu0 %v1934, 120
      %v2058 = vpop.permute.xlu0 %2057
      %2060 = vrot.lane.b32.xlu0 %v1935, 120
      %v2061 = vpop.permute.xlu0 %2060
      %v2063 = vsel %vm633, %v2058, 0
      %v2066 = vsel %vm633, %v2061, 0
      %2068 = vmatprep.subr.bf16.mxu0 0
      %2069 = vmatpush1.bf16.xpose.msra.mxu0 %v2066
      %2070 = vmatprep.subr.bf16.mxu0 0
      %2071 = vmatpush1.bf16.xpose.msra.mxu0 0
      %2072 = vmatprep.subr.bf16.mxu0 0
      %2073 = vmatpush1.bf16.xpose.msra.mxu0 0
      %2074 = vmatprep.subr.bf16.mxu0 0
      %2075 = vmatpush1.bf16.xpose.msra.mxu0 0
      %2076 = vmatprep.subr.bf16.mxu0 0
      %2077 = vmatpush1.bf16.xpose.msra.mxu0 0
      %2078 = vmatprep.subr.bf16.mxu0 0
      %2079 = vmatpush1.bf16.xpose.msra.mxu0 0
      %2080 = vmatprep.subr.bf16.mxu0 0
      %2081 = vmatpush1.bf16.xpose.msra.mxu0 0
      %2082 = vmatprep.subr.bf16.mxu0 0
      %2083 = vmatpush1.bf16.xpose.msra.mxu0 0
      %2084 = vmatprep.subr.bf16.mxu0 0
      %2085 = vmatpush1.bf16.xpose.msra.mxu0 0
      %2086 = vmatprep.subr.bf16.mxu0 0
      %2087 = vmatpush1.bf16.xpose.msra.mxu0 0
      %2088 = vmatprep.subr.bf16.mxu0 0
      %2089 = vmatpush1.bf16.xpose.msra.mxu0 0
      %2090 = vmatprep.subr.bf16.mxu0 0
      %2091 = vmatpush1.bf16.xpose.msra.mxu0 0
      %2092 = vmatprep.subr.bf16.mxu0 0
      %2093 = vmatpush1.bf16.xpose.msra.mxu0 0
      %2094 = vmatprep.subr.bf16.mxu0 0
      %2095 = vmatpush1.bf16.xpose.msra.mxu0 0
      %2096 = vmatprep.subr.bf16.mxu0 0
      %2097 = vmatpush1.bf16.xpose.msra.mxu0 0
      %2098 = vmatprep.subr.bf16.mxu0 0
      %2099 = vmatpush1.bf16.xpose.msra.mxu0 0
      %2100 = vmatprep.mubr.bf16.mxu0 0
      %2101 = vmatmul.mubr.bf16.gmra.mrb[0].mxu0 %v2063
      %v2102 = vpop.f32.mrb[0].mxu0
      %v2103 = vadd.f32 0.0, %v2102
      %v2104 = vpop.f32.mrb[0].mxu0
      %v2105 = vpop.f32.mrb[0].mxu0
      %v2106 = vadd.f32 0.0, %v2105
      %v2107 = vpop.f32.mrb[0].mxu0
      %2108 = vdwg.mxu0
      %v2109 = vmul.f32 %v2103, 0.35355338
      %v2110 = vmul.f32 %v2106, 0.35355338
      %v2111 = vsel %vm683, %v2109, -inf
      %2112 = vmax.xlane.f32.xlu0 %v2111
      %v2113 = vpop.xlane.xlu0 %2112
      %v2114 = vsel %vm683, %v2110, -inf
      %2115 = vmax.xlane.f32.xlu0 %v2114
      %v2116 = vpop.xlane.xlu0 %2115
      %v2117 = vsub.f32 %v2109, %v2113
      %v2118 = vsub.f32 %v2110, %v2116
      %v2119 = vmul.f32 %v2117, 1.442695
      %v2120 = vpow.pop %v2119
      %v2121 = vmul.f32 %v2118, 1.442695
      %v2122 = vpow.pop %v2121
      %v2123 = vsel %vm683, %v2120, 0.0
      %2124 = vadd.xlane.f32.xlu0 %v2123
      %v2125 = vpop.xlane.xlu0 %2124
      %v2126 = vsel %vm683, %v2122, 0.0
      %2127 = vadd.xlane.f32.xlu0 %v2126
      %v2128 = vpop.xlane.xlu0 %2127
      %v2129 = vrcp.pop %v2125
      %v2130 = vrcp.pop %v2128
      %v2131 = vmul.f32 %v2120, %v2129
      %v2132 = vmul.f32 %v2122, %v2130
      %v2133 = vpack.c.bf16 %v2132, %v2131
      %2135 = vrot.lane.b32.xlu0 %v2008, 120
      %v2136 = vpop.permute.xlu0 %2135
      %v2138 = vsel %vm683, %v2133, 0
      %v2141 = vand.u32 %v2136, %v715
      %2143 = vmatprep.subr.bf16.mxu0 0
      %2144 = vmatpush1.bf16.msra.mxu0 %v2141
      %2145 = vmatprep.subr.bf16.mxu0 0
      %2146 = vmatpush1.bf16.msra.mxu0 0
      %2147 = vmatprep.subr.bf16.mxu0 0
      %2148 = vmatpush1.bf16.msra.mxu0 0
      %2149 = vmatprep.subr.bf16.mxu0 0
      %2150 = vmatpush1.bf16.msra.mxu0 0
      %2151 = vmatprep.subr.bf16.mxu0 0
      %2152 = vmatpush1.bf16.msra.mxu0 0
      %2153 = vmatprep.subr.bf16.mxu0 0
      %2154 = vmatpush1.bf16.msra.mxu0 0
      %2155 = vmatprep.subr.bf16.mxu0 0
      %2156 = vmatpush1.bf16.msra.mxu0 0
      %2157 = vmatprep.subr.bf16.mxu0 0
      %2158 = vmatpush1.bf16.msra.mxu0 0
      %2159 = vmatprep.subr.bf16.mxu0 0
      %2160 = vmatpush1.bf16.msra.mxu0 0
      %2161 = vmatprep.subr.bf16.mxu0 0
      %2162 = vmatpush1.bf16.msra.mxu0 0
      %2163 = vmatprep.subr.bf16.mxu0 0
      %2164 = vmatpush1.bf16.msra.mxu0 0
      %2165 = vmatprep.subr.bf16.mxu0 0
      %2166 = vmatpush1.bf16.msra.mxu0 0
      %2167 = vmatprep.subr.bf16.mxu0 0
      %2168 = vmatpush1.bf16.msra.mxu0 0
      %2169 = vmatprep.subr.bf16.mxu0 0
      %2170 = vmatpush1.bf16.msra.mxu0 0
      %2171 = vmatprep.subr.bf16.mxu0 0
      %2172 = vmatpush1.bf16.msra.mxu0 0
      %2173 = vmatprep.subr.bf16.mxu0 0
      %2174 = vmatpush1.bf16.msra.mxu0 0
      %2175 = vmatprep.mubr.bf16.mxu0 0
      %2176 = vmatmul.mubr.bf16.gmra.mrb[0].mxu0 %v2138
      %v2177 = vpop.f32.mrb[0].mxu0
      %v2178 = vadd.f32 0.0, %v2177
      %v2179 = vpop.f32.mrb[0].mxu0
      %v2180 = vpop.f32.mrb[0].mxu0
      %v2181 = vadd.f32 0.0, %v2180
      %v2182 = vpop.f32.mrb[0].mxu0
      %2183 = vdwg.mxu0
      %2186 = vrot.lane.b32.xlu0 %v2178, 8
      %v2187 = vpop.permute.xlu0 %2186
      %2188 = vrot.lane.b32.xlu0 %v2181, 8
      %v2189 = vpop.permute.xlu0 %2188
      %v2192 = vsel %vm633, %v2050, %v2187
      %v2193 = vsel %vm633, %v2053, %v2189
      %s2194 = scalar_lea.vmem %s3, 88
      %v2195 = vld [vmem:[%s2194] sm:$0xf]
      %v2196 = vld [vmem:[%s2194 + $0x4] sm:$0xf]
      %v2197 = vpack.c.bf16 %v2193, %v2192
      %s2198 = scalar_lea.vmem %s4, 11
      %v2199 = vld [vmem:[%s2198] sm:$0x1]
      %v2201 = vlaneseq
      %v2202 = vshrl.u32 %v2201, 7
      %v2203 = vsub.s32 0, %v2202
      %v2204 = vrot.slane %v2199, %v2203
      %v2208 = vunpack.c.l.b16 %v2195
      %v2209 = vunpack.c.l.b16 %v2196
      %v2210 = vpack.c.b16 %v2209, %v2208
      %v2213 = vsel %vm470, %v2197, 0
      %2215 = vmatprep.subr.bf16.mxu0 0
      %2216 = vmatpush1.bf16.msra.mxu0 %v2210
      %2217 = vmatprep.subr.bf16.mxu0 0
      %2218 = vmatpush1.bf16.msra.mxu0 0
      %2219 = vmatprep.subr.bf16.mxu0 0
      %2220 = vmatpush1.bf16.msra.mxu0 0
      %2221 = vmatprep.subr.bf16.mxu0 0
      %2222 = vmatpush1.bf16.msra.mxu0 0
      %2223 = vmatprep.subr.bf16.mxu0 0
      %2224 = vmatpush1.bf16.msra.mxu0 0
      %2225 = vmatprep.subr.bf16.mxu0 0
      %2226 = vmatpush1.bf16.msra.mxu0 0
      %2227 = vmatprep.subr.bf16.mxu0 0
      %2228 = vmatpush1.bf16.msra.mxu0 0
      %2229 = vmatprep.subr.bf16.mxu0 0
      %2230 = vmatpush1.bf16.msra.mxu0 0
      %2231 = vmatprep.subr.bf16.mxu0 0
      %2232 = vmatpush1.bf16.msra.mxu0 0
      %2233 = vmatprep.subr.bf16.mxu0 0
      %2234 = vmatpush1.bf16.msra.mxu0 0
      %2235 = vmatprep.subr.bf16.mxu0 0
      %2236 = vmatpush1.bf16.msra.mxu0 0
      %2237 = vmatprep.subr.bf16.mxu0 0
      %2238 = vmatpush1.bf16.msra.mxu0 0
      %2239 = vmatprep.subr.bf16.mxu0 0
      %2240 = vmatpush1.bf16.msra.mxu0 0
      %2241 = vmatprep.subr.bf16.mxu0 0
      %2242 = vmatpush1.bf16.msra.mxu0 0
      %2243 = vmatprep.subr.bf16.mxu0 0
      %2244 = vmatpush1.bf16.msra.mxu0 0
      %2245 = vmatprep.subr.bf16.mxu0 0
      %2246 = vmatpush1.bf16.msra.mxu0 0
      %2247 = vmatprep.mubr.bf16.mxu0 0
      %2248 = vmatmul.mubr.bf16.gmra.mrb[0].mxu0 %v2213
      %v2249 = vpop.f32.mrb[0].mxu0
      %v2250 = vadd.f32 %v2204, %v2249
      %v2251 = vpop.f32.mrb[0].mxu0
      %v2252 = vpop.f32.mrb[0].mxu0
      %v2253 = vadd.f32 %v2204, %v2252
      %v2254 = vpop.f32.mrb[0].mxu0
      %2255 = vdwg.mxu0
      %v2256 = vadd.f32 %v450, %v2250
      %v2257 = vadd.f32 %v451, %v2253
      %s2258 = scalar_lea.vmem %s5, 3
      %v2259 = vld [vmem:[%s2258] sm:$0x1]
      %s2260 = scalar_lea.vmem %s6, 3
      %v2261 = vld [vmem:[%s2260] sm:$0x1]
      %v2262 = vsel %vm470, %v2256, 0.0
      %2263 = vadd.xlane.f32.xlu0 %v2262
      %v2264 = vpop.xlane.xlu0 %2263
      %v2265 = vsel %vm470, %v2257, 0.0
      %2266 = vadd.xlane.f32.xlu0 %v2265
      %v2267 = vpop.xlane.xlu0 %2266
      %v2268 = vmul.f32 %v2264, %v971
      %v2269 = vmul.f32 %v2267, %v971
      %v2270 = vsub.f32 %v2256, %v2268
      %v2271 = vsub.f32 %v2257, %v2269
      %v2272 = vmul.f32 %v2270, %v2270
      %v2273 = vmul.f32 %v2271, %v2271
      %v2274 = vsel %vm470, %v2272, 0.0
      %2275 = vadd.xlane.f32.xlu0 %v2274
      %v2276 = vpop.xlane.xlu0 %2275
      %v2277 = vsel %vm470, %v2273, 0.0
      %2278 = vadd.xlane.f32.xlu0 %v2277
      %v2279 = vpop.xlane.xlu0 %2278
      %v2280 = vmul.f32 %v2276, %v971
      %v2281 = vmul.f32 %v2279, %v971
      %v2282 = vadd.f32 %v2280, 1e-05
      %v2283 = vadd.f32 %v2281, 1e-05
      %v2284 = vrsqrt.pop %v2282
      %v2285 = vrsqrt.pop %v2283
      %v2286 = vmul.f32 %v2270, %v2284
      %v2287 = vmul.f32 %v2271, %v2285
      %v2289 = vlaneseq
      %v2290 = vshrl.u32 %v2289, 7
      %v2291 = vsub.s32 0, %v2290
      %v2292 = vrot.slane %v2259, %v2291
      %v2294 = vmul.f32 %v2286, %v2292
      %v2295 = vmul.f32 %v2287, %v2292
      %v2297 = vlaneseq
      %v2298 = vshrl.u32 %v2297, 7
      %v2299 = vsub.s32 0, %v2298
      %v2300 = vrot.slane %v2261, %v2299
      %v2302 = vadd.f32 %v2294, %v2300
      %v2303 = vadd.f32 %v2295, %v2300
      %v2304 = vadd.f32 %v2302, %v452
      %v2305 = vadd.f32 %v2303, %v453
      %s2306 = scalar_lea.vmem %s3, 96
      %v2307 = vld [vmem:[%s2306] sm:$0xf]
      %v2308 = vld [vmem:[%s2306 + $0x4] sm:$0xf]
      %s2309 = scalar_lea.vmem %s4, 12
      %v2310 = vld [vmem:[%s2309] sm:$0x1]
      %v2312 = vlaneseq
      %v2313 = vshrl.u32 %v2312, 7
      %v2314 = vsub.s32 0, %v2313
      %v2315 = vrot.slane %v2310, %v2314
      %v2319 = vunpack.c.l.b16 %v2307
      %v2320 = vunpack.c.l.b16 %v2308
      %v2321 = vpack.c.b16 %v2320, %v2319
      %2323 = vmatprep.subr.bf16.mxu0 0
      %2324 = vmatpush1.bf16.msra.mxu0 %v2321
      %2325 = vmatprep.subr.bf16.mxu0 0
      %2326 = vmatpush1.bf16.msra.mxu0 0
      %2327 = vmatprep.subr.bf16.mxu0 0
      %2328 = vmatpush1.bf16.msra.mxu0 0
      %2329 = vmatprep.subr.bf16.mxu0 0
      %2330 = vmatpush1.bf16.msra.mxu0 0
      %2331 = vmatprep.subr.bf16.mxu0 0
      %2332 = vmatpush1.bf16.msra.mxu0 0
      %2333 = vmatprep.subr.bf16.mxu0 0
      %2334 = vmatpush1.bf16.msra.mxu0 0
      %2335 = vmatprep.subr.bf16.mxu0 0
      %2336 = vmatpush1.bf16.msra.mxu0 0
      %2337 = vmatprep.subr.bf16.mxu0 0
      %2338 = vmatpush1.bf16.msra.mxu0 0
      %2339 = vmatprep.subr.bf16.mxu0 0
      %2340 = vmatpush1.bf16.msra.mxu0 0
      %2341 = vmatprep.subr.bf16.mxu0 0
      %2342 = vmatpush1.bf16.msra.mxu0 0
      %2343 = vmatprep.subr.bf16.mxu0 0
      %2344 = vmatpush1.bf16.msra.mxu0 0
      %2345 = vmatprep.subr.bf16.mxu0 0
      %2346 = vmatpush1.bf16.msra.mxu0 0
      %2347 = vmatprep.subr.bf16.mxu0 0
      %2348 = vmatpush1.bf16.msra.mxu0 0
      %2349 = vmatprep.subr.bf16.mxu0 0
      %2350 = vmatpush1.bf16.msra.mxu0 0
      %2351 = vmatprep.subr.bf16.mxu0 0
      %2352 = vmatpush1.bf16.msra.mxu0 0
      %2353 = vmatprep.subr.bf16.mxu0 0
      %2354 = vmatpush1.bf16.msra.mxu0 0
      %2355 = vmatprep.mubr.bf16.mxu0 0
      %2356 = vmatmul.mubr.bf16.gmra.mrb[0].mxu0 %v1833
      %v2357 = vpop.f32.mrb[0].mxu0
      %v2358 = vadd.f32 %v2315, %v2357
      %v2359 = vpop.f32.mrb[0].mxu0
      %v2360 = vpop.f32.mrb[0].mxu0
      %v2361 = vadd.f32 %v2315, %v2360
      %v2362 = vpop.f32.mrb[0].mxu0
      %2363 = vdwg.mxu0
      %s2364 = scalar_lea.vmem %s3, 104
      %v2365 = vld [vmem:[%s2364] sm:$0xf]
      %v2366 = vld [vmem:[%s2364 + $0x4] sm:$0xf]
      %v2367 = vpack.c.bf16 %v2305, %v2304
      %s2368 = scalar_lea.vmem %s4, 13
      %v2369 = vld [vmem:[%s2368] sm:$0x1]
      %v2371 = vlaneseq
      %v2372 = vshrl.u32 %v2371, 7
      %v2373 = vsub.s32 0, %v2372
      %v2374 = vrot.slane %v2369, %v2373
      %v2378 = vunpack.c.l.b16 %v2365
      %v2379 = vunpack.c.l.b16 %v2366
      %v2380 = vpack.c.b16 %v2379, %v2378
      %v2383 = vsel %vm470, %v2367, 0
      %2385 = vmatprep.subr.bf16.mxu0 0
      %2386 = vmatpush1.bf16.msra.mxu0 %v2380
      %2387 = vmatprep.subr.bf16.mxu0 0
      %2388 = vmatpush1.bf16.msra.mxu0 0
      %2389 = vmatprep.subr.bf16.mxu0 0
      %2390 = vmatpush1.bf16.msra.mxu0 0
      %2391 = vmatprep.subr.bf16.mxu0 0
      %2392 = vmatpush1.bf16.msra.mxu0 0
      %2393 = vmatprep.subr.bf16.mxu0 0
      %2394 = vmatpush1.bf16.msra.mxu0 0
      %2395 = vmatprep.subr.bf16.mxu0 0
      %2396 = vmatpush1.bf16.msra.mxu0 0
      %2397 = vmatprep.subr.bf16.mxu0 0
      %2398 = vmatpush1.bf16.msra.mxu0 0
      %2399 = vmatprep.subr.bf16.mxu0 0
      %2400 = vmatpush1.bf16.msra.mxu0 0
      %2401 = vmatprep.subr.bf16.mxu0 0
      %2402 = vmatpush1.bf16.msra.mxu0 0
      %2403 = vmatprep.subr.bf16.mxu0 0
      %2404 = vmatpush1.bf16.msra.mxu0 0
      %2405 = vmatprep.subr.bf16.mxu0 0
      %2406 = vmatpush1.bf16.msra.mxu0 0
      %2407 = vmatprep.subr.bf16.mxu0 0
      %2408 = vmatpush1.bf16.msra.mxu0 0
      %2409 = vmatprep.subr.bf16.mxu0 0
      %2410 = vmatpush1.bf16.msra.mxu0 0
      %2411 = vmatprep.subr.bf16.mxu0 0
      %2412 = vmatpush1.bf16.msra.mxu0 0
      %2413 = vmatprep.subr.bf16.mxu0 0
      %2414 = vmatpush1.bf16.msra.mxu0 0
      %2415 = vmatprep.subr.bf16.mxu0 0
      %2416 = vmatpush1.bf16.msra.mxu0 0
      %2417 = vmatprep.mubr.bf16.mxu0 0
      %2418 = vmatmul.mubr.bf16.gmra.mrb[0].mxu0 %v2383
      %v2419 = vpop.f32.mrb[0].mxu0
      %v2420 = vadd.f32 %v2374, %v2419
      %v2421 = vpop.f32.mrb[0].mxu0
      %v2422 = vpop.f32.mrb[0].mxu0
      %v2423 = vadd.f32 %v2374, %v2422
      %v2424 = vpop.f32.mrb[0].mxu0
      %2425 = vdwg.mxu0
      %s2426 = scalar_lea.vmem %s3, 112
      %v2427 = vld [vmem:[%s2426] sm:$0xf]
      %v2428 = vld [vmem:[%s2426 + $0x4] sm:$0xf]
      %v2429 = vpack.c.bf16 %v2303, %v2302
      %s2430 = scalar_lea.vmem %s4, 14
      %v2431 = vld [vmem:[%s2430] sm:$0x1]
      %v2433 = vlaneseq
      %v2434 = vshrl.u32 %v2433, 7
      %v2435 = vsub.s32 0, %v2434
      %v2436 = vrot.slane %v2431, %v2435
      %v2440 = vunpack.c.l.b16 %v2427
      %v2441 = vunpack.c.l.b16 %v2428
      %v2442 = vpack.c.b16 %v2441, %v2440
      %v2445 = vsel %vm470, %v2429, 0
      %2447 = vmatprep.subr.bf16.mxu0 0
      %2448 = vmatpush1.bf16.msra.mxu0 %v2442
      %2449 = vmatprep.subr.bf16.mxu0 0
      %2450 = vmatpush1.bf16.msra.mxu0 0
      %2451 = vmatprep.subr.bf16.mxu0 0
      %2452 = vmatpush1.bf16.msra.mxu0 0
      %2453 = vmatprep.subr.bf16.mxu0 0
      %2454 = vmatpush1.bf16.msra.mxu0 0
      %2455 = vmatprep.subr.bf16.mxu0 0
      %2456 = vmatpush1.bf16.msra.mxu0 0
      %2457 = vmatprep.subr.bf16.mxu0 0
      %2458 = vmatpush1.bf16.msra.mxu0 0
      %2459 = vmatprep.subr.bf16.mxu0 0
      %2460 = vmatpush1.bf16.msra.mxu0 0
      %2461 = vmatprep.subr.bf16.mxu0 0
      %2462 = vmatpush1.bf16.msra.mxu0 0
      %2463 = vmatprep.subr.bf16.mxu0 0
      %2464 = vmatpush1.bf16.msra.mxu0 0
      %2465 = vmatprep.subr.bf16.mxu0 0
      %2466 = vmatpush1.bf16.msra.mxu0 0
      %2467 = vmatprep.subr.bf16.mxu0 0
      %2468 = vmatpush1.bf16.msra.mxu0 0
      %2469 = vmatprep.subr.bf16.mxu0 0
      %2470 = vmatpush1.bf16.msra.mxu0 0
      %2471 = vmatprep.subr.bf16.mxu0 0
      %2472 = vmatpush1.bf16.msra.mxu0 0
      %2473 = vmatprep.subr.bf16.mxu0 0
      %2474 = vmatpush1.bf16.msra.mxu0 0
      %2475 = vmatprep.subr.bf16.mxu0 0
      %2476 = vmatpush1.bf16.msra.mxu0 0
      %2477 = vmatprep.subr.bf16.mxu0 0
      %2478 = vmatpush1.bf16.msra.mxu0 0
      %2479 = vmatprep.mubr.bf16.mxu0 0
      %2480 = vmatmul.mubr.bf16.gmra.mrb[0].mxu0 %v2445
      %v2481 = vpop.f32.mrb[0].mxu0
      %v2482 = vadd.f32 %v2436, %v2481
      %v2483 = vpop.f32.mrb[0].mxu0
      %v2484 = vpop.f32.mrb[0].mxu0
      %v2485 = vadd.f32 %v2436, %v2484
      %v2486 = vpop.f32.mrb[0].mxu0
      %2487 = vdwg.mxu0
      %v2488 = vpack.c.bf16 %v2361, %v2358
      %v2489 = vpack.c.bf16 %v2423, %v2420
      %v2491 = vsel %vm633, %v2488, 0
      %v2494 = vsel %vm633, %v2489, 0
      %2496 = vmatprep.subr.bf16.mxu0 0
      %2497 = vmatpush1.bf16.xpose.msra.mxu0 %v2494
      %2498 = vmatprep.subr.bf16.mxu0 0
      %2499 = vmatpush1.bf16.xpose.msra.mxu0 0
      %2500 = vmatprep.subr.bf16.mxu0 0
      %2501 = vmatpush1.bf16.xpose.msra.mxu0 0
      %2502 = vmatprep.subr.bf16.mxu0 0
      %2503 = vmatpush1.bf16.xpose.msra.mxu0 0
      %2504 = vmatprep.subr.bf16.mxu0 0
      %2505 = vmatpush1.bf16.xpose.msra.mxu0 0
      %2506 = vmatprep.subr.bf16.mxu0 0
      %2507 = vmatpush1.bf16.xpose.msra.mxu0 0
      %2508 = vmatprep.subr.bf16.mxu0 0
      %2509 = vmatpush1.bf16.xpose.msra.mxu0 0
      %2510 = vmatprep.subr.bf16.mxu0 0
      %2511 = vmatpush1.bf16.xpose.msra.mxu0 0
      %2512 = vmatprep.subr.bf16.mxu0 0
      %2513 = vmatpush1.bf16.xpose.msra.mxu0 0
      %2514 = vmatprep.subr.bf16.mxu0 0
      %2515 = vmatpush1.bf16.xpose.msra.mxu0 0
      %2516 = vmatprep.subr.bf16.mxu0 0
      %2517 = vmatpush1.bf16.xpose.msra.mxu0 0
      %2518 = vmatprep.subr.bf16.mxu0 0
      %2519 = vmatpush1.bf16.xpose.msra.mxu0 0
      %2520 = vmatprep.subr.bf16.mxu0 0
      %2521 = vmatpush1.bf16.xpose.msra.mxu0 0
      %2522 = vmatprep.subr.bf16.mxu0 0
      %2523 = vmatpush1.bf16.xpose.msra.mxu0 0
      %2524 = vmatprep.subr.bf16.mxu0 0
      %2525 = vmatpush1.bf16.xpose.msra.mxu0 0
      %2526 = vmatprep.subr.bf16.mxu0 0
      %2527 = vmatpush1.bf16.xpose.msra.mxu0 0
      %2528 = vmatprep.mubr.bf16.mxu0 0
      %2529 = vmatmul.mubr.bf16.gmra.mrb[0].mxu0 %v2491
      %v2530 = vpop.f32.mrb[0].mxu0
      %v2531 = vadd.f32 0.0, %v2530
      %v2532 = vpop.f32.mrb[0].mxu0
      %v2533 = vpop.f32.mrb[0].mxu0
      %v2534 = vadd.f32 0.0, %v2533
      %v2535 = vpop.f32.mrb[0].mxu0
      %2536 = vdwg.mxu0
      %v2537 = vmul.f32 %v2531, 0.35355338
      %v2538 = vmul.f32 %v2534, 0.35355338
      %v2539 = vsel %vm470, %v2537, -inf
      %2540 = vmax.xlane.f32.xlu0 %v2539
      %v2541 = vpop.xlane.xlu0 %2540
      %v2542 = vsel %vm967, %v2538, -inf
      %2543 = vmax.xlane.f32.xlu0 %v2542
      %v2544 = vpop.xlane.xlu0 %2543
      %v2545 = vsub.f32 %v2537, %v2541
      %v2546 = vsub.f32 %v2538, %v2544
      %v2547 = vmul.f32 %v2545, 1.442695
      %v2548 = vpow.pop %v2547
      %v2549 = vmul.f32 %v2546, 1.442695
      %v2550 = vpow.pop %v2549
      %v2551 = vsel %vm470, %v2548, 0.0
      %2552 = vadd.xlane.f32.xlu0 %v2551
      %v2553 = vpop.xlane.xlu0 %2552
      %v2554 = vsel %vm967, %v2550, 0.0
      %2555 = vadd.xlane.f32.xlu0 %v2554
      %v2556 = vpop.xlane.xlu0 %2555
      %v2557 = vrcp.pop %v2553
      %v2558 = vrcp.pop %v2556
      %v2559 = vmul.f32 %v2548, %v2557
      %v2560 = vmul.f32 %v2550, %v2558
      %v2561 = vpack.c.bf16 %v2560, %v2559
      %v2562 = vpack.c.bf16 %v2485, %v2482
      %v2564 = vsel %vm470, %v2561, 0
      %2566 = vmatprep.subr.bf16.mxu0 0
      %2567 = vmatpush1.bf16.msra.mxu0 %v2562
      %2568 = vmatprep.subr.bf16.mxu0 0
      %2569 = vmatpush1.bf16.msra.mxu0 0
      %2570 = vmatprep.subr.bf16.mxu0 0
      %2571 = vmatpush1.bf16.msra.mxu0 0
      %2572 = vmatprep.subr.bf16.mxu0 0
      %2573 = vmatpush1.bf16.msra.mxu0 0
      %2574 = vmatprep.subr.bf16.mxu0 0
      %2575 = vmatpush1.bf16.msra.mxu0 0
      %2576 = vmatprep.subr.bf16.mxu0 0
      %2577 = vmatpush1.bf16.msra.mxu0 0
      %2578 = vmatprep.subr.bf16.mxu0 0
      %2579 = vmatpush1.bf16.msra.mxu0 0
      %2580 = vmatprep.subr.bf16.mxu0 0
      %2581 = vmatpush1.bf16.msra.mxu0 0
      %2582 = vmatprep.subr.bf16.mxu0 0
      %2583 = vmatpush1.bf16.msra.mxu0 0
      %2584 = vmatprep.subr.bf16.mxu0 0
      %2585 = vmatpush1.bf16.msra.mxu0 0
      %2586 = vmatprep.subr.bf16.mxu0 0
      %2587 = vmatpush1.bf16.msra.mxu0 0
      %2588 = vmatprep.subr.bf16.mxu0 0
      %2589 = vmatpush1.bf16.msra.mxu0 0
      %2590 = vmatprep.subr.bf16.mxu0 0
      %2591 = vmatpush1.bf16.msra.mxu0 0
      %2592 = vmatprep.subr.bf16.mxu0 0
      %2593 = vmatpush1.bf16.msra.mxu0 0
      %2594 = vmatprep.subr.bf16.mxu0 0
      %2595 = vmatpush1.bf16.msra.mxu0 0
      %2596 = vmatprep.subr.bf16.mxu0 0
      %2597 = vmatpush1.bf16.msra.mxu0 0
      %2598 = vmatprep.mubr.bf16.mxu0 0
      %2599 = vmatmul.mubr.bf16.gmra.mrb[0].mxu0 %v2564
      %v2600 = vpop.f32.mrb[0].mxu0
      %v2601 = vadd.f32 0.0, %v2600
      %v2602 = vpop.f32.mrb[0].mxu0
      %v2603 = vpop.f32.mrb[0].mxu0
      %v2604 = vadd.f32 0.0, %v2603
      %v2605 = vpop.f32.mrb[0].mxu0
      %2606 = vdwg.mxu0
      %2608 = vrot.lane.b32.xlu0 %v2488, 120
      %v2609 = vpop.permute.xlu0 %2608
      %2611 = vrot.lane.b32.xlu0 %v2489, 120
      %v2612 = vpop.permute.xlu0 %2611
      %v2614 = vsel %vm633, %v2609, 0
      %v2617 = vsel %vm633, %v2612, 0
      %2619 = vmatprep.subr.bf16.mxu0 0
      %2620 = vmatpush1.bf16.xpose.msra.mxu0 %v2617
      %2621 = vmatprep.subr.bf16.mxu0 0
      %2622 = vmatpush1.bf16.xpose.msra.mxu0 0
      %2623 = vmatprep.subr.bf16.mxu0 0
      %2624 = vmatpush1.bf16.xpose.msra.mxu0 0
      %2625 = vmatprep.subr.bf16.mxu0 0
      %2626 = vmatpush1.bf16.xpose.msra.mxu0 0
      %2627 = vmatprep.subr.bf16.mxu0 0
      %2628 = vmatpush1.bf16.xpose.msra.mxu0 0
      %2629 = vmatprep.subr.bf16.mxu0 0
      %2630 = vmatpush1.bf16.xpose.msra.mxu0 0
      %2631 = vmatprep.subr.bf16.mxu0 0
      %2632 = vmatpush1.bf16.xpose.msra.mxu0 0
      %2633 = vmatprep.subr.bf16.mxu0 0
      %2634 = vmatpush1.bf16.xpose.msra.mxu0 0
      %2635 = vmatprep.subr.bf16.mxu0 0
      %2636 = vmatpush1.bf16.xpose.msra.mxu0 0
      %2637 = vmatprep.subr.bf16.mxu0 0
      %2638 = vmatpush1.bf16.xpose.msra.mxu0 0
      %2639 = vmatprep.subr.bf16.mxu0 0
      %2640 = vmatpush1.bf16.xpose.msra.mxu0 0
      %2641 = vmatprep.subr.bf16.mxu0 0
      %2642 = vmatpush1.bf16.xpose.msra.mxu0 0
      %2643 = vmatprep.subr.bf16.mxu0 0
      %2644 = vmatpush1.bf16.xpose.msra.mxu0 0
      %2645 = vmatprep.subr.bf16.mxu0 0
      %2646 = vmatpush1.bf16.xpose.msra.mxu0 0
      %2647 = vmatprep.subr.bf16.mxu0 0
      %2648 = vmatpush1.bf16.xpose.msra.mxu0 0
      %2649 = vmatprep.subr.bf16.mxu0 0
      %2650 = vmatpush1.bf16.xpose.msra.mxu0 0
      %2651 = vmatprep.mubr.bf16.mxu0 0
      %2652 = vmatmul.mubr.bf16.gmra.mrb[0].mxu0 %v2614
      %v2653 = vpop.f32.mrb[0].mxu0
      %v2654 = vadd.f32 0.0, %v2653
      %v2655 = vpop.f32.mrb[0].mxu0
      %v2656 = vpop.f32.mrb[0].mxu0
      %v2657 = vadd.f32 0.0, %v2656
      %v2658 = vpop.f32.mrb[0].mxu0
      %2659 = vdwg.mxu0
      %v2660 = vmul.f32 %v2654, 0.35355338
      %v2661 = vmul.f32 %v2657, 0.35355338
      %v2662 = vsel %vm470, %v2660, -inf
      %2663 = vmax.xlane.f32.xlu0 %v2662
      %v2664 = vpop.xlane.xlu0 %2663
      %v2665 = vsel %vm967, %v2661, -inf
      %2666 = vmax.xlane.f32.xlu0 %v2665
      %v2667 = vpop.xlane.xlu0 %2666
      %v2668 = vsub.f32 %v2660, %v2664
      %v2669 = vsub.f32 %v2661, %v2667
      %v2670 = vmul.f32 %v2668, 1.442695
      %v2671 = vpow.pop %v2670
      %v2672 = vmul.f32 %v2669, 1.442695
      %v2673 = vpow.pop %v2672
      %v2674 = vsel %vm470, %v2671, 0.0
      %2675 = vadd.xlane.f32.xlu0 %v2674
      %v2676 = vpop.xlane.xlu0 %2675
      %v2677 = vsel %vm967, %v2673, 0.0
      %2678 = vadd.xlane.f32.xlu0 %v2677
      %v2679 = vpop.xlane.xlu0 %2678
      %v2680 = vrcp.pop %v2676
      %v2681 = vrcp.pop %v2679
      %v2682 = vmul.f32 %v2671, %v2680
      %v2683 = vmul.f32 %v2673, %v2681
      %v2684 = vpack.c.bf16 %v2683, %v2682
      %2686 = vrot.lane.b32.xlu0 %v2562, 120
      %v2687 = vpop.permute.xlu0 %2686
      %v2690 = vsel %vm470, %v2684, 0
      %2692 = vmatprep.subr.bf16.mxu0 0
      %2693 = vmatpush1.bf16.msra.mxu0 %v2687
      %2694 = vmatprep.subr.bf16.mxu0 0
      %2695 = vmatpush1.bf16.msra.mxu0 0
      %2696 = vmatprep.subr.bf16.mxu0 0
      %2697 = vmatpush1.bf16.msra.mxu0 0
      %2698 = vmatprep.subr.bf16.mxu0 0
      %2699 = vmatpush1.bf16.msra.mxu0 0
      %2700 = vmatprep.subr.bf16.mxu0 0
      %2701 = vmatpush1.bf16.msra.mxu0 0
      %2702 = vmatprep.subr.bf16.mxu0 0
      %2703 = vmatpush1.bf16.msra.mxu0 0
      %2704 = vmatprep.subr.bf16.mxu0 0
      %2705 = vmatpush1.bf16.msra.mxu0 0
      %2706 = vmatprep.subr.bf16.mxu0 0
      %2707 = vmatpush1.bf16.msra.mxu0 0
      %2708 = vmatprep.subr.bf16.mxu0 0
      %2709 = vmatpush1.bf16.msra.mxu0 0
      %2710 = vmatprep.subr.bf16.mxu0 0
      %2711 = vmatpush1.bf16.msra.mxu0 0
      %2712 = vmatprep.subr.bf16.mxu0 0
      %2713 = vmatpush1.bf16.msra.mxu0 0
      %2714 = vmatprep.subr.bf16.mxu0 0
      %2715 = vmatpush1.bf16.msra.mxu0 0
      %2716 = vmatprep.subr.bf16.mxu0 0
      %2717 = vmatpush1.bf16.msra.mxu0 0
      %2718 = vmatprep.subr.bf16.mxu0 0
      %2719 = vmatpush1.bf16.msra.mxu0 0
      %2720 = vmatprep.subr.bf16.mxu0 0
      %2721 = vmatpush1.bf16.msra.mxu0 0
      %2722 = vmatprep.subr.bf16.mxu0 0
      %2723 = vmatpush1.bf16.msra.mxu0 0
      %2724 = vmatprep.mubr.bf16.mxu0 0
      %2725 = vmatmul.mubr.bf16.gmra.mrb[0].mxu0 %v2690
      %v2726 = vpop.f32.mrb[0].mxu0
      %v2727 = vadd.f32 0.0, %v2726
      %v2728 = vpop.f32.mrb[0].mxu0
      %v2729 = vpop.f32.mrb[0].mxu0
      %v2730 = vadd.f32 0.0, %v2729
      %v2731 = vpop.f32.mrb[0].mxu0
      %2732 = vdwg.mxu0
      %2735 = vrot.lane.b32.xlu0 %v2727, 8
      %v2736 = vpop.permute.xlu0 %2735
      %2737 = vrot.lane.b32.xlu0 %v2730, 8
      %v2738 = vpop.permute.xlu0 %2737
      %v2741 = vsel %vm633, %v2601, %v2736
      %v2742 = vsel %vm633, %v2604, %v2738
      %s2743 = scalar_lea.vmem %s3, 120
      %v2744 = vld [vmem:[%s2743] sm:$0xf]
      %v2745 = vld [vmem:[%s2743 + $0x4] sm:$0xf]
      %v2746 = vpack.c.bf16 %v2742, %v2741
      %s2747 = scalar_lea.vmem %s4, 15
      %v2748 = vld [vmem:[%s2747] sm:$0x1]
      %v2750 = vlaneseq
      %v2751 = vshrl.u32 %v2750, 7
      %v2752 = vsub.s32 0, %v2751
      %v2753 = vrot.slane %v2748, %v2752
      %v2757 = vunpack.c.l.b16 %v2744
      %v2758 = vunpack.c.l.b16 %v2745
      %v2759 = vpack.c.b16 %v2758, %v2757
      %v2762 = vsel %vm470, %v2746, 0
      %2764 = vmatprep.subr.bf16.mxu0 0
      %2765 = vmatpush1.bf16.msra.mxu0 %v2759
      %2766 = vmatprep.subr.bf16.mxu0 0
      %2767 = vmatpush1.bf16.msra.mxu0 0
      %2768 = vmatprep.subr.bf16.mxu0 0
      %2769 = vmatpush1.bf16.msra.mxu0 0
      %2770 = vmatprep.subr.bf16.mxu0 0
      %2771 = vmatpush1.bf16.msra.mxu0 0
      %2772 = vmatprep.subr.bf16.mxu0 0
      %2773 = vmatpush1.bf16.msra.mxu0 0
      %2774 = vmatprep.subr.bf16.mxu0 0
      %2775 = vmatpush1.bf16.msra.mxu0 0
      %2776 = vmatprep.subr.bf16.mxu0 0
      %2777 = vmatpush1.bf16.msra.mxu0 0
      %2778 = vmatprep.subr.bf16.mxu0 0
      %2779 = vmatpush1.bf16.msra.mxu0 0
      %2780 = vmatprep.subr.bf16.mxu0 0
      %2781 = vmatpush1.bf16.msra.mxu0 0
      %2782 = vmatprep.subr.bf16.mxu0 0
      %2783 = vmatpush1.bf16.msra.mxu0 0
      %2784 = vmatprep.subr.bf16.mxu0 0
      %2785 = vmatpush1.bf16.msra.mxu0 0
      %2786 = vmatprep.subr.bf16.mxu0 0
      %2787 = vmatpush1.bf16.msra.mxu0 0
      %2788 = vmatprep.subr.bf16.mxu0 0
      %2789 = vmatpush1.bf16.msra.mxu0 0
      %2790 = vmatprep.subr.bf16.mxu0 0
      %2791 = vmatpush1.bf16.msra.mxu0 0
      %2792 = vmatprep.subr.bf16.mxu0 0
      %2793 = vmatpush1.bf16.msra.mxu0 0
      %2794 = vmatprep.subr.bf16.mxu0 0
      %2795 = vmatpush1.bf16.msra.mxu0 0
      %2796 = vmatprep.mubr.bf16.mxu0 0
      %2797 = vmatmul.mubr.bf16.gmra.mrb[0].mxu0 %v2762
      %v2798 = vpop.f32.mrb[0].mxu0
      %v2799 = vadd.f32 %v2753, %v2798
      %v2800 = vpop.f32.mrb[0].mxu0
      %v2801 = vpop.f32.mrb[0].mxu0
      %v2802 = vadd.f32 %v2753, %v2801
      %v2803 = vpop.f32.mrb[0].mxu0
      %2804 = vdwg.mxu0
      %v2805 = vadd.f32 %v1754, %v2799
      %v2806 = vadd.f32 %v1755, %v2802
      %s2807 = scalar_lea.vmem %s5, 4
      %v2808 = vld [vmem:[%s2807] sm:$0x1]
      %s2809 = scalar_lea.vmem %s6, 4
      %v2810 = vld [vmem:[%s2809] sm:$0x1]
      %v2811 = vsel %vm470, %v2805, 0.0
      %2812 = vadd.xlane.f32.xlu0 %v2811
      %v2813 = vpop.xlane.xlu0 %2812
      %v2814 = vsel %vm967, %v2806, 0.0
      %2815 = vadd.xlane.f32.xlu0 %v2814
      %v2816 = vpop.xlane.xlu0 %2815
      %v2817 = vmul.f32 %v2813, %v971
      %v2818 = vmul.f32 %v2816, %v971
      %v2819 = vsub.f32 %v2805, %v2817
      %v2820 = vsub.f32 %v2806, %v2818
      %v2821 = vmul.f32 %v2819, %v2819
      %v2822 = vmul.f32 %v2820, %v2820
      %v2823 = vsel %vm470, %v2821, 0.0
      %2824 = vadd.xlane.f32.xlu0 %v2823
      %v2825 = vpop.xlane.xlu0 %2824
      %v2826 = vsel %vm967, %v2822, 0.0
      %2827 = vadd.xlane.f32.xlu0 %v2826
      %v2828 = vpop.xlane.xlu0 %2827
      %v2829 = vmul.f32 %v2825, %v971
      %v2830 = vmul.f32 %v2828, %v971
      %v2831 = vadd.f32 %v2829, 1e-05
      %v2832 = vadd.f32 %v2830, 1e-05
      %v2833 = vrsqrt.pop %v2831
      %v2834 = vrsqrt.pop %v2832
      %v2835 = vmul.f32 %v2819, %v2833
      %v2836 = vmul.f32 %v2820, %v2834
      %v2838 = vlaneseq
      %v2839 = vshrl.u32 %v2838, 7
      %v2840 = vsub.s32 0, %v2839
      %v2841 = vrot.slane %v2808, %v2840
      %v2843 = vmul.f32 %v2835, %v2841
      %v2844 = vmul.f32 %v2836, %v2841
      %v2846 = vlaneseq
      %v2847 = vshrl.u32 %v2846, 7
      %v2848 = vsub.s32 0, %v2847
      %v2849 = vrot.slane %v2810, %v2848
      %v2851 = vadd.f32 %v2843, %v2849
      %v2852 = vadd.f32 %v2844, %v2849
      %2853 = vst.msk [vmem:[%s441] sm:$0xff] %vm470, %v2851
      %2854 = vst.msk [vmem:[%s441 + $0x8] sm:$0x7] %vm967, %v2852
      %2855 = vst.msk [vmem:[%s446] sm:$0xff] %vm470, %v2302
      %2856 = vst.msk [vmem:[%s446 + $0x8] sm:$0xff] %vm470, %v2303
      %p2857 = scmp.lt.s32.totalorder %s24, 1
      %s2858 = scalar_select %p2857, %s24, 1
      %s2859 = smul.addr %s2858, 2
      %s2860 = smul.addr %s2859, 8
      %s2861 = scalar_lea.vmem %s11, %s2860
      %p2862 = scmp.lt.s32.totalorder %s24, 1
      %s2863 = scalar_select %p2862, %s24, 1
      %s2864 = smul.addr %s2863, 2
      %s2865 = smul.addr %s2864, 8
      %s2866 = scalar_lea.vmem %s12, %s2865
      // Predicated region
      $region65: #{efficient_sam_forward.9} parent=63 // pred_check
        %p2867 = pneg %p283
      $region66: #{efficient_sam_forward.9} parent=63 // pred_check_branch
        %2869 = sbr.rel (%p2867) target = $region68
      $region67: #{efficient_sam_forward.9} parent=63 // pred_region
        _
      $region68: #{efficient_sam_forward.9} parent=63 // pred_fallthru
        _
      // Predicated region
      $region69: #{efficient_sam_forward.9} parent=63 // pred_check
        %p2870 = pneg %p309
      $region70: #{efficient_sam_forward.9} parent=63 // pred_check_branch
        %2872 = sbr.rel (%p2870) target = $region72
      $region71: #{efficient_sam_forward.9} parent=63 // pred_region
        _
      $region72: #{efficient_sam_forward.9} parent=63 // pred_fallthru
        _
    $region64: #{efficient_sam_forward.9} parent=5 // pred_fallthru
      _
    %p2873 = scmp.le.s32.totalorder 2, %s19
    // Predicated region
    $region73: #{efficient_sam_forward.9} parent=5 // pred_check
      %p2874 = pneg %p2873
    $region74: #{efficient_sam_forward.9} parent=5 // pred_check_branch
      %2876 = sbr.rel (%p2874) target = $region76
    $region75: #{efficient_sam_forward.9} parent=5 // pred_region
      %s2877 = ssub.s32 %s19, 2
      // Predicated region
      $region77: #{efficient_sam_forward.9} parent=75 // pred_check
        %p2878 = pneg %p289
      $region78: #{efficient_sam_forward.9} parent=75 // pred_check_branch
        %2880 = sbr.rel (%p2878) target = $region80
      $region79: #{efficient_sam_forward.9} parent=75 // pred_region
        %p2881 = scmp.lt.s32.totalorder %s25, 1
        %s2882 = scalar_select %p2881, %s25, 1
        %s2883 = smul.addr %s2882, 2
        %s2884 = smul.addr %s2883, 8
        %s2885 = scalar_lea.vmem %s11, %s2884
      $region80: #{efficient_sam_forward.9} parent=75 // pred_fallthru
        _
      // Predicated region
      $region81: #{efficient_sam_forward.9} parent=75 // pred_check
        %p2886 = pneg %p315
      $region82: #{efficient_sam_forward.9} parent=75 // pred_check_branch
        %2888 = sbr.rel (%p2886) target = $region84
      $region83: #{efficient_sam_forward.9} parent=75 // pred_region
        %p2889 = scmp.lt.s32.totalorder %s25, 1
        %s2890 = scalar_select %p2889, %s25, 1
        %s2891 = smul.addr %s2890, 2
        %s2892 = smul.addr %s2891, 8
        %s2893 = scalar_lea.vmem %s12, %s2892
      $region84: #{efficient_sam_forward.9} parent=75 // pred_fallthru
        _
    $region76: #{efficient_sam_forward.9} parent=5 // pred_fallthru
      _
  $region6: #{efficient_sam_forward.9} parent=0 // loop_footer
    %s23 = sadd.s32 1, %s19
  $region7: #{efficient_sam_forward.9} parent=0 // loop_footer_branch
    %18 = sbr.rel target = $region3
  $region8: #{efficient_sam_forward.9} parent=0 // loop_exit
    _

// kernel: efficient_sam_forward.11
$region0: #{efficient_sam_forward.11}
  #allocation0 [shape = 'u32[]', space=smem, size = 0x4, offset = 0x4, fixed_abs, tag = 'smem constant byte address 0x4 - core index']
  #allocation1 [shape = 'u32[144,128]{1,0:T(1,128)}', space=vmem, size = 0x12000, scoped, tag = 'internal scratch']
  %s0 = inlined_call_operand.vmem [shape: f32[128,4], index: 0, kind: input, shape index: {}]
  %s1 = inlined_call_operand.vmem [shape: bf16[4,8], index: 1, kind: input, shape index: {}]
  %s2 = inlined_call_operand.vmem [shape: f32[1,8], index: 2, kind: input, shape index: {}]
  %s3 = inlined_call_operand.vmem [shape: f32[128,8], index: 3, kind: output, shape index: {}]
  %s4 = sld [smem:[#allocation0]]
  $region22: #{efficient_sam_forward.11} parent=0
    _
  %s6 = ssub.s32 1, %s4
  %s7 = scalar_select 0, %s6, %s4
  // Predicated region
  $region2: #{efficient_sam_forward.11} parent=0 // pred_check
    _
  $region3: #{efficient_sam_forward.11} parent=0 // pred_check_branch
    %9 = sbr.rel (0) target = $region5
  $region4: #{efficient_sam_forward.11} parent=0 // pred_region
    _
  $region5: #{efficient_sam_forward.11} parent=0 // pred_fallthru
    _
  // Predicated region
  $region6: #{efficient_sam_forward.11} parent=0 // pred_check
    _
  $region7: #{efficient_sam_forward.11} parent=0 // pred_check_branch
    %11 = sbr.rel (0) target = $region9
  $region8: #{efficient_sam_forward.11} parent=0 // pred_region
    _
  $region9: #{efficient_sam_forward.11} parent=0 // pred_fallthru
    _
  // Predicated region
  $region10: #{efficient_sam_forward.11} parent=0 // pred_check
    _
  $region11: #{efficient_sam_forward.11} parent=0 // pred_check_branch
    %13 = sbr.rel (0) target = $region13
  $region12: #{efficient_sam_forward.11} parent=0 // pred_region
    _
  $region13: #{efficient_sam_forward.11} parent=0 // pred_fallthru
    _
  %v15 = vld [vmem:[%s0] sm:$0xff]
  %v16 = vld [vmem:[%s0 + $0x8] sm:$0xff]
  %v17 = vld [vmem:[%s0 + $0x10] sm:$0xff]
  %v18 = vld [vmem:[%s0 + $0x18] sm:$0xff]
  %v19 = vld [vmem:[%s0 + $0x20] sm:$0xff]
  %v20 = vld [vmem:[%s0 + $0x28] sm:$0xff]
  %v21 = vld [vmem:[%s0 + $0x30] sm:$0xff]
  %v22 = vld [vmem:[%s0 + $0x38] sm:$0xff]
  %v23 = vld [vmem:[%s0 + $0x40] sm:$0xff]
  %v24 = vld [vmem:[%s0 + $0x48] sm:$0xff]
  %v25 = vld [vmem:[%s0 + $0x50] sm:$0xff]
  %v26 = vld [vmem:[%s0 + $0x58] sm:$0xff]
  %v27 = vld [vmem:[%s0 + $0x60] sm:$0xff]
  %v28 = vld [vmem:[%s0 + $0x68] sm:$0xff]
  %v29 = vld [vmem:[%s0 + $0x70] sm:$0xff]
  %v30 = vld [vmem:[%s0 + $0x78] sm:$0xff]
  %v31 = vld [vmem:[%s1] sm:$0x3]
  %v32 = vpack.c.bf16 %v16, %v15
  %v33 = vpack.c.bf16 %v18, %v17
  %v34 = vpack.c.bf16 %v20, %v19
  %v35 = vpack.c.bf16 %v22, %v21
  %v36 = vpack.c.bf16 %v24, %v23
  %v37 = vpack.c.bf16 %v26, %v25
  %v38 = vpack.c.bf16 %v28, %v27
  %v39 = vpack.c.bf16 %v30, %v29
  %v40 = vld [vmem:[%s2] sm:$0x1]
  %v42 = vlaneseq
  %v43 = vshrl.u32 %v42, 7
  %v44 = vsub.s32 0, %v43
  %v45 = vrot.slane %v40, %v44
  %vm47 = vcmask 31744
  %v49 = vsel %vm47, %v32, 0
  %v52 = vsel %vm47, %v33, 0
  %v55 = vsel %vm47, %v34, 0
  %v58 = vsel %vm47, %v35, 0
  %v61 = vsel %vm47, %v36, 0
  %v64 = vsel %vm47, %v37, 0
  %v67 = vsel %vm47, %v38, 0
  %v70 = vsel %vm47, %v39, 0
  %vm72 = vcmask 1041408
  %v74 = vsel %vm72, %v31, 0
  %76 = vmatprep.subr.bf16.mxu0 0
  %77 = vmatpush1.bf16.msra.mxu0 %v74
  %78 = vmatprep.subr.bf16.mxu0 0
  %79 = vmatpush1.bf16.msra.mxu0 0
  %80 = vmatprep.subr.bf16.mxu0 0
  %81 = vmatpush1.bf16.msra.mxu0 0
  %82 = vmatprep.subr.bf16.mxu0 0
  %83 = vmatpush1.bf16.msra.mxu0 0
  %84 = vmatprep.subr.bf16.mxu0 0
  %85 = vmatpush1.bf16.msra.mxu0 0
  %86 = vmatprep.subr.bf16.mxu0 0
  %87 = vmatpush1.bf16.msra.mxu0 0
  %88 = vmatprep.subr.bf16.mxu0 0
  %89 = vmatpush1.bf16.msra.mxu0 0
  %90 = vmatprep.subr.bf16.mxu0 0
  %91 = vmatpush1.bf16.msra.mxu0 0
  %92 = vmatprep.subr.bf16.mxu0 0
  %93 = vmatpush1.bf16.msra.mxu0 0
  %94 = vmatprep.subr.bf16.mxu0 0
  %95 = vmatpush1.bf16.msra.mxu0 0
  %96 = vmatprep.subr.bf16.mxu0 0
  %97 = vmatpush1.bf16.msra.mxu0 0
  %98 = vmatprep.subr.bf16.mxu0 0
  %99 = vmatpush1.bf16.msra.mxu0 0
  %100 = vmatprep.subr.bf16.mxu0 0
  %101 = vmatpush1.bf16.msra.mxu0 0
  %102 = vmatprep.subr.bf16.mxu0 0
  %103 = vmatpush1.bf16.msra.mxu0 0
  %104 = vmatprep.subr.bf16.mxu0 0
  %105 = vmatpush1.bf16.msra.mxu0 0
  %106 = vmatprep.subr.bf16.mxu0 0
  %107 = vmatpush1.bf16.msra.mxu0 0
  %108 = vmatprep.mubr.bf16.mxu0 0
  %109 = vmatmul.mubr.bf16.gmra.mrb[0].mxu0 %v49
  %v110 = vpop.f32.mrb[0].mxu0
  %v111 = vadd.f32 %v45, %v110
  %v112 = vpop.f32.mrb[0].mxu0
  %v113 = vpop.f32.mrb[0].mxu0
  %v114 = vadd.f32 %v45, %v113
  %v115 = vpop.f32.mrb[0].mxu0
  %116 = vmatprep.mubr.bf16.mxu0 0
  %117 = vmatmul.mubr.bf16.gmra.mrb[0].mxu0 %v52
  %v118 = vpop.f32.mrb[0].mxu0
  %v119 = vadd.f32 %v45, %v118
  %v120 = vpop.f32.mrb[0].mxu0
  %v121 = vpop.f32.mrb[0].mxu0
  %v122 = vadd.f32 %v45, %v121
  %v123 = vpop.f32.mrb[0].mxu0
  %124 = vmatprep.mubr.bf16.mxu0 0
  %125 = vmatmul.mubr.bf16.gmra.mrb[0].mxu0 %v55
  %v126 = vpop.f32.mrb[0].mxu0
  %v127 = vadd.f32 %v45, %v126
  %v128 = vpop.f32.mrb[0].mxu0
  %v129 = vpop.f32.mrb[0].mxu0
  %v130 = vadd.f32 %v45, %v129
  %v131 = vpop.f32.mrb[0].mxu0
  %132 = vmatprep.mubr.bf16.mxu0 0
  %133 = vmatmul.mubr.bf16.gmra.mrb[0].mxu0 %v58
  %v134 = vpop.f32.mrb[0].mxu0
  %v135 = vadd.f32 %v45, %v134
  %v136 = vpop.f32.mrb[0].mxu0
  %v137 = vpop.f32.mrb[0].mxu0
  %v138 = vadd.f32 %v45, %v137
  %v139 = vpop.f32.mrb[0].mxu0
  %140 = vmatprep.mubr.bf16.mxu0 0
  %141 = vmatmul.mubr.bf16.gmra.mrb[0].mxu0 %v61
  %v142 = vpop.f32.mrb[0].mxu0
  %v143 = vadd.f32 %v45, %v142
  %v144 = vpop.f32.mrb[0].mxu0
  %v145 = vpop.f32.mrb[0].mxu0
  %v146 = vadd.f32 %v45, %v145
  %v147 = vpop.f32.mrb[0].mxu0
  %148 = vmatprep.mubr.bf16.mxu0 0
  %149 = vmatmul.mubr.bf16.gmra.mrb[0].mxu0 %v64
  %v150 = vpop.f32.mrb[0].mxu0
  %v151 = vadd.f32 %v45, %v150
  %v152 = vpop.f32.mrb[0].mxu0
  %v153 = vpop.f32.mrb[0].mxu0
  %v154 = vadd.f32 %v45, %v153
  %v155 = vpop.f32.mrb[0].mxu0
  %156 = vmatprep.mubr.bf16.mxu0 0
  %157 = vmatmul.mubr.bf16.gmra.mrb[0].mxu0 %v67
  %v158 = vpop.f32.mrb[0].mxu0
  %v159 = vadd.f32 %v45, %v158
  %v160 = vpop.f32.mrb[0].mxu0
  %v161 = vpop.f32.mrb[0].mxu0
  %v162 = vadd.f32 %v45, %v161
  %v163 = vpop.f32.mrb[0].mxu0
  %164 = vmatprep.mubr.bf16.mxu0 0
  %165 = vmatmul.mubr.bf16.gmra.mrb[0].mxu0 %v70
  %v166 = vpop.f32.mrb[0].mxu0
  %v167 = vadd.f32 %v45, %v166
  %v168 = vpop.f32.mrb[0].mxu0
  %v169 = vpop.f32.mrb[0].mxu0
  %v170 = vadd.f32 %v45, %v169
  %v171 = vpop.f32.mrb[0].mxu0
  %172 = vdwg.mxu0
  %v173 = vmul.f32 %v111, %v111
  %v174 = vmul.f32 %v114, %v114
  %v175 = vmul.f32 %v119, %v119
  %v176 = vmul.f32 %v122, %v122
  %v177 = vmul.f32 %v127, %v127
  %v178 = vmul.f32 %v130, %v130
  %v179 = vmul.f32 %v135, %v135
  %v180 = vmul.f32 %v138, %v138
  %v181 = vmul.f32 %v143, %v143
  %v182 = vmul.f32 %v146, %v146
  %v183 = vmul.f32 %v151, %v151
  %v184 = vmul.f32 %v154, %v154
  %v185 = vmul.f32 %v159, %v159
  %v186 = vmul.f32 %v162, %v162
  %v187 = vmul.f32 %v167, %v167
  %v188 = vmul.f32 %v170, %v170
  %v189 = vmul.f32 %v111, %v173
  %v190 = vmul.f32 %v114, %v174
  %v191 = vmul.f32 %v119, %v175
  %v192 = vmul.f32 %v122, %v176
  %v193 = vmul.f32 %v127, %v177
  %v194 = vmul.f32 %v130, %v178
  %v195 = vmul.f32 %v135, %v179
  %v196 = vmul.f32 %v138, %v180
  %v197 = vmul.f32 %v143, %v181
  %v198 = vmul.f32 %v146, %v182
  %v199 = vmul.f32 %v151, %v183
  %v200 = vmul.f32 %v154, %v184
  %v201 = vmul.f32 %v159, %v185
  %v202 = vmul.f32 %v162, %v186
  %v203 = vmul.f32 %v167, %v187
  %v204 = vmul.f32 %v170, %v188
  %v205 = vmul.f32 %v189, 0.044715
  %v206 = vmul.f32 %v190, 0.044715
  %v207 = vmul.f32 %v191, 0.044715
  %v208 = vmul.f32 %v192, 0.044715
  %v209 = vmul.f32 %v193, 0.044715
  %v210 = vmul.f32 %v194, 0.044715
  %v211 = vmul.f32 %v195, 0.044715
  %v212 = vmul.f32 %v196, 0.044715
  %v213 = vmul.f32 %v197, 0.044715
  %v214 = vmul.f32 %v198, 0.044715
  %v215 = vmul.f32 %v199, 0.044715
  %v216 = vmul.f32 %v200, 0.044715
  %v217 = vmul.f32 %v201, 0.044715
  %v218 = vmul.f32 %v202, 0.044715
  %v219 = vmul.f32 %v203, 0.044715
  %v220 = vmul.f32 %v204, 0.044715
  %v221 = vadd.f32 %v111, %v205
  %v222 = vadd.f32 %v114, %v206
  %v223 = vadd.f32 %v119, %v207
  %v224 = vadd.f32 %v122, %v208
  %v225 = vadd.f32 %v127, %v209
  %v226 = vadd.f32 %v130, %v210
  %v227 = vadd.f32 %v135, %v211
  %v228 = vadd.f32 %v138, %v212
  %v229 = vadd.f32 %v143, %v213
  %v230 = vadd.f32 %v146, %v214
  %v231 = vadd.f32 %v151, %v215
  %v232 = vadd.f32 %v154, %v216
  %v233 = vadd.f32 %v159, %v217
  %v234 = vadd.f32 %v162, %v218
  %v235 = vadd.f32 %v167, %v219
  %v236 = vadd.f32 %v170, %v220
  %v237 = vmul.f32 %v221, 0.7978846
  %v238 = vmul.f32 %v222, 0.7978846
  %v239 = vmul.f32 %v223, 0.7978846
  %v240 = vmul.f32 %v224, 0.7978846
  %v241 = vmul.f32 %v225, 0.7978846
  %v242 = vmul.f32 %v226, 0.7978846
  %v243 = vmul.f32 %v227, 0.7978846
  %v244 = vmul.f32 %v228, 0.7978846
  %v245 = vmul.f32 %v229, 0.7978846
  %v246 = vmul.f32 %v230, 0.7978846
  %v247 = vmul.f32 %v231, 0.7978846
  %v248 = vmul.f32 %v232, 0.7978846
  %v249 = vmul.f32 %v233, 0.7978846
  %v250 = vmul.f32 %v234, 0.7978846
  %v251 = vmul.f32 %v235, 0.7978846
  %v252 = vmul.f32 %v236, 0.7978846
  %v253 = vtanh.pop %v237
  %v254 = vtanh.pop %v238
  %v255 = vtanh.pop %v239
  %v256 = vtanh.pop %v240
  %v257 = vtanh.pop %v241
  %v258 = vtanh.pop %v242
  %v259 = vtanh.pop %v243
  %v260 = vtanh.pop %v244
  %v261 = vtanh.pop %v245
  %v262 = vtanh.pop %v246
  %v263 = vtanh.pop %v247
  %v264 = vtanh.pop %v248
  %v265 = vtanh.pop %v249
  %v266 = vtanh.pop %v250
  %v267 = vtanh.pop %v251
  %v268 = vtanh.pop %v252
  %v269 = vadd.f32 %v253, 1.0
  %v270 = vadd.f32 %v254, 1.0
  %v271 = vadd.f32 %v255, 1.0
  %v272 = vadd.f32 %v256, 1.0
  %v273 = vadd.f32 %v257, 1.0
  %v274 = vadd.f32 %v258, 1.0
  %v275 = vadd.f32 %v259, 1.0
  %v276 = vadd.f32 %v260, 1.0
  %v277 = vadd.f32 %v261, 1.0
  %v278 = vadd.f32 %v262, 1.0
  %v279 = vadd.f32 %v263, 1.0
  %v280 = vadd.f32 %v264, 1.0
  %v281 = vadd.f32 %v265, 1.0
  %v282 = vadd.f32 %v266, 1.0
  %v283 = vadd.f32 %v267, 1.0
  %v284 = vadd.f32 %v268, 1.0
  %v285 = vmul.f32 %v269, 0.5
  %v286 = vmul.f32 %v270, 0.5
  %v287 = vmul.f32 %v271, 0.5
  %v288 = vmul.f32 %v272, 0.5
  %v289 = vmul.f32 %v273, 0.5
  %v290 = vmul.f32 %v274, 0.5
  %v291 = vmul.f32 %v275, 0.5
  %v292 = vmul.f32 %v276, 0.5
  %v293 = vmul.f32 %v277, 0.5
  %v294 = vmul.f32 %v278, 0.5
  %v295 = vmul.f32 %v279, 0.5
  %v296 = vmul.f32 %v280, 0.5
  %v297 = vmul.f32 %v281, 0.5
  %v298 = vmul.f32 %v282, 0.5
  %v299 = vmul.f32 %v283, 0.5
  %v300 = vmul.f32 %v284, 0.5
  %v301 = vmul.f32 %v111, %v285
  %v302 = vmul.f32 %v114, %v286
  %v303 = vmul.f32 %v119, %v287
  %v304 = vmul.f32 %v122, %v288
  %v305 = vmul.f32 %v127, %v289
  %v306 = vmul.f32 %v130, %v290
  %v307 = vmul.f32 %v135, %v291
  %v308 = vmul.f32 %v138, %v292
  %v309 = vmul.f32 %v143, %v293
  %v310 = vmul.f32 %v146, %v294
  %v311 = vmul.f32 %v151, %v295
  %v312 = vmul.f32 %v154, %v296
  %v313 = vmul.f32 %v159, %v297
  %v314 = vmul.f32 %v162, %v298
  %v315 = vmul.f32 %v167, %v299
  %v316 = vmul.f32 %v170, %v300
  %vm317 = vcmask 64512
  %318 = vst.msk [vmem:[%s3] sm:$0xff] %vm317, %v301
  %319 = vst.msk [vmem:[%s3 + $0x8] sm:$0xff] %vm317, %v302
  %320 = vst.msk [vmem:[%s3 + $0x10] sm:$0xff] %vm317, %v303
  %321 = vst.msk [vmem:[%s3 + $0x18] sm:$0xff] %vm317, %v304
  %322 = vst.msk [vmem:[%s3 + $0x20] sm:$0xff] %vm317, %v305
  %323 = vst.msk [vmem:[%s3 + $0x28] sm:$0xff] %vm317, %v306
  %324 = vst.msk [vmem:[%s3 + $0x30] sm:$0xff] %vm317, %v307
  %325 = vst.msk [vmem:[%s3 + $0x38] sm:$0xff] %vm317, %v308
  %326 = vst.msk [vmem:[%s3 + $0x40] sm:$0xff] %vm317, %v309
  %327 = vst.msk [vmem:[%s3 + $0x48] sm:$0xff] %vm317, %v310
  %328 = vst.msk [vmem:[%s3 + $0x50] sm:$0xff] %vm317, %v311
  %329 = vst.msk [vmem:[%s3 + $0x58] sm:$0xff] %vm317, %v312
  %330 = vst.msk [vmem:[%s3 + $0x60] sm:$0xff] %vm317, %v313
  %331 = vst.msk [vmem:[%s3 + $0x68] sm:$0xff] %vm317, %v314
  %332 = vst.msk [vmem:[%s3 + $0x70] sm:$0xff] %vm317, %v315
  %333 = vst.msk [vmem:[%s3 + $0x78] sm:$0xff] %vm317, %v316
  // Predicated region
  $region14: #{efficient_sam_forward.11} parent=0 // pred_check
    _
  $region15: #{efficient_sam_forward.11} parent=0 // pred_check_branch
    %335 = sbr.rel (0) target = $region17
  $region16: #{efficient_sam_forward.11} parent=0 // pred_region
    _
  $region17: #{efficient_sam_forward.11} parent=0 // pred_fallthru
    _
  // Predicated region
  $region18: #{efficient_sam_forward.11} parent=0 // pred_check
    _
  $region19: #{efficient_sam_forward.11} parent=0 // pred_check_branch
    %337 = sbr.rel (0) target = $region21
  $region20: #{efficient_sam_forward.11} parent=0 // pred_region
    _
  $region21: #{efficient_sam_forward.11} parent=0 // pred_fallthru
    _

// kernel: efficient_sam_forward.13
$region0: #{efficient_sam_forward.13}
  #allocation0 [shape = 'u32[]', space=smem, size = 0x4, offset = 0x4, fixed_abs, tag = 'smem constant byte address 0x4 - core index']
  #allocation1 [shape = 'u32[144,128]{1,0:T(1,128)}', space=vmem, size = 0x12000, scoped, tag = 'internal scratch']
  %s0 = inlined_call_operand.vmem [shape: f32[6,16,16], index: 0, kind: input, shape index: {}]
  %s1 = inlined_call_operand.vmem [shape: f32[32,16], index: 1, kind: input, shape index: {}]
  %s2 = inlined_call_operand.vmem [shape: f32[16,32], index: 2, kind: input, shape index: {}]
  %s3 = inlined_call_operand.hbm [shape: f32[6,32,32], index: 3, kind: output, shape index: {}]
  %s4 = sld [smem:[#allocation0]]
  $region45: #{efficient_sam_forward.13} parent=0
    _
  %s6 = ssub.s32 1, %s4
  %s7 = scalar_select 0, %s6, %s4
  $region1: #{efficient_sam_forward.13} parent=0
    #allocation2 [shape = 'u8[32768]{0}', space=vmem, size = 0x8000, scoped, tag = 'output window, operand 0']
    #allocation3 [shape = 's32[2]{0}', space=sflag, size = 0x8, scoped, tag = 'scoped memory for efficient_sam_forward.13']
    %8 = vsyncpa [#allocation3], 0
    %s9 = scalar_lea.sflag [#allocation3], 1
    %10 = vsyncpa %s9, 0
    loop: start=0, step=1, limit=8
    $region2: #{efficient_sam_forward.13} parent=1 // loop_pre_header
      _
    $region3: #{efficient_sam_forward.13} parent=1 // loop_header
      %s12 = sphi 0, %s16
      %p13 = scmp.ge.s32.totalorder %s12, 8
      %s22 = sphi 0, %s24
      %s25 = sphi 0, %s22
      %s26 = sphi 0, %s25
      %s42 = sphi 0, %s26
      %s46 = sphi 0, %s46
      %s48 = sphi 0, %s46
      %s49 = sphi 0, %s48
      %s63 = sphi 0, %s49
      %s67 = sphi 0, %s67
      %s69 = sphi 0, %s67
      %s70 = sphi 0, %s69
      %s84 = sphi 0, %s70
      %s90 = sphi 0, %s92
      %s93 = sphi 0, %s90
      %s94 = sphi 0, %s93
      %s110 = sphi 0, %s94
    $region4: #{efficient_sam_forward.13} parent=1 // loop_header_branch
      %15 = sbr.rel (%p13) target = $region8
    $region5: #{efficient_sam_forward.13} parent=1 // loop_body
      %s17 = ssub.s32 %s12, 1
      %s18 = ssub.s32 %s12, 2
      %s19 = sadd.s32 %s12, 1
      %s20 = ssub.s32 %s12, %s19
      %p21 = scmp.eq.s32.totalorder %s20, 0
      %s23 = sadd.s32 %s22, 1
      %s24 = scalar_select %p21, %s22, %s23
      %p27 = pneg %p21
      %p28 = scmp.eq.s32.totalorder %s12, 5
      %p29 = por %p27, %p28
      %p30 = scmp.ne.s32.totalorder %s22, %s25
      %p31 = scmp.eq.s32.totalorder %s12, 0
      %p32 = por %p30, %p31
      %p33 = scmp.ne.s32.totalorder %s22, %s25
      %p34 = scmp.eq.s32.totalorder %s17, 5
      %p35 = por %p33, %p34
      %p36 = scmp.ne.s32.totalorder %s25, %s26
      %p37 = scmp.eq.s32.totalorder %s17, 0
      %p38 = por %p36, %p37
      %p39 = scmp.ne.s32.totalorder %s25, %s26
      %p40 = scmp.eq.s32.totalorder %s18, 5
      %p41 = por %p39, %p40
      %p43 = scmp.ne.s32.totalorder %s26, %s42
      %p44 = scmp.eq.s32.totalorder %s18, 0
      %p45 = por %p43, %p44
      %s47 = sadd.s32 %s46, 1
      %p50 = scmp.eq.s32.totalorder %s12, 5
      %p51 = scmp.ne.s32.totalorder %s46, %s48
      %p52 = scmp.eq.s32.totalorder %s12, 0
      %p53 = por %p51, %p52
      %p54 = scmp.ne.s32.totalorder %s46, %s48
      %p55 = scmp.eq.s32.totalorder %s17, 5
      %p56 = por %p54, %p55
      %p57 = scmp.ne.s32.totalorder %s48, %s49
      %p58 = scmp.eq.s32.totalorder %s17, 0
      %p59 = por %p57, %p58
      %p60 = scmp.ne.s32.totalorder %s48, %s49
      %p61 = scmp.eq.s32.totalorder %s18, 5
      %p62 = por %p60, %p61
      %p64 = scmp.ne.s32.totalorder %s49, %s63
      %p65 = scmp.eq.s32.totalorder %s18, 0
      %p66 = por %p64, %p65
      %s68 = sadd.s32 %s67, 1
      %p71 = scmp.eq.s32.totalorder %s12, 5
      %p72 = scmp.ne.s32.totalorder %s67, %s69
      %p73 = scmp.eq.s32.totalorder %s12, 0
      %p74 = por %p72, %p73
      %p75 = scmp.ne.s32.totalorder %s67, %s69
      %p76 = scmp.eq.s32.totalorder %s17, 5
      %p77 = por %p75, %p76
      %p78 = scmp.ne.s32.totalorder %s69, %s70
      %p79 = scmp.eq.s32.totalorder %s17, 0
      %p80 = por %p78, %p79
      %p81 = scmp.ne.s32.totalorder %s69, %s70
      %p82 = scmp.eq.s32.totalorder %s18, 5
      %p83 = por %p81, %p82
      %p85 = scmp.ne.s32.totalorder %s70, %s84
      %p86 = scmp.eq.s32.totalorder %s18, 0
      %p87 = por %p85, %p86
      %s88 = ssub.s32 %s12, %s19
      %p89 = scmp.eq.s32.totalorder %s88, 0
      %s91 = sadd.s32 %s90, 1
      %s92 = scalar_select %p89, %s90, %s91
      %p95 = pneg %p89
      %p96 = scmp.eq.s32.totalorder %s12, 5
      %p97 = por %p95, %p96
      %p98 = scmp.ne.s32.totalorder %s90, %s93
      %p99 = scmp.eq.s32.totalorder %s12, 0
      %p100 = por %p98, %p99
      %p101 = scmp.ne.s32.totalorder %s90, %s93
      %p102 = scmp.eq.s32.totalorder %s17, 5
      %p103 = por %p101, %p102
      %p104 = scmp.ne.s32.totalorder %s93, %s94
      %p105 = scmp.eq.s32.totalorder %s17, 0
      %p106 = por %p104, %p105
      %p107 = scmp.ne.s32.totalorder %s93, %s94
      %p108 = scmp.eq.s32.totalorder %s18, 5
      %p109 = por %p107, %p108
      %p111 = scmp.ne.s32.totalorder %s94, %s110
      %p112 = scmp.eq.s32.totalorder %s18, 0
      %p113 = por %p111, %p112
      %p114 = scmp.le.s32.totalorder 1, %s12
      %p115 = scmp.lt.s32.totalorder %s12, 7
      %p116 = pnand %p114, %p115
      %p117 = pneg %p116
      // Predicated region
      $region9: #{efficient_sam_forward.13} parent=5 // pred_check
        _
      $region10: #{efficient_sam_forward.13} parent=5 // pred_check_branch
        %119 = sbr.rel (%p116) target = $region12
      $region11: #{efficient_sam_forward.13} parent=5 // pred_region
        %s120 = ssub.s32 %s12, 1
        // Predicated region
        $region13: #{efficient_sam_forward.13} parent=11 // pred_check
          %p121 = pneg %p59
        $region14: #{efficient_sam_forward.13} parent=11 // pred_check_branch
          %123 = sbr.rel (%p121) target = $region16
        $region15: #{efficient_sam_forward.13} parent=11 // pred_region
          _
        $region16: #{efficient_sam_forward.13} parent=11 // pred_fallthru
          _
        // Predicated region
        $region17: #{efficient_sam_forward.13} parent=11 // pred_check
          %p124 = pneg %p80
        $region18: #{efficient_sam_forward.13} parent=11 // pred_check_branch
          %126 = sbr.rel (%p124) target = $region20
        $region19: #{efficient_sam_forward.13} parent=11 // pred_region
          _
        $region20: #{efficient_sam_forward.13} parent=11 // pred_fallthru
          _
      $region12: #{efficient_sam_forward.13} parent=5 // pred_fallthru
        _
      %p127 = scmp.lt.s32.totalorder %s12, 6
      // Predicated region
      $region21: #{efficient_sam_forward.13} parent=5 // pred_check
        %p128 = pneg %p127
      $region22: #{efficient_sam_forward.13} parent=5 // pred_check_branch
        %130 = sbr.rel (%p128) target = $region24
      $region23: #{efficient_sam_forward.13} parent=5 // pred_region
        // Predicated region
        $region25: #{efficient_sam_forward.13} parent=23 // pred_check
          %p131 = pneg %p32
        $region26: #{efficient_sam_forward.13} parent=23 // pred_check_branch
          %133 = sbr.rel (%p131) target = $region28
        $region27: #{efficient_sam_forward.13} parent=23 // pred_region
          %p134 = scmp.lt.s32.totalorder %s12, 5
          %s135 = scalar_select %p134, %s12, 5
          %s136 = smul.addr %s135, 2
          %s137 = smul.addr %s136, 8
          %s138 = scalar_lea.vmem %s0, %s137
        $region28: #{efficient_sam_forward.13} parent=23 // pred_fallthru
          _
      $region24: #{efficient_sam_forward.13} parent=5 // pred_fallthru
        _
      %p139 = scmp.le.s32.totalorder 1, %s12
      %p140 = scmp.lt.s32.totalorder %s12, 7
      %p141 = pnand %p139, %p140
      %p142 = pneg %p141
      // Predicated region
      $region29: #{efficient_sam_forward.13} parent=5 // pred_check
        _
      $region30: #{efficient_sam_forward.13} parent=5 // pred_check_branch
        %144 = sbr.rel (%p141) target = $region32
      $region31: #{efficient_sam_forward.13} parent=5 // pred_region
        %s145 = ssub.s32 %s12, 1
        %p146 = scmp.lt.s32.totalorder %s17, 5
        %s147 = scalar_select %p146, %s17, 5
        %s148 = smul.addr %s147, 2
        %s149 = smul.addr %s148, 8
        %s150 = scalar_lea.vmem %s0, %s149
        %p151 = pneg %p38
        %p152 = pneg %p35
        %p153 = pneg %p59
        %p154 = pneg %p56
        %p155 = pneg %p80
        %p156 = pneg %p77
        %p157 = pneg %p106
        %p158 = pneg %p103
        %s159 = sand.u32 %s93, 1
        %s160 = scalar_lea.sflag [#allocation3], %s159
        %s161 = sand.u32 %s93, 1
        %s162 = smul.addr %s161, 32
        %s163 = scalar_lea.vmem [#allocation2], %s162
        %p164 = scmp.lt.s32.totalorder %s17, 5
        %s165 = scalar_select %p164, %s17, 5
        %s166 = smul.addr %s165, 2
        %s167 = smul.addr %s166, 8
        %s168 = scalar_lea.vmem %s0, %s167
        %v169 = vld [vmem:[%s1] sm:$0xff]
        %v170 = vld [vmem:[%s1 + $0x8] sm:$0xff]
        %v171 = vld [vmem:[%s1 + $0x10] sm:$0xff]
        %v172 = vld [vmem:[%s1 + $0x18] sm:$0xff]
        %v173 = vld [vmem:[%s168] sm:$0xff]
        %v174 = vld [vmem:[%s168 + $0x8] sm:$0xff]
        %vm175 = vcmask 130048
        %v177 = vsel %vm175, %v169, 0
        %v180 = vsel %vm175, %v170, 0
        %v183 = vsel %vm175, %v171, 0
        %v186 = vsel %vm175, %v172, 0
        %188 = vmatprep.subr.mxu0 0.0
        %189 = vmatpush1.msra.mxu0 %v173
        %190 = vmatprep.subr.mxu0 0.0
        %191 = vmatpush1.msra.mxu0 %v174
        %192 = vmatprep.subr.mxu0 0.0
        %193 = vmatpush1.msra.mxu0 0.0
        %194 = vmatprep.subr.mxu0 0.0
        %195 = vmatpush1.msra.mxu0 0.0
        %196 = vmatprep.subr.mxu0 0.0
        %197 = vmatpush1.msra.mxu0 0.0
        %198 = vmatprep.subr.mxu0 0.0
        %199 = vmatpush1.msra.mxu0 0.0
        %200 = vmatprep.subr.mxu0 0.0
        %201 = vmatpush1.msra.mxu0 0.0
        %202 = vmatprep.subr.mxu0 0.0
        %203 = vmatpush1.msra.mxu0 0.0
        %204 = vmatprep.subr.mxu0 0.0
        %205 = vmatpush1.msra.mxu0 0.0
        %206 = vmatprep.subr.mxu0 0.0
        %207 = vmatpush1.msra.mxu0 0.0
        %208 = vmatprep.subr.mxu0 0.0
        %209 = vmatpush1.msra.mxu0 0.0
        %210 = vmatprep.subr.mxu0 0.0
        %211 = vmatpush1.msra.mxu0 0.0
        %212 = vmatprep.subr.mxu0 0.0
        %213 = vmatpush1.msra.mxu0 0.0
        %214 = vmatprep.subr.mxu0 0.0
        %215 = vmatpush1.msra.mxu0 0.0
        %216 = vmatprep.subr.mxu0 0.0
        %217 = vmatpush1.msra.mxu0 0.0
        %218 = vmatprep.subr.mxu0 0.0
        %219 = vmatpush1.msra.mxu0 0.0
        %220 = vmatprep.subr.mxu0 0.0
        %221 = vmatpush1.msra.mxu0 0.0
        %222 = vmatprep.subr.mxu0 0.0
        %223 = vmatpush1.msra.mxu0 0.0
        %224 = vmatprep.subr.mxu0 0.0
        %225 = vmatpush1.msra.mxu0 0.0
        %226 = vmatprep.subr.mxu0 0.0
        %227 = vmatpush1.msra.mxu0 0.0
        %228 = vmatprep.subr.mxu0 0.0
        %229 = vmatpush1.msra.mxu0 0.0
        %230 = vmatprep.subr.mxu0 0.0
        %231 = vmatpush1.msra.mxu0 0.0
        %232 = vmatprep.subr.mxu0 0.0
        %233 = vmatpush1.msra.mxu0 0.0
        %234 = vmatprep.subr.mxu0 0.0
        %235 = vmatpush1.msra.mxu0 0.0
        %236 = vmatprep.subr.mxu0 0.0
        %237 = vmatpush1.msra.mxu0 0.0
        %238 = vmatprep.subr.mxu0 0.0
        %239 = vmatpush1.msra.mxu0 0.0
        %240 = vmatprep.subr.mxu0 0.0
        %241 = vmatpush1.msra.mxu0 0.0
        %242 = vmatprep.subr.mxu0 0.0
        %243 = vmatpush1.msra.mxu0 0.0
        %244 = vmatprep.subr.mxu0 0.0
        %245 = vmatpush1.msra.mxu0 0.0
        %246 = vmatprep.subr.mxu0 0.0
        %247 = vmatpush1.msra.mxu0 0.0
        %248 = vmatprep.subr.mxu0 0.0
        %249 = vmatpush1.msra.mxu0 0.0
        %250 = vmatprep.subr.mxu0 0.0
        %251 = vmatpush1.msra.mxu0 0.0
        %252 = vmatprep.mubr.f32.mxu0 0.0
        %253 = vmatmul.mubr.f32.gmra.mrb[0].mxu0 %v177
        %v254 = vpop.f32.mrb[0].mxu0
        %v255 = vadd.f32 0.0, %v254
        %v256 = vpop.f32.mrb[0].mxu0
        %257 = vmatprep.mubr.f32.mxu0 0.0
        %258 = vmatmul.mubr.f32.gmra.mrb[0].mxu0 %v180
        %v259 = vpop.f32.mrb[0].mxu0
        %v260 = vadd.f32 0.0, %v259
        %v261 = vpop.f32.mrb[0].mxu0
        %262 = vmatprep.mubr.f32.mxu0 0.0
        %263 = vmatmul.mubr.f32.gmra.mrb[0].mxu0 %v183
        %v264 = vpop.f32.mrb[0].mxu0
        %v265 = vadd.f32 0.0, %v264
        %v266 = vpop.f32.mrb[0].mxu0
        %267 = vmatprep.mubr.f32.mxu0 0.0
        %268 = vmatmul.mubr.f32.gmra.mrb[0].mxu0 %v186
        %v269 = vpop.f32.mrb[0].mxu0
        %v270 = vadd.f32 0.0, %v269
        %v271 = vpop.f32.mrb[0].mxu0
        %272 = vdwg.mxu0
        %v273 = vld [vmem:[%s2] sm:$0xff]
        %v274 = vld [vmem:[%s2 + $0x8] sm:$0xff]
        %v276 = vsel %vm175, %v255, 0
        %v279 = vsel %vm175, %v260, 0
        %v282 = vsel %vm175, %v265, 0
        %v285 = vsel %vm175, %v270, 0
        %287 = vmatprep.subr.mxu0 0.0
        %288 = vmatpush1.msra.mxu0 %v273
        %289 = vmatprep.subr.mxu0 0.0
        %290 = vmatpush1.msra.mxu0 %v274
        %291 = vmatprep.subr.mxu0 0.0
        %292 = vmatpush1.msra.mxu0 0.0
        %293 = vmatprep.subr.mxu0 0.0
        %294 = vmatpush1.msra.mxu0 0.0
        %295 = vmatprep.subr.mxu0 0.0
        %296 = vmatpush1.msra.mxu0 0.0
        %297 = vmatprep.subr.mxu0 0.0
        %298 = vmatpush1.msra.mxu0 0.0
        %299 = vmatprep.subr.mxu0 0.0
        %300 = vmatpush1.msra.mxu0 0.0
        %301 = vmatprep.subr.mxu0 0.0
        %302 = vmatpush1.msra.mxu0 0.0
        %303 = vmatprep.subr.mxu0 0.0
        %304 = vmatpush1.msra.mxu0 0.0
        %305 = vmatprep.subr.mxu0 0.0
        %306 = vmatpush1.msra.mxu0 0.0
        %307 = vmatprep.subr.mxu0 0.0
        %308 = vmatpush1.msra.mxu0 0.0
        %309 = vmatprep.subr.mxu0 0.0
        %310 = vmatpush1.msra.mxu0 0.0
        %311 = vmatprep.subr.mxu0 0.0
        %312 = vmatpush1.msra.mxu0 0.0
        %313 = vmatprep.subr.mxu0 0.0
        %314 = vmatpush1.msra.mxu0 0.0
        %315 = vmatprep.subr.mxu0 0.0
        %316 = vmatpush1.msra.mxu0 0.0
        %317 = vmatprep.subr.mxu0 0.0
        %318 = vmatpush1.msra.mxu0 0.0
        %319 = vmatprep.subr.mxu0 0.0
        %320 = vmatpush1.msra.mxu0 0.0
        %321 = vmatprep.subr.mxu0 0.0
        %322 = vmatpush1.msra.mxu0 0.0
        %323 = vmatprep.subr.mxu0 0.0
        %324 = vmatpush1.msra.mxu0 0.0
        %325 = vmatprep.subr.mxu0 0.0
        %326 = vmatpush1.msra.mxu0 0.0
        %327 = vmatprep.subr.mxu0 0.0
        %328 = vmatpush1.msra.mxu0 0.0
        %329 = vmatprep.subr.mxu0 0.0
        %330 = vmatpush1.msra.mxu0 0.0
        %331 = vmatprep.subr.mxu0 0.0
        %332 = vmatpush1.msra.mxu0 0.0
        %333 = vmatprep.subr.mxu0 0.0
        %334 = vmatpush1.msra.mxu0 0.0
        %335 = vmatprep.subr.mxu0 0.0
        %336 = vmatpush1.msra.mxu0 0.0
        %337 = vmatprep.subr.mxu0 0.0
        %338 = vmatpush1.msra.mxu0 0.0
        %339 = vmatprep.subr.mxu0 0.0
        %340 = vmatpush1.msra.mxu0 0.0
        %341 = vmatprep.subr.mxu0 0.0
        %342 = vmatpush1.msra.mxu0 0.0
        %343 = vmatprep.subr.mxu0 0.0
        %344 = vmatpush1.msra.mxu0 0.0
        %345 = vmatprep.subr.mxu0 0.0
        %346 = vmatpush1.msra.mxu0 0.0
        %347 = vmatprep.subr.mxu0 0.0
        %348 = vmatpush1.msra.mxu0 0.0
        %349 = vmatprep.subr.mxu0 0.0
        %350 = vmatpush1.msra.mxu0 0.0
        %351 = vmatprep.mubr.f32.mxu0 0.0
        %352 = vmatmul.mubr.f32.gmra.mrb[0].mxu0 %v276
        %v353 = vpop.f32.mrb[0].mxu0
        %v354 = vadd.f32 0.0, %v353
        %v355 = vpop.f32.mrb[0].mxu0
        %356 = vmatprep.mubr.f32.mxu0 0.0
        %357 = vmatmul.mubr.f32.gmra.mrb[0].mxu0 %v279
        %v358 = vpop.f32.mrb[0].mxu0
        %v359 = vadd.f32 0.0, %v358
        %v360 = vpop.f32.mrb[0].mxu0
        %361 = vmatprep.mubr.f32.mxu0 0.0
        %362 = vmatmul.mubr.f32.gmra.mrb[0].mxu0 %v282
        %v363 = vpop.f32.mrb[0].mxu0
        %v364 = vadd.f32 0.0, %v363
        %v365 = vpop.f32.mrb[0].mxu0
        %366 = vmatprep.mubr.f32.mxu0 0.0
        %367 = vmatmul.mubr.f32.gmra.mrb[0].mxu0 %v285
        %v368 = vpop.f32.mrb[0].mxu0
        %v369 = vadd.f32 0.0, %v368
        %v370 = vpop.f32.mrb[0].mxu0
        %371 = vdwg.mxu0
        %vm372 = vcmask 261120
        %373 = vst.msk [vmem:[%s163] sm:$0xff] %vm372, %v354
        %374 = vst.msk [vmem:[%s163 + $0x8] sm:$0xff] %vm372, %v359
        %375 = vst.msk [vmem:[%s163 + $0x10] sm:$0xff] %vm372, %v364
        %376 = vst.msk [vmem:[%s163 + $0x18] sm:$0xff] %vm372, %v369
        %s377 = sand.u32 %s93, 1
        %s378 = scalar_lea.sflag [#allocation3], %s377
        %s379 = sand.u32 %s93, 1
        %s380 = smul.addr %s379, 32
        %s381 = scalar_lea.vmem [#allocation2], %s380
        // Predicated region
        $region33: #{efficient_sam_forward.13} parent=31 // pred_check
          %p382 = pneg %p103
        $region34: #{efficient_sam_forward.13} parent=31 // pred_check_branch
          %384 = sbr.rel (%p382) target = $region36
        $region35: #{efficient_sam_forward.13} parent=31 // pred_region
          %s386 = ssub.s32 512, 512
          %387 = vsyncadd %s378, %s386
          %s388 = smul.addr %s17, 4
          %s389 = smul.addr %s388, 128
          %s390 = scalar_lea.hbm %s3, %s389
          %s391 = sshll.u32 %s381, 4
          %s392 = int_to_ptr.vmem [resolvable:$true] %s391
          %397 = dma.vmem_to_hbm [thread:$0]  %s392, 512, %s390, %s378, 128, 128, 8
        $region36: #{efficient_sam_forward.13} parent=31 // pred_fallthru
          _
      $region32: #{efficient_sam_forward.13} parent=5 // pred_fallthru
        _
      %p398 = scmp.le.s32.totalorder 2, %s12
      // Predicated region
      $region37: #{efficient_sam_forward.13} parent=5 // pred_check
        %p399 = pneg %p398
      $region38: #{efficient_sam_forward.13} parent=5 // pred_check_branch
        %401 = sbr.rel (%p399) target = $region40
      $region39: #{efficient_sam_forward.13} parent=5 // pred_region
        %s402 = ssub.s32 %s12, 2
        // Predicated region
        $region41: #{efficient_sam_forward.13} parent=39 // pred_check
          %p403 = pneg %p109
        $region42: #{efficient_sam_forward.13} parent=39 // pred_check_branch
          %405 = sbr.rel (%p403) target = $region44
        $region43: #{efficient_sam_forward.13} parent=39 // pred_region
          %s406 = sand.u32 %s94, 1
          %s407 = scalar_lea.sflag [#allocation3], %s406
          %s408 = sand.u32 %s94, 1
          %s409 = smul.addr %s408, 32
          %s410 = scalar_lea.vmem [#allocation2], %s409
          %411 = dma.done %s407, 512
        $region44: #{efficient_sam_forward.13} parent=39 // pred_fallthru
          _
      $region40: #{efficient_sam_forward.13} parent=5 // pred_fallthru
        _
    $region6: #{efficient_sam_forward.13} parent=1 // loop_footer
      %s16 = sadd.s32 1, %s12
    $region7: #{efficient_sam_forward.13} parent=1 // loop_footer_branch
      %11 = sbr.rel target = $region3
    $region8: #{efficient_sam_forward.13} parent=1 // loop_exit
      _
    %412 = vsyncpa [#allocation3], 1
    %s413 = scalar_lea.sflag [#allocation3], 1
    %414 = vsyncpa %s413, 1

// kernel: efficient_sam_forward.12
$region0: #{efficient_sam_forward.12}
  #allocation0 [shape = 'u32[]', space=smem, size = 0x4, offset = 0x4, fixed_abs, tag = 'smem constant byte address 0x4 - core index']
  #allocation1 [shape = 'u32[144,128]{1,0:T(1,128)}', space=vmem, size = 0x12000, scoped, tag = 'internal scratch']
  %s0 = inlined_call_operand.vmem [shape: f32[2,1,64], index: 0, kind: input, shape index: {}]
  %s1 = inlined_call_operand.vmem [shape: f32[2,1,16], index: 1, kind: input, shape index: {}]
  %s2 = inlined_call_operand.vmem [shape: f32[2,2,256], index: 2, kind: input, shape index: {}]
  %s3 = inlined_call_operand.vmem [shape: bf16[64,64], index: 3, kind: input, shape index: {}]
  %s4 = inlined_call_operand.vmem [shape: f32[1,64], index: 4, kind: input, shape index: {}]
  %s5 = inlined_call_operand.vmem [shape: bf16[64,64], index: 5, kind: input, shape index: {}]
  %s6 = inlined_call_operand.vmem [shape: f32[1,64], index: 6, kind: input, shape index: {}]
  %s7 = inlined_call_operand.vmem [shape: bf16[64,8], index: 7, kind: input, shape index: {}]
  %s8 = inlined_call_operand.vmem [shape: f32[1,8], index: 8, kind: input, shape index: {}]
  %s9 = inlined_call_operand.vmem [shape: bf16[16,16], index: 9, kind: input, shape index: {}]
  %s10 = inlined_call_operand.vmem [shape: f32[1,16], index: 10, kind: input, shape index: {}]
  %s11 = inlined_call_operand.vmem [shape: bf16[16,16], index: 11, kind: input, shape index: {}]
  %s12 = inlined_call_operand.vmem [shape: f32[1,16], index: 12, kind: input, shape index: {}]
  %s13 = inlined_call_operand.vmem [shape: bf16[16,4], index: 13, kind: input, shape index: {}]
  %s14 = inlined_call_operand.vmem [shape: f32[1,4], index: 14, kind: input, shape index: {}]
  %s15 = inlined_call_operand.vmem [shape: f32[2,4,256], index: 15, kind: output, shape index: {0}]
  %s16 = inlined_call_operand.vmem [shape: f32[2,1,4], index: 16, kind: output, shape index: {1}]
  %17 = xla_tuple %s15, %s16
  %s18 = sld [smem:[#allocation0]]
  $region101: #{efficient_sam_forward.12} parent=0
    _
  %s20 = ssub.s32 1, %s18
  %s21 = scalar_select 0, %s20, %s18
  loop: start=0, step=1, limit=4
  $region2: #{efficient_sam_forward.12} parent=0 // loop_pre_header
    _
  $region3: #{efficient_sam_forward.12} parent=0 // loop_header
    %s23 = sphi 0, %s27
    %p24 = scmp.ge.s32.totalorder %s23, 4
    %s33 = sphi 0, %s35
    %s36 = sphi 0, %s33
    %s37 = sphi 0, %s36
    %s53 = sphi 0, %s37
    %s59 = sphi 0, %s61
    %s62 = sphi 0, %s59
    %s63 = sphi 0, %s62
    %s79 = sphi 0, %s63
    %s85 = sphi 0, %s87
    %s88 = sphi 0, %s85
    %s89 = sphi 0, %s88
    %s105 = sphi 0, %s89
    %s109 = sphi 0, %s109
    %s111 = sphi 0, %s109
    %s112 = sphi 0, %s111
    %s126 = sphi 0, %s112
    %s130 = sphi 0, %s130
    %s132 = sphi 0, %s130
    %s133 = sphi 0, %s132
    %s147 = sphi 0, %s133
    %s151 = sphi 0, %s151
    %s153 = sphi 0, %s151
    %s154 = sphi 0, %s153
    %s168 = sphi 0, %s154
    %s172 = sphi 0, %s172
    %s174 = sphi 0, %s172
    %s175 = sphi 0, %s174
    %s189 = sphi 0, %s175
    %s193 = sphi 0, %s193
    %s195 = sphi 0, %s193
    %s196 = sphi 0, %s195
    %s210 = sphi 0, %s196
    %s214 = sphi 0, %s214
    %s216 = sphi 0, %s214
    %s217 = sphi 0, %s216
    %s231 = sphi 0, %s217
    %s235 = sphi 0, %s235
    %s237 = sphi 0, %s235
    %s238 = sphi 0, %s237
    %s252 = sphi 0, %s238
    %s256 = sphi 0, %s256
    %s258 = sphi 0, %s256
    %s259 = sphi 0, %s258
    %s273 = sphi 0, %s259
    %s277 = sphi 0, %s277
    %s279 = sphi 0, %s277
    %s280 = sphi 0, %s279
    %s294 = sphi 0, %s280
    %s298 = sphi 0, %s298
    %s300 = sphi 0, %s298
    %s301 = sphi 0, %s300
    %s315 = sphi 0, %s301
    %s319 = sphi 0, %s319
    %s321 = sphi 0, %s319
    %s322 = sphi 0, %s321
    %s336 = sphi 0, %s322
    %s340 = sphi 0, %s340
    %s342 = sphi 0, %s340
    %s343 = sphi 0, %s342
    %s357 = sphi 0, %s343
    %s363 = sphi 0, %s365
    %s366 = sphi 0, %s363
    %s367 = sphi 0, %s366
    %s383 = sphi 0, %s367
    %s389 = sphi 0, %s391
    %s392 = sphi 0, %s389
    %s393 = sphi 0, %s392
    %s409 = sphi 0, %s393
  $region4: #{efficient_sam_forward.12} parent=0 // loop_header_branch
    %26 = sbr.rel (%p24) target = $region8
  $region5: #{efficient_sam_forward.12} parent=0 // loop_body
    %s28 = ssub.s32 %s23, 1
    %s29 = ssub.s32 %s23, 2
    %s30 = sadd.s32 %s23, 1
    %s31 = ssub.s32 %s23, %s30
    %p32 = scmp.eq.s32.totalorder %s31, 0
    %s34 = sadd.s32 %s33, 1
    %s35 = scalar_select %p32, %s33, %s34
    %p38 = pneg %p32
    %p39 = scmp.eq.s32.totalorder %s23, 1
    %p40 = por %p38, %p39
    %p41 = scmp.ne.s32.totalorder %s33, %s36
    %p42 = scmp.eq.s32.totalorder %s23, 0
    %p43 = por %p41, %p42
    %p44 = scmp.ne.s32.totalorder %s33, %s36
    %p45 = scmp.eq.s32.totalorder %s28, 1
    %p46 = por %p44, %p45
    %p47 = scmp.ne.s32.totalorder %s36, %s37
    %p48 = scmp.eq.s32.totalorder %s28, 0
    %p49 = por %p47, %p48
    %p50 = scmp.ne.s32.totalorder %s36, %s37
    %p51 = scmp.eq.s32.totalorder %s29, 1
    %p52 = por %p50, %p51
    %p54 = scmp.ne.s32.totalorder %s37, %s53
    %p55 = scmp.eq.s32.totalorder %s29, 0
    %p56 = por %p54, %p55
    %s57 = ssub.s32 %s23, %s30
    %p58 = scmp.eq.s32.totalorder %s57, 0
    %s60 = sadd.s32 %s59, 1
    %s61 = scalar_select %p58, %s59, %s60
    %p64 = pneg %p58
    %p65 = scmp.eq.s32.totalorder %s23, 1
    %p66 = por %p64, %p65
    %p67 = scmp.ne.s32.totalorder %s59, %s62
    %p68 = scmp.eq.s32.totalorder %s23, 0
    %p69 = por %p67, %p68
    %p70 = scmp.ne.s32.totalorder %s59, %s62
    %p71 = scmp.eq.s32.totalorder %s28, 1
    %p72 = por %p70, %p71
    %p73 = scmp.ne.s32.totalorder %s62, %s63
    %p74 = scmp.eq.s32.totalorder %s28, 0
    %p75 = por %p73, %p74
    %p76 = scmp.ne.s32.totalorder %s62, %s63
    %p77 = scmp.eq.s32.totalorder %s29, 1
    %p78 = por %p76, %p77
    %p80 = scmp.ne.s32.totalorder %s63, %s79
    %p81 = scmp.eq.s32.totalorder %s29, 0
    %p82 = por %p80, %p81
    %s83 = ssub.s32 %s23, %s30
    %p84 = scmp.eq.s32.totalorder %s83, 0
    %s86 = sadd.s32 %s85, 1
    %s87 = scalar_select %p84, %s85, %s86
    %p90 = pneg %p84
    %p91 = scmp.eq.s32.totalorder %s23, 1
    %p92 = por %p90, %p91
    %p93 = scmp.ne.s32.totalorder %s85, %s88
    %p94 = scmp.eq.s32.totalorder %s23, 0
    %p95 = por %p93, %p94
    %p96 = scmp.ne.s32.totalorder %s85, %s88
    %p97 = scmp.eq.s32.totalorder %s28, 1
    %p98 = por %p96, %p97
    %p99 = scmp.ne.s32.totalorder %s88, %s89
    %p100 = scmp.eq.s32.totalorder %s28, 0
    %p101 = por %p99, %p100
    %p102 = scmp.ne.s32.totalorder %s88, %s89
    %p103 = scmp.eq.s32.totalorder %s29, 1
    %p104 = por %p102, %p103
    %p106 = scmp.ne.s32.totalorder %s89, %s105
    %p107 = scmp.eq.s32.totalorder %s29, 0
    %p108 = por %p106, %p107
    %s110 = sadd.s32 %s109, 1
    %p113 = scmp.eq.s32.totalorder %s23, 1
    %p114 = scmp.ne.s32.totalorder %s109, %s111
    %p115 = scmp.eq.s32.totalorder %s23, 0
    %p116 = por %p114, %p115
    %p117 = scmp.ne.s32.totalorder %s109, %s111
    %p118 = scmp.eq.s32.totalorder %s28, 1
    %p119 = por %p117, %p118
    %p120 = scmp.ne.s32.totalorder %s111, %s112
    %p121 = scmp.eq.s32.totalorder %s28, 0
    %p122 = por %p120, %p121
    %p123 = scmp.ne.s32.totalorder %s111, %s112
    %p124 = scmp.eq.s32.totalorder %s29, 1
    %p125 = por %p123, %p124
    %p127 = scmp.ne.s32.totalorder %s112, %s126
    %p128 = scmp.eq.s32.totalorder %s29, 0
    %p129 = por %p127, %p128
    %s131 = sadd.s32 %s130, 1
    %p134 = scmp.eq.s32.totalorder %s23, 1
    %p135 = scmp.ne.s32.totalorder %s130, %s132
    %p136 = scmp.eq.s32.totalorder %s23, 0
    %p137 = por %p135, %p136
    %p138 = scmp.ne.s32.totalorder %s130, %s132
    %p139 = scmp.eq.s32.totalorder %s28, 1
    %p140 = por %p138, %p139
    %p141 = scmp.ne.s32.totalorder %s132, %s133
    %p142 = scmp.eq.s32.totalorder %s28, 0
    %p143 = por %p141, %p142
    %p144 = scmp.ne.s32.totalorder %s132, %s133
    %p145 = scmp.eq.s32.totalorder %s29, 1
    %p146 = por %p144, %p145
    %p148 = scmp.ne.s32.totalorder %s133, %s147
    %p149 = scmp.eq.s32.totalorder %s29, 0
    %p150 = por %p148, %p149
    %s152 = sadd.s32 %s151, 1
    %p155 = scmp.eq.s32.totalorder %s23, 1
    %p156 = scmp.ne.s32.totalorder %s151, %s153
    %p157 = scmp.eq.s32.totalorder %s23, 0
    %p158 = por %p156, %p157
    %p159 = scmp.ne.s32.totalorder %s151, %s153
    %p160 = scmp.eq.s32.totalorder %s28, 1
    %p161 = por %p159, %p160
    %p162 = scmp.ne.s32.totalorder %s153, %s154
    %p163 = scmp.eq.s32.totalorder %s28, 0
    %p164 = por %p162, %p163
    %p165 = scmp.ne.s32.totalorder %s153, %s154
    %p166 = scmp.eq.s32.totalorder %s29, 1
    %p167 = por %p165, %p166
    %p169 = scmp.ne.s32.totalorder %s154, %s168
    %p170 = scmp.eq.s32.totalorder %s29, 0
    %p171 = por %p169, %p170
    %s173 = sadd.s32 %s172, 1
    %p176 = scmp.eq.s32.totalorder %s23, 1
    %p177 = scmp.ne.s32.totalorder %s172, %s174
    %p178 = scmp.eq.s32.totalorder %s23, 0
    %p179 = por %p177, %p178
    %p180 = scmp.ne.s32.totalorder %s172, %s174
    %p181 = scmp.eq.s32.totalorder %s28, 1
    %p182 = por %p180, %p181
    %p183 = scmp.ne.s32.totalorder %s174, %s175
    %p184 = scmp.eq.s32.totalorder %s28, 0
    %p185 = por %p183, %p184
    %p186 = scmp.ne.s32.totalorder %s174, %s175
    %p187 = scmp.eq.s32.totalorder %s29, 1
    %p188 = por %p186, %p187
    %p190 = scmp.ne.s32.totalorder %s175, %s189
    %p191 = scmp.eq.s32.totalorder %s29, 0
    %p192 = por %p190, %p191
    %s194 = sadd.s32 %s193, 1
    %p197 = scmp.eq.s32.totalorder %s23, 1
    %p198 = scmp.ne.s32.totalorder %s193, %s195
    %p199 = scmp.eq.s32.totalorder %s23, 0
    %p200 = por %p198, %p199
    %p201 = scmp.ne.s32.totalorder %s193, %s195
    %p202 = scmp.eq.s32.totalorder %s28, 1
    %p203 = por %p201, %p202
    %p204 = scmp.ne.s32.totalorder %s195, %s196
    %p205 = scmp.eq.s32.totalorder %s28, 0
    %p206 = por %p204, %p205
    %p207 = scmp.ne.s32.totalorder %s195, %s196
    %p208 = scmp.eq.s32.totalorder %s29, 1
    %p209 = por %p207, %p208
    %p211 = scmp.ne.s32.totalorder %s196, %s210
    %p212 = scmp.eq.s32.totalorder %s29, 0
    %p213 = por %p211, %p212
    %s215 = sadd.s32 %s214, 1
    %p218 = scmp.eq.s32.totalorder %s23, 1
    %p219 = scmp.ne.s32.totalorder %s214, %s216
    %p220 = scmp.eq.s32.totalorder %s23, 0
    %p221 = por %p219, %p220
    %p222 = scmp.ne.s32.totalorder %s214, %s216
    %p223 = scmp.eq.s32.totalorder %s28, 1
    %p224 = por %p222, %p223
    %p225 = scmp.ne.s32.totalorder %s216, %s217
    %p226 = scmp.eq.s32.totalorder %s28, 0
    %p227 = por %p225, %p226
    %p228 = scmp.ne.s32.totalorder %s216, %s217
    %p229 = scmp.eq.s32.totalorder %s29, 1
    %p230 = por %p228, %p229
    %p232 = scmp.ne.s32.totalorder %s217, %s231
    %p233 = scmp.eq.s32.totalorder %s29, 0
    %p234 = por %p232, %p233
    %s236 = sadd.s32 %s235, 1
    %p239 = scmp.eq.s32.totalorder %s23, 1
    %p240 = scmp.ne.s32.totalorder %s235, %s237
    %p241 = scmp.eq.s32.totalorder %s23, 0
    %p242 = por %p240, %p241
    %p243 = scmp.ne.s32.totalorder %s235, %s237
    %p244 = scmp.eq.s32.totalorder %s28, 1
    %p245 = por %p243, %p244
    %p246 = scmp.ne.s32.totalorder %s237, %s238
    %p247 = scmp.eq.s32.totalorder %s28, 0
    %p248 = por %p246, %p247
    %p249 = scmp.ne.s32.totalorder %s237, %s238
    %p250 = scmp.eq.s32.totalorder %s29, 1
    %p251 = por %p249, %p250
    %p253 = scmp.ne.s32.totalorder %s238, %s252
    %p254 = scmp.eq.s32.totalorder %s29, 0
    %p255 = por %p253, %p254
    %s257 = sadd.s32 %s256, 1
    %p260 = scmp.eq.s32.totalorder %s23, 1
    %p261 = scmp.ne.s32.totalorder %s256, %s258
    %p262 = scmp.eq.s32.totalorder %s23, 0
    %p263 = por %p261, %p262
    %p264 = scmp.ne.s32.totalorder %s256, %s258
    %p265 = scmp.eq.s32.totalorder %s28, 1
    %p266 = por %p264, %p265
    %p267 = scmp.ne.s32.totalorder %s258, %s259
    %p268 = scmp.eq.s32.totalorder %s28, 0
    %p269 = por %p267, %p268
    %p270 = scmp.ne.s32.totalorder %s258, %s259
    %p271 = scmp.eq.s32.totalorder %s29, 1
    %p272 = por %p270, %p271
    %p274 = scmp.ne.s32.totalorder %s259, %s273
    %p275 = scmp.eq.s32.totalorder %s29, 0
    %p276 = por %p274, %p275
    %s278 = sadd.s32 %s277, 1
    %p281 = scmp.eq.s32.totalorder %s23, 1
    %p282 = scmp.ne.s32.totalorder %s277, %s279
    %p283 = scmp.eq.s32.totalorder %s23, 0
    %p284 = por %p282, %p283
    %p285 = scmp.ne.s32.totalorder %s277, %s279
    %p286 = scmp.eq.s32.totalorder %s28, 1
    %p287 = por %p285, %p286
    %p288 = scmp.ne.s32.totalorder %s279, %s280
    %p289 = scmp.eq.s32.totalorder %s28, 0
    %p290 = por %p288, %p289
    %p291 = scmp.ne.s32.totalorder %s279, %s280
    %p292 = scmp.eq.s32.totalorder %s29, 1
    %p293 = por %p291, %p292
    %p295 = scmp.ne.s32.totalorder %s280, %s294
    %p296 = scmp.eq.s32.totalorder %s29, 0
    %p297 = por %p295, %p296
    %s299 = sadd.s32 %s298, 1
    %p302 = scmp.eq.s32.totalorder %s23, 1
    %p303 = scmp.ne.s32.totalorder %s298, %s300
    %p304 = scmp.eq.s32.totalorder %s23, 0
    %p305 = por %p303, %p304
    %p306 = scmp.ne.s32.totalorder %s298, %s300
    %p307 = scmp.eq.s32.totalorder %s28, 1
    %p308 = por %p306, %p307
    %p309 = scmp.ne.s32.totalorder %s300, %s301
    %p310 = scmp.eq.s32.totalorder %s28, 0
    %p311 = por %p309, %p310
    %p312 = scmp.ne.s32.totalorder %s300, %s301
    %p313 = scmp.eq.s32.totalorder %s29, 1
    %p314 = por %p312, %p313
    %p316 = scmp.ne.s32.totalorder %s301, %s315
    %p317 = scmp.eq.s32.totalorder %s29, 0
    %p318 = por %p316, %p317
    %s320 = sadd.s32 %s319, 1
    %p323 = scmp.eq.s32.totalorder %s23, 1
    %p324 = scmp.ne.s32.totalorder %s319, %s321
    %p325 = scmp.eq.s32.totalorder %s23, 0
    %p326 = por %p324, %p325
    %p327 = scmp.ne.s32.totalorder %s319, %s321
    %p328 = scmp.eq.s32.totalorder %s28, 1
    %p329 = por %p327, %p328
    %p330 = scmp.ne.s32.totalorder %s321, %s322
    %p331 = scmp.eq.s32.totalorder %s28, 0
    %p332 = por %p330, %p331
    %p333 = scmp.ne.s32.totalorder %s321, %s322
    %p334 = scmp.eq.s32.totalorder %s29, 1
    %p335 = por %p333, %p334
    %p337 = scmp.ne.s32.totalorder %s322, %s336
    %p338 = scmp.eq.s32.totalorder %s29, 0
    %p339 = por %p337, %p338
    %s341 = sadd.s32 %s340, 1
    %p344 = scmp.eq.s32.totalorder %s23, 1
    %p345 = scmp.ne.s32.totalorder %s340, %s342
    %p346 = scmp.eq.s32.totalorder %s23, 0
    %p347 = por %p345, %p346
    %p348 = scmp.ne.s32.totalorder %s340, %s342
    %p349 = scmp.eq.s32.totalorder %s28, 1
    %p350 = por %p348, %p349
    %p351 = scmp.ne.s32.totalorder %s342, %s343
    %p352 = scmp.eq.s32.totalorder %s28, 0
    %p353 = por %p351, %p352
    %p354 = scmp.ne.s32.totalorder %s342, %s343
    %p355 = scmp.eq.s32.totalorder %s29, 1
    %p356 = por %p354, %p355
    %p358 = scmp.ne.s32.totalorder %s343, %s357
    %p359 = scmp.eq.s32.totalorder %s29, 0
    %p360 = por %p358, %p359
    %s361 = ssub.s32 %s23, %s30
    %p362 = scmp.eq.s32.totalorder %s361, 0
    %s364 = sadd.s32 %s363, 1
    %s365 = scalar_select %p362, %s363, %s364
    %p368 = pneg %p362
    %p369 = scmp.eq.s32.totalorder %s23, 1
    %p370 = por %p368, %p369
    %p371 = scmp.ne.s32.totalorder %s363, %s366
    %p372 = scmp.eq.s32.totalorder %s23, 0
    %p373 = por %p371, %p372
    %p374 = scmp.ne.s32.totalorder %s363, %s366
    %p375 = scmp.eq.s32.totalorder %s28, 1
    %p376 = por %p374, %p375
    %p377 = scmp.ne.s32.totalorder %s366, %s367
    %p378 = scmp.eq.s32.totalorder %s28, 0
    %p379 = por %p377, %p378
    %p380 = scmp.ne.s32.totalorder %s366, %s367
    %p381 = scmp.eq.s32.totalorder %s29, 1
    %p382 = por %p380, %p381
    %p384 = scmp.ne.s32.totalorder %s367, %s383
    %p385 = scmp.eq.s32.totalorder %s29, 0
    %p386 = por %p384, %p385
    %s387 = ssub.s32 %s23, %s30
    %p388 = scmp.eq.s32.totalorder %s387, 0
    %s390 = sadd.s32 %s389, 1
    %s391 = scalar_select %p388, %s389, %s390
    %p394 = pneg %p388
    %p395 = scmp.eq.s32.totalorder %s23, 1
    %p396 = por %p394, %p395
    %p397 = scmp.ne.s32.totalorder %s389, %s392
    %p398 = scmp.eq.s32.totalorder %s23, 0
    %p399 = por %p397, %p398
    %p400 = scmp.ne.s32.totalorder %s389, %s392
    %p401 = scmp.eq.s32.totalorder %s28, 1
    %p402 = por %p400, %p401
    %p403 = scmp.ne.s32.totalorder %s392, %s393
    %p404 = scmp.eq.s32.totalorder %s28, 0
    %p405 = por %p403, %p404
    %p406 = scmp.ne.s32.totalorder %s392, %s393
    %p407 = scmp.eq.s32.totalorder %s29, 1
    %p408 = por %p406, %p407
    %p410 = scmp.ne.s32.totalorder %s393, %s409
    %p411 = scmp.eq.s32.totalorder %s29, 0
    %p412 = por %p410, %p411
    %p413 = scmp.le.s32.totalorder 1, %s23
    %p414 = scmp.lt.s32.totalorder %s23, 3
    %p415 = pnand %p413, %p414
    %p416 = pneg %p415
    // Predicated region
    $region9: #{efficient_sam_forward.12} parent=5 // pred_check
      _
    $region10: #{efficient_sam_forward.12} parent=5 // pred_check_branch
      %418 = sbr.rel (%p415) target = $region12
    $region11: #{efficient_sam_forward.12} parent=5 // pred_region
      %s419 = ssub.s32 %s23, 1
      // Predicated region
      $region13: #{efficient_sam_forward.12} parent=11 // pred_check
        %p420 = pneg %p122
      $region14: #{efficient_sam_forward.12} parent=11 // pred_check_branch
        %422 = sbr.rel (%p420) target = $region16
      $region15: #{efficient_sam_forward.12} parent=11 // pred_region
        _
      $region16: #{efficient_sam_forward.12} parent=11 // pred_fallthru
        _
      // Predicated region
      $region17: #{efficient_sam_forward.12} parent=11 // pred_check
        %p423 = pneg %p143
      $region18: #{efficient_sam_forward.12} parent=11 // pred_check_branch
        %425 = sbr.rel (%p423) target = $region20
      $region19: #{efficient_sam_forward.12} parent=11 // pred_region
        _
      $region20: #{efficient_sam_forward.12} parent=11 // pred_fallthru
        _
      // Predicated region
      $region21: #{efficient_sam_forward.12} parent=11 // pred_check
        %p426 = pneg %p164
      $region22: #{efficient_sam_forward.12} parent=11 // pred_check_branch
        %428 = sbr.rel (%p426) target = $region24
      $region23: #{efficient_sam_forward.12} parent=11 // pred_region
        _
      $region24: #{efficient_sam_forward.12} parent=11 // pred_fallthru
        _
      // Predicated region
      $region25: #{efficient_sam_forward.12} parent=11 // pred_check
        %p429 = pneg %p185
      $region26: #{efficient_sam_forward.12} parent=11 // pred_check_branch
        %431 = sbr.rel (%p429) target = $region28
      $region27: #{efficient_sam_forward.12} parent=11 // pred_region
        _
      $region28: #{efficient_sam_forward.12} parent=11 // pred_fallthru
        _
      // Predicated region
      $region29: #{efficient_sam_forward.12} parent=11 // pred_check
        %p432 = pneg %p206
      $region30: #{efficient_sam_forward.12} parent=11 // pred_check_branch
        %434 = sbr.rel (%p432) target = $region32
      $region31: #{efficient_sam_forward.12} parent=11 // pred_region
        _
      $region32: #{efficient_sam_forward.12} parent=11 // pred_fallthru
        _
      // Predicated region
      $region33: #{efficient_sam_forward.12} parent=11 // pred_check
        %p435 = pneg %p227
      $region34: #{efficient_sam_forward.12} parent=11 // pred_check_branch
        %437 = sbr.rel (%p435) target = $region36
      $region35: #{efficient_sam_forward.12} parent=11 // pred_region
        _
      $region36: #{efficient_sam_forward.12} parent=11 // pred_fallthru
        _
      // Predicated region
      $region37: #{efficient_sam_forward.12} parent=11 // pred_check
        %p438 = pneg %p248
      $region38: #{efficient_sam_forward.12} parent=11 // pred_check_branch
        %440 = sbr.rel (%p438) target = $region40
      $region39: #{efficient_sam_forward.12} parent=11 // pred_region
        _
      $region40: #{efficient_sam_forward.12} parent=11 // pred_fallthru
        _
      // Predicated region
      $region41: #{efficient_sam_forward.12} parent=11 // pred_check
        %p441 = pneg %p269
      $region42: #{efficient_sam_forward.12} parent=11 // pred_check_branch
        %443 = sbr.rel (%p441) target = $region44
      $region43: #{efficient_sam_forward.12} parent=11 // pred_region
        _
      $region44: #{efficient_sam_forward.12} parent=11 // pred_fallthru
        _
      // Predicated region
      $region45: #{efficient_sam_forward.12} parent=11 // pred_check
        %p444 = pneg %p290
      $region46: #{efficient_sam_forward.12} parent=11 // pred_check_branch
        %446 = sbr.rel (%p444) target = $region48
      $region47: #{efficient_sam_forward.12} parent=11 // pred_region
        _
      $region48: #{efficient_sam_forward.12} parent=11 // pred_fallthru
        _
      // Predicated region
      $region49: #{efficient_sam_forward.12} parent=11 // pred_check
        %p447 = pneg %p311
      $region50: #{efficient_sam_forward.12} parent=11 // pred_check_branch
        %449 = sbr.rel (%p447) target = $region52
      $region51: #{efficient_sam_forward.12} parent=11 // pred_region
        _
      $region52: #{efficient_sam_forward.12} parent=11 // pred_fallthru
        _
      // Predicated region
      $region53: #{efficient_sam_forward.12} parent=11 // pred_check
        %p450 = pneg %p332
      $region54: #{efficient_sam_forward.12} parent=11 // pred_check_branch
        %452 = sbr.rel (%p450) target = $region56
      $region55: #{efficient_sam_forward.12} parent=11 // pred_region
        _
      $region56: #{efficient_sam_forward.12} parent=11 // pred_fallthru
        _
      // Predicated region
      $region57: #{efficient_sam_forward.12} parent=11 // pred_check
        %p453 = pneg %p353
      $region58: #{efficient_sam_forward.12} parent=11 // pred_check_branch
        %455 = sbr.rel (%p453) target = $region60
      $region59: #{efficient_sam_forward.12} parent=11 // pred_region
        _
      $region60: #{efficient_sam_forward.12} parent=11 // pred_fallthru
        _
    $region12: #{efficient_sam_forward.12} parent=5 // pred_fallthru
      _
    %p456 = scmp.lt.s32.totalorder %s23, 2
    // Predicated region
    $region61: #{efficient_sam_forward.12} parent=5 // pred_check
      %p457 = pneg %p456
    $region62: #{efficient_sam_forward.12} parent=5 // pred_check_branch
      %459 = sbr.rel (%p457) target = $region64
    $region63: #{efficient_sam_forward.12} parent=5 // pred_region
      // Predicated region
      $region65: #{efficient_sam_forward.12} parent=63 // pred_check
        %p460 = pneg %p43
      $region66: #{efficient_sam_forward.12} parent=63 // pred_check_branch
        %462 = sbr.rel (%p460) target = $region68
      $region67: #{efficient_sam_forward.12} parent=63 // pred_region
        %p463 = scmp.lt.s32.totalorder %s23, 1
        %s464 = scalar_select %p463, %s23, 1
        %s465 = scalar_lea.vmem %s0, %s464
      $region68: #{efficient_sam_forward.12} parent=63 // pred_fallthru
        _
      // Predicated region
      $region69: #{efficient_sam_forward.12} parent=63 // pred_check
        %p466 = pneg %p69
      $region70: #{efficient_sam_forward.12} parent=63 // pred_check_branch
        %468 = sbr.rel (%p466) target = $region72
      $region71: #{efficient_sam_forward.12} parent=63 // pred_region
        %p469 = scmp.lt.s32.totalorder %s23, 1
        %s470 = scalar_select %p469, %s23, 1
        %s471 = scalar_lea.vmem %s1, %s470
      $region72: #{efficient_sam_forward.12} parent=63 // pred_fallthru
        _
      // Predicated region
      $region73: #{efficient_sam_forward.12} parent=63 // pred_check
        %p472 = pneg %p95
      $region74: #{efficient_sam_forward.12} parent=63 // pred_check_branch
        %474 = sbr.rel (%p472) target = $region76
      $region75: #{efficient_sam_forward.12} parent=63 // pred_region
        %p475 = scmp.lt.s32.totalorder %s23, 1
        %s476 = scalar_select %p475, %s23, 1
        %s477 = smul.addr %s476, 2
        %s478 = smul.addr %s477, 2
        %s479 = scalar_lea.vmem %s2, %s478
      $region76: #{efficient_sam_forward.12} parent=63 // pred_fallthru
        _
    $region64: #{efficient_sam_forward.12} parent=5 // pred_fallthru
      _
    %p480 = scmp.le.s32.totalorder 1, %s23
    %p481 = scmp.lt.s32.totalorder %s23, 3
    %p482 = pnand %p480, %p481
    %p483 = pneg %p482
    // Predicated region
    $region77: #{efficient_sam_forward.12} parent=5 // pred_check
      _
    $region78: #{efficient_sam_forward.12} parent=5 // pred_check_branch
      %485 = sbr.rel (%p482) target = $region80
    $region79: #{efficient_sam_forward.12} parent=5 // pred_region
      %s486 = ssub.s32 %s23, 1
      %p487 = scmp.lt.s32.totalorder %s28, 1
      %s488 = scalar_select %p487, %s28, 1
      %s489 = scalar_lea.vmem %s0, %s488
      %p490 = pneg %p49
      %p491 = pneg %p46
      %p492 = scmp.lt.s32.totalorder %s28, 1
      %s493 = scalar_select %p492, %s28, 1
      %s494 = scalar_lea.vmem %s1, %s493
      %p495 = pneg %p75
      %p496 = pneg %p72
      %p497 = scmp.lt.s32.totalorder %s28, 1
      %s498 = scalar_select %p497, %s28, 1
      %s499 = smul.addr %s498, 2
      %s500 = smul.addr %s499, 2
      %s501 = scalar_lea.vmem %s2, %s500
      %p502 = pneg %p101
      %p503 = pneg %p98
      %p504 = pneg %p122
      %p505 = pneg %p119
      %p506 = pneg %p143
      %p507 = pneg %p140
      %p508 = pneg %p164
      %p509 = pneg %p161
      %p510 = pneg %p185
      %p511 = pneg %p182
      %p512 = pneg %p206
      %p513 = pneg %p203
      %p514 = pneg %p227
      %p515 = pneg %p224
      %p516 = pneg %p248
      %p517 = pneg %p245
      %p518 = pneg %p269
      %p519 = pneg %p266
      %p520 = pneg %p290
      %p521 = pneg %p287
      %p522 = pneg %p311
      %p523 = pneg %p308
      %p524 = pneg %p332
      %p525 = pneg %p329
      %p526 = pneg %p353
      %p527 = pneg %p350
      %p528 = pneg %p379
      %p529 = pneg %p376
      %p530 = scmp.lt.s32.totalorder %s28, 1
      %s531 = scalar_select %p530, %s28, 1
      %s532 = smul.addr %s531, 2
      %s533 = smul.addr %s532, 4
      %s534 = scalar_lea.vmem %s15, %s533
      %p535 = pneg %p405
      %p536 = pneg %p402
      %p537 = scmp.lt.s32.totalorder %s28, 1
      %s538 = scalar_select %p537, %s28, 1
      %s539 = scalar_lea.vmem %s16, %s538
      %p540 = scmp.lt.s32.totalorder %s28, 1
      %s541 = scalar_select %p540, %s28, 1
      %s542 = scalar_lea.vmem %s0, %s541
      %p543 = scmp.lt.s32.totalorder %s28, 1
      %s544 = scalar_select %p543, %s28, 1
      %s545 = scalar_lea.vmem %s1, %s544
      %p546 = scmp.lt.s32.totalorder %s28, 1
      %s547 = scalar_select %p546, %s28, 1
      %s548 = smul.addr %s547, 2
      %s549 = smul.addr %s548, 2
      %s550 = scalar_lea.vmem %s2, %s549
      %p551 = scmp.lt.s32.totalorder %s28, 1
      %s552 = scalar_select %p551, %s28, 1
      %s553 = smul.addr %s552, 2
      %s554 = smul.addr %s553, 4
      %s555 = scalar_lea.vmem %s15, %s554
      %p556 = scmp.lt.s32.totalorder %s28, 1
      %s557 = scalar_select %p556, %s28, 1
      %s558 = scalar_lea.vmem %s16, %s557
      %v560 = vld [vmem:[%s542] sm:$0x1]
      %v561 = vld [vmem:[%s3] sm:$0xf]
      %v562 = vld [vmem:[%s3 + $0x4] sm:$0xf]
      %v563 = vld [vmem:[%s3 + $0x8] sm:$0xf]
      %v564 = vld [vmem:[%s3 + $0xc] sm:$0xf]
      %v565 = vld [vmem:[%s3 + $0x10] sm:$0xf]
      %v566 = vld [vmem:[%s3 + $0x14] sm:$0xf]
      %v567 = vld [vmem:[%s3 + $0x18] sm:$0xf]
      %v568 = vld [vmem:[%s3 + $0x1c] sm:$0xf]
      %v569 = vpack.c.bf16 %v560, %v560
      %v570 = vld [vmem:[%s4] sm:$0x1]
      %v579 = vunpack.c.l.b16 %v561
      %v580 = vunpack.c.l.b16 %v562
      %v581 = vunpack.c.l.b16 %v563
      %v582 = vunpack.c.l.b16 %v564
      %v583 = vunpack.c.l.b16 %v565
      %v584 = vunpack.c.l.b16 %v566
      %v585 = vunpack.c.l.b16 %v567
      %v586 = vunpack.c.l.b16 %v568
      %v587 = vpack.c.b16 %v580, %v579
      %v588 = vpack.c.b16 %v582, %v581
      %v589 = vpack.c.b16 %v584, %v583
      %v590 = vpack.c.b16 %v586, %v585
      %vm595 = vcmask 523264
      %v597 = vsel %vm595, %v569, 0
      %599 = vmatprep.subr.bf16.mxu0 0
      %600 = vmatpush1.bf16.msra.mxu0 %v587
      %601 = vmatprep.subr.bf16.mxu0 0
      %602 = vmatpush1.bf16.msra.mxu0 %v588
      %603 = vmatprep.subr.bf16.mxu0 0
      %604 = vmatpush1.bf16.msra.mxu0 %v589
      %605 = vmatprep.subr.bf16.mxu0 0
      %606 = vmatpush1.bf16.msra.mxu0 %v590
      %607 = vmatprep.subr.bf16.mxu0 0
      %608 = vmatpush1.bf16.msra.mxu0 0
      %609 = vmatprep.subr.bf16.mxu0 0
      %610 = vmatpush1.bf16.msra.mxu0 0
      %611 = vmatprep.subr.bf16.mxu0 0
      %612 = vmatpush1.bf16.msra.mxu0 0
      %613 = vmatprep.subr.bf16.mxu0 0
      %614 = vmatpush1.bf16.msra.mxu0 0
      %615 = vmatprep.subr.bf16.mxu0 0
      %616 = vmatpush1.bf16.msra.mxu0 0
      %617 = vmatprep.subr.bf16.mxu0 0
      %618 = vmatpush1.bf16.msra.mxu0 0
      %619 = vmatprep.subr.bf16.mxu0 0
      %620 = vmatpush1.bf16.msra.mxu0 0
      %621 = vmatprep.subr.bf16.mxu0 0
      %622 = vmatpush1.bf16.msra.mxu0 0
      %623 = vmatprep.subr.bf16.mxu0 0
      %624 = vmatpush1.bf16.msra.mxu0 0
      %625 = vmatprep.subr.bf16.mxu0 0
      %626 = vmatpush1.bf16.msra.mxu0 0
      %627 = vmatprep.subr.bf16.mxu0 0
      %628 = vmatpush1.bf16.msra.mxu0 0
      %629 = vmatprep.subr.bf16.mxu0 0
      %630 = vmatpush1.bf16.msra.mxu0 0
      %631 = vmatprep.mubr.bf16.mxu0 0
      %632 = vmatmul.mubr.bf16.gmra.mrb[0].mxu0 %v597
      %v633 = vpop.f32.mrb[0].mxu0
      %v634 = vadd.f32 %v570, %v633
      %v635 = vpop.f32.mrb[0].mxu0
      %v636 = vpop.f32.mrb[0].mxu0
      %v637 = vpop.f32.mrb[0].mxu0
      %638 = vdwg.mxu0
      %v639 = vmax.f32 %v634, 0.0
      %v640 = vld [vmem:[%s5] sm:$0xf]
      %v641 = vld [vmem:[%s5 + $0x4] sm:$0xf]
      %v642 = vld [vmem:[%s5 + $0x8] sm:$0xf]
      %v643 = vld [vmem:[%s5 + $0xc] sm:$0xf]
      %v644 = vld [vmem:[%s5 + $0x10] sm:$0xf]
      %v645 = vld [vmem:[%s5 + $0x14] sm:$0xf]
      %v646 = vld [vmem:[%s5 + $0x18] sm:$0xf]
      %v647 = vld [vmem:[%s5 + $0x1c] sm:$0xf]
      %v648 = vpack.c.bf16 %v639, %v639
      %v649 = vld [vmem:[%s6] sm:$0x1]
      %v658 = vunpack.c.l.b16 %v640
      %v659 = vunpack.c.l.b16 %v641
      %v660 = vunpack.c.l.b16 %v642
      %v661 = vunpack.c.l.b16 %v643
      %v662 = vunpack.c.l.b16 %v644
      %v663 = vunpack.c.l.b16 %v645
      %v664 = vunpack.c.l.b16 %v646
      %v665 = vunpack.c.l.b16 %v647
      %v666 = vpack.c.b16 %v659, %v658
      %v667 = vpack.c.b16 %v661, %v660
      %v668 = vpack.c.b16 %v663, %v662
      %v669 = vpack.c.b16 %v665, %v664
      %v675 = vsel %vm595, %v648, 0
      %677 = vmatprep.subr.bf16.mxu0 0
      %678 = vmatpush1.bf16.msra.mxu0 %v666
      %679 = vmatprep.subr.bf16.mxu0 0
      %680 = vmatpush1.bf16.msra.mxu0 %v667
      %681 = vmatprep.subr.bf16.mxu0 0
      %682 = vmatpush1.bf16.msra.mxu0 %v668
      %683 = vmatprep.subr.bf16.mxu0 0
      %684 = vmatpush1.bf16.msra.mxu0 %v669
      %685 = vmatprep.subr.bf16.mxu0 0
      %686 = vmatpush1.bf16.msra.mxu0 0
      %687 = vmatprep.subr.bf16.mxu0 0
      %688 = vmatpush1.bf16.msra.mxu0 0
      %689 = vmatprep.subr.bf16.mxu0 0
      %690 = vmatpush1.bf16.msra.mxu0 0
      %691 = vmatprep.subr.bf16.mxu0 0
      %692 = vmatpush1.bf16.msra.mxu0 0
      %693 = vmatprep.subr.bf16.mxu0 0
      %694 = vmatpush1.bf16.msra.mxu0 0
      %695 = vmatprep.subr.bf16.mxu0 0
      %696 = vmatpush1.bf16.msra.mxu0 0
      %697 = vmatprep.subr.bf16.mxu0 0
      %698 = vmatpush1.bf16.msra.mxu0 0
      %699 = vmatprep.subr.bf16.mxu0 0
      %700 = vmatpush1.bf16.msra.mxu0 0
      %701 = vmatprep.subr.bf16.mxu0 0
      %702 = vmatpush1.bf16.msra.mxu0 0
      %703 = vmatprep.subr.bf16.mxu0 0
      %704 = vmatpush1.bf16.msra.mxu0 0
      %705 = vmatprep.subr.bf16.mxu0 0
      %706 = vmatpush1.bf16.msra.mxu0 0
      %707 = vmatprep.subr.bf16.mxu0 0
      %708 = vmatpush1.bf16.msra.mxu0 0
      %709 = vmatprep.mubr.bf16.mxu0 0
      %710 = vmatmul.mubr.bf16.gmra.mrb[0].mxu0 %v675
      %v711 = vpop.f32.mrb[0].mxu0
      %v712 = vadd.f32 %v649, %v711
      %v713 = vpop.f32.mrb[0].mxu0
      %v714 = vpop.f32.mrb[0].mxu0
      %v715 = vpop.f32.mrb[0].mxu0
      %716 = vdwg.mxu0
      %v717 = vmax.f32 %v712, 0.0
      %v718 = vld [vmem:[%s7] sm:$0xf]
      %v719 = vld [vmem:[%s7 + $0x4] sm:$0xf]
      %v720 = vld [vmem:[%s7 + $0x8] sm:$0xf]
      %v721 = vld [vmem:[%s7 + $0xc] sm:$0xf]
      %v722 = vld [vmem:[%s7 + $0x10] sm:$0xf]
      %v723 = vld [vmem:[%s7 + $0x14] sm:$0xf]
      %v724 = vld [vmem:[%s7 + $0x18] sm:$0xf]
      %v725 = vld [vmem:[%s7 + $0x1c] sm:$0xf]
      %v726 = vpack.c.bf16 %v717, %v717
      %v727 = vld [vmem:[%s8] sm:$0x1]
      %v736 = vunpack.c.l.b16 %v718
      %v737 = vunpack.c.l.b16 %v719
      %v738 = vunpack.c.l.b16 %v720
      %v739 = vunpack.c.l.b16 %v721
      %v740 = vunpack.c.l.b16 %v722
      %v741 = vunpack.c.l.b16 %v723
      %v742 = vunpack.c.l.b16 %v724
      %v743 = vunpack.c.l.b16 %v725
      %v744 = vpack.c.b16 %v737, %v736
      %v745 = vpack.c.b16 %v739, %v738
      %v746 = vpack.c.b16 %v741, %v740
      %v747 = vpack.c.b16 %v743, %v742
      %v753 = vsel %vm595, %v726, 0
      %755 = vmatprep.subr.bf16.mxu0 0
      %756 = vmatpush1.bf16.msra.mxu0 %v744
      %757 = vmatprep.subr.bf16.mxu0 0
      %758 = vmatpush1.bf16.msra.mxu0 %v745
      %759 = vmatprep.subr.bf16.mxu0 0
      %760 = vmatpush1.bf16.msra.mxu0 %v746
      %761 = vmatprep.subr.bf16.mxu0 0
      %762 = vmatpush1.bf16.msra.mxu0 %v747
      %763 = vmatprep.subr.bf16.mxu0 0
      %764 = vmatpush1.bf16.msra.mxu0 0
      %765 = vmatprep.subr.bf16.mxu0 0
      %766 = vmatpush1.bf16.msra.mxu0 0
      %767 = vmatprep.subr.bf16.mxu0 0
      %768 = vmatpush1.bf16.msra.mxu0 0
      %769 = vmatprep.subr.bf16.mxu0 0
      %770 = vmatpush1.bf16.msra.mxu0 0
      %771 = vmatprep.subr.bf16.mxu0 0
      %772 = vmatpush1.bf16.msra.mxu0 0
      %773 = vmatprep.subr.bf16.mxu0 0
      %774 = vmatpush1.bf16.msra.mxu0 0
      %775 = vmatprep.subr.bf16.mxu0 0
      %776 = vmatpush1.bf16.msra.mxu0 0
      %777 = vmatprep.subr.bf16.mxu0 0
      %778 = vmatpush1.bf16.msra.mxu0 0
      %779 = vmatprep.subr.bf16.mxu0 0
      %780 = vmatpush1.bf16.msra.mxu0 0
      %781 = vmatprep.subr.bf16.mxu0 0
      %782 = vmatpush1.bf16.msra.mxu0 0
      %783 = vmatprep.subr.bf16.mxu0 0
      %784 = vmatpush1.bf16.msra.mxu0 0
      %785 = vmatprep.subr.bf16.mxu0 0
      %786 = vmatpush1.bf16.msra.mxu0 0
      %787 = vmatprep.mubr.bf16.mxu0 0
      %788 = vmatmul.mubr.bf16.gmra.mrb[0].mxu0 %v753
      %v789 = vpop.f32.mrb[0].mxu0
      %v790 = vadd.f32 %v727, %v789
      %v791 = vpop.f32.mrb[0].mxu0
      %v792 = vpop.f32.mrb[0].mxu0
      %v793 = vpop.f32.mrb[0].mxu0
      %794 = vdwg.mxu0
      %v795 = vld [vmem:[%s550] sm:$0xf]
      %v796 = vpack.c.bf16 %v790, %v790
      %v799 = vunpack.c.l.s4 1983009808
      %v800 = vunpack.c.0.s8 %v799
      %v801 = vlaneseq
      %v802 = vshrl.u32 %v801, 7
      %v803 = vsub.s32 %v800, %v802
      %v804 = vrot.slane %v795, %v803
      %v805 = vcombine.high %v804, %v804
      %v808 = vpack.c.bf16 %v804, %v804
      %v809 = vpack.c.bf16 %v805, %v805
      %vm810 = vcmask 15360
      %v812 = vsel %vm810, %v796, 0
      %vm814 = vcmask 1040384
      %v816 = vsel %vm814, %v808, 0
      %v819 = vsel %vm814, %v809, 0
      %821 = vmatprep.subr.bf16.mxu0 %v819
      %822 = vmatpush1.bf16.msra.mxu0 %v816
      %823 = vmatprep.subr.bf16.mxu0 0
      %824 = vmatpush1.bf16.msra.mxu0 0
      %825 = vmatprep.subr.bf16.mxu0 0
      %826 = vmatpush1.bf16.msra.mxu0 0
      %827 = vmatprep.subr.bf16.mxu0 0
      %828 = vmatpush1.bf16.msra.mxu0 0
      %829 = vmatprep.subr.bf16.mxu0 0
      %830 = vmatpush1.bf16.msra.mxu0 0
      %831 = vmatprep.subr.bf16.mxu0 0
      %832 = vmatpush1.bf16.msra.mxu0 0
      %833 = vmatprep.subr.bf16.mxu0 0
      %834 = vmatpush1.bf16.msra.mxu0 0
      %835 = vmatprep.subr.bf16.mxu0 0
      %836 = vmatpush1.bf16.msra.mxu0 0
      %837 = vmatprep.subr.bf16.mxu0 0
      %838 = vmatpush1.bf16.msra.mxu0 0
      %839 = vmatprep.subr.bf16.mxu0 0
      %840 = vmatpush1.bf16.msra.mxu0 0
      %841 = vmatprep.subr.bf16.mxu0 0
      %842 = vmatpush1.bf16.msra.mxu0 0
      %843 = vmatprep.subr.bf16.mxu0 0
      %844 = vmatpush1.bf16.msra.mxu0 0
      %845 = vmatprep.subr.bf16.mxu0 0
      %846 = vmatpush1.bf16.msra.mxu0 0
      %847 = vmatprep.subr.bf16.mxu0 0
      %848 = vmatpush1.bf16.msra.mxu0 0
      %849 = vmatprep.subr.bf16.mxu0 0
      %850 = vmatpush1.bf16.msra.mxu0 0
      %851 = vmatprep.subr.bf16.mxu0 0
      %852 = vmatpush1.bf16.msra.mxu0 0
      %853 = vmatprep.mubr.bf16.mxu0 0
      %854 = vmatmul.mubr.bf16.gmra.mrb[0].mxu0 %v812
      %v855 = vpop.f32.mrb[0].mxu0
      %v856 = vadd.f32 0.0, %v855
      %v857 = vpop.f32.mrb[0].mxu0
      %v858 = vadd.f32 0.0, %v857
      %v859 = vpop.f32.mrb[0].mxu0
      %v860 = vpop.f32.mrb[0].mxu0
      %861 = vdwg.mxu0
      %863 = vrot.lane.b32.xlu0 %v796, 126
      %v864 = vpop.permute.xlu0 %863
      %v866 = vsel %vm810, %v864, 0
      %868 = vmatprep.subr.bf16.mxu0 %v819
      %869 = vmatpush1.bf16.msra.mxu0 %v816
      %870 = vmatprep.subr.bf16.mxu0 0
      %871 = vmatpush1.bf16.msra.mxu0 0
      %872 = vmatprep.subr.bf16.mxu0 0
      %873 = vmatpush1.bf16.msra.mxu0 0
      %874 = vmatprep.subr.bf16.mxu0 0
      %875 = vmatpush1.bf16.msra.mxu0 0
      %876 = vmatprep.subr.bf16.mxu0 0
      %877 = vmatpush1.bf16.msra.mxu0 0
      %878 = vmatprep.subr.bf16.mxu0 0
      %879 = vmatpush1.bf16.msra.mxu0 0
      %880 = vmatprep.subr.bf16.mxu0 0
      %881 = vmatpush1.bf16.msra.mxu0 0
      %882 = vmatprep.subr.bf16.mxu0 0
      %883 = vmatpush1.bf16.msra.mxu0 0
      %884 = vmatprep.subr.bf16.mxu0 0
      %885 = vmatpush1.bf16.msra.mxu0 0
      %886 = vmatprep.subr.bf16.mxu0 0
      %887 = vmatpush1.bf16.msra.mxu0 0
      %888 = vmatprep.subr.bf16.mxu0 0
      %889 = vmatpush1.bf16.msra.mxu0 0
      %890 = vmatprep.subr.bf16.mxu0 0
      %891 = vmatpush1.bf16.msra.mxu0 0
      %892 = vmatprep.subr.bf16.mxu0 0
      %893 = vmatpush1.bf16.msra.mxu0 0
      %894 = vmatprep.subr.bf16.mxu0 0
      %895 = vmatpush1.bf16.msra.mxu0 0
      %896 = vmatprep.subr.bf16.mxu0 0
      %897 = vmatpush1.bf16.msra.mxu0 0
      %898 = vmatprep.subr.bf16.mxu0 0
      %899 = vmatpush1.bf16.msra.mxu0 0
      %900 = vmatprep.mubr.bf16.mxu0 0
      %901 = vmatmul.mubr.bf16.gmra.mrb[0].mxu0 %v866
      %v902 = vpop.f32.mrb[0].mxu0
      %v903 = vadd.f32 0.0, %v902
      %v904 = vpop.f32.mrb[0].mxu0
      %v905 = vadd.f32 0.0, %v904
      %v906 = vpop.f32.mrb[0].mxu0
      %v907 = vpop.f32.mrb[0].mxu0
      %908 = vdwg.mxu0
      %909 = vrot.lane.b32.xlu0 %v796, 124
      %v910 = vpop.permute.xlu0 %909
      %v912 = vsel %vm810, %v910, 0
      %914 = vmatprep.subr.bf16.mxu0 %v819
      %915 = vmatpush1.bf16.msra.mxu0 %v816
      %916 = vmatprep.subr.bf16.mxu0 0
      %917 = vmatpush1.bf16.msra.mxu0 0
      %918 = vmatprep.subr.bf16.mxu0 0
      %919 = vmatpush1.bf16.msra.mxu0 0
      %920 = vmatprep.subr.bf16.mxu0 0
      %921 = vmatpush1.bf16.msra.mxu0 0
      %922 = vmatprep.subr.bf16.mxu0 0
      %923 = vmatpush1.bf16.msra.mxu0 0
      %924 = vmatprep.subr.bf16.mxu0 0
      %925 = vmatpush1.bf16.msra.mxu0 0
      %926 = vmatprep.subr.bf16.mxu0 0
      %927 = vmatpush1.bf16.msra.mxu0 0
      %928 = vmatprep.subr.bf16.mxu0 0
      %929 = vmatpush1.bf16.msra.mxu0 0
      %930 = vmatprep.subr.bf16.mxu0 0
      %931 = vmatpush1.bf16.msra.mxu0 0
      %932 = vmatprep.subr.bf16.mxu0 0
      %933 = vmatpush1.bf16.msra.mxu0 0
      %934 = vmatprep.subr.bf16.mxu0 0
      %935 = vmatpush1.bf16.msra.mxu0 0
      %936 = vmatprep.subr.bf16.mxu0 0
      %937 = vmatpush1.bf16.msra.mxu0 0
      %938 = vmatprep.subr.bf16.mxu0 0
      %939 = vmatpush1.bf16.msra.mxu0 0
      %940 = vmatprep.subr.bf16.mxu0 0
      %941 = vmatpush1.bf16.msra.mxu0 0
      %942 = vmatprep.subr.bf16.mxu0 0
      %943 = vmatpush1.bf16.msra.mxu0 0
      %944 = vmatprep.subr.bf16.mxu0 0
      %945 = vmatpush1.bf16.msra.mxu0 0
      %946 = vmatprep.mubr.bf16.mxu0 0
      %947 = vmatmul.mubr.bf16.gmra.mrb[0].mxu0 %v912
      %v948 = vpop.f32.mrb[0].mxu0
      %v949 = vadd.f32 0.0, %v948
      %v950 = vpop.f32.mrb[0].mxu0
      %v951 = vadd.f32 0.0, %v950
      %v952 = vpop.f32.mrb[0].mxu0
      %v953 = vpop.f32.mrb[0].mxu0
      %954 = vdwg.mxu0
      %955 = vrot.lane.b32.xlu0 %v796, 122
      %v956 = vpop.permute.xlu0 %955
      %v958 = vsel %vm810, %v956, 0
      %960 = vmatprep.subr.bf16.mxu0 %v819
      %961 = vmatpush1.bf16.msra.mxu0 %v816
      %962 = vmatprep.subr.bf16.mxu0 0
      %963 = vmatpush1.bf16.msra.mxu0 0
      %964 = vmatprep.subr.bf16.mxu0 0
      %965 = vmatpush1.bf16.msra.mxu0 0
      %966 = vmatprep.subr.bf16.mxu0 0
      %967 = vmatpush1.bf16.msra.mxu0 0
      %968 = vmatprep.subr.bf16.mxu0 0
      %969 = vmatpush1.bf16.msra.mxu0 0
      %970 = vmatprep.subr.bf16.mxu0 0
      %971 = vmatpush1.bf16.msra.mxu0 0
      %972 = vmatprep.subr.bf16.mxu0 0
      %973 = vmatpush1.bf16.msra.mxu0 0
      %974 = vmatprep.subr.bf16.mxu0 0
      %975 = vmatpush1.bf16.msra.mxu0 0
      %976 = vmatprep.subr.bf16.mxu0 0
      %977 = vmatpush1.bf16.msra.mxu0 0
      %978 = vmatprep.subr.bf16.mxu0 0
      %979 = vmatpush1.bf16.msra.mxu0 0
      %980 = vmatprep.subr.bf16.mxu0 0
      %981 = vmatpush1.bf16.msra.mxu0 0
      %982 = vmatprep.subr.bf16.mxu0 0
      %983 = vmatpush1.bf16.msra.mxu0 0
      %984 = vmatprep.subr.bf16.mxu0 0
      %985 = vmatpush1.bf16.msra.mxu0 0
      %986 = vmatprep.subr.bf16.mxu0 0
      %987 = vmatpush1.bf16.msra.mxu0 0
      %988 = vmatprep.subr.bf16.mxu0 0
      %989 = vmatpush1.bf16.msra.mxu0 0
      %990 = vmatprep.subr.bf16.mxu0 0
      %991 = vmatpush1.bf16.msra.mxu0 0
      %992 = vmatprep.mubr.bf16.mxu0 0
      %993 = vmatmul.mubr.bf16.gmra.mrb[0].mxu0 %v958
      %v994 = vpop.f32.mrb[0].mxu0
      %v995 = vadd.f32 0.0, %v994
      %v996 = vpop.f32.mrb[0].mxu0
      %v997 = vadd.f32 0.0, %v996
      %v998 = vpop.f32.mrb[0].mxu0
      %v999 = vpop.f32.mrb[0].mxu0
      %1000 = vdwg.mxu0
      %v1003 = vrot.slane %v903, 7
      %v1004 = vrot.slane %v905, 7
      %v1009 = vrot.slane %v949, 6
      %v1010 = vrot.slane %v951, 6
      %v1015 = vrot.slane %v995, 5
      %v1016 = vrot.slane %v997, 5
      %v1019 = vsel %vm814, %v856, %v1003
      %v1020 = vsel %vm814, %v858, %v1004
      %vm1021 = vcmask 1041408
      %v1022 = vsel %vm1021, %v1019, %v1009
      %v1023 = vsel %vm1021, %v1020, %v1010
      %vm1024 = vcmask 1042432
      %v1025 = vsel %vm1024, %v1022, %v1015
      %v1026 = vsel %vm1024, %v1023, %v1016
      %v1029 = vcombine.low %v1025, %v1026
      %1031 = vst [vmem:[%s555] sm:$0xff] %v1029
      %v1032 = vld [vmem:[%s545] sm:$0x1]
      %v1033 = vld [vmem:[%s9] sm:$0xf]
      %v1034 = vld [vmem:[%s9 + $0x4] sm:$0xf]
      %v1035 = vpack.c.bf16 %v1032, %v1032
      %v1036 = vld [vmem:[%s10] sm:$0x1]
      %v1039 = vunpack.c.l.b16 %v1033
      %v1040 = vunpack.c.l.b16 %v1034
      %v1041 = vpack.c.b16 %v1040, %v1039
      %vm1043 = vcmask 130048
      %v1045 = vsel %vm1043, %v1035, 0
      %1047 = vmatprep.subr.bf16.mxu0 0
      %1048 = vmatpush1.bf16.msra.mxu0 %v1041
      %1049 = vmatprep.subr.bf16.mxu0 0
      %1050 = vmatpush1.bf16.msra.mxu0 0
      %1051 = vmatprep.subr.bf16.mxu0 0
      %1052 = vmatpush1.bf16.msra.mxu0 0
      %1053 = vmatprep.subr.bf16.mxu0 0
      %1054 = vmatpush1.bf16.msra.mxu0 0
      %1055 = vmatprep.subr.bf16.mxu0 0
      %1056 = vmatpush1.bf16.msra.mxu0 0
      %1057 = vmatprep.subr.bf16.mxu0 0
      %1058 = vmatpush1.bf16.msra.mxu0 0
      %1059 = vmatprep.subr.bf16.mxu0 0
      %1060 = vmatpush1.bf16.msra.mxu0 0
      %1061 = vmatprep.subr.bf16.mxu0 0
      %1062 = vmatpush1.bf16.msra.mxu0 0
      %1063 = vmatprep.subr.bf16.mxu0 0
      %1064 = vmatpush1.bf16.msra.mxu0 0
      %1065 = vmatprep.subr.bf16.mxu0 0
      %1066 = vmatpush1.bf16.msra.mxu0 0
      %1067 = vmatprep.subr.bf16.mxu0 0
      %1068 = vmatpush1.bf16.msra.mxu0 0
      %1069 = vmatprep.subr.bf16.mxu0 0
      %1070 = vmatpush1.bf16.msra.mxu0 0
      %1071 = vmatprep.subr.bf16.mxu0 0
      %1072 = vmatpush1.bf16.msra.mxu0 0
      %1073 = vmatprep.subr.bf16.mxu0 0
      %1074 = vmatpush1.bf16.msra.mxu0 0
      %1075 = vmatprep.subr.bf16.mxu0 0
      %1076 = vmatpush1.bf16.msra.mxu0 0
      %1077 = vmatprep.subr.bf16.mxu0 0
      %1078 = vmatpush1.bf16.msra.mxu0 0
      %1079 = vmatprep.mubr.bf16.mxu0 0
      %1080 = vmatmul.mubr.bf16.gmra.mrb[0].mxu0 %v1045
      %v1081 = vpop.f32.mrb[0].mxu0
      %v1082 = vadd.f32 %v1036, %v1081
      %v1083 = vpop.f32.mrb[0].mxu0
      %v1084 = vpop.f32.mrb[0].mxu0
      %v1085 = vpop.f32.mrb[0].mxu0
      %1086 = vdwg.mxu0
      %v1087 = vmax.f32 %v1082, 0.0
      %v1088 = vld [vmem:[%s11] sm:$0xf]
      %v1089 = vld [vmem:[%s11 + $0x4] sm:$0xf]
      %v1090 = vpack.c.bf16 %v1087, %v1087
      %v1091 = vld [vmem:[%s12] sm:$0x1]
      %v1094 = vunpack.c.l.b16 %v1088
      %v1095 = vunpack.c.l.b16 %v1089
      %v1096 = vpack.c.b16 %v1095, %v1094
      %v1099 = vsel %vm1043, %v1090, 0
      %1101 = vmatprep.subr.bf16.mxu0 0
      %1102 = vmatpush1.bf16.msra.mxu0 %v1096
      %1103 = vmatprep.subr.bf16.mxu0 0
      %1104 = vmatpush1.bf16.msra.mxu0 0
      %1105 = vmatprep.subr.bf16.mxu0 0
      %1106 = vmatpush1.bf16.msra.mxu0 0
      %1107 = vmatprep.subr.bf16.mxu0 0
      %1108 = vmatpush1.bf16.msra.mxu0 0
      %1109 = vmatprep.subr.bf16.mxu0 0
      %1110 = vmatpush1.bf16.msra.mxu0 0
      %1111 = vmatprep.subr.bf16.mxu0 0
      %1112 = vmatpush1.bf16.msra.mxu0 0
      %1113 = vmatprep.subr.bf16.mxu0 0
      %1114 = vmatpush1.bf16.msra.mxu0 0
      %1115 = vmatprep.subr.bf16.mxu0 0
      %1116 = vmatpush1.bf16.msra.mxu0 0
      %1117 = vmatprep.subr.bf16.mxu0 0
      %1118 = vmatpush1.bf16.msra.mxu0 0
      %1119 = vmatprep.subr.bf16.mxu0 0
      %1120 = vmatpush1.bf16.msra.mxu0 0
      %1121 = vmatprep.subr.bf16.mxu0 0
      %1122 = vmatpush1.bf16.msra.mxu0 0
      %1123 = vmatprep.subr.bf16.mxu0 0
      %1124 = vmatpush1.bf16.msra.mxu0 0
      %1125 = vmatprep.subr.bf16.mxu0 0
      %1126 = vmatpush1.bf16.msra.mxu0 0
      %1127 = vmatprep.subr.bf16.mxu0 0
      %1128 = vmatpush1.bf16.msra.mxu0 0
      %1129 = vmatprep.subr.bf16.mxu0 0
      %1130 = vmatpush1.bf16.msra.mxu0 0
      %1131 = vmatprep.subr.bf16.mxu0 0
      %1132 = vmatpush1.bf16.msra.mxu0 0
      %1133 = vmatprep.mubr.bf16.mxu0 0
      %1134 = vmatmul.mubr.bf16.gmra.mrb[0].mxu0 %v1099
      %v1135 = vpop.f32.mrb[0].mxu0
      %v1136 = vadd.f32 %v1091, %v1135
      %v1137 = vpop.f32.mrb[0].mxu0
      %v1138 = vpop.f32.mrb[0].mxu0
      %v1139 = vpop.f32.mrb[0].mxu0
      %1140 = vdwg.mxu0
      %v1141 = vmax.f32 %v1136, 0.0
      %v1142 = vld [vmem:[%s13] sm:$0xf]
      %v1143 = vld [vmem:[%s13 + $0x4] sm:$0xf]
      %v1144 = vpack.c.bf16 %v1141, %v1141
      %v1145 = vld [vmem:[%s14] sm:$0x1]
      %v1148 = vunpack.c.l.b16 %v1142
      %v1149 = vunpack.c.l.b16 %v1143
      %v1150 = vpack.c.b16 %v1149, %v1148
      %v1153 = vsel %vm1043, %v1144, 0
      %1155 = vmatprep.subr.bf16.mxu0 0
      %1156 = vmatpush1.bf16.msra.mxu0 %v1150
      %1157 = vmatprep.subr.bf16.mxu0 0
      %1158 = vmatpush1.bf16.msra.mxu0 0
      %1159 = vmatprep.subr.bf16.mxu0 0
      %1160 = vmatpush1.bf16.msra.mxu0 0
      %1161 = vmatprep.subr.bf16.mxu0 0
      %1162 = vmatpush1.bf16.msra.mxu0 0
      %1163 = vmatprep.subr.bf16.mxu0 0
      %1164 = vmatpush1.bf16.msra.mxu0 0
      %1165 = vmatprep.subr.bf16.mxu0 0
      %1166 = vmatpush1.bf16.msra.mxu0 0
      %1167 = vmatprep.subr.bf16.mxu0 0
      %1168 = vmatpush1.bf16.msra.mxu0 0
      %1169 = vmatprep.subr.bf16.mxu0 0
      %1170 = vmatpush1.bf16.msra.mxu0 0
      %1171 = vmatprep.subr.bf16.mxu0 0
      %1172 = vmatpush1.bf16.msra.mxu0 0
      %1173 = vmatprep.subr.bf16.mxu0 0
      %1174 = vmatpush1.bf16.msra.mxu0 0
      %1175 = vmatprep.subr.bf16.mxu0 0
      %1176 = vmatpush1.bf16.msra.mxu0 0
      %1177 = vmatprep.subr.bf16.mxu0 0
      %1178 = vmatpush1.bf16.msra.mxu0 0
      %1179 = vmatprep.subr.bf16.mxu0 0
      %1180 = vmatpush1.bf16.msra.mxu0 0
      %1181 = vmatprep.subr.bf16.mxu0 0
      %1182 = vmatpush1.bf16.msra.mxu0 0
      %1183 = vmatprep.subr.bf16.mxu0 0
      %1184 = vmatpush1.bf16.msra.mxu0 0
      %1185 = vmatprep.subr.bf16.mxu0 0
      %1186 = vmatpush1.bf16.msra.mxu0 0
      %1187 = vmatprep.mubr.bf16.mxu0 0
      %1188 = vmatmul.mubr.bf16.gmra.mrb[0].mxu0 %v1153
      %v1189 = vpop.f32.mrb[0].mxu0
      %v1190 = vadd.f32 %v1145, %v1189
      %v1191 = vpop.f32.mrb[0].mxu0
      %v1192 = vpop.f32.mrb[0].mxu0
      %v1193 = vpop.f32.mrb[0].mxu0
      %1194 = vdwg.mxu0
      %vm1195 = vcmask 24576
      %1196 = vst.msk [vmem:[%s558] sm:$0x1] %vm1195, %v1190
      %p1197 = scmp.lt.s32.totalorder %s28, 1
      %s1198 = scalar_select %p1197, %s28, 1
      %s1199 = smul.addr %s1198, 2
      %s1200 = smul.addr %s1199, 4
      %s1201 = scalar_lea.vmem %s15, %s1200
      %p1202 = scmp.lt.s32.totalorder %s28, 1
      %s1203 = scalar_select %p1202, %s28, 1
      %s1204 = scalar_lea.vmem %s16, %s1203
      // Predicated region
      $region81: #{efficient_sam_forward.12} parent=79 // pred_check
        %p1205 = pneg %p376
      $region82: #{efficient_sam_forward.12} parent=79 // pred_check_branch
        %1207 = sbr.rel (%p1205) target = $region84
      $region83: #{efficient_sam_forward.12} parent=79 // pred_region
        _
      $region84: #{efficient_sam_forward.12} parent=79 // pred_fallthru
        _
      // Predicated region
      $region85: #{efficient_sam_forward.12} parent=79 // pred_check
        %p1208 = pneg %p402
      $region86: #{efficient_sam_forward.12} parent=79 // pred_check_branch
        %1210 = sbr.rel (%p1208) target = $region88
      $region87: #{efficient_sam_forward.12} parent=79 // pred_region
        _
      $region88: #{efficient_sam_forward.12} parent=79 // pred_fallthru
        _
    $region80: #{efficient_sam_forward.12} parent=5 // pred_fallthru
      _
    %p1211 = scmp.le.s32.totalorder 2, %s23
    // Predicated region
    $region89: #{efficient_sam_forward.12} parent=5 // pred_check
      %p1212 = pneg %p1211
    $region90: #{efficient_sam_forward.12} parent=5 // pred_check_branch
      %1214 = sbr.rel (%p1212) target = $region92
    $region91: #{efficient_sam_forward.12} parent=5 // pred_region
      %s1215 = ssub.s32 %s23, 2
      // Predicated region
      $region93: #{efficient_sam_forward.12} parent=91 // pred_check
        %p1216 = pneg %p382
      $region94: #{efficient_sam_forward.12} parent=91 // pred_check_branch
        %1218 = sbr.rel (%p1216) target = $region96
      $region95: #{efficient_sam_forward.12} parent=91 // pred_region
        %p1219 = scmp.lt.s32.totalorder %s29, 1
        %s1220 = scalar_select %p1219, %s29, 1
        %s1221 = smul.addr %s1220, 2
        %s1222 = smul.addr %s1221, 4
        %s1223 = scalar_lea.vmem %s15, %s1222
      $region96: #{efficient_sam_forward.12} parent=91 // pred_fallthru
        _
      // Predicated region
      $region97: #{efficient_sam_forward.12} parent=91 // pred_check
        %p1224 = pneg %p408
      $region98: #{efficient_sam_forward.12} parent=91 // pred_check_branch
        %1226 = sbr.rel (%p1224) target = $region100
      $region99: #{efficient_sam_forward.12} parent=91 // pred_region
        %p1227 = scmp.lt.s32.totalorder %s29, 1
        %s1228 = scalar_select %p1227, %s29, 1
        %s1229 = scalar_lea.vmem %s16, %s1228
      $region100: #{efficient_sam_forward.12} parent=91 // pred_fallthru
        _
    $region92: #{efficient_sam_forward.12} parent=5 // pred_fallthru
      _
  $region6: #{efficient_sam_forward.12} parent=0 // loop_footer
    %s27 = sadd.s32 1, %s23
  $region7: #{efficient_sam_forward.12} parent=0 // loop_footer_branch
    %22 = sbr.rel target = $region3
  $region8: #{efficient_sam_forward.12} parent=0 // loop_exit
    _

</llo_original>
